<compile_context>
chip_gen: v7x
topology: tpu7x:2x2x1
jax: 0.10.0
libtpu: 0.0.40
codegen_flags: <defaults>
</compile_context>

<pallas_src>
import math

import numpy as np
import jax
import jax.numpy as jnp
from jax import lax
from jax.experimental import pallas as pl
from jax.experimental.pallas import tpu as pltpu

SSIM_WINDOW_SIZE = 5
MSSSIM_LEVELS = 5
_MSSSIM_WEIGHTS = (0.0448, 0.2856, 0.3001, 0.2363, 0.1333)
_SSIM_C1 = 0.01 ** 2
_SSIM_C2 = 0.03 ** 2
_COS_EPS = 1e-8
_OUT_LANES = 128  # lane-dense packing width for the per-image scalar results


# -----------------------------------------------------------------------------
# Trace-time (numpy) construction of the constant matrices
# -----------------------------------------------------------------------------
def _gaussian_1d(window_size: int, sigma: float) -> np.ndarray:
    g = np.array(
        [math.exp(-((x - window_size // 2) ** 2) / (2.0 * sigma ** 2))
         for x in range(window_size)],
        dtype=np.float64,
    )
    return (g / g.sum()).astype(np.float32)


def _band_matrix(n: int, g: np.ndarray) -> np.ndarray:
    """B[i, k] = g[k - i + pad]; B @ X == zero-padded 1-D gaussian filter along
    rows, and (since g is symmetric) X @ B filters along columns."""
    ws = g.shape[0]
    pad = ws // 2
    m = np.zeros((n, n), np.float32)
    for i in range(n):
        for dy in range(ws):
            k = i + dy - pad
            if 0 <= k < n:
                m[i, k] = g[dy]
    return m


def _pool_matrix(n: int) -> np.ndarray:
    """P: (n//2, n) with P[i, 2i] = P[i, 2i+1] = 0.5; P @ X averages row pairs,
    X @ P.T averages column pairs  (== F.avg_pool2d(x, (2, 2)))."""
    m = np.zeros((n // 2, n), np.float32)
    for i in range(n // 2):
        m[i, 2 * i] = 0.5
        m[i, 2 * i + 1] = 0.5
    return m


# -----------------------------------------------------------------------------
# The fused kernel
# -----------------------------------------------------------------------------
def _make_deeplpf_kernel(H: int, W: int, level_hw):
    levels = len(level_hw)
    weights = _MSSSIM_WEIGHTS

    def sum2d(x):
        # two chained single-axis reductions -> (1, 1)
        return jnp.sum(jnp.sum(x, axis=1, keepdims=True), axis=0, keepdims=True)

    def srgb_to_linear(c):
        hi = jnp.exp(2.4 * jnp.log((jnp.maximum(c, 1e-4) + 0.055) / 1.055))
        return jnp.where(c <= 0.04045, c / 12.92, hi)

    def rgb_to_lab(r, g, b):
        rl = srgb_to_linear(r)
        gl = srgb_to_linear(g)
        bl = srgb_to_linear(b)

        x = 0.412453 * rl + 0.357580 * gl + 0.180423 * bl
        y = 0.212671 * rl + 0.715160 * gl + 0.072169 * bl
        z = 0.019334 * rl + 0.119193 * gl + 0.950227 * bl
        x = x * (1.0 / 0.950456)
        z = z * (1.0 / 1.088754)
        eps = 6.0 / 29.0

        def f(t):
            cube_root = jnp.exp(jnp.log(jnp.maximum(t, 1e-4)) * (1.0 / 3.0))
            return jnp.where(t <= eps ** 3, t / (3.0 * eps ** 2) + 4.0 / 29.0, cube_root)

        fx, fy, fz = f(x), f(y), f(z)
        L = (116.0 * fy - 16.0) / 100.0
        A = (500.0 * (fx - fy) / 110.0 + 1.0) / 2.0
        Bc = (200.0 * (fy - fz) / 110.0 + 1.0) / 2.0
        L = jnp.where(jnp.isnan(L), 0.0, L)
        A = jnp.where(jnp.isnan(A), 0.0, A)
        Bc = jnp.where(jnp.isnan(Bc), 0.0, Bc)
        return L, A, Bc

    def safe_pow(x, p):
        # x is a (1, 1) positive value in normal operation; the clamp only
        # protects the log.
        return jnp.exp(p * jnp.log(jnp.maximum(x, 1e-12)))

    def kernel(pred_ref, gt_ref, *rest):
        out_ref = rest[-1]
        consts = rest[:-1]
        band_h = consts[0:levels]
        band_w = consts[levels:2 * levels]
        pool_h = consts[2 * levels:3 * levels - 1]
        pool_wt = consts[3 * levels - 1:4 * levels - 2]

        pr, pg, pb = pred_ref[0, 0], pred_ref[0, 1], pred_ref[0, 2]
        tr, tg, tb = gt_ref[0, 0], gt_ref[0, 1], gt_ref[0, 2]

        # ---- RGB -> LAB for both images (stays on-chip) ----
        pL, pA, pB = rgb_to_lab(pr, pg, pb)
        tL, tA, tB = rgb_to_lab(tr, tg, tb)

        # ---- per-image L1 mean over the LAB triplet (== F.l1_loss) ----
        l1_sum = (sum2d(jnp.abs(pL - tL)) + sum2d(jnp.abs(pA - tA))
                  + sum2d(jnp.abs(pB - tB)))
        l1_mean = l1_sum * (1.0 / float(3 * H * W))

        # ---- per-image mean cosine similarity over RGB channels ----
        dot12 = pr * tr + pg * tg + pb * tb
        n1 = jnp.sqrt(pr * pr + pg * pg + pb * pb)
        n2 = jnp.sqrt(tr * tr + tg * tg + tb * tb)
        cos = dot12 / (jnp.maximum(n1, _COS_EPS) * jnp.maximum(n2, _COS_EPS))
        cos_mean = sum2d(cos) * (1.0 / float(H * W))

        # ---- MS-SSIM pyramid on the L channel, all levels in VMEM ----
        a = pL
        b = tL
        msssim = None
        for lvl in range(levels):
            h, w = level_hw[lvl]
            Mh = band_h[lvl][...]
            Mw = band_w[lvl][...]

            def blur(x, Mh=Mh, Mw=Mw):
                # separable 5x5 gaussian "conv" (zero padding baked into the
                # band matrices) as two small MXU matmuls.
                y = jnp.dot(Mh, x, preferred_element_type=jnp.float32)
                return jnp.dot(y, Mw, preferred_element_type=jnp.float32)

            mu1 = blur(a)
            mu2 = blur(b)
            s11 = blur(a * a)
            s22 = blur(b * b)
            s12 = blur(a * b)

            mu1_sq = mu1 * mu1
            mu2_sq = mu2 * mu2
            mu1_mu2 = mu1 * mu2
            sigma1_sq = s11 - mu1_sq
            sigma2_sq = s22 - mu2_sq
            sigma12 = s12 - mu1_mu2

            v1 = 2.0 * sigma12 + _SSIM_C2
            v2 = sigma1_sq + sigma2_sq + _SSIM_C2
            ssim_map = ((2.0 * mu1_mu2 + _SSIM_C1) * v1) / ((mu1_sq + mu2_sq + _SSIM_C1) * v2)

            inv_n = 1.0 / float(h * w)
            mssim_l = (sum2d(ssim_map) * inv_n + 1.0) * 0.5
            mcs_l = (sum2d(v1 / v2) * inv_n + 1.0) * 0.5

            term = safe_pow(mcs_l if lvl < levels - 1 else mssim_l, weights[lvl])
            msssim = term if msssim is None else msssim * term

            if lvl < levels - 1:
                P = pool_h[lvl][...]
                Q = pool_wt[lvl][...]

                def pool(x, P=P, Q=Q):
                    # 2x2 average pool as two tiny matmuls: P @ X @ P^T
                    y = jnp.dot(P, x, preferred_element_type=jnp.float32)
                    return jnp.dot(y, Q, preferred_element_type=jnp.float32)

                a = pool(a)
                b = pool(b)

        # ---- pack the per-image scalars into one lane-dense row ----
        lane = lax.broadcasted_iota(jnp.int32, (1, _OUT_LANES), 1)
        row = (
            jnp.where(lane == 0, jnp.broadcast_to(l1_mean, (1, _OUT_LANES)), 0.0)
            + jnp.where(lane == 1, jnp.broadcast_to(cos_mean, (1, _OUT_LANES)), 0.0)
            + jnp.where(lane == 2, jnp.broadcast_to(msssim, (1, _OUT_LANES)), 0.0)
        )
        out_ref[0] = row

    return kernel


def _fused_loss_terms(pred, gt):
    """One pallas_call over the batch; returns (B, 1, 128) with per-image
    [l1_mean, cos_mean, msssim] in lanes 0..2."""
    B, C, H, W = pred.shape
    assert C == 3 and gt.shape == pred.shape
    assert H >= 2 ** (MSSSIM_LEVELS - 1) and W >= 2 ** (MSSSIM_LEVELS - 1)

    g = _gaussian_1d(SSIM_WINDOW_SIZE, 1.5)

    level_hw = []
    band_h, band_w, pool_h, pool_wt = [], [], [], []
    h, w = H, W
    for lvl in range(MSSSIM_LEVELS):
        level_hw.append((h, w))
        band_h.append(_band_matrix(h, g))
        band_w.append(_band_matrix(w, g))
        if lvl < MSSSIM_LEVELS - 1:
            pool_h.append(_pool_matrix(h))
            pool_wt.append(np.ascontiguousarray(_pool_matrix(w).T))
            h //= 2
            w //= 2

    const_arrays = band_h + band_w + pool_h + pool_wt
    const_specs = [pl.BlockSpec(m.shape, lambda b: (0, 0)) for m in const_arrays]

    kernel = _make_deeplpf_kernel(H, W, tuple(level_hw))

    out = pl.pallas_call(
        kernel,
        grid=(B,),
        in_specs=[
            pl.BlockSpec((1, 3, H, W), lambda b: (b, 0, 0, 0)),
            pl.BlockSpec((1, 3, H, W), lambda b: (b, 0, 0, 0)),
        ] + const_specs,
        out_specs=pl.BlockSpec((1, 1, _OUT_LANES), lambda b: (b, 0, 0)),
        out_shape=jax.ShapeDtypeStruct((B, 1, _OUT_LANES), jnp.float32),
        compiler_params=pltpu.CompilerParams(dimension_semantics=("parallel",)),
    )(pred, gt, *[jnp.asarray(m) for m in const_arrays])
    return out


# -----------------------------------------------------------------------------
# Forward (mirrors DeepLPFLoss.forward with output_dict={OUTPUT, INPUT})
# -----------------------------------------------------------------------------
def deeplpf_loss(output_img, gt, input_img, cos_weight=0.1, ltv_weight=None):
    terms = _fused_loss_terms(output_img, gt)

    l1_loss_value = jnp.mean(terms[:, 0, 0])          # mean of per-image L1 means
    cos_mean = jnp.mean(terms[:, 0, 1])               # mean cosine sim over B*H*W
    ssim_loss_value = jnp.mean(1.0 - terms[:, 0, 2])  # mean of per-image (1 - MS-SSIM)

    loss = l1_loss_value + 0.001 * ssim_loss_value

    # TODO(synk): LTVloss is an external class not defined in the reference
    # module; the reference forward only adds it when its weight is truthy, so
    # it stays disabled here (ltv_weight=None) rather than faking its semantics.
    if ltv_weight:
        raise NotImplementedError("LTVloss not available in this module")

    if cos_weight:
        loss = loss + cos_mean * cos_weight

    # PyTorch reference returns a (1, 1) tensor.
    return jnp.reshape(loss, (1, 1))


if __name__ == "__main__":
    key = jax.random.PRNGKey(0)
    k1, k2, k3 = jax.random.split(key, 3)
    # H, W must survive the 4 MS-SSIM 2x2-pooling steps -> 64.
    B, C, H, W = 2, 3, 64, 64
    predicted = jax.random.uniform(k1, (B, C, H, W), dtype=jnp.float32)
    gt_batch = jax.random.uniform(k2, (B, C, H, W), dtype=jnp.float32)
    input_batch = jax.random.uniform(k3, (B, C, H, W), dtype=jnp.float32)

    loss_fn = jax.jit(lambda o, g, i: deeplpf_loss(o, g, i, cos_weight=0.1, ltv_weight=None))
    loss = loss_fn(predicted, gt_batch, input_batch)
    jax.block_until_ready(loss)
    assert loss.shape == (1, 1) and bool(jnp.isfinite(loss).all())
    print("KERNEL_OK")
</pallas_src>

<mosaic_0001>
module attributes {stable_mosaic.version = 11 : i64} {
  func.func @kernel(%arg0: i32, %arg1: memref<1x3x64x64xf32, #tpu.memory_space<vmem>>, %arg2: memref<1x3x64x64xf32, #tpu.memory_space<vmem>>, %arg3: memref<64x64xf32, #tpu.memory_space<vmem>>, %arg4: memref<32x32xf32, #tpu.memory_space<vmem>>, %arg5: memref<16x16xf32, #tpu.memory_space<vmem>>, %arg6: memref<8x8xf32, #tpu.memory_space<vmem>>, %arg7: memref<4x4xf32, #tpu.memory_space<vmem>>, %arg8: memref<64x64xf32, #tpu.memory_space<vmem>>, %arg9: memref<32x32xf32, #tpu.memory_space<vmem>>, %arg10: memref<16x16xf32, #tpu.memory_space<vmem>>, %arg11: memref<8x8xf32, #tpu.memory_space<vmem>>, %arg12: memref<4x4xf32, #tpu.memory_space<vmem>>, %arg13: memref<32x64xf32, #tpu.memory_space<vmem>>, %arg14: memref<16x32xf32, #tpu.memory_space<vmem>>, %arg15: memref<8x16xf32, #tpu.memory_space<vmem>>, %arg16: memref<4x8xf32, #tpu.memory_space<vmem>>, %arg17: memref<64x32xf32, #tpu.memory_space<vmem>>, %arg18: memref<32x16xf32, #tpu.memory_space<vmem>>, %arg19: memref<16x8xf32, #tpu.memory_space<vmem>>, %arg20: memref<8x4xf32, #tpu.memory_space<vmem>>, %arg21: memref<1x1x128xf32, #tpu.memory_space<vmem>>) attributes {dimension_semantics = [#tpu.dimension_semantics<parallel>], iteration_bounds = array<i64: 2>, scalar_prefetch = 0 : i64, scratch_operands = 0 : i64, tpu.core_type = #tpu.core_type<tc>, window_params = [{transform_indices = @transform_0, window_bounds = array<i64: 1, 3, 64, 64>}, {transform_indices = @transform_1, window_bounds = array<i64: 1, 3, 64, 64>}, {pipeline_mode = #tpu.pipeline_mode<synchronous>, transform_indices = @transform_2, window_bounds = array<i64: 64, 64>}, {pipeline_mode = #tpu.pipeline_mode<synchronous>, transform_indices = @transform_3, window_bounds = array<i64: 32, 32>}, {pipeline_mode = #tpu.pipeline_mode<synchronous>, transform_indices = @transform_4, window_bounds = array<i64: 16, 16>}, {pipeline_mode = #tpu.pipeline_mode<synchronous>, transform_indices = @transform_5, window_bounds = array<i64: 8, 8>}, {pipeline_mode = #tpu.pipeline_mode<synchronous>, transform_indices = @transform_6, window_bounds = array<i64: 4, 4>}, {pipeline_mode = #tpu.pipeline_mode<synchronous>, transform_indices = @transform_7, window_bounds = array<i64: 64, 64>}, {pipeline_mode = #tpu.pipeline_mode<synchronous>, transform_indices = @transform_8, window_bounds = array<i64: 32, 32>}, {pipeline_mode = #tpu.pipeline_mode<synchronous>, transform_indices = @transform_9, window_bounds = array<i64: 16, 16>}, {pipeline_mode = #tpu.pipeline_mode<synchronous>, transform_indices = @transform_10, window_bounds = array<i64: 8, 8>}, {pipeline_mode = #tpu.pipeline_mode<synchronous>, transform_indices = @transform_11, window_bounds = array<i64: 4, 4>}, {pipeline_mode = #tpu.pipeline_mode<synchronous>, transform_indices = @transform_12, window_bounds = array<i64: 32, 64>}, {pipeline_mode = #tpu.pipeline_mode<synchronous>, transform_indices = @transform_13, window_bounds = array<i64: 16, 32>}, {pipeline_mode = #tpu.pipeline_mode<synchronous>, transform_indices = @transform_14, window_bounds = array<i64: 8, 16>}, {pipeline_mode = #tpu.pipeline_mode<synchronous>, transform_indices = @transform_15, window_bounds = array<i64: 4, 8>}, {pipeline_mode = #tpu.pipeline_mode<synchronous>, transform_indices = @transform_16, window_bounds = array<i64: 64, 32>}, {pipeline_mode = #tpu.pipeline_mode<synchronous>, transform_indices = @transform_17, window_bounds = array<i64: 32, 16>}, {pipeline_mode = #tpu.pipeline_mode<synchronous>, transform_indices = @transform_18, window_bounds = array<i64: 16, 8>}, {pipeline_mode = #tpu.pipeline_mode<synchronous>, transform_indices = @transform_19, window_bounds = array<i64: 8, 4>}, {transform_indices = @transform_20, window_bounds = array<i64: 1, 1, 128>}]} {
    %c0 = arith.constant 0 : index
    %c0_0 = arith.constant 0 : index
    %c0_1 = arith.constant 0 : index
    %c0_2 = arith.constant 0 : index
    %0 = vector.load %arg1[%c0, %c0_0, %c0_1, %c0_2] : memref<1x3x64x64xf32, #tpu.memory_space<vmem>>, vector<1x1x64x64xf32>
    %1 = vector.shape_cast %0 : vector<1x1x64x64xf32> to vector<64x64xf32>
    %c0_3 = arith.constant 0 : index
    %c1 = arith.constant 1 : index
    %c0_4 = arith.constant 0 : index
    %c0_5 = arith.constant 0 : index
    %2 = vector.load %arg1[%c0_3, %c1, %c0_4, %c0_5] : memref<1x3x64x64xf32, #tpu.memory_space<vmem>>, vector<1x1x64x64xf32>
    %3 = vector.shape_cast %2 : vector<1x1x64x64xf32> to vector<64x64xf32>
    %c0_6 = arith.constant 0 : index
    %c2 = arith.constant 2 : index
    %c0_7 = arith.constant 0 : index
    %c0_8 = arith.constant 0 : index
    %4 = vector.load %arg1[%c0_6, %c2, %c0_7, %c0_8] : memref<1x3x64x64xf32, #tpu.memory_space<vmem>>, vector<1x1x64x64xf32>
    %5 = vector.shape_cast %4 : vector<1x1x64x64xf32> to vector<64x64xf32>
    %c0_9 = arith.constant 0 : index
    %c0_10 = arith.constant 0 : index
    %c0_11 = arith.constant 0 : index
    %c0_12 = arith.constant 0 : index
    %6 = vector.load %arg2[%c0_9, %c0_10, %c0_11, %c0_12] : memref<1x3x64x64xf32, #tpu.memory_space<vmem>>, vector<1x1x64x64xf32>
    %7 = vector.shape_cast %6 : vector<1x1x64x64xf32> to vector<64x64xf32>
    %c0_13 = arith.constant 0 : index
    %c1_14 = arith.constant 1 : index
    %c0_15 = arith.constant 0 : index
    %c0_16 = arith.constant 0 : index
    %8 = vector.load %arg2[%c0_13, %c1_14, %c0_15, %c0_16] : memref<1x3x64x64xf32, #tpu.memory_space<vmem>>, vector<1x1x64x64xf32>
    %9 = vector.shape_cast %8 : vector<1x1x64x64xf32> to vector<64x64xf32>
    %c0_17 = arith.constant 0 : index
    %c2_18 = arith.constant 2 : index
    %c0_19 = arith.constant 0 : index
    %c0_20 = arith.constant 0 : index
    %10 = vector.load %arg2[%c0_17, %c2_18, %c0_19, %c0_20] : memref<1x3x64x64xf32, #tpu.memory_space<vmem>>, vector<1x1x64x64xf32>
    %11 = vector.shape_cast %10 : vector<1x1x64x64xf32> to vector<64x64xf32>
    %cst = arith.constant 9.99999974E-5 : f32
    %12 = vector.broadcast %cst : f32 to vector<64x64xf32>
    %13 = arith.maximumf %1, %12 : vector<64x64xf32>
    %cst_21 = arith.constant 5.500000e-02 : f32
    %14 = vector.broadcast %cst_21 : f32 to vector<64x64xf32>
    %15 = arith.addf %13, %14 : vector<64x64xf32>
    %cst_22 = arith.constant 1.055000e+00 : f32
    %16 = vector.broadcast %cst_22 : f32 to vector<64x64xf32>
    %17 = arith.divf %15, %16 : vector<64x64xf32>
    %18 = math.log %17 : vector<64x64xf32>
    %cst_23 = arith.constant 2.400000e+00 : f32
    %19 = vector.broadcast %cst_23 : f32 to vector<64x64xf32>
    %20 = arith.mulf %19, %18 : vector<64x64xf32>
    %21 = math.exp %20 : vector<64x64xf32>
    %cst_24 = arith.constant 4.045000e-02 : f32
    %22 = vector.broadcast %cst_24 : f32 to vector<64x64xf32>
    %23 = arith.cmpf ole, %1, %22 : vector<64x64xf32>
    %cst_25 = arith.constant 1.292000e+01 : f32
    %24 = vector.broadcast %cst_25 : f32 to vector<64x64xf32>
    %25 = arith.divf %1, %24 : vector<64x64xf32>
    %26 = arith.select %23, %25, %21 : vector<64x64xi1>, vector<64x64xf32>
    %cst_26 = arith.constant 9.99999974E-5 : f32
    %27 = vector.broadcast %cst_26 : f32 to vector<64x64xf32>
    %28 = arith.maximumf %3, %27 : vector<64x64xf32>
    %cst_27 = arith.constant 5.500000e-02 : f32
    %29 = vector.broadcast %cst_27 : f32 to vector<64x64xf32>
    %30 = arith.addf %28, %29 : vector<64x64xf32>
    %cst_28 = arith.constant 1.055000e+00 : f32
    %31 = vector.broadcast %cst_28 : f32 to vector<64x64xf32>
    %32 = arith.divf %30, %31 : vector<64x64xf32>
    %33 = math.log %32 : vector<64x64xf32>
    %cst_29 = arith.constant 2.400000e+00 : f32
    %34 = vector.broadcast %cst_29 : f32 to vector<64x64xf32>
    %35 = arith.mulf %34, %33 : vector<64x64xf32>
    %36 = math.exp %35 : vector<64x64xf32>
    %cst_30 = arith.constant 4.045000e-02 : f32
    %37 = vector.broadcast %cst_30 : f32 to vector<64x64xf32>
    %38 = arith.cmpf ole, %3, %37 : vector<64x64xf32>
    %cst_31 = arith.constant 1.292000e+01 : f32
    %39 = vector.broadcast %cst_31 : f32 to vector<64x64xf32>
    %40 = arith.divf %3, %39 : vector<64x64xf32>
    %41 = arith.select %38, %40, %36 : vector<64x64xi1>, vector<64x64xf32>
    %cst_32 = arith.constant 9.99999974E-5 : f32
    %42 = vector.broadcast %cst_32 : f32 to vector<64x64xf32>
    %43 = arith.maximumf %5, %42 : vector<64x64xf32>
    %cst_33 = arith.constant 5.500000e-02 : f32
    %44 = vector.broadcast %cst_33 : f32 to vector<64x64xf32>
    %45 = arith.addf %43, %44 : vector<64x64xf32>
    %cst_34 = arith.constant 1.055000e+00 : f32
    %46 = vector.broadcast %cst_34 : f32 to vector<64x64xf32>
    %47 = arith.divf %45, %46 : vector<64x64xf32>
    %48 = math.log %47 : vector<64x64xf32>
    %cst_35 = arith.constant 2.400000e+00 : f32
    %49 = vector.broadcast %cst_35 : f32 to vector<64x64xf32>
    %50 = arith.mulf %49, %48 : vector<64x64xf32>
    %51 = math.exp %50 : vector<64x64xf32>
    %cst_36 = arith.constant 4.045000e-02 : f32
    %52 = vector.broadcast %cst_36 : f32 to vector<64x64xf32>
    %53 = arith.cmpf ole, %5, %52 : vector<64x64xf32>
    %cst_37 = arith.constant 1.292000e+01 : f32
    %54 = vector.broadcast %cst_37 : f32 to vector<64x64xf32>
    %55 = arith.divf %5, %54 : vector<64x64xf32>
    %56 = arith.select %53, %55, %51 : vector<64x64xi1>, vector<64x64xf32>
    %cst_38 = arith.constant 4.124530e-01 : f32
    %57 = vector.broadcast %cst_38 : f32 to vector<64x64xf32>
    %58 = arith.mulf %57, %26 : vector<64x64xf32>
    %cst_39 = arith.constant 3.575800e-01 : f32
    %59 = vector.broadcast %cst_39 : f32 to vector<64x64xf32>
    %60 = arith.mulf %59, %41 : vector<64x64xf32>
    %61 = arith.addf %58, %60 : vector<64x64xf32>
    %cst_40 = arith.constant 1.804230e-01 : f32
    %62 = vector.broadcast %cst_40 : f32 to vector<64x64xf32>
    %63 = arith.mulf %62, %56 : vector<64x64xf32>
    %64 = arith.addf %61, %63 : vector<64x64xf32>
    %cst_41 = arith.constant 2.126710e-01 : f32
    %65 = vector.broadcast %cst_41 : f32 to vector<64x64xf32>
    %66 = arith.mulf %65, %26 : vector<64x64xf32>
    %cst_42 = arith.constant 7.151600e-01 : f32
    %67 = vector.broadcast %cst_42 : f32 to vector<64x64xf32>
    %68 = arith.mulf %67, %41 : vector<64x64xf32>
    %69 = arith.addf %66, %68 : vector<64x64xf32>
    %cst_43 = arith.constant 7.216900e-02 : f32
    %70 = vector.broadcast %cst_43 : f32 to vector<64x64xf32>
    %71 = arith.mulf %70, %56 : vector<64x64xf32>
    %72 = arith.addf %69, %71 : vector<64x64xf32>
    %cst_44 = arith.constant 1.933400e-02 : f32
    %73 = vector.broadcast %cst_44 : f32 to vector<64x64xf32>
    %74 = arith.mulf %73, %26 : vector<64x64xf32>
    %cst_45 = arith.constant 1.191930e-01 : f32
    %75 = vector.broadcast %cst_45 : f32 to vector<64x64xf32>
    %76 = arith.mulf %75, %41 : vector<64x64xf32>
    %77 = arith.addf %74, %76 : vector<64x64xf32>
    %cst_46 = arith.constant 9.502270e-01 : f32
    %78 = vector.broadcast %cst_46 : f32 to vector<64x64xf32>
    %79 = arith.mulf %78, %56 : vector<64x64xf32>
    %80 = arith.addf %77, %79 : vector<64x64xf32>
    %cst_47 = arith.constant 1.05212653 : f32
    %81 = vector.broadcast %cst_47 : f32 to vector<64x64xf32>
    %82 = arith.mulf %64, %81 : vector<64x64xf32>
    %cst_48 = arith.constant 0.918481112 : f32
    %83 = vector.broadcast %cst_48 : f32 to vector<64x64xf32>
    %84 = arith.mulf %80, %83 : vector<64x64xf32>
    %cst_49 = arith.constant 9.99999974E-5 : f32
    %85 = vector.broadcast %cst_49 : f32 to vector<64x64xf32>
    %86 = arith.maximumf %82, %85 : vector<64x64xf32>
    %87 = math.log %86 : vector<64x64xf32>
    %cst_50 = arith.constant 0.333333343 : f32
    %88 = vector.broadcast %cst_50 : f32 to vector<64x64xf32>
    %89 = arith.mulf %87, %88 : vector<64x64xf32>
    %90 = math.exp %89 : vector<64x64xf32>
    %cst_51 = arith.constant 0.00885645207 : f32
    %91 = vector.broadcast %cst_51 : f32 to vector<64x64xf32>
    %92 = arith.cmpf ole, %82, %91 : vector<64x64xf32>
    %cst_52 = arith.constant 0.12841855 : f32
    %93 = vector.broadcast %cst_52 : f32 to vector<64x64xf32>
    %94 = arith.divf %82, %93 : vector<64x64xf32>
    %cst_53 = arith.constant 0.137931034 : f32
    %95 = vector.broadcast %cst_53 : f32 to vector<64x64xf32>
    %96 = arith.addf %94, %95 : vector<64x64xf32>
    %97 = arith.select %92, %96, %90 : vector<64x64xi1>, vector<64x64xf32>
    %cst_54 = arith.constant 9.99999974E-5 : f32
    %98 = vector.broadcast %cst_54 : f32 to vector<64x64xf32>
    %99 = arith.maximumf %72, %98 : vector<64x64xf32>
    %100 = math.log %99 : vector<64x64xf32>
    %cst_55 = arith.constant 0.333333343 : f32
    %101 = vector.broadcast %cst_55 : f32 to vector<64x64xf32>
    %102 = arith.mulf %100, %101 : vector<64x64xf32>
    %103 = math.exp %102 : vector<64x64xf32>
    %cst_56 = arith.constant 0.00885645207 : f32
    %104 = vector.broadcast %cst_56 : f32 to vector<64x64xf32>
    %105 = arith.cmpf ole, %72, %104 : vector<64x64xf32>
    %cst_57 = arith.constant 0.12841855 : f32
    %106 = vector.broadcast %cst_57 : f32 to vector<64x64xf32>
    %107 = arith.divf %72, %106 : vector<64x64xf32>
    %cst_58 = arith.constant 0.137931034 : f32
    %108 = vector.broadcast %cst_58 : f32 to vector<64x64xf32>
    %109 = arith.addf %107, %108 : vector<64x64xf32>
    %110 = arith.select %105, %109, %103 : vector<64x64xi1>, vector<64x64xf32>
    %cst_59 = arith.constant 9.99999974E-5 : f32
    %111 = vector.broadcast %cst_59 : f32 to vector<64x64xf32>
    %112 = arith.maximumf %84, %111 : vector<64x64xf32>
    %113 = math.log %112 : vector<64x64xf32>
    %cst_60 = arith.constant 0.333333343 : f32
    %114 = vector.broadcast %cst_60 : f32 to vector<64x64xf32>
    %115 = arith.mulf %113, %114 : vector<64x64xf32>
    %116 = math.exp %115 : vector<64x64xf32>
    %cst_61 = arith.constant 0.00885645207 : f32
    %117 = vector.broadcast %cst_61 : f32 to vector<64x64xf32>
    %118 = arith.cmpf ole, %84, %117 : vector<64x64xf32>
    %cst_62 = arith.constant 0.12841855 : f32
    %119 = vector.broadcast %cst_62 : f32 to vector<64x64xf32>
    %120 = arith.divf %84, %119 : vector<64x64xf32>
    %cst_63 = arith.constant 0.137931034 : f32
    %121 = vector.broadcast %cst_63 : f32 to vector<64x64xf32>
    %122 = arith.addf %120, %121 : vector<64x64xf32>
    %123 = arith.select %118, %122, %116 : vector<64x64xi1>, vector<64x64xf32>
    %cst_64 = arith.constant 1.160000e+02 : f32
    %124 = vector.broadcast %cst_64 : f32 to vector<64x64xf32>
    %125 = arith.mulf %124, %110 : vector<64x64xf32>
    %cst_65 = arith.constant 1.600000e+01 : f32
    %126 = vector.broadcast %cst_65 : f32 to vector<64x64xf32>
    %127 = arith.subf %125, %126 : vector<64x64xf32>
    %cst_66 = arith.constant 1.000000e+02 : f32
    %128 = vector.broadcast %cst_66 : f32 to vector<64x64xf32>
    %129 = arith.divf %127, %128 : vector<64x64xf32>
    %130 = arith.subf %97, %110 : vector<64x64xf32>
    %cst_67 = arith.constant 5.000000e+02 : f32
    %131 = vector.broadcast %cst_67 : f32 to vector<64x64xf32>
    %132 = arith.mulf %131, %130 : vector<64x64xf32>
    %cst_68 = arith.constant 1.100000e+02 : f32
    %133 = vector.broadcast %cst_68 : f32 to vector<64x64xf32>
    %134 = arith.divf %132, %133 : vector<64x64xf32>
    %cst_69 = arith.constant 1.000000e+00 : f32
    %135 = vector.broadcast %cst_69 : f32 to vector<64x64xf32>
    %136 = arith.addf %134, %135 : vector<64x64xf32>
    %cst_70 = arith.constant 2.000000e+00 : f32
    %137 = vector.broadcast %cst_70 : f32 to vector<64x64xf32>
    %138 = arith.divf %136, %137 : vector<64x64xf32>
    %139 = arith.subf %110, %123 : vector<64x64xf32>
    %cst_71 = arith.constant 2.000000e+02 : f32
    %140 = vector.broadcast %cst_71 : f32 to vector<64x64xf32>
    %141 = arith.mulf %140, %139 : vector<64x64xf32>
    %cst_72 = arith.constant 1.100000e+02 : f32
    %142 = vector.broadcast %cst_72 : f32 to vector<64x64xf32>
    %143 = arith.divf %141, %142 : vector<64x64xf32>
    %cst_73 = arith.constant 1.000000e+00 : f32
    %144 = vector.broadcast %cst_73 : f32 to vector<64x64xf32>
    %145 = arith.addf %143, %144 : vector<64x64xf32>
    %cst_74 = arith.constant 2.000000e+00 : f32
    %146 = vector.broadcast %cst_74 : f32 to vector<64x64xf32>
    %147 = arith.divf %145, %146 : vector<64x64xf32>
    %148 = arith.cmpf one, %129, %129 : vector<64x64xf32>
    %cst_75 = arith.constant 0.000000e+00 : f32
    %149 = vector.broadcast %cst_75 : f32 to vector<64x64xf32>
    %150 = arith.select %148, %149, %129 : vector<64x64xi1>, vector<64x64xf32>
    %151 = arith.cmpf one, %138, %138 : vector<64x64xf32>
    %cst_76 = arith.constant 0.000000e+00 : f32
    %152 = vector.broadcast %cst_76 : f32 to vector<64x64xf32>
    %153 = arith.select %151, %152, %138 : vector<64x64xi1>, vector<64x64xf32>
    %154 = arith.cmpf one, %147, %147 : vector<64x64xf32>
    %cst_77 = arith.constant 0.000000e+00 : f32
    %155 = vector.broadcast %cst_77 : f32 to vector<64x64xf32>
    %156 = arith.select %154, %155, %147 : vector<64x64xi1>, vector<64x64xf32>
    %cst_78 = arith.constant 9.99999974E-5 : f32
    %157 = vector.broadcast %cst_78 : f32 to vector<64x64xf32>
    %158 = arith.maximumf %7, %157 : vector<64x64xf32>
    %cst_79 = arith.constant 5.500000e-02 : f32
    %159 = vector.broadcast %cst_79 : f32 to vector<64x64xf32>
    %160 = arith.addf %158, %159 : vector<64x64xf32>
    %cst_80 = arith.constant 1.055000e+00 : f32
    %161 = vector.broadcast %cst_80 : f32 to vector<64x64xf32>
    %162 = arith.divf %160, %161 : vector<64x64xf32>
    %163 = math.log %162 : vector<64x64xf32>
    %cst_81 = arith.constant 2.400000e+00 : f32
    %164 = vector.broadcast %cst_81 : f32 to vector<64x64xf32>
    %165 = arith.mulf %164, %163 : vector<64x64xf32>
    %166 = math.exp %165 : vector<64x64xf32>
    %cst_82 = arith.constant 4.045000e-02 : f32
    %167 = vector.broadcast %cst_82 : f32 to vector<64x64xf32>
    %168 = arith.cmpf ole, %7, %167 : vector<64x64xf32>
    %cst_83 = arith.constant 1.292000e+01 : f32
    %169 = vector.broadcast %cst_83 : f32 to vector<64x64xf32>
    %170 = arith.divf %7, %169 : vector<64x64xf32>
    %171 = arith.select %168, %170, %166 : vector<64x64xi1>, vector<64x64xf32>
    %cst_84 = arith.constant 9.99999974E-5 : f32
    %172 = vector.broadcast %cst_84 : f32 to vector<64x64xf32>
    %173 = arith.maximumf %9, %172 : vector<64x64xf32>
    %cst_85 = arith.constant 5.500000e-02 : f32
    %174 = vector.broadcast %cst_85 : f32 to vector<64x64xf32>
    %175 = arith.addf %173, %174 : vector<64x64xf32>
    %cst_86 = arith.constant 1.055000e+00 : f32
    %176 = vector.broadcast %cst_86 : f32 to vector<64x64xf32>
    %177 = arith.divf %175, %176 : vector<64x64xf32>
    %178 = math.log %177 : vector<64x64xf32>
    %cst_87 = arith.constant 2.400000e+00 : f32
    %179 = vector.broadcast %cst_87 : f32 to vector<64x64xf32>
    %180 = arith.mulf %179, %178 : vector<64x64xf32>
    %181 = math.exp %180 : vector<64x64xf32>
    %cst_88 = arith.constant 4.045000e-02 : f32
    %182 = vector.broadcast %cst_88 : f32 to vector<64x64xf32>
    %183 = arith.cmpf ole, %9, %182 : vector<64x64xf32>
    %cst_89 = arith.constant 1.292000e+01 : f32
    %184 = vector.broadcast %cst_89 : f32 to vector<64x64xf32>
    %185 = arith.divf %9, %184 : vector<64x64xf32>
    %186 = arith.select %183, %185, %181 : vector<64x64xi1>, vector<64x64xf32>
    %cst_90 = arith.constant 9.99999974E-5 : f32
    %187 = vector.broadcast %cst_90 : f32 to vector<64x64xf32>
    %188 = arith.maximumf %11, %187 : vector<64x64xf32>
    %cst_91 = arith.constant 5.500000e-02 : f32
    %189 = vector.broadcast %cst_91 : f32 to vector<64x64xf32>
    %190 = arith.addf %188, %189 : vector<64x64xf32>
    %cst_92 = arith.constant 1.055000e+00 : f32
    %191 = vector.broadcast %cst_92 : f32 to vector<64x64xf32>
    %192 = arith.divf %190, %191 : vector<64x64xf32>
    %193 = math.log %192 : vector<64x64xf32>
    %cst_93 = arith.constant 2.400000e+00 : f32
    %194 = vector.broadcast %cst_93 : f32 to vector<64x64xf32>
    %195 = arith.mulf %194, %193 : vector<64x64xf32>
    %196 = math.exp %195 : vector<64x64xf32>
    %cst_94 = arith.constant 4.045000e-02 : f32
    %197 = vector.broadcast %cst_94 : f32 to vector<64x64xf32>
    %198 = arith.cmpf ole, %11, %197 : vector<64x64xf32>
    %cst_95 = arith.constant 1.292000e+01 : f32
    %199 = vector.broadcast %cst_95 : f32 to vector<64x64xf32>
    %200 = arith.divf %11, %199 : vector<64x64xf32>
    %201 = arith.select %198, %200, %196 : vector<64x64xi1>, vector<64x64xf32>
    %cst_96 = arith.constant 4.124530e-01 : f32
    %202 = vector.broadcast %cst_96 : f32 to vector<64x64xf32>
    %203 = arith.mulf %202, %171 : vector<64x64xf32>
    %cst_97 = arith.constant 3.575800e-01 : f32
    %204 = vector.broadcast %cst_97 : f32 to vector<64x64xf32>
    %205 = arith.mulf %204, %186 : vector<64x64xf32>
    %206 = arith.addf %203, %205 : vector<64x64xf32>
    %cst_98 = arith.constant 1.804230e-01 : f32
    %207 = vector.broadcast %cst_98 : f32 to vector<64x64xf32>
    %208 = arith.mulf %207, %201 : vector<64x64xf32>
    %209 = arith.addf %206, %208 : vector<64x64xf32>
    %cst_99 = arith.constant 2.126710e-01 : f32
    %210 = vector.broadcast %cst_99 : f32 to vector<64x64xf32>
    %211 = arith.mulf %210, %171 : vector<64x64xf32>
    %cst_100 = arith.constant 7.151600e-01 : f32
    %212 = vector.broadcast %cst_100 : f32 to vector<64x64xf32>
    %213 = arith.mulf %212, %186 : vector<64x64xf32>
    %214 = arith.addf %211, %213 : vector<64x64xf32>
    %cst_101 = arith.constant 7.216900e-02 : f32
    %215 = vector.broadcast %cst_101 : f32 to vector<64x64xf32>
    %216 = arith.mulf %215, %201 : vector<64x64xf32>
    %217 = arith.addf %214, %216 : vector<64x64xf32>
    %cst_102 = arith.constant 1.933400e-02 : f32
    %218 = vector.broadcast %cst_102 : f32 to vector<64x64xf32>
    %219 = arith.mulf %218, %171 : vector<64x64xf32>
    %cst_103 = arith.constant 1.191930e-01 : f32
    %220 = vector.broadcast %cst_103 : f32 to vector<64x64xf32>
    %221 = arith.mulf %220, %186 : vector<64x64xf32>
    %222 = arith.addf %219, %221 : vector<64x64xf32>
    %cst_104 = arith.constant 9.502270e-01 : f32
    %223 = vector.broadcast %cst_104 : f32 to vector<64x64xf32>
    %224 = arith.mulf %223, %201 : vector<64x64xf32>
    %225 = arith.addf %222, %224 : vector<64x64xf32>
    %cst_105 = arith.constant 1.05212653 : f32
    %226 = vector.broadcast %cst_105 : f32 to vector<64x64xf32>
    %227 = arith.mulf %209, %226 : vector<64x64xf32>
    %cst_106 = arith.constant 0.918481112 : f32
    %228 = vector.broadcast %cst_106 : f32 to vector<64x64xf32>
    %229 = arith.mulf %225, %228 : vector<64x64xf32>
    %cst_107 = arith.constant 9.99999974E-5 : f32
    %230 = vector.broadcast %cst_107 : f32 to vector<64x64xf32>
    %231 = arith.maximumf %227, %230 : vector<64x64xf32>
    %232 = math.log %231 : vector<64x64xf32>
    %cst_108 = arith.constant 0.333333343 : f32
    %233 = vector.broadcast %cst_108 : f32 to vector<64x64xf32>
    %234 = arith.mulf %232, %233 : vector<64x64xf32>
    %235 = math.exp %234 : vector<64x64xf32>
    %cst_109 = arith.constant 0.00885645207 : f32
    %236 = vector.broadcast %cst_109 : f32 to vector<64x64xf32>
    %237 = arith.cmpf ole, %227, %236 : vector<64x64xf32>
    %cst_110 = arith.constant 0.12841855 : f32
    %238 = vector.broadcast %cst_110 : f32 to vector<64x64xf32>
    %239 = arith.divf %227, %238 : vector<64x64xf32>
    %cst_111 = arith.constant 0.137931034 : f32
    %240 = vector.broadcast %cst_111 : f32 to vector<64x64xf32>
    %241 = arith.addf %239, %240 : vector<64x64xf32>
    %242 = arith.select %237, %241, %235 : vector<64x64xi1>, vector<64x64xf32>
    %cst_112 = arith.constant 9.99999974E-5 : f32
    %243 = vector.broadcast %cst_112 : f32 to vector<64x64xf32>
    %244 = arith.maximumf %217, %243 : vector<64x64xf32>
    %245 = math.log %244 : vector<64x64xf32>
    %cst_113 = arith.constant 0.333333343 : f32
    %246 = vector.broadcast %cst_113 : f32 to vector<64x64xf32>
    %247 = arith.mulf %245, %246 : vector<64x64xf32>
    %248 = math.exp %247 : vector<64x64xf32>
    %cst_114 = arith.constant 0.00885645207 : f32
    %249 = vector.broadcast %cst_114 : f32 to vector<64x64xf32>
    %250 = arith.cmpf ole, %217, %249 : vector<64x64xf32>
    %cst_115 = arith.constant 0.12841855 : f32
    %251 = vector.broadcast %cst_115 : f32 to vector<64x64xf32>
    %252 = arith.divf %217, %251 : vector<64x64xf32>
    %cst_116 = arith.constant 0.137931034 : f32
    %253 = vector.broadcast %cst_116 : f32 to vector<64x64xf32>
    %254 = arith.addf %252, %253 : vector<64x64xf32>
    %255 = arith.select %250, %254, %248 : vector<64x64xi1>, vector<64x64xf32>
    %cst_117 = arith.constant 9.99999974E-5 : f32
    %256 = vector.broadcast %cst_117 : f32 to vector<64x64xf32>
    %257 = arith.maximumf %229, %256 : vector<64x64xf32>
    %258 = math.log %257 : vector<64x64xf32>
    %cst_118 = arith.constant 0.333333343 : f32
    %259 = vector.broadcast %cst_118 : f32 to vector<64x64xf32>
    %260 = arith.mulf %258, %259 : vector<64x64xf32>
    %261 = math.exp %260 : vector<64x64xf32>
    %cst_119 = arith.constant 0.00885645207 : f32
    %262 = vector.broadcast %cst_119 : f32 to vector<64x64xf32>
    %263 = arith.cmpf ole, %229, %262 : vector<64x64xf32>
    %cst_120 = arith.constant 0.12841855 : f32
    %264 = vector.broadcast %cst_120 : f32 to vector<64x64xf32>
    %265 = arith.divf %229, %264 : vector<64x64xf32>
    %cst_121 = arith.constant 0.137931034 : f32
    %266 = vector.broadcast %cst_121 : f32 to vector<64x64xf32>
    %267 = arith.addf %265, %266 : vector<64x64xf32>
    %268 = arith.select %263, %267, %261 : vector<64x64xi1>, vector<64x64xf32>
    %cst_122 = arith.constant 1.160000e+02 : f32
    %269 = vector.broadcast %cst_122 : f32 to vector<64x64xf32>
    %270 = arith.mulf %269, %255 : vector<64x64xf32>
    %cst_123 = arith.constant 1.600000e+01 : f32
    %271 = vector.broadcast %cst_123 : f32 to vector<64x64xf32>
    %272 = arith.subf %270, %271 : vector<64x64xf32>
    %cst_124 = arith.constant 1.000000e+02 : f32
    %273 = vector.broadcast %cst_124 : f32 to vector<64x64xf32>
    %274 = arith.divf %272, %273 : vector<64x64xf32>
    %275 = arith.subf %242, %255 : vector<64x64xf32>
    %cst_125 = arith.constant 5.000000e+02 : f32
    %276 = vector.broadcast %cst_125 : f32 to vector<64x64xf32>
    %277 = arith.mulf %276, %275 : vector<64x64xf32>
    %cst_126 = arith.constant 1.100000e+02 : f32
    %278 = vector.broadcast %cst_126 : f32 to vector<64x64xf32>
    %279 = arith.divf %277, %278 : vector<64x64xf32>
    %cst_127 = arith.constant 1.000000e+00 : f32
    %280 = vector.broadcast %cst_127 : f32 to vector<64x64xf32>
    %281 = arith.addf %279, %280 : vector<64x64xf32>
    %cst_128 = arith.constant 2.000000e+00 : f32
    %282 = vector.broadcast %cst_128 : f32 to vector<64x64xf32>
    %283 = arith.divf %281, %282 : vector<64x64xf32>
    %284 = arith.subf %255, %268 : vector<64x64xf32>
    %cst_129 = arith.constant 2.000000e+02 : f32
    %285 = vector.broadcast %cst_129 : f32 to vector<64x64xf32>
    %286 = arith.mulf %285, %284 : vector<64x64xf32>
    %cst_130 = arith.constant 1.100000e+02 : f32
    %287 = vector.broadcast %cst_130 : f32 to vector<64x64xf32>
    %288 = arith.divf %286, %287 : vector<64x64xf32>
    %cst_131 = arith.constant 1.000000e+00 : f32
    %289 = vector.broadcast %cst_131 : f32 to vector<64x64xf32>
    %290 = arith.addf %288, %289 : vector<64x64xf32>
    %cst_132 = arith.constant 2.000000e+00 : f32
    %291 = vector.broadcast %cst_132 : f32 to vector<64x64xf32>
    %292 = arith.divf %290, %291 : vector<64x64xf32>
    %293 = arith.cmpf one, %274, %274 : vector<64x64xf32>
    %cst_133 = arith.constant 0.000000e+00 : f32
    %294 = vector.broadcast %cst_133 : f32 to vector<64x64xf32>
    %295 = arith.select %293, %294, %274 : vector<64x64xi1>, vector<64x64xf32>
    %296 = arith.cmpf one, %283, %283 : vector<64x64xf32>
    %cst_134 = arith.constant 0.000000e+00 : f32
    %297 = vector.broadcast %cst_134 : f32 to vector<64x64xf32>
    %298 = arith.select %296, %297, %283 : vector<64x64xi1>, vector<64x64xf32>
    %299 = arith.cmpf one, %292, %292 : vector<64x64xf32>
    %cst_135 = arith.constant 0.000000e+00 : f32
    %300 = vector.broadcast %cst_135 : f32 to vector<64x64xf32>
    %301 = arith.select %299, %300, %292 : vector<64x64xi1>, vector<64x64xf32>
    %302 = arith.subf %150, %295 : vector<64x64xf32>
    %303 = math.absf %302 : vector<64x64xf32>
    %cst_136 = arith.constant dense<0.000000e+00> : vector<64xf32>
    %304 = vector.multi_reduction <add>, %303, %cst_136 [1] : vector<64x64xf32> to vector<64xf32>
    %305 = vector.shape_cast %304 : vector<64xf32> to vector<64x1xf32>
    %cst_137 = arith.constant dense<0.000000e+00> : vector<1xf32>
    %306 = vector.multi_reduction <add>, %305, %cst_137 [0] : vector<64x1xf32> to vector<1xf32>
    %307 = vector.shape_cast %306 : vector<1xf32> to vector<1x1xf32>
    %308 = arith.subf %153, %298 : vector<64x64xf32>
    %309 = math.absf %308 : vector<64x64xf32>
    %cst_138 = arith.constant dense<0.000000e+00> : vector<64xf32>
    %310 = vector.multi_reduction <add>, %309, %cst_138 [1] : vector<64x64xf32> to vector<64xf32>
    %311 = vector.shape_cast %310 : vector<64xf32> to vector<64x1xf32>
    %cst_139 = arith.constant dense<0.000000e+00> : vector<1xf32>
    %312 = vector.multi_reduction <add>, %311, %cst_139 [0] : vector<64x1xf32> to vector<1xf32>
    %313 = vector.shape_cast %312 : vector<1xf32> to vector<1x1xf32>
    %314 = arith.addf %307, %313 : vector<1x1xf32>
    %315 = arith.subf %156, %301 : vector<64x64xf32>
    %316 = math.absf %315 : vector<64x64xf32>
    %cst_140 = arith.constant dense<0.000000e+00> : vector<64xf32>
    %317 = vector.multi_reduction <add>, %316, %cst_140 [1] : vector<64x64xf32> to vector<64xf32>
    %318 = vector.shape_cast %317 : vector<64xf32> to vector<64x1xf32>
    %cst_141 = arith.constant dense<0.000000e+00> : vector<1xf32>
    %319 = vector.multi_reduction <add>, %318, %cst_141 [0] : vector<64x1xf32> to vector<1xf32>
    %320 = vector.shape_cast %319 : vector<1xf32> to vector<1x1xf32>
    %321 = arith.addf %314, %320 : vector<1x1xf32>
    %cst_142 = arith.constant 8.13802107E-5 : f32
    %322 = vector.broadcast %cst_142 : f32 to vector<1x1xf32>
    %323 = arith.mulf %321, %322 : vector<1x1xf32>
    %324 = arith.mulf %1, %7 : vector<64x64xf32>
    %325 = arith.mulf %3, %9 : vector<64x64xf32>
    %326 = arith.addf %324, %325 : vector<64x64xf32>
    %327 = arith.mulf %5, %11 : vector<64x64xf32>
    %328 = arith.addf %326, %327 : vector<64x64xf32>
    %329 = arith.mulf %1, %1 : vector<64x64xf32>
    %330 = arith.mulf %3, %3 : vector<64x64xf32>
    %331 = arith.addf %329, %330 : vector<64x64xf32>
    %332 = arith.mulf %5, %5 : vector<64x64xf32>
    %333 = arith.addf %331, %332 : vector<64x64xf32>
    %334 = math.sqrt %333 : vector<64x64xf32>
    %335 = arith.mulf %7, %7 : vector<64x64xf32>
    %336 = arith.mulf %9, %9 : vector<64x64xf32>
    %337 = arith.addf %335, %336 : vector<64x64xf32>
    %338 = arith.mulf %11, %11 : vector<64x64xf32>
    %339 = arith.addf %337, %338 : vector<64x64xf32>
    %340 = math.sqrt %339 : vector<64x64xf32>
    %cst_143 = arith.constant 9.99999993E-9 : f32
    %341 = vector.broadcast %cst_143 : f32 to vector<64x64xf32>
    %342 = arith.maximumf %334, %341 : vector<64x64xf32>
    %cst_144 = arith.constant 9.99999993E-9 : f32
    %343 = vector.broadcast %cst_144 : f32 to vector<64x64xf32>
    %344 = arith.maximumf %340, %343 : vector<64x64xf32>
    %345 = arith.mulf %342, %344 : vector<64x64xf32>
    %346 = arith.divf %328, %345 : vector<64x64xf32>
    %cst_145 = arith.constant dense<0.000000e+00> : vector<64xf32>
    %347 = vector.multi_reduction <add>, %346, %cst_145 [1] : vector<64x64xf32> to vector<64xf32>
    %348 = vector.shape_cast %347 : vector<64xf32> to vector<64x1xf32>
    %cst_146 = arith.constant dense<0.000000e+00> : vector<1xf32>
    %349 = vector.multi_reduction <add>, %348, %cst_146 [0] : vector<64x1xf32> to vector<1xf32>
    %350 = vector.shape_cast %349 : vector<1xf32> to vector<1x1xf32>
    %cst_147 = arith.constant 2.44140625E-4 : f32
    %351 = vector.broadcast %cst_147 : f32 to vector<1x1xf32>
    %352 = arith.mulf %350, %351 : vector<1x1xf32>
    %c0_148 = arith.constant 0 : index
    %c0_149 = arith.constant 0 : index
    %353 = vector.load %arg3[%c0_148, %c0_149] : memref<64x64xf32, #tpu.memory_space<vmem>>, vector<64x64xf32>
    %c0_150 = arith.constant 0 : index
    %c0_151 = arith.constant 0 : index
    %354 = vector.load %arg8[%c0_150, %c0_151] : memref<64x64xf32, #tpu.memory_space<vmem>>, vector<64x64xf32>
    %cst_152 = arith.constant dense<0.000000e+00> : vector<64x64xf32>
    %355 = tpu.matmul %353, %150, %cst_152 {dimension_numbers = #tpu.dot_dimension_numbers<[1], [0], [0], [1], [0, 0, 1, 1], [], []>} : vector<64x64xf32>, vector<64x64xf32>, vector<64x64xf32> -> vector<64x64xf32>
    %cst_153 = arith.constant dense<0.000000e+00> : vector<64x64xf32>
    %356 = tpu.matmul %355, %354, %cst_153 {dimension_numbers = #tpu.dot_dimension_numbers<[1], [0], [0], [1], [0, 0, 1, 1], [], []>} : vector<64x64xf32>, vector<64x64xf32>, vector<64x64xf32> -> vector<64x64xf32>
    %cst_154 = arith.constant dense<0.000000e+00> : vector<64x64xf32>
    %357 = tpu.matmul %353, %295, %cst_154 {dimension_numbers = #tpu.dot_dimension_numbers<[1], [0], [0], [1], [0, 0, 1, 1], [], []>} : vector<64x64xf32>, vector<64x64xf32>, vector<64x64xf32> -> vector<64x64xf32>
    %cst_155 = arith.constant dense<0.000000e+00> : vector<64x64xf32>
    %358 = tpu.matmul %357, %354, %cst_155 {dimension_numbers = #tpu.dot_dimension_numbers<[1], [0], [0], [1], [0, 0, 1, 1], [], []>} : vector<64x64xf32>, vector<64x64xf32>, vector<64x64xf32> -> vector<64x64xf32>
    %359 = arith.mulf %150, %150 : vector<64x64xf32>
    %cst_156 = arith.constant dense<0.000000e+00> : vector<64x64xf32>
    %360 = tpu.matmul %353, %359, %cst_156 {dimension_numbers = #tpu.dot_dimension_numbers<[1], [0], [0], [1], [0, 0, 1, 1], [], []>} : vector<64x64xf32>, vector<64x64xf32>, vector<64x64xf32> -> vector<64x64xf32>
    %cst_157 = arith.constant dense<0.000000e+00> : vector<64x64xf32>
    %361 = tpu.matmul %360, %354, %cst_157 {dimension_numbers = #tpu.dot_dimension_numbers<[1], [0], [0], [1], [0, 0, 1, 1], [], []>} : vector<64x64xf32>, vector<64x64xf32>, vector<64x64xf32> -> vector<64x64xf32>
    %362 = arith.mulf %295, %295 : vector<64x64xf32>
    %cst_158 = arith.constant dense<0.000000e+00> : vector<64x64xf32>
    %363 = tpu.matmul %353, %362, %cst_158 {dimension_numbers = #tpu.dot_dimension_numbers<[1], [0], [0], [1], [0, 0, 1, 1], [], []>} : vector<64x64xf32>, vector<64x64xf32>, vector<64x64xf32> -> vector<64x64xf32>
    %cst_159 = arith.constant dense<0.000000e+00> : vector<64x64xf32>
    %364 = tpu.matmul %363, %354, %cst_159 {dimension_numbers = #tpu.dot_dimension_numbers<[1], [0], [0], [1], [0, 0, 1, 1], [], []>} : vector<64x64xf32>, vector<64x64xf32>, vector<64x64xf32> -> vector<64x64xf32>
    %365 = arith.mulf %150, %295 : vector<64x64xf32>
    %cst_160 = arith.constant dense<0.000000e+00> : vector<64x64xf32>
    %366 = tpu.matmul %353, %365, %cst_160 {dimension_numbers = #tpu.dot_dimension_numbers<[1], [0], [0], [1], [0, 0, 1, 1], [], []>} : vector<64x64xf32>, vector<64x64xf32>, vector<64x64xf32> -> vector<64x64xf32>
    %cst_161 = arith.constant dense<0.000000e+00> : vector<64x64xf32>
    %367 = tpu.matmul %366, %354, %cst_161 {dimension_numbers = #tpu.dot_dimension_numbers<[1], [0], [0], [1], [0, 0, 1, 1], [], []>} : vector<64x64xf32>, vector<64x64xf32>, vector<64x64xf32> -> vector<64x64xf32>
    %368 = arith.mulf %356, %356 : vector<64x64xf32>
    %369 = arith.mulf %358, %358 : vector<64x64xf32>
    %370 = arith.mulf %356, %358 : vector<64x64xf32>
    %371 = arith.subf %361, %368 : vector<64x64xf32>
    %372 = arith.subf %364, %369 : vector<64x64xf32>
    %373 = arith.subf %367, %370 : vector<64x64xf32>
    %cst_162 = arith.constant 2.000000e+00 : f32
    %374 = vector.broadcast %cst_162 : f32 to vector<64x64xf32>
    %375 = arith.mulf %374, %373 : vector<64x64xf32>
    %cst_163 = arith.constant 8.99999984E-4 : f32
    %376 = vector.broadcast %cst_163 : f32 to vector<64x64xf32>
    %377 = arith.addf %375, %376 : vector<64x64xf32>
    %378 = arith.addf %371, %372 : vector<64x64xf32>
    %cst_164 = arith.constant 8.99999984E-4 : f32
    %379 = vector.broadcast %cst_164 : f32 to vector<64x64xf32>
    %380 = arith.addf %378, %379 : vector<64x64xf32>
    %381 = arith.divf %377, %380 : vector<64x64xf32>
    %cst_165 = arith.constant dense<0.000000e+00> : vector<64xf32>
    %382 = vector.multi_reduction <add>, %381, %cst_165 [1] : vector<64x64xf32> to vector<64xf32>
    %383 = vector.shape_cast %382 : vector<64xf32> to vector<64x1xf32>
    %cst_166 = arith.constant dense<0.000000e+00> : vector<1xf32>
    %384 = vector.multi_reduction <add>, %383, %cst_166 [0] : vector<64x1xf32> to vector<1xf32>
    %385 = vector.shape_cast %384 : vector<1xf32> to vector<1x1xf32>
    %cst_167 = arith.constant 2.44140625E-4 : f32
    %386 = vector.broadcast %cst_167 : f32 to vector<1x1xf32>
    %387 = arith.mulf %385, %386 : vector<1x1xf32>
    %cst_168 = arith.constant 1.000000e+00 : f32
    %388 = vector.broadcast %cst_168 : f32 to vector<1x1xf32>
    %389 = arith.addf %387, %388 : vector<1x1xf32>
    %cst_169 = arith.constant 5.000000e-01 : f32
    %390 = vector.broadcast %cst_169 : f32 to vector<1x1xf32>
    %391 = arith.mulf %389, %390 : vector<1x1xf32>
    %cst_170 = arith.constant 9.99999996E-13 : f32
    %392 = vector.broadcast %cst_170 : f32 to vector<1x1xf32>
    %393 = arith.maximumf %391, %392 : vector<1x1xf32>
    %394 = math.log %393 : vector<1x1xf32>
    %cst_171 = arith.constant 4.480000e-02 : f32
    %395 = vector.broadcast %cst_171 : f32 to vector<1x1xf32>
    %396 = arith.mulf %395, %394 : vector<1x1xf32>
    %397 = math.exp %396 : vector<1x1xf32>
    %c0_172 = arith.constant 0 : index
    %c0_173 = arith.constant 0 : index
    %398 = vector.load %arg13[%c0_172, %c0_173] : memref<32x64xf32, #tpu.memory_space<vmem>>, vector<32x64xf32>
    %c0_174 = arith.constant 0 : index
    %c0_175 = arith.constant 0 : index
    %399 = vector.load %arg17[%c0_174, %c0_175] : memref<64x32xf32, #tpu.memory_space<vmem>>, vector<64x32xf32>
    %cst_176 = arith.constant dense<0.000000e+00> : vector<32x64xf32>
    %400 = tpu.matmul %398, %150, %cst_176 {dimension_numbers = #tpu.dot_dimension_numbers<[1], [0], [0], [1], [0, 0, 1, 1], [], []>} : vector<32x64xf32>, vector<64x64xf32>, vector<32x64xf32> -> vector<32x64xf32>
    %cst_177 = arith.constant dense<0.000000e+00> : vector<32x32xf32>
    %401 = tpu.matmul %400, %399, %cst_177 {dimension_numbers = #tpu.dot_dimension_numbers<[1], [0], [0], [1], [0, 0, 1, 1], [], []>} : vector<32x64xf32>, vector<64x32xf32>, vector<32x32xf32> -> vector<32x32xf32>
    %cst_178 = arith.constant dense<0.000000e+00> : vector<32x64xf32>
    %402 = tpu.matmul %398, %295, %cst_178 {dimension_numbers = #tpu.dot_dimension_numbers<[1], [0], [0], [1], [0, 0, 1, 1], [], []>} : vector<32x64xf32>, vector<64x64xf32>, vector<32x64xf32> -> vector<32x64xf32>
    %cst_179 = arith.constant dense<0.000000e+00> : vector<32x32xf32>
    %403 = tpu.matmul %402, %399, %cst_179 {dimension_numbers = #tpu.dot_dimension_numbers<[1], [0], [0], [1], [0, 0, 1, 1], [], []>} : vector<32x64xf32>, vector<64x32xf32>, vector<32x32xf32> -> vector<32x32xf32>
    %c0_180 = arith.constant 0 : index
    %c0_181 = arith.constant 0 : index
    %404 = vector.load %arg4[%c0_180, %c0_181] : memref<32x32xf32, #tpu.memory_space<vmem>>, vector<32x32xf32>
    %c0_182 = arith.constant 0 : index
    %c0_183 = arith.constant 0 : index
    %405 = vector.load %arg9[%c0_182, %c0_183] : memref<32x32xf32, #tpu.memory_space<vmem>>, vector<32x32xf32>
    %cst_184 = arith.constant dense<0.000000e+00> : vector<32x32xf32>
    %406 = tpu.matmul %404, %401, %cst_184 {dimension_numbers = #tpu.dot_dimension_numbers<[1], [0], [0], [1], [0, 0, 1, 1], [], []>} : vector<32x32xf32>, vector<32x32xf32>, vector<32x32xf32> -> vector<32x32xf32>
    %cst_185 = arith.constant dense<0.000000e+00> : vector<32x32xf32>
    %407 = tpu.matmul %406, %405, %cst_185 {dimension_numbers = #tpu.dot_dimension_numbers<[1], [0], [0], [1], [0, 0, 1, 1], [], []>} : vector<32x32xf32>, vector<32x32xf32>, vector<32x32xf32> -> vector<32x32xf32>
    %cst_186 = arith.constant dense<0.000000e+00> : vector<32x32xf32>
    %408 = tpu.matmul %404, %403, %cst_186 {dimension_numbers = #tpu.dot_dimension_numbers<[1], [0], [0], [1], [0, 0, 1, 1], [], []>} : vector<32x32xf32>, vector<32x32xf32>, vector<32x32xf32> -> vector<32x32xf32>
    %cst_187 = arith.constant dense<0.000000e+00> : vector<32x32xf32>
    %409 = tpu.matmul %408, %405, %cst_187 {dimension_numbers = #tpu.dot_dimension_numbers<[1], [0], [0], [1], [0, 0, 1, 1], [], []>} : vector<32x32xf32>, vector<32x32xf32>, vector<32x32xf32> -> vector<32x32xf32>
    %410 = arith.mulf %401, %401 : vector<32x32xf32>
    %cst_188 = arith.constant dense<0.000000e+00> : vector<32x32xf32>
    %411 = tpu.matmul %404, %410, %cst_188 {dimension_numbers = #tpu.dot_dimension_numbers<[1], [0], [0], [1], [0, 0, 1, 1], [], []>} : vector<32x32xf32>, vector<32x32xf32>, vector<32x32xf32> -> vector<32x32xf32>
    %cst_189 = arith.constant dense<0.000000e+00> : vector<32x32xf32>
    %412 = tpu.matmul %411, %405, %cst_189 {dimension_numbers = #tpu.dot_dimension_numbers<[1], [0], [0], [1], [0, 0, 1, 1], [], []>} : vector<32x32xf32>, vector<32x32xf32>, vector<32x32xf32> -> vector<32x32xf32>
    %413 = arith.mulf %403, %403 : vector<32x32xf32>
    %cst_190 = arith.constant dense<0.000000e+00> : vector<32x32xf32>
    %414 = tpu.matmul %404, %413, %cst_190 {dimension_numbers = #tpu.dot_dimension_numbers<[1], [0], [0], [1], [0, 0, 1, 1], [], []>} : vector<32x32xf32>, vector<32x32xf32>, vector<32x32xf32> -> vector<32x32xf32>
    %cst_191 = arith.constant dense<0.000000e+00> : vector<32x32xf32>
    %415 = tpu.matmul %414, %405, %cst_191 {dimension_numbers = #tpu.dot_dimension_numbers<[1], [0], [0], [1], [0, 0, 1, 1], [], []>} : vector<32x32xf32>, vector<32x32xf32>, vector<32x32xf32> -> vector<32x32xf32>
    %416 = arith.mulf %401, %403 : vector<32x32xf32>
    %cst_192 = arith.constant dense<0.000000e+00> : vector<32x32xf32>
    %417 = tpu.matmul %404, %416, %cst_192 {dimension_numbers = #tpu.dot_dimension_numbers<[1], [0], [0], [1], [0, 0, 1, 1], [], []>} : vector<32x32xf32>, vector<32x32xf32>, vector<32x32xf32> -> vector<32x32xf32>
    %cst_193 = arith.constant dense<0.000000e+00> : vector<32x32xf32>
    %418 = tpu.matmul %417, %405, %cst_193 {dimension_numbers = #tpu.dot_dimension_numbers<[1], [0], [0], [1], [0, 0, 1, 1], [], []>} : vector<32x32xf32>, vector<32x32xf32>, vector<32x32xf32> -> vector<32x32xf32>
    %419 = arith.mulf %407, %407 : vector<32x32xf32>
    %420 = arith.mulf %409, %409 : vector<32x32xf32>
    %421 = arith.mulf %407, %409 : vector<32x32xf32>
    %422 = arith.subf %412, %419 : vector<32x32xf32>
    %423 = arith.subf %415, %420 : vector<32x32xf32>
    %424 = arith.subf %418, %421 : vector<32x32xf32>
    %cst_194 = arith.constant 2.000000e+00 : f32
    %425 = vector.broadcast %cst_194 : f32 to vector<32x32xf32>
    %426 = arith.mulf %425, %424 : vector<32x32xf32>
    %cst_195 = arith.constant 8.99999984E-4 : f32
    %427 = vector.broadcast %cst_195 : f32 to vector<32x32xf32>
    %428 = arith.addf %426, %427 : vector<32x32xf32>
    %429 = arith.addf %422, %423 : vector<32x32xf32>
    %cst_196 = arith.constant 8.99999984E-4 : f32
    %430 = vector.broadcast %cst_196 : f32 to vector<32x32xf32>
    %431 = arith.addf %429, %430 : vector<32x32xf32>
    %432 = arith.divf %428, %431 : vector<32x32xf32>
    %cst_197 = arith.constant dense<0.000000e+00> : vector<32xf32>
    %433 = vector.multi_reduction <add>, %432, %cst_197 [1] : vector<32x32xf32> to vector<32xf32>
    %434 = vector.shape_cast %433 : vector<32xf32> to vector<32x1xf32>
    %cst_198 = arith.constant dense<0.000000e+00> : vector<1xf32>
    %435 = vector.multi_reduction <add>, %434, %cst_198 [0] : vector<32x1xf32> to vector<1xf32>
    %436 = vector.shape_cast %435 : vector<1xf32> to vector<1x1xf32>
    %cst_199 = arith.constant 9.765625E-4 : f32
    %437 = vector.broadcast %cst_199 : f32 to vector<1x1xf32>
    %438 = arith.mulf %436, %437 : vector<1x1xf32>
    %cst_200 = arith.constant 1.000000e+00 : f32
    %439 = vector.broadcast %cst_200 : f32 to vector<1x1xf32>
    %440 = arith.addf %438, %439 : vector<1x1xf32>
    %cst_201 = arith.constant 5.000000e-01 : f32
    %441 = vector.broadcast %cst_201 : f32 to vector<1x1xf32>
    %442 = arith.mulf %440, %441 : vector<1x1xf32>
    %cst_202 = arith.constant 9.99999996E-13 : f32
    %443 = vector.broadcast %cst_202 : f32 to vector<1x1xf32>
    %444 = arith.maximumf %442, %443 : vector<1x1xf32>
    %445 = math.log %444 : vector<1x1xf32>
    %cst_203 = arith.constant 2.856000e-01 : f32
    %446 = vector.broadcast %cst_203 : f32 to vector<1x1xf32>
    %447 = arith.mulf %446, %445 : vector<1x1xf32>
    %448 = math.exp %447 : vector<1x1xf32>
    %449 = arith.mulf %397, %448 : vector<1x1xf32>
    %c0_204 = arith.constant 0 : index
    %c0_205 = arith.constant 0 : index
    %450 = vector.load %arg14[%c0_204, %c0_205] : memref<16x32xf32, #tpu.memory_space<vmem>>, vector<16x32xf32>
    %c0_206 = arith.constant 0 : index
    %c0_207 = arith.constant 0 : index
    %451 = vector.load %arg18[%c0_206, %c0_207] : memref<32x16xf32, #tpu.memory_space<vmem>>, vector<32x16xf32>
    %cst_208 = arith.constant dense<0.000000e+00> : vector<16x32xf32>
    %452 = tpu.matmul %450, %401, %cst_208 {dimension_numbers = #tpu.dot_dimension_numbers<[1], [0], [0], [1], [0, 0, 1, 1], [], []>} : vector<16x32xf32>, vector<32x32xf32>, vector<16x32xf32> -> vector<16x32xf32>
    %cst_209 = arith.constant dense<0.000000e+00> : vector<16x16xf32>
    %453 = tpu.matmul %452, %451, %cst_209 {dimension_numbers = #tpu.dot_dimension_numbers<[1], [0], [0], [1], [0, 0, 1, 1], [], []>} : vector<16x32xf32>, vector<32x16xf32>, vector<16x16xf32> -> vector<16x16xf32>
    %cst_210 = arith.constant dense<0.000000e+00> : vector<16x32xf32>
    %454 = tpu.matmul %450, %403, %cst_210 {dimension_numbers = #tpu.dot_dimension_numbers<[1], [0], [0], [1], [0, 0, 1, 1], [], []>} : vector<16x32xf32>, vector<32x32xf32>, vector<16x32xf32> -> vector<16x32xf32>
    %cst_211 = arith.constant dense<0.000000e+00> : vector<16x16xf32>
    %455 = tpu.matmul %454, %451, %cst_211 {dimension_numbers = #tpu.dot_dimension_numbers<[1], [0], [0], [1], [0, 0, 1, 1], [], []>} : vector<16x32xf32>, vector<32x16xf32>, vector<16x16xf32> -> vector<16x16xf32>
    %c0_212 = arith.constant 0 : index
    %c0_213 = arith.constant 0 : index
    %456 = vector.load %arg5[%c0_212, %c0_213] : memref<16x16xf32, #tpu.memory_space<vmem>>, vector<16x16xf32>
    %c0_214 = arith.constant 0 : index
    %c0_215 = arith.constant 0 : index
    %457 = vector.load %arg10[%c0_214, %c0_215] : memref<16x16xf32, #tpu.memory_space<vmem>>, vector<16x16xf32>
    %cst_216 = arith.constant dense<0.000000e+00> : vector<16x16xf32>
    %458 = tpu.matmul %456, %453, %cst_216 {dimension_numbers = #tpu.dot_dimension_numbers<[1], [0], [0], [1], [0, 0, 1, 1], [], []>} : vector<16x16xf32>, vector<16x16xf32>, vector<16x16xf32> -> vector<16x16xf32>
    %cst_217 = arith.constant dense<0.000000e+00> : vector<16x16xf32>
    %459 = tpu.matmul %458, %457, %cst_217 {dimension_numbers = #tpu.dot_dimension_numbers<[1], [0], [0], [1], [0, 0, 1, 1], [], []>} : vector<16x16xf32>, vector<16x16xf32>, vector<16x16xf32> -> vector<16x16xf32>
    %cst_218 = arith.constant dense<0.000000e+00> : vector<16x16xf32>
    %460 = tpu.matmul %456, %455, %cst_218 {dimension_numbers = #tpu.dot_dimension_numbers<[1], [0], [0], [1], [0, 0, 1, 1], [], []>} : vector<16x16xf32>, vector<16x16xf32>, vector<16x16xf32> -> vector<16x16xf32>
    %cst_219 = arith.constant dense<0.000000e+00> : vector<16x16xf32>
    %461 = tpu.matmul %460, %457, %cst_219 {dimension_numbers = #tpu.dot_dimension_numbers<[1], [0], [0], [1], [0, 0, 1, 1], [], []>} : vector<16x16xf32>, vector<16x16xf32>, vector<16x16xf32> -> vector<16x16xf32>
    %462 = arith.mulf %453, %453 : vector<16x16xf32>
    %cst_220 = arith.constant dense<0.000000e+00> : vector<16x16xf32>
    %463 = tpu.matmul %456, %462, %cst_220 {dimension_numbers = #tpu.dot_dimension_numbers<[1], [0], [0], [1], [0, 0, 1, 1], [], []>} : vector<16x16xf32>, vector<16x16xf32>, vector<16x16xf32> -> vector<16x16xf32>
    %cst_221 = arith.constant dense<0.000000e+00> : vector<16x16xf32>
    %464 = tpu.matmul %463, %457, %cst_221 {dimension_numbers = #tpu.dot_dimension_numbers<[1], [0], [0], [1], [0, 0, 1, 1], [], []>} : vector<16x16xf32>, vector<16x16xf32>, vector<16x16xf32> -> vector<16x16xf32>
    %465 = arith.mulf %455, %455 : vector<16x16xf32>
    %cst_222 = arith.constant dense<0.000000e+00> : vector<16x16xf32>
    %466 = tpu.matmul %456, %465, %cst_222 {dimension_numbers = #tpu.dot_dimension_numbers<[1], [0], [0], [1], [0, 0, 1, 1], [], []>} : vector<16x16xf32>, vector<16x16xf32>, vector<16x16xf32> -> vector<16x16xf32>
    %cst_223 = arith.constant dense<0.000000e+00> : vector<16x16xf32>
    %467 = tpu.matmul %466, %457, %cst_223 {dimension_numbers = #tpu.dot_dimension_numbers<[1], [0], [0], [1], [0, 0, 1, 1], [], []>} : vector<16x16xf32>, vector<16x16xf32>, vector<16x16xf32> -> vector<16x16xf32>
    %468 = arith.mulf %453, %455 : vector<16x16xf32>
    %cst_224 = arith.constant dense<0.000000e+00> : vector<16x16xf32>
    %469 = tpu.matmul %456, %468, %cst_224 {dimension_numbers = #tpu.dot_dimension_numbers<[1], [0], [0], [1], [0, 0, 1, 1], [], []>} : vector<16x16xf32>, vector<16x16xf32>, vector<16x16xf32> -> vector<16x16xf32>
    %cst_225 = arith.constant dense<0.000000e+00> : vector<16x16xf32>
    %470 = tpu.matmul %469, %457, %cst_225 {dimension_numbers = #tpu.dot_dimension_numbers<[1], [0], [0], [1], [0, 0, 1, 1], [], []>} : vector<16x16xf32>, vector<16x16xf32>, vector<16x16xf32> -> vector<16x16xf32>
    %471 = arith.mulf %459, %459 : vector<16x16xf32>
    %472 = arith.mulf %461, %461 : vector<16x16xf32>
    %473 = arith.mulf %459, %461 : vector<16x16xf32>
    %474 = arith.subf %464, %471 : vector<16x16xf32>
    %475 = arith.subf %467, %472 : vector<16x16xf32>
    %476 = arith.subf %470, %473 : vector<16x16xf32>
    %cst_226 = arith.constant 2.000000e+00 : f32
    %477 = vector.broadcast %cst_226 : f32 to vector<16x16xf32>
    %478 = arith.mulf %477, %476 : vector<16x16xf32>
    %cst_227 = arith.constant 8.99999984E-4 : f32
    %479 = vector.broadcast %cst_227 : f32 to vector<16x16xf32>
    %480 = arith.addf %478, %479 : vector<16x16xf32>
    %481 = arith.addf %474, %475 : vector<16x16xf32>
    %cst_228 = arith.constant 8.99999984E-4 : f32
    %482 = vector.broadcast %cst_228 : f32 to vector<16x16xf32>
    %483 = arith.addf %481, %482 : vector<16x16xf32>
    %484 = arith.divf %480, %483 : vector<16x16xf32>
    %cst_229 = arith.constant dense<0.000000e+00> : vector<16xf32>
    %485 = vector.multi_reduction <add>, %484, %cst_229 [1] : vector<16x16xf32> to vector<16xf32>
    %486 = vector.shape_cast %485 : vector<16xf32> to vector<16x1xf32>
    %cst_230 = arith.constant dense<0.000000e+00> : vector<1xf32>
    %487 = vector.multi_reduction <add>, %486, %cst_230 [0] : vector<16x1xf32> to vector<1xf32>
    %488 = vector.shape_cast %487 : vector<1xf32> to vector<1x1xf32>
    %cst_231 = arith.constant 3.906250e-03 : f32
    %489 = vector.broadcast %cst_231 : f32 to vector<1x1xf32>
    %490 = arith.mulf %488, %489 : vector<1x1xf32>
    %cst_232 = arith.constant 1.000000e+00 : f32
    %491 = vector.broadcast %cst_232 : f32 to vector<1x1xf32>
    %492 = arith.addf %490, %491 : vector<1x1xf32>
    %cst_233 = arith.constant 5.000000e-01 : f32
    %493 = vector.broadcast %cst_233 : f32 to vector<1x1xf32>
    %494 = arith.mulf %492, %493 : vector<1x1xf32>
    %cst_234 = arith.constant 9.99999996E-13 : f32
    %495 = vector.broadcast %cst_234 : f32 to vector<1x1xf32>
    %496 = arith.maximumf %494, %495 : vector<1x1xf32>
    %497 = math.log %496 : vector<1x1xf32>
    %cst_235 = arith.constant 3.001000e-01 : f32
    %498 = vector.broadcast %cst_235 : f32 to vector<1x1xf32>
    %499 = arith.mulf %498, %497 : vector<1x1xf32>
    %500 = math.exp %499 : vector<1x1xf32>
    %501 = arith.mulf %449, %500 : vector<1x1xf32>
    %c0_236 = arith.constant 0 : index
    %c0_237 = arith.constant 0 : index
    %502 = vector.load %arg15[%c0_236, %c0_237] : memref<8x16xf32, #tpu.memory_space<vmem>>, vector<8x16xf32>
    %c0_238 = arith.constant 0 : index
    %c0_239 = arith.constant 0 : index
    %503 = vector.load %arg19[%c0_238, %c0_239] : memref<16x8xf32, #tpu.memory_space<vmem>>, vector<16x8xf32>
    %cst_240 = arith.constant dense<0.000000e+00> : vector<8x16xf32>
    %504 = tpu.matmul %502, %453, %cst_240 {dimension_numbers = #tpu.dot_dimension_numbers<[1], [0], [0], [1], [0, 0, 1, 1], [], []>} : vector<8x16xf32>, vector<16x16xf32>, vector<8x16xf32> -> vector<8x16xf32>
    %cst_241 = arith.constant dense<0.000000e+00> : vector<8x8xf32>
    %505 = tpu.matmul %504, %503, %cst_241 {dimension_numbers = #tpu.dot_dimension_numbers<[1], [0], [0], [1], [0, 0, 1, 1], [], []>} : vector<8x16xf32>, vector<16x8xf32>, vector<8x8xf32> -> vector<8x8xf32>
    %cst_242 = arith.constant dense<0.000000e+00> : vector<8x16xf32>
    %506 = tpu.matmul %502, %455, %cst_242 {dimension_numbers = #tpu.dot_dimension_numbers<[1], [0], [0], [1], [0, 0, 1, 1], [], []>} : vector<8x16xf32>, vector<16x16xf32>, vector<8x16xf32> -> vector<8x16xf32>
    %cst_243 = arith.constant dense<0.000000e+00> : vector<8x8xf32>
    %507 = tpu.matmul %506, %503, %cst_243 {dimension_numbers = #tpu.dot_dimension_numbers<[1], [0], [0], [1], [0, 0, 1, 1], [], []>} : vector<8x16xf32>, vector<16x8xf32>, vector<8x8xf32> -> vector<8x8xf32>
    %c0_244 = arith.constant 0 : index
    %c0_245 = arith.constant 0 : index
    %508 = vector.load %arg6[%c0_244, %c0_245] : memref<8x8xf32, #tpu.memory_space<vmem>>, vector<8x8xf32>
    %c0_246 = arith.constant 0 : index
    %c0_247 = arith.constant 0 : index
    %509 = vector.load %arg11[%c0_246, %c0_247] : memref<8x8xf32, #tpu.memory_space<vmem>>, vector<8x8xf32>
    %cst_248 = arith.constant dense<0.000000e+00> : vector<8x8xf32>
    %510 = tpu.matmul %508, %505, %cst_248 {dimension_numbers = #tpu.dot_dimension_numbers<[1], [0], [0], [1], [0, 0, 1, 1], [], []>} : vector<8x8xf32>, vector<8x8xf32>, vector<8x8xf32> -> vector<8x8xf32>
    %cst_249 = arith.constant dense<0.000000e+00> : vector<8x8xf32>
    %511 = tpu.matmul %510, %509, %cst_249 {dimension_numbers = #tpu.dot_dimension_numbers<[1], [0], [0], [1], [0, 0, 1, 1], [], []>} : vector<8x8xf32>, vector<8x8xf32>, vector<8x8xf32> -> vector<8x8xf32>
    %cst_250 = arith.constant dense<0.000000e+00> : vector<8x8xf32>
    %512 = tpu.matmul %508, %507, %cst_250 {dimension_numbers = #tpu.dot_dimension_numbers<[1], [0], [0], [1], [0, 0, 1, 1], [], []>} : vector<8x8xf32>, vector<8x8xf32>, vector<8x8xf32> -> vector<8x8xf32>
    %cst_251 = arith.constant dense<0.000000e+00> : vector<8x8xf32>
    %513 = tpu.matmul %512, %509, %cst_251 {dimension_numbers = #tpu.dot_dimension_numbers<[1], [0], [0], [1], [0, 0, 1, 1], [], []>} : vector<8x8xf32>, vector<8x8xf32>, vector<8x8xf32> -> vector<8x8xf32>
    %514 = arith.mulf %505, %505 : vector<8x8xf32>
    %cst_252 = arith.constant dense<0.000000e+00> : vector<8x8xf32>
    %515 = tpu.matmul %508, %514, %cst_252 {dimension_numbers = #tpu.dot_dimension_numbers<[1], [0], [0], [1], [0, 0, 1, 1], [], []>} : vector<8x8xf32>, vector<8x8xf32>, vector<8x8xf32> -> vector<8x8xf32>
    %cst_253 = arith.constant dense<0.000000e+00> : vector<8x8xf32>
    %516 = tpu.matmul %515, %509, %cst_253 {dimension_numbers = #tpu.dot_dimension_numbers<[1], [0], [0], [1], [0, 0, 1, 1], [], []>} : vector<8x8xf32>, vector<8x8xf32>, vector<8x8xf32> -> vector<8x8xf32>
    %517 = arith.mulf %507, %507 : vector<8x8xf32>
    %cst_254 = arith.constant dense<0.000000e+00> : vector<8x8xf32>
    %518 = tpu.matmul %508, %517, %cst_254 {dimension_numbers = #tpu.dot_dimension_numbers<[1], [0], [0], [1], [0, 0, 1, 1], [], []>} : vector<8x8xf32>, vector<8x8xf32>, vector<8x8xf32> -> vector<8x8xf32>
    %cst_255 = arith.constant dense<0.000000e+00> : vector<8x8xf32>
    %519 = tpu.matmul %518, %509, %cst_255 {dimension_numbers = #tpu.dot_dimension_numbers<[1], [0], [0], [1], [0, 0, 1, 1], [], []>} : vector<8x8xf32>, vector<8x8xf32>, vector<8x8xf32> -> vector<8x8xf32>
    %520 = arith.mulf %505, %507 : vector<8x8xf32>
    %cst_256 = arith.constant dense<0.000000e+00> : vector<8x8xf32>
    %521 = tpu.matmul %508, %520, %cst_256 {dimension_numbers = #tpu.dot_dimension_numbers<[1], [0], [0], [1], [0, 0, 1, 1], [], []>} : vector<8x8xf32>, vector<8x8xf32>, vector<8x8xf32> -> vector<8x8xf32>
    %cst_257 = arith.constant dense<0.000000e+00> : vector<8x8xf32>
    %522 = tpu.matmul %521, %509, %cst_257 {dimension_numbers = #tpu.dot_dimension_numbers<[1], [0], [0], [1], [0, 0, 1, 1], [], []>} : vector<8x8xf32>, vector<8x8xf32>, vector<8x8xf32> -> vector<8x8xf32>
    %523 = arith.mulf %511, %511 : vector<8x8xf32>
    %524 = arith.mulf %513, %513 : vector<8x8xf32>
    %525 = arith.mulf %511, %513 : vector<8x8xf32>
    %526 = arith.subf %516, %523 : vector<8x8xf32>
    %527 = arith.subf %519, %524 : vector<8x8xf32>
    %528 = arith.subf %522, %525 : vector<8x8xf32>
    %cst_258 = arith.constant 2.000000e+00 : f32
    %529 = vector.broadcast %cst_258 : f32 to vector<8x8xf32>
    %530 = arith.mulf %529, %528 : vector<8x8xf32>
    %cst_259 = arith.constant 8.99999984E-4 : f32
    %531 = vector.broadcast %cst_259 : f32 to vector<8x8xf32>
    %532 = arith.addf %530, %531 : vector<8x8xf32>
    %533 = arith.addf %526, %527 : vector<8x8xf32>
    %cst_260 = arith.constant 8.99999984E-4 : f32
    %534 = vector.broadcast %cst_260 : f32 to vector<8x8xf32>
    %535 = arith.addf %533, %534 : vector<8x8xf32>
    %536 = arith.divf %532, %535 : vector<8x8xf32>
    %cst_261 = arith.constant dense<0.000000e+00> : vector<8xf32>
    %537 = vector.multi_reduction <add>, %536, %cst_261 [1] : vector<8x8xf32> to vector<8xf32>
    %538 = vector.shape_cast %537 : vector<8xf32> to vector<8x1xf32>
    %cst_262 = arith.constant dense<0.000000e+00> : vector<1xf32>
    %539 = vector.multi_reduction <add>, %538, %cst_262 [0] : vector<8x1xf32> to vector<1xf32>
    %540 = vector.shape_cast %539 : vector<1xf32> to vector<1x1xf32>
    %cst_263 = arith.constant 1.562500e-02 : f32
    %541 = vector.broadcast %cst_263 : f32 to vector<1x1xf32>
    %542 = arith.mulf %540, %541 : vector<1x1xf32>
    %cst_264 = arith.constant 1.000000e+00 : f32
    %543 = vector.broadcast %cst_264 : f32 to vector<1x1xf32>
    %544 = arith.addf %542, %543 : vector<1x1xf32>
    %cst_265 = arith.constant 5.000000e-01 : f32
    %545 = vector.broadcast %cst_265 : f32 to vector<1x1xf32>
    %546 = arith.mulf %544, %545 : vector<1x1xf32>
    %cst_266 = arith.constant 9.99999996E-13 : f32
    %547 = vector.broadcast %cst_266 : f32 to vector<1x1xf32>
    %548 = arith.maximumf %546, %547 : vector<1x1xf32>
    %549 = math.log %548 : vector<1x1xf32>
    %cst_267 = arith.constant 2.363000e-01 : f32
    %550 = vector.broadcast %cst_267 : f32 to vector<1x1xf32>
    %551 = arith.mulf %550, %549 : vector<1x1xf32>
    %552 = math.exp %551 : vector<1x1xf32>
    %553 = arith.mulf %501, %552 : vector<1x1xf32>
    %c0_268 = arith.constant 0 : index
    %c0_269 = arith.constant 0 : index
    %554 = vector.load %arg16[%c0_268, %c0_269] : memref<4x8xf32, #tpu.memory_space<vmem>>, vector<4x8xf32>
    %c0_270 = arith.constant 0 : index
    %c0_271 = arith.constant 0 : index
    %555 = vector.load %arg20[%c0_270, %c0_271] : memref<8x4xf32, #tpu.memory_space<vmem>>, vector<8x4xf32>
    %cst_272 = arith.constant dense<0.000000e+00> : vector<4x8xf32>
    %556 = tpu.matmul %554, %505, %cst_272 {dimension_numbers = #tpu.dot_dimension_numbers<[1], [0], [0], [1], [0, 0, 1, 1], [], []>} : vector<4x8xf32>, vector<8x8xf32>, vector<4x8xf32> -> vector<4x8xf32>
    %cst_273 = arith.constant dense<0.000000e+00> : vector<4x4xf32>
    %557 = tpu.matmul %556, %555, %cst_273 {dimension_numbers = #tpu.dot_dimension_numbers<[1], [0], [0], [1], [0, 0, 1, 1], [], []>} : vector<4x8xf32>, vector<8x4xf32>, vector<4x4xf32> -> vector<4x4xf32>
    %cst_274 = arith.constant dense<0.000000e+00> : vector<4x8xf32>
    %558 = tpu.matmul %554, %507, %cst_274 {dimension_numbers = #tpu.dot_dimension_numbers<[1], [0], [0], [1], [0, 0, 1, 1], [], []>} : vector<4x8xf32>, vector<8x8xf32>, vector<4x8xf32> -> vector<4x8xf32>
    %cst_275 = arith.constant dense<0.000000e+00> : vector<4x4xf32>
    %559 = tpu.matmul %558, %555, %cst_275 {dimension_numbers = #tpu.dot_dimension_numbers<[1], [0], [0], [1], [0, 0, 1, 1], [], []>} : vector<4x8xf32>, vector<8x4xf32>, vector<4x4xf32> -> vector<4x4xf32>
    %c0_276 = arith.constant 0 : index
    %c0_277 = arith.constant 0 : index
    %560 = vector.load %arg7[%c0_276, %c0_277] : memref<4x4xf32, #tpu.memory_space<vmem>>, vector<4x4xf32>
    %c0_278 = arith.constant 0 : index
    %c0_279 = arith.constant 0 : index
    %561 = vector.load %arg12[%c0_278, %c0_279] : memref<4x4xf32, #tpu.memory_space<vmem>>, vector<4x4xf32>
    %cst_280 = arith.constant dense<0.000000e+00> : vector<4x4xf32>
    %562 = tpu.matmul %560, %557, %cst_280 {dimension_numbers = #tpu.dot_dimension_numbers<[1], [0], [0], [1], [0, 0, 1, 1], [], []>} : vector<4x4xf32>, vector<4x4xf32>, vector<4x4xf32> -> vector<4x4xf32>
    %cst_281 = arith.constant dense<0.000000e+00> : vector<4x4xf32>
    %563 = tpu.matmul %562, %561, %cst_281 {dimension_numbers = #tpu.dot_dimension_numbers<[1], [0], [0], [1], [0, 0, 1, 1], [], []>} : vector<4x4xf32>, vector<4x4xf32>, vector<4x4xf32> -> vector<4x4xf32>
    %cst_282 = arith.constant dense<0.000000e+00> : vector<4x4xf32>
    %564 = tpu.matmul %560, %559, %cst_282 {dimension_numbers = #tpu.dot_dimension_numbers<[1], [0], [0], [1], [0, 0, 1, 1], [], []>} : vector<4x4xf32>, vector<4x4xf32>, vector<4x4xf32> -> vector<4x4xf32>
    %cst_283 = arith.constant dense<0.000000e+00> : vector<4x4xf32>
    %565 = tpu.matmul %564, %561, %cst_283 {dimension_numbers = #tpu.dot_dimension_numbers<[1], [0], [0], [1], [0, 0, 1, 1], [], []>} : vector<4x4xf32>, vector<4x4xf32>, vector<4x4xf32> -> vector<4x4xf32>
    %566 = arith.mulf %557, %557 : vector<4x4xf32>
    %cst_284 = arith.constant dense<0.000000e+00> : vector<4x4xf32>
    %567 = tpu.matmul %560, %566, %cst_284 {dimension_numbers = #tpu.dot_dimension_numbers<[1], [0], [0], [1], [0, 0, 1, 1], [], []>} : vector<4x4xf32>, vector<4x4xf32>, vector<4x4xf32> -> vector<4x4xf32>
    %cst_285 = arith.constant dense<0.000000e+00> : vector<4x4xf32>
    %568 = tpu.matmul %567, %561, %cst_285 {dimension_numbers = #tpu.dot_dimension_numbers<[1], [0], [0], [1], [0, 0, 1, 1], [], []>} : vector<4x4xf32>, vector<4x4xf32>, vector<4x4xf32> -> vector<4x4xf32>
    %569 = arith.mulf %559, %559 : vector<4x4xf32>
    %cst_286 = arith.constant dense<0.000000e+00> : vector<4x4xf32>
    %570 = tpu.matmul %560, %569, %cst_286 {dimension_numbers = #tpu.dot_dimension_numbers<[1], [0], [0], [1], [0, 0, 1, 1], [], []>} : vector<4x4xf32>, vector<4x4xf32>, vector<4x4xf32> -> vector<4x4xf32>
    %cst_287 = arith.constant dense<0.000000e+00> : vector<4x4xf32>
    %571 = tpu.matmul %570, %561, %cst_287 {dimension_numbers = #tpu.dot_dimension_numbers<[1], [0], [0], [1], [0, 0, 1, 1], [], []>} : vector<4x4xf32>, vector<4x4xf32>, vector<4x4xf32> -> vector<4x4xf32>
    %572 = arith.mulf %557, %559 : vector<4x4xf32>
    %cst_288 = arith.constant dense<0.000000e+00> : vector<4x4xf32>
    %573 = tpu.matmul %560, %572, %cst_288 {dimension_numbers = #tpu.dot_dimension_numbers<[1], [0], [0], [1], [0, 0, 1, 1], [], []>} : vector<4x4xf32>, vector<4x4xf32>, vector<4x4xf32> -> vector<4x4xf32>
    %cst_289 = arith.constant dense<0.000000e+00> : vector<4x4xf32>
    %574 = tpu.matmul %573, %561, %cst_289 {dimension_numbers = #tpu.dot_dimension_numbers<[1], [0], [0], [1], [0, 0, 1, 1], [], []>} : vector<4x4xf32>, vector<4x4xf32>, vector<4x4xf32> -> vector<4x4xf32>
    %575 = arith.mulf %563, %563 : vector<4x4xf32>
    %576 = arith.mulf %565, %565 : vector<4x4xf32>
    %577 = arith.mulf %563, %565 : vector<4x4xf32>
    %578 = arith.subf %568, %575 : vector<4x4xf32>
    %579 = arith.subf %571, %576 : vector<4x4xf32>
    %580 = arith.subf %574, %577 : vector<4x4xf32>
    %cst_290 = arith.constant 2.000000e+00 : f32
    %581 = vector.broadcast %cst_290 : f32 to vector<4x4xf32>
    %582 = arith.mulf %581, %580 : vector<4x4xf32>
    %cst_291 = arith.constant 8.99999984E-4 : f32
    %583 = vector.broadcast %cst_291 : f32 to vector<4x4xf32>
    %584 = arith.addf %582, %583 : vector<4x4xf32>
    %585 = arith.addf %578, %579 : vector<4x4xf32>
    %cst_292 = arith.constant 8.99999984E-4 : f32
    %586 = vector.broadcast %cst_292 : f32 to vector<4x4xf32>
    %587 = arith.addf %585, %586 : vector<4x4xf32>
    %cst_293 = arith.constant 2.000000e+00 : f32
    %588 = vector.broadcast %cst_293 : f32 to vector<4x4xf32>
    %589 = arith.mulf %588, %577 : vector<4x4xf32>
    %cst_294 = arith.constant 9.99999974E-5 : f32
    %590 = vector.broadcast %cst_294 : f32 to vector<4x4xf32>
    %591 = arith.addf %589, %590 : vector<4x4xf32>
    %592 = arith.mulf %591, %584 : vector<4x4xf32>
    %593 = arith.addf %575, %576 : vector<4x4xf32>
    %cst_295 = arith.constant 9.99999974E-5 : f32
    %594 = vector.broadcast %cst_295 : f32 to vector<4x4xf32>
    %595 = arith.addf %593, %594 : vector<4x4xf32>
    %596 = arith.mulf %595, %587 : vector<4x4xf32>
    %597 = arith.divf %592, %596 : vector<4x4xf32>
    %cst_296 = arith.constant dense<0.000000e+00> : vector<4xf32>
    %598 = vector.multi_reduction <add>, %597, %cst_296 [1] : vector<4x4xf32> to vector<4xf32>
    %599 = vector.shape_cast %598 : vector<4xf32> to vector<4x1xf32>
    %cst_297 = arith.constant dense<0.000000e+00> : vector<1xf32>
    %600 = vector.multi_reduction <add>, %599, %cst_297 [0] : vector<4x1xf32> to vector<1xf32>
    %601 = vector.shape_cast %600 : vector<1xf32> to vector<1x1xf32>
    %cst_298 = arith.constant 6.250000e-02 : f32
    %602 = vector.broadcast %cst_298 : f32 to vector<1x1xf32>
    %603 = arith.mulf %601, %602 : vector<1x1xf32>
    %cst_299 = arith.constant 1.000000e+00 : f32
    %604 = vector.broadcast %cst_299 : f32 to vector<1x1xf32>
    %605 = arith.addf %603, %604 : vector<1x1xf32>
    %cst_300 = arith.constant 5.000000e-01 : f32
    %606 = vector.broadcast %cst_300 : f32 to vector<1x1xf32>
    %607 = arith.mulf %605, %606 : vector<1x1xf32>
    %cst_301 = arith.constant 9.99999996E-13 : f32
    %608 = vector.broadcast %cst_301 : f32 to vector<1x1xf32>
    %609 = arith.maximumf %607, %608 : vector<1x1xf32>
    %610 = math.log %609 : vector<1x1xf32>
    %cst_302 = arith.constant 1.333000e-01 : f32
    %611 = vector.broadcast %cst_302 : f32 to vector<1x1xf32>
    %612 = arith.mulf %611, %610 : vector<1x1xf32>
    %613 = math.exp %612 : vector<1x1xf32>
    %614 = arith.mulf %553, %613 : vector<1x1xf32>
    %615 = tpu.iota {dimensions = array<i32: 1>} : vector<1x128xi32>
    %c0_i32 = arith.constant 0 : i32
    %616 = vector.broadcast %c0_i32 : i32 to vector<1x128xi32>
    %617 = arith.cmpi eq, %615, %616 : vector<1x128xi32>
    %618 = vector.shape_cast %323 : vector<1x1xf32> to vector<1x1xf32>
    %619 = vector.broadcast %618 : vector<1x1xf32> to vector<1x128xf32>
    %cst_303 = arith.constant 0.000000e+00 : f32
    %620 = vector.broadcast %cst_303 : f32 to vector<1x128xf32>
    %621 = arith.select %617, %619, %620 : vector<1x128xi1>, vector<1x128xf32>
    %c1_i32 = arith.constant 1 : i32
    %622 = vector.broadcast %c1_i32 : i32 to vector<1x128xi32>
    %623 = arith.cmpi eq, %615, %622 : vector<1x128xi32>
    %624 = vector.shape_cast %352 : vector<1x1xf32> to vector<1x1xf32>
    %625 = vector.broadcast %624 : vector<1x1xf32> to vector<1x128xf32>
    %cst_304 = arith.constant 0.000000e+00 : f32
    %626 = vector.broadcast %cst_304 : f32 to vector<1x128xf32>
    %627 = arith.select %623, %625, %626 : vector<1x128xi1>, vector<1x128xf32>
    %628 = arith.addf %621, %627 : vector<1x128xf32>
    %c2_i32 = arith.constant 2 : i32
    %629 = vector.broadcast %c2_i32 : i32 to vector<1x128xi32>
    %630 = arith.cmpi eq, %615, %629 : vector<1x128xi32>
    %631 = vector.shape_cast %614 : vector<1x1xf32> to vector<1x1xf32>
    %632 = vector.broadcast %631 : vector<1x1xf32> to vector<1x128xf32>
    %cst_305 = arith.constant 0.000000e+00 : f32
    %633 = vector.broadcast %cst_305 : f32 to vector<1x128xf32>
    %634 = arith.select %630, %632, %633 : vector<1x128xi1>, vector<1x128xf32>
    %635 = arith.addf %628, %634 : vector<1x128xf32>
    %c0_306 = arith.constant 0 : index
    %c0_307 = arith.constant 0 : index
    %c0_308 = arith.constant 0 : index
    %636 = vector.load %arg21[%c0_306, %c0_307, %c0_308] : memref<1x1x128xf32, #tpu.memory_space<vmem>>, vector<1x1x128xf32>
    %637 = vector.shape_cast %636 : vector<1x1x128xf32> to vector<1x128xf32>
    %638 = vector.shape_cast %635 : vector<1x128xf32> to vector<1x1x128xf32>
    tpu.vector_store %arg21[%c0_306, %c0_307, %c0_308], %638 {strides = array<i32>} : memref<1x1x128xf32, #tpu.memory_space<vmem>>, vector<1x1x128xf32>,
    return
  }
  func.func @transform_0(%arg0: i32) -> (i32, i32, i32, i32) {
    %c0_i32 = arith.constant 0 : i32
    %c0_i32_0 = arith.constant 0 : i32
    %c0_i32_1 = arith.constant 0 : i32
    %c0_i32_2 = arith.constant 0 : i32
    return %arg0, %c0_i32, %c0_i32_0, %c0_i32_1 : i32, i32, i32, i32
  }
  func.func @transform_1(%arg0: i32) -> (i32, i32, i32, i32) {
    %c0_i32 = arith.constant 0 : i32
    %c0_i32_0 = arith.constant 0 : i32
    %c0_i32_1 = arith.constant 0 : i32
    %c0_i32_2 = arith.constant 0 : i32
    return %arg0, %c0_i32, %c0_i32_0, %c0_i32_1 : i32, i32, i32, i32
  }
  func.func @transform_2(%arg0: i32) -> (i32, i32) {
    %c0_i32 = arith.constant 0 : i32
    %c0_i32_0 = arith.constant 0 : i32
    %c0_i32_1 = arith.constant 0 : i32
    return %c0_i32, %c0_i32_0 : i32, i32
  }
  func.func @transform_3(%arg0: i32) -> (i32, i32) {
    %c0_i32 = arith.constant 0 : i32
    %c0_i32_0 = arith.constant 0 : i32
    %c0_i32_1 = arith.constant 0 : i32
    return %c0_i32, %c0_i32_0 : i32, i32
  }
  func.func @transform_4(%arg0: i32) -> (i32, i32) {
    %c0_i32 = arith.constant 0 : i32
    %c0_i32_0 = arith.constant 0 : i32
    %c0_i32_1 = arith.constant 0 : i32
    return %c0_i32, %c0_i32_0 : i32, i32
  }
  func.func @transform_5(%arg0: i32) -> (i32, i32) {
    %c0_i32 = arith.constant 0 : i32
    %c0_i32_0 = arith.constant 0 : i32
    %c0_i32_1 = arith.constant 0 : i32
    return %c0_i32, %c0_i32_0 : i32, i32
  }
  func.func @transform_6(%arg0: i32) -> (i32, i32) {
    %c0_i32 = arith.constant 0 : i32
    %c0_i32_0 = arith.constant 0 : i32
    %c0_i32_1 = arith.constant 0 : i32
    return %c0_i32, %c0_i32_0 : i32, i32
  }
  func.func @transform_7(%arg0: i32) -> (i32, i32) {
    %c0_i32 = arith.constant 0 : i32
    %c0_i32_0 = arith.constant 0 : i32
    %c0_i32_1 = arith.constant 0 : i32
    return %c0_i32, %c0_i32_0 : i32, i32
  }
  func.func @transform_8(%arg0: i32) -> (i32, i32) {
    %c0_i32 = arith.constant 0 : i32
    %c0_i32_0 = arith.constant 0 : i32
    %c0_i32_1 = arith.constant 0 : i32
    return %c0_i32, %c0_i32_0 : i32, i32
  }
  func.func @transform_9(%arg0: i32) -> (i32, i32) {
    %c0_i32 = arith.constant 0 : i32
    %c0_i32_0 = arith.constant 0 : i32
    %c0_i32_1 = arith.constant 0 : i32
    return %c0_i32, %c0_i32_0 : i32, i32
  }
  func.func @transform_10(%arg0: i32) -> (i32, i32) {
    %c0_i32 = arith.constant 0 : i32
    %c0_i32_0 = arith.constant 0 : i32
    %c0_i32_1 = arith.constant 0 : i32
    return %c0_i32, %c0_i32_0 : i32, i32
  }
  func.func @transform_11(%arg0: i32) -> (i32, i32) {
    %c0_i32 = arith.constant 0 : i32
    %c0_i32_0 = arith.constant 0 : i32
    %c0_i32_1 = arith.constant 0 : i32
    return %c0_i32, %c0_i32_0 : i32, i32
  }
  func.func @transform_12(%arg0: i32) -> (i32, i32) {
    %c0_i32 = arith.constant 0 : i32
    %c0_i32_0 = arith.constant 0 : i32
    %c0_i32_1 = arith.constant 0 : i32
    return %c0_i32, %c0_i32_0 : i32, i32
  }
  func.func @transform_13(%arg0: i32) -> (i32, i32) {
    %c0_i32 = arith.constant 0 : i32
    %c0_i32_0 = arith.constant 0 : i32
    %c0_i32_1 = arith.constant 0 : i32
    return %c0_i32, %c0_i32_0 : i32, i32
  }
  func.func @transform_14(%arg0: i32) -> (i32, i32) {
    %c0_i32 = arith.constant 0 : i32
    %c0_i32_0 = arith.constant 0 : i32
    %c0_i32_1 = arith.constant 0 : i32
    return %c0_i32, %c0_i32_0 : i32, i32
  }
  func.func @transform_15(%arg0: i32) -> (i32, i32) {
    %c0_i32 = arith.constant 0 : i32
    %c0_i32_0 = arith.constant 0 : i32
    %c0_i32_1 = arith.constant 0 : i32
    return %c0_i32, %c0_i32_0 : i32, i32
  }
  func.func @transform_16(%arg0: i32) -> (i32, i32) {
    %c0_i32 = arith.constant 0 : i32
    %c0_i32_0 = arith.constant 0 : i32
    %c0_i32_1 = arith.constant 0 : i32
    return %c0_i32, %c0_i32_0 : i32, i32
  }
  func.func @transform_17(%arg0: i32) -> (i32, i32) {
    %c0_i32 = arith.constant 0 : i32
    %c0_i32_0 = arith.constant 0 : i32
    %c0_i32_1 = arith.constant 0 : i32
    return %c0_i32, %c0_i32_0 : i32, i32
  }
  func.func @transform_18(%arg0: i32) -> (i32, i32) {
    %c0_i32 = arith.constant 0 : i32
    %c0_i32_0 = arith.constant 0 : i32
    %c0_i32_1 = arith.constant 0 : i32
    return %c0_i32, %c0_i32_0 : i32, i32
  }
  func.func @transform_19(%arg0: i32) -> (i32, i32) {
    %c0_i32 = arith.constant 0 : i32
    %c0_i32_0 = arith.constant 0 : i32
    %c0_i32_1 = arith.constant 0 : i32
    return %c0_i32, %c0_i32_0 : i32, i32
  }
  func.func @transform_20(%arg0: i32) -> (i32, i32, i32) {
    %c0_i32 = arith.constant 0 : i32
    %c0_i32_0 = arith.constant 0 : i32
    %c0_i32_1 = arith.constant 0 : i32
    return %arg0, %c0_i32, %c0_i32_0 : i32, i32, i32
  }
}

</mosaic_0001>

<llo_original>
// kernel: _lambda_.1
$region0: #{_lambda_.1}
  #allocation0 [shape = 'u32[]', space=smem, size = 0x4, offset = 0x4, fixed_abs, tag = 'smem constant byte address 0x4 - core index']
  #allocation1 [shape = 'u32[144,128]{1,0:T(1,128)}', space=vmem, size = 0x12000, scoped, tag = 'internal scratch']
  %s0 = inlined_call_operand.hbm [shape: f32[2,3,64,64], index: 0, kind: input, shape index: {}]
  %s1 = inlined_call_operand.hbm [shape: f32[2,3,64,64], index: 1, kind: input, shape index: {}]
  %s2 = inlined_call_operand.hbm [shape: f32[64,64], index: 2, kind: input, shape index: {}, may-alias: {2,7}]
  %s3 = inlined_call_operand.hbm [shape: f32[32,32], index: 3, kind: input, shape index: {}, may-alias: {3,8}]
  %s4 = inlined_call_operand.vmem [shape: f32[16,16], index: 4, kind: input, shape index: {}, may-alias: {4,9}]
  %s5 = inlined_call_operand.vmem [shape: f32[8,8], index: 5, kind: input, shape index: {}, may-alias: {5,10}]
  %s6 = inlined_call_operand.hbm [shape: f32[4,4], index: 6, kind: input, shape index: {}, may-alias: {6,11}]
  %s7 = inlined_call_operand.hbm [shape: f32[64,64], index: 7, kind: input, shape index: {}, may-alias: {2,7}]
  %s8 = inlined_call_operand.hbm [shape: f32[32,32], index: 8, kind: input, shape index: {}, may-alias: {3,8}]
  %s9 = inlined_call_operand.vmem [shape: f32[16,16], index: 9, kind: input, shape index: {}, may-alias: {4,9}]
  %s10 = inlined_call_operand.vmem [shape: f32[8,8], index: 10, kind: input, shape index: {}, may-alias: {5,10}]
  %s11 = inlined_call_operand.hbm [shape: f32[4,4], index: 11, kind: input, shape index: {}, may-alias: {6,11}]
  %s12 = inlined_call_operand.hbm [shape: f32[32,64], index: 12, kind: input, shape index: {}]
  %s13 = inlined_call_operand.hbm [shape: f32[16,32], index: 13, kind: input, shape index: {}]
  %s14 = inlined_call_operand.hbm [shape: f32[8,16], index: 14, kind: input, shape index: {}]
  %s15 = inlined_call_operand.hbm [shape: f32[4,8], index: 15, kind: input, shape index: {}]
  %s16 = inlined_call_operand.hbm [shape: f32[64,32], index: 16, kind: input, shape index: {}]
  %s17 = inlined_call_operand.vmem [shape: f32[32,16], index: 17, kind: input, shape index: {}]
  %s18 = inlined_call_operand.hbm [shape: f32[16,8], index: 18, kind: input, shape index: {}]
  %s19 = inlined_call_operand.vmem [shape: f32[8,4], index: 19, kind: input, shape index: {}]
  %s20 = inlined_call_operand.vmem [shape: f32[2,1,128], index: 20, kind: output, shape index: {}]
  %s21 = sld [smem:[#allocation0]]
  $region169: #{_lambda_.1} parent=0
    _
  %s23 = ssub.s32 1, %s21
  %s24 = scalar_select 0, %s23, %s21
  $region1: #{_lambda_.1} parent=0
    #allocation2 [shape = 'u8[196608]{0}', space=vmem, size = 0x30000, scoped, tag = 'input window, operand 0']
    #allocation3 [shape = 's32[2]{0}', space=sflag, size = 0x8, scoped, tag = 'scoped memory for _lambda_.1']
    #allocation4 [shape = 'u8[196608]{0}', space=vmem, size = 0x30000, scoped, tag = 'input window, operand 1']
    #allocation5 [shape = 's32[2]{0}', space=sflag, size = 0x8, scoped, tag = 'scoped memory for _lambda_.1']
    #allocation6 [shape = 'u8[32768]{0}', space=vmem, size = 0x8000, scoped, tag = 'input window, operand 2, single buffered']
    #allocation7 [shape = 'u8[16384]{0}', space=vmem, size = 0x4000, scoped, tag = 'input window, operand 3, single buffered']
    #allocation8 [shape = 's32[1]{0}', space=sflag, size = 0x4, scoped, tag = 'scoped memory for _lambda_.1']
    #allocation9 [shape = 'u8[2048]{0}', space=vmem, size = 0x800, scoped, tag = 'input window, operand 6, single buffered']
    #allocation10 [shape = 'u8[32768]{0}', space=vmem, size = 0x8000, scoped, tag = 'input window, operand 7, single buffered']
    #allocation11 [shape = 's32[1]{0}', space=sflag, size = 0x4, scoped, tag = 'scoped memory for _lambda_.1']
    #allocation12 [shape = 'u8[16384]{0}', space=vmem, size = 0x4000, scoped, tag = 'input window, operand 8, single buffered']
    #allocation13 [shape = 'u8[2048]{0}', space=vmem, size = 0x800, scoped, tag = 'input window, operand 11, single buffered']
    #allocation14 [shape = 's32[1]{0}', space=sflag, size = 0x4, scoped, tag = 'scoped memory for _lambda_.1']
    #allocation15 [shape = 'u8[16384]{0}', space=vmem, size = 0x4000, scoped, tag = 'input window, operand 12, single buffered']
    #allocation16 [shape = 'u8[8192]{0}', space=vmem, size = 0x2000, scoped, tag = 'input window, operand 13, single buffered']
    #allocation17 [shape = 's32[1]{0}', space=sflag, size = 0x4, scoped, tag = 'scoped memory for _lambda_.1']
    #allocation18 [shape = 'u8[4096]{0}', space=vmem, size = 0x1000, scoped, tag = 'input window, operand 14, single buffered']
    #allocation19 [shape = 'u8[2048]{0}', space=vmem, size = 0x800, scoped, tag = 'input window, operand 15, single buffered']
    #allocation20 [shape = 's32[1]{0}', space=sflag, size = 0x4, scoped, tag = 'scoped memory for _lambda_.1']
    #allocation21 [shape = 'u8[32768]{0}', space=vmem, size = 0x8000, scoped, tag = 'input window, operand 16, single buffered']
    #allocation22 [shape = 'u8[8192]{0}', space=vmem, size = 0x2000, scoped, tag = 'input window, operand 18, single buffered']
    #allocation23 [shape = 's32[1]{0}', space=sflag, size = 0x4, scoped, tag = 'scoped memory for _lambda_.1']
    %25 = vsyncpa [#allocation3], 0
    %s26 = scalar_lea.sflag [#allocation3], 1
    %27 = vsyncpa %s26, 0
    %28 = vsyncpa [#allocation5], 0
    %s29 = scalar_lea.sflag [#allocation5], 1
    %30 = vsyncpa %s29, 0
    %31 = vsyncpa [#allocation8], 0
    %32 = vsyncpa [#allocation11], 0
    %33 = vsyncpa [#allocation14], 0
    %34 = vsyncpa [#allocation17], 0
    %35 = vsyncpa [#allocation20], 0
    %36 = vsyncpa [#allocation23], 0
    loop: start=0, step=1, limit=4
    $region2: #{_lambda_.1} parent=1 // loop_pre_header
      _
    $region3: #{_lambda_.1} parent=1 // loop_header
      %s38 = sphi 0, %s42
      %p39 = scmp.ge.s32.totalorder %s38, 4
      %s48 = sphi 0, %s50
      %s51 = sphi 0, %s48
      %s52 = sphi 0, %s51
      %s68 = sphi 0, %s52
      %s74 = sphi 0, %s76
      %s77 = sphi 0, %s74
      %s78 = sphi 0, %s77
      %s94 = sphi 0, %s78
      %s98 = sphi 0, %s98
      %s100 = sphi 0, %s98
      %s101 = sphi 0, %s100
      %s115 = sphi 0, %s101
      %s119 = sphi 0, %s119
      %s121 = sphi 0, %s119
      %s122 = sphi 0, %s121
      %s136 = sphi 0, %s122
      %s140 = sphi 0, %s140
      %s142 = sphi 0, %s140
      %s143 = sphi 0, %s142
      %s157 = sphi 0, %s143
      %s161 = sphi 0, %s161
      %s163 = sphi 0, %s161
      %s164 = sphi 0, %s163
      %s178 = sphi 0, %s164
      %s182 = sphi 0, %s182
      %s184 = sphi 0, %s182
      %s185 = sphi 0, %s184
      %s199 = sphi 0, %s185
      %s203 = sphi 0, %s203
      %s205 = sphi 0, %s203
      %s206 = sphi 0, %s205
      %s220 = sphi 0, %s206
      %s224 = sphi 0, %s224
      %s226 = sphi 0, %s224
      %s227 = sphi 0, %s226
      %s241 = sphi 0, %s227
      %s245 = sphi 0, %s245
      %s247 = sphi 0, %s245
      %s248 = sphi 0, %s247
      %s262 = sphi 0, %s248
      %s266 = sphi 0, %s266
      %s268 = sphi 0, %s266
      %s269 = sphi 0, %s268
      %s283 = sphi 0, %s269
      %s287 = sphi 0, %s287
      %s289 = sphi 0, %s287
      %s290 = sphi 0, %s289
      %s304 = sphi 0, %s290
      %s308 = sphi 0, %s308
      %s310 = sphi 0, %s308
      %s311 = sphi 0, %s310
      %s325 = sphi 0, %s311
      %s329 = sphi 0, %s329
      %s331 = sphi 0, %s329
      %s332 = sphi 0, %s331
      %s346 = sphi 0, %s332
      %s350 = sphi 0, %s350
      %s352 = sphi 0, %s350
      %s353 = sphi 0, %s352
      %s367 = sphi 0, %s353
      %s371 = sphi 0, %s371
      %s373 = sphi 0, %s371
      %s374 = sphi 0, %s373
      %s388 = sphi 0, %s374
      %s392 = sphi 0, %s392
      %s394 = sphi 0, %s392
      %s395 = sphi 0, %s394
      %s409 = sphi 0, %s395
      %s413 = sphi 0, %s413
      %s415 = sphi 0, %s413
      %s416 = sphi 0, %s415
      %s430 = sphi 0, %s416
      %s434 = sphi 0, %s434
      %s436 = sphi 0, %s434
      %s437 = sphi 0, %s436
      %s451 = sphi 0, %s437
      %s455 = sphi 0, %s455
      %s457 = sphi 0, %s455
      %s458 = sphi 0, %s457
      %s472 = sphi 0, %s458
      %s478 = sphi 0, %s480
      %s481 = sphi 0, %s478
      %s482 = sphi 0, %s481
      %s498 = sphi 0, %s482
    $region4: #{_lambda_.1} parent=1 // loop_header_branch
      %41 = sbr.rel (%p39) target = $region8
    $region5: #{_lambda_.1} parent=1 // loop_body
      %s43 = ssub.s32 %s38, 1
      %s44 = ssub.s32 %s38, 2
      %s45 = sadd.s32 %s38, 1
      %s46 = ssub.s32 %s38, %s45
      %p47 = scmp.eq.s32.totalorder %s46, 0
      %s49 = sadd.s32 %s48, 1
      %s50 = scalar_select %p47, %s48, %s49
      %p53 = pneg %p47
      %p54 = scmp.eq.s32.totalorder %s38, 1
      %p55 = por %p53, %p54
      %p56 = scmp.ne.s32.totalorder %s48, %s51
      %p57 = scmp.eq.s32.totalorder %s38, 0
      %p58 = por %p56, %p57
      %p59 = scmp.ne.s32.totalorder %s48, %s51
      %p60 = scmp.eq.s32.totalorder %s43, 1
      %p61 = por %p59, %p60
      %p62 = scmp.ne.s32.totalorder %s51, %s52
      %p63 = scmp.eq.s32.totalorder %s43, 0
      %p64 = por %p62, %p63
      %p65 = scmp.ne.s32.totalorder %s51, %s52
      %p66 = scmp.eq.s32.totalorder %s44, 1
      %p67 = por %p65, %p66
      %p69 = scmp.ne.s32.totalorder %s52, %s68
      %p70 = scmp.eq.s32.totalorder %s44, 0
      %p71 = por %p69, %p70
      %s72 = ssub.s32 %s38, %s45
      %p73 = scmp.eq.s32.totalorder %s72, 0
      %s75 = sadd.s32 %s74, 1
      %s76 = scalar_select %p73, %s74, %s75
      %p79 = pneg %p73
      %p80 = scmp.eq.s32.totalorder %s38, 1
      %p81 = por %p79, %p80
      %p82 = scmp.ne.s32.totalorder %s74, %s77
      %p83 = scmp.eq.s32.totalorder %s38, 0
      %p84 = por %p82, %p83
      %p85 = scmp.ne.s32.totalorder %s74, %s77
      %p86 = scmp.eq.s32.totalorder %s43, 1
      %p87 = por %p85, %p86
      %p88 = scmp.ne.s32.totalorder %s77, %s78
      %p89 = scmp.eq.s32.totalorder %s43, 0
      %p90 = por %p88, %p89
      %p91 = scmp.ne.s32.totalorder %s77, %s78
      %p92 = scmp.eq.s32.totalorder %s44, 1
      %p93 = por %p91, %p92
      %p95 = scmp.ne.s32.totalorder %s78, %s94
      %p96 = scmp.eq.s32.totalorder %s44, 0
      %p97 = por %p95, %p96
      %s99 = sadd.s32 %s98, 1
      %p102 = scmp.eq.s32.totalorder %s38, 1
      %p103 = scmp.ne.s32.totalorder %s98, %s100
      %p104 = scmp.eq.s32.totalorder %s38, 0
      %p105 = por %p103, %p104
      %p106 = scmp.ne.s32.totalorder %s98, %s100
      %p107 = scmp.eq.s32.totalorder %s43, 1
      %p108 = por %p106, %p107
      %p109 = scmp.ne.s32.totalorder %s100, %s101
      %p110 = scmp.eq.s32.totalorder %s43, 0
      %p111 = por %p109, %p110
      %p112 = scmp.ne.s32.totalorder %s100, %s101
      %p113 = scmp.eq.s32.totalorder %s44, 1
      %p114 = por %p112, %p113
      %p116 = scmp.ne.s32.totalorder %s101, %s115
      %p117 = scmp.eq.s32.totalorder %s44, 0
      %p118 = por %p116, %p117
      %s120 = sadd.s32 %s119, 1
      %p123 = scmp.eq.s32.totalorder %s38, 1
      %p124 = scmp.ne.s32.totalorder %s119, %s121
      %p125 = scmp.eq.s32.totalorder %s38, 0
      %p126 = por %p124, %p125
      %p127 = scmp.ne.s32.totalorder %s119, %s121
      %p128 = scmp.eq.s32.totalorder %s43, 1
      %p129 = por %p127, %p128
      %p130 = scmp.ne.s32.totalorder %s121, %s122
      %p131 = scmp.eq.s32.totalorder %s43, 0
      %p132 = por %p130, %p131
      %p133 = scmp.ne.s32.totalorder %s121, %s122
      %p134 = scmp.eq.s32.totalorder %s44, 1
      %p135 = por %p133, %p134
      %p137 = scmp.ne.s32.totalorder %s122, %s136
      %p138 = scmp.eq.s32.totalorder %s44, 0
      %p139 = por %p137, %p138
      %s141 = sadd.s32 %s140, 1
      %p144 = scmp.eq.s32.totalorder %s38, 1
      %p145 = scmp.ne.s32.totalorder %s140, %s142
      %p146 = scmp.eq.s32.totalorder %s38, 0
      %p147 = por %p145, %p146
      %p148 = scmp.ne.s32.totalorder %s140, %s142
      %p149 = scmp.eq.s32.totalorder %s43, 1
      %p150 = por %p148, %p149
      %p151 = scmp.ne.s32.totalorder %s142, %s143
      %p152 = scmp.eq.s32.totalorder %s43, 0
      %p153 = por %p151, %p152
      %p154 = scmp.ne.s32.totalorder %s142, %s143
      %p155 = scmp.eq.s32.totalorder %s44, 1
      %p156 = por %p154, %p155
      %p158 = scmp.ne.s32.totalorder %s143, %s157
      %p159 = scmp.eq.s32.totalorder %s44, 0
      %p160 = por %p158, %p159
      %s162 = sadd.s32 %s161, 1
      %p165 = scmp.eq.s32.totalorder %s38, 1
      %p166 = scmp.ne.s32.totalorder %s161, %s163
      %p167 = scmp.eq.s32.totalorder %s38, 0
      %p168 = por %p166, %p167
      %p169 = scmp.ne.s32.totalorder %s161, %s163
      %p170 = scmp.eq.s32.totalorder %s43, 1
      %p171 = por %p169, %p170
      %p172 = scmp.ne.s32.totalorder %s163, %s164
      %p173 = scmp.eq.s32.totalorder %s43, 0
      %p174 = por %p172, %p173
      %p175 = scmp.ne.s32.totalorder %s163, %s164
      %p176 = scmp.eq.s32.totalorder %s44, 1
      %p177 = por %p175, %p176
      %p179 = scmp.ne.s32.totalorder %s164, %s178
      %p180 = scmp.eq.s32.totalorder %s44, 0
      %p181 = por %p179, %p180
      %s183 = sadd.s32 %s182, 1
      %p186 = scmp.eq.s32.totalorder %s38, 1
      %p187 = scmp.ne.s32.totalorder %s182, %s184
      %p188 = scmp.eq.s32.totalorder %s38, 0
      %p189 = por %p187, %p188
      %p190 = scmp.ne.s32.totalorder %s182, %s184
      %p191 = scmp.eq.s32.totalorder %s43, 1
      %p192 = por %p190, %p191
      %p193 = scmp.ne.s32.totalorder %s184, %s185
      %p194 = scmp.eq.s32.totalorder %s43, 0
      %p195 = por %p193, %p194
      %p196 = scmp.ne.s32.totalorder %s184, %s185
      %p197 = scmp.eq.s32.totalorder %s44, 1
      %p198 = por %p196, %p197
      %p200 = scmp.ne.s32.totalorder %s185, %s199
      %p201 = scmp.eq.s32.totalorder %s44, 0
      %p202 = por %p200, %p201
      %s204 = sadd.s32 %s203, 1
      %p207 = scmp.eq.s32.totalorder %s38, 1
      %p208 = scmp.ne.s32.totalorder %s203, %s205
      %p209 = scmp.eq.s32.totalorder %s38, 0
      %p210 = por %p208, %p209
      %p211 = scmp.ne.s32.totalorder %s203, %s205
      %p212 = scmp.eq.s32.totalorder %s43, 1
      %p213 = por %p211, %p212
      %p214 = scmp.ne.s32.totalorder %s205, %s206
      %p215 = scmp.eq.s32.totalorder %s43, 0
      %p216 = por %p214, %p215
      %p217 = scmp.ne.s32.totalorder %s205, %s206
      %p218 = scmp.eq.s32.totalorder %s44, 1
      %p219 = por %p217, %p218
      %p221 = scmp.ne.s32.totalorder %s206, %s220
      %p222 = scmp.eq.s32.totalorder %s44, 0
      %p223 = por %p221, %p222
      %s225 = sadd.s32 %s224, 1
      %p228 = scmp.eq.s32.totalorder %s38, 1
      %p229 = scmp.ne.s32.totalorder %s224, %s226
      %p230 = scmp.eq.s32.totalorder %s38, 0
      %p231 = por %p229, %p230
      %p232 = scmp.ne.s32.totalorder %s224, %s226
      %p233 = scmp.eq.s32.totalorder %s43, 1
      %p234 = por %p232, %p233
      %p235 = scmp.ne.s32.totalorder %s226, %s227
      %p236 = scmp.eq.s32.totalorder %s43, 0
      %p237 = por %p235, %p236
      %p238 = scmp.ne.s32.totalorder %s226, %s227
      %p239 = scmp.eq.s32.totalorder %s44, 1
      %p240 = por %p238, %p239
      %p242 = scmp.ne.s32.totalorder %s227, %s241
      %p243 = scmp.eq.s32.totalorder %s44, 0
      %p244 = por %p242, %p243
      %s246 = sadd.s32 %s245, 1
      %p249 = scmp.eq.s32.totalorder %s38, 1
      %p250 = scmp.ne.s32.totalorder %s245, %s247
      %p251 = scmp.eq.s32.totalorder %s38, 0
      %p252 = por %p250, %p251
      %p253 = scmp.ne.s32.totalorder %s245, %s247
      %p254 = scmp.eq.s32.totalorder %s43, 1
      %p255 = por %p253, %p254
      %p256 = scmp.ne.s32.totalorder %s247, %s248
      %p257 = scmp.eq.s32.totalorder %s43, 0
      %p258 = por %p256, %p257
      %p259 = scmp.ne.s32.totalorder %s247, %s248
      %p260 = scmp.eq.s32.totalorder %s44, 1
      %p261 = por %p259, %p260
      %p263 = scmp.ne.s32.totalorder %s248, %s262
      %p264 = scmp.eq.s32.totalorder %s44, 0
      %p265 = por %p263, %p264
      %s267 = sadd.s32 %s266, 1
      %p270 = scmp.eq.s32.totalorder %s38, 1
      %p271 = scmp.ne.s32.totalorder %s266, %s268
      %p272 = scmp.eq.s32.totalorder %s38, 0
      %p273 = por %p271, %p272
      %p274 = scmp.ne.s32.totalorder %s266, %s268
      %p275 = scmp.eq.s32.totalorder %s43, 1
      %p276 = por %p274, %p275
      %p277 = scmp.ne.s32.totalorder %s268, %s269
      %p278 = scmp.eq.s32.totalorder %s43, 0
      %p279 = por %p277, %p278
      %p280 = scmp.ne.s32.totalorder %s268, %s269
      %p281 = scmp.eq.s32.totalorder %s44, 1
      %p282 = por %p280, %p281
      %p284 = scmp.ne.s32.totalorder %s269, %s283
      %p285 = scmp.eq.s32.totalorder %s44, 0
      %p286 = por %p284, %p285
      %s288 = sadd.s32 %s287, 1
      %p291 = scmp.eq.s32.totalorder %s38, 1
      %p292 = scmp.ne.s32.totalorder %s287, %s289
      %p293 = scmp.eq.s32.totalorder %s38, 0
      %p294 = por %p292, %p293
      %p295 = scmp.ne.s32.totalorder %s287, %s289
      %p296 = scmp.eq.s32.totalorder %s43, 1
      %p297 = por %p295, %p296
      %p298 = scmp.ne.s32.totalorder %s289, %s290
      %p299 = scmp.eq.s32.totalorder %s43, 0
      %p300 = por %p298, %p299
      %p301 = scmp.ne.s32.totalorder %s289, %s290
      %p302 = scmp.eq.s32.totalorder %s44, 1
      %p303 = por %p301, %p302
      %p305 = scmp.ne.s32.totalorder %s290, %s304
      %p306 = scmp.eq.s32.totalorder %s44, 0
      %p307 = por %p305, %p306
      %s309 = sadd.s32 %s308, 1
      %p312 = scmp.eq.s32.totalorder %s38, 1
      %p313 = scmp.ne.s32.totalorder %s308, %s310
      %p314 = scmp.eq.s32.totalorder %s38, 0
      %p315 = por %p313, %p314
      %p316 = scmp.ne.s32.totalorder %s308, %s310
      %p317 = scmp.eq.s32.totalorder %s43, 1
      %p318 = por %p316, %p317
      %p319 = scmp.ne.s32.totalorder %s310, %s311
      %p320 = scmp.eq.s32.totalorder %s43, 0
      %p321 = por %p319, %p320
      %p322 = scmp.ne.s32.totalorder %s310, %s311
      %p323 = scmp.eq.s32.totalorder %s44, 1
      %p324 = por %p322, %p323
      %p326 = scmp.ne.s32.totalorder %s311, %s325
      %p327 = scmp.eq.s32.totalorder %s44, 0
      %p328 = por %p326, %p327
      %s330 = sadd.s32 %s329, 1
      %p333 = scmp.eq.s32.totalorder %s38, 1
      %p334 = scmp.ne.s32.totalorder %s329, %s331
      %p335 = scmp.eq.s32.totalorder %s38, 0
      %p336 = por %p334, %p335
      %p337 = scmp.ne.s32.totalorder %s329, %s331
      %p338 = scmp.eq.s32.totalorder %s43, 1
      %p339 = por %p337, %p338
      %p340 = scmp.ne.s32.totalorder %s331, %s332
      %p341 = scmp.eq.s32.totalorder %s43, 0
      %p342 = por %p340, %p341
      %p343 = scmp.ne.s32.totalorder %s331, %s332
      %p344 = scmp.eq.s32.totalorder %s44, 1
      %p345 = por %p343, %p344
      %p347 = scmp.ne.s32.totalorder %s332, %s346
      %p348 = scmp.eq.s32.totalorder %s44, 0
      %p349 = por %p347, %p348
      %s351 = sadd.s32 %s350, 1
      %p354 = scmp.eq.s32.totalorder %s38, 1
      %p355 = scmp.ne.s32.totalorder %s350, %s352
      %p356 = scmp.eq.s32.totalorder %s38, 0
      %p357 = por %p355, %p356
      %p358 = scmp.ne.s32.totalorder %s350, %s352
      %p359 = scmp.eq.s32.totalorder %s43, 1
      %p360 = por %p358, %p359
      %p361 = scmp.ne.s32.totalorder %s352, %s353
      %p362 = scmp.eq.s32.totalorder %s43, 0
      %p363 = por %p361, %p362
      %p364 = scmp.ne.s32.totalorder %s352, %s353
      %p365 = scmp.eq.s32.totalorder %s44, 1
      %p366 = por %p364, %p365
      %p368 = scmp.ne.s32.totalorder %s353, %s367
      %p369 = scmp.eq.s32.totalorder %s44, 0
      %p370 = por %p368, %p369
      %s372 = sadd.s32 %s371, 1
      %p375 = scmp.eq.s32.totalorder %s38, 1
      %p376 = scmp.ne.s32.totalorder %s371, %s373
      %p377 = scmp.eq.s32.totalorder %s38, 0
      %p378 = por %p376, %p377
      %p379 = scmp.ne.s32.totalorder %s371, %s373
      %p380 = scmp.eq.s32.totalorder %s43, 1
      %p381 = por %p379, %p380
      %p382 = scmp.ne.s32.totalorder %s373, %s374
      %p383 = scmp.eq.s32.totalorder %s43, 0
      %p384 = por %p382, %p383
      %p385 = scmp.ne.s32.totalorder %s373, %s374
      %p386 = scmp.eq.s32.totalorder %s44, 1
      %p387 = por %p385, %p386
      %p389 = scmp.ne.s32.totalorder %s374, %s388
      %p390 = scmp.eq.s32.totalorder %s44, 0
      %p391 = por %p389, %p390
      %s393 = sadd.s32 %s392, 1
      %p396 = scmp.eq.s32.totalorder %s38, 1
      %p397 = scmp.ne.s32.totalorder %s392, %s394
      %p398 = scmp.eq.s32.totalorder %s38, 0
      %p399 = por %p397, %p398
      %p400 = scmp.ne.s32.totalorder %s392, %s394
      %p401 = scmp.eq.s32.totalorder %s43, 1
      %p402 = por %p400, %p401
      %p403 = scmp.ne.s32.totalorder %s394, %s395
      %p404 = scmp.eq.s32.totalorder %s43, 0
      %p405 = por %p403, %p404
      %p406 = scmp.ne.s32.totalorder %s394, %s395
      %p407 = scmp.eq.s32.totalorder %s44, 1
      %p408 = por %p406, %p407
      %p410 = scmp.ne.s32.totalorder %s395, %s409
      %p411 = scmp.eq.s32.totalorder %s44, 0
      %p412 = por %p410, %p411
      %s414 = sadd.s32 %s413, 1
      %p417 = scmp.eq.s32.totalorder %s38, 1
      %p418 = scmp.ne.s32.totalorder %s413, %s415
      %p419 = scmp.eq.s32.totalorder %s38, 0
      %p420 = por %p418, %p419
      %p421 = scmp.ne.s32.totalorder %s413, %s415
      %p422 = scmp.eq.s32.totalorder %s43, 1
      %p423 = por %p421, %p422
      %p424 = scmp.ne.s32.totalorder %s415, %s416
      %p425 = scmp.eq.s32.totalorder %s43, 0
      %p426 = por %p424, %p425
      %p427 = scmp.ne.s32.totalorder %s415, %s416
      %p428 = scmp.eq.s32.totalorder %s44, 1
      %p429 = por %p427, %p428
      %p431 = scmp.ne.s32.totalorder %s416, %s430
      %p432 = scmp.eq.s32.totalorder %s44, 0
      %p433 = por %p431, %p432
      %s435 = sadd.s32 %s434, 1
      %p438 = scmp.eq.s32.totalorder %s38, 1
      %p439 = scmp.ne.s32.totalorder %s434, %s436
      %p440 = scmp.eq.s32.totalorder %s38, 0
      %p441 = por %p439, %p440
      %p442 = scmp.ne.s32.totalorder %s434, %s436
      %p443 = scmp.eq.s32.totalorder %s43, 1
      %p444 = por %p442, %p443
      %p445 = scmp.ne.s32.totalorder %s436, %s437
      %p446 = scmp.eq.s32.totalorder %s43, 0
      %p447 = por %p445, %p446
      %p448 = scmp.ne.s32.totalorder %s436, %s437
      %p449 = scmp.eq.s32.totalorder %s44, 1
      %p450 = por %p448, %p449
      %p452 = scmp.ne.s32.totalorder %s437, %s451
      %p453 = scmp.eq.s32.totalorder %s44, 0
      %p454 = por %p452, %p453
      %s456 = sadd.s32 %s455, 1
      %p459 = scmp.eq.s32.totalorder %s38, 1
      %p460 = scmp.ne.s32.totalorder %s455, %s457
      %p461 = scmp.eq.s32.totalorder %s38, 0
      %p462 = por %p460, %p461
      %p463 = scmp.ne.s32.totalorder %s455, %s457
      %p464 = scmp.eq.s32.totalorder %s43, 1
      %p465 = por %p463, %p464
      %p466 = scmp.ne.s32.totalorder %s457, %s458
      %p467 = scmp.eq.s32.totalorder %s43, 0
      %p468 = por %p466, %p467
      %p469 = scmp.ne.s32.totalorder %s457, %s458
      %p470 = scmp.eq.s32.totalorder %s44, 1
      %p471 = por %p469, %p470
      %p473 = scmp.ne.s32.totalorder %s458, %s472
      %p474 = scmp.eq.s32.totalorder %s44, 0
      %p475 = por %p473, %p474
      %s476 = ssub.s32 %s38, %s45
      %p477 = scmp.eq.s32.totalorder %s476, 0
      %s479 = sadd.s32 %s478, 1
      %s480 = scalar_select %p477, %s478, %s479
      %p483 = pneg %p477
      %p484 = scmp.eq.s32.totalorder %s38, 1
      %p485 = por %p483, %p484
      %p486 = scmp.ne.s32.totalorder %s478, %s481
      %p487 = scmp.eq.s32.totalorder %s38, 0
      %p488 = por %p486, %p487
      %p489 = scmp.ne.s32.totalorder %s478, %s481
      %p490 = scmp.eq.s32.totalorder %s43, 1
      %p491 = por %p489, %p490
      %p492 = scmp.ne.s32.totalorder %s481, %s482
      %p493 = scmp.eq.s32.totalorder %s43, 0
      %p494 = por %p492, %p493
      %p495 = scmp.ne.s32.totalorder %s481, %s482
      %p496 = scmp.eq.s32.totalorder %s44, 1
      %p497 = por %p495, %p496
      %p499 = scmp.ne.s32.totalorder %s482, %s498
      %p500 = scmp.eq.s32.totalorder %s44, 0
      %p501 = por %p499, %p500
      %p502 = scmp.le.s32.totalorder 1, %s38
      %p503 = scmp.lt.s32.totalorder %s38, 3
      %p504 = pnand %p502, %p503
      %p505 = pneg %p504
      // Predicated region
      $region9: #{_lambda_.1} parent=5 // pred_check
        _
      $region10: #{_lambda_.1} parent=5 // pred_check_branch
        %507 = sbr.rel (%p504) target = $region12
      $region11: #{_lambda_.1} parent=5 // pred_region
        %s508 = ssub.s32 %s38, 1
        // Predicated region
        $region13: #{_lambda_.1} parent=11 // pred_check
          %p509 = pneg %p111
        $region14: #{_lambda_.1} parent=11 // pred_check_branch
          %511 = sbr.rel (%p509) target = $region16
        $region15: #{_lambda_.1} parent=11 // pred_region
          %s513 = ssub.s32 1024, 1024
          %514 = vsyncadd [#allocation5], %s513
          %s515 = sshll.u32 [#allocation6], 4
          %s516 = int_to_ptr.vmem [resolvable:$true] %s515
          %521 = dma.hbm_to_vmem [thread:$0]  %s2, 1024, %s516, [#allocation5], 128, 128, 8
        $region16: #{_lambda_.1} parent=11 // pred_fallthru
          _
        // Predicated region
        $region17: #{_lambda_.1} parent=11 // pred_check
          %p522 = pneg %p132
        $region18: #{_lambda_.1} parent=11 // pred_check_branch
          %524 = sbr.rel (%p522) target = $region20
        $region19: #{_lambda_.1} parent=11 // pred_region
          %s526 = ssub.s32 512, 512
          %527 = vsyncadd [#allocation8], %s526
          %s528 = sshll.u32 [#allocation7], 4
          %s529 = int_to_ptr.vmem [resolvable:$true] %s528
          %534 = dma.hbm_to_vmem [thread:$0]  %s3, 512, %s529, [#allocation8], 128, 128, 8
        $region20: #{_lambda_.1} parent=11 // pred_fallthru
          _
        // Predicated region
        $region21: #{_lambda_.1} parent=11 // pred_check
          %p535 = pneg %p153
        $region22: #{_lambda_.1} parent=11 // pred_check_branch
          %537 = sbr.rel (%p535) target = $region24
        $region23: #{_lambda_.1} parent=11 // pred_region
          _
        $region24: #{_lambda_.1} parent=11 // pred_fallthru
          _
        // Predicated region
        $region25: #{_lambda_.1} parent=11 // pred_check
          %p538 = pneg %p174
        $region26: #{_lambda_.1} parent=11 // pred_check_branch
          %540 = sbr.rel (%p538) target = $region28
        $region27: #{_lambda_.1} parent=11 // pred_region
          _
        $region28: #{_lambda_.1} parent=11 // pred_fallthru
          _
        // Predicated region
        $region29: #{_lambda_.1} parent=11 // pred_check
          %p541 = pneg %p195
        $region30: #{_lambda_.1} parent=11 // pred_check_branch
          %543 = sbr.rel (%p541) target = $region32
        $region31: #{_lambda_.1} parent=11 // pred_region
          %s545 = ssub.s32 64, 64
          %546 = vsyncadd [#allocation8], %s545
          %s548 = sshll.u32 [#allocation9], 4
          %s549 = int_to_ptr.vmem [resolvable:$true] %s548
          %551 = dma.hbm_to_vmem [thread:$0]  %s6, 64, %s549, [#allocation8]
        $region32: #{_lambda_.1} parent=11 // pred_fallthru
          _
        // Predicated region
        $region33: #{_lambda_.1} parent=11 // pred_check
          %p552 = pneg %p216
        $region34: #{_lambda_.1} parent=11 // pred_check_branch
          %554 = sbr.rel (%p552) target = $region36
        $region35: #{_lambda_.1} parent=11 // pred_region
          %s556 = ssub.s32 1024, 1024
          %557 = vsyncadd [#allocation11], %s556
          %s558 = sshll.u32 [#allocation10], 4
          %s559 = int_to_ptr.vmem [resolvable:$true] %s558
          %564 = dma.hbm_to_vmem [thread:$0]  %s7, 1024, %s559, [#allocation11], 128, 128, 8
        $region36: #{_lambda_.1} parent=11 // pred_fallthru
          _
        // Predicated region
        $region37: #{_lambda_.1} parent=11 // pred_check
          %p565 = pneg %p237
        $region38: #{_lambda_.1} parent=11 // pred_check_branch
          %567 = sbr.rel (%p565) target = $region40
        $region39: #{_lambda_.1} parent=11 // pred_region
          %s569 = ssub.s32 512, 512
          %570 = vsyncadd [#allocation11], %s569
          %s571 = sshll.u32 [#allocation12], 4
          %s572 = int_to_ptr.vmem [resolvable:$true] %s571
          %577 = dma.hbm_to_vmem [thread:$0]  %s8, 512, %s572, [#allocation11], 128, 128, 8
        $region40: #{_lambda_.1} parent=11 // pred_fallthru
          _
        // Predicated region
        $region41: #{_lambda_.1} parent=11 // pred_check
          %p578 = pneg %p258
        $region42: #{_lambda_.1} parent=11 // pred_check_branch
          %580 = sbr.rel (%p578) target = $region44
        $region43: #{_lambda_.1} parent=11 // pred_region
          _
        $region44: #{_lambda_.1} parent=11 // pred_fallthru
          _
        // Predicated region
        $region45: #{_lambda_.1} parent=11 // pred_check
          %p581 = pneg %p279
        $region46: #{_lambda_.1} parent=11 // pred_check_branch
          %583 = sbr.rel (%p581) target = $region48
        $region47: #{_lambda_.1} parent=11 // pred_region
          _
        $region48: #{_lambda_.1} parent=11 // pred_fallthru
          _
        // Predicated region
        $region49: #{_lambda_.1} parent=11 // pred_check
          %p584 = pneg %p300
        $region50: #{_lambda_.1} parent=11 // pred_check_branch
          %586 = sbr.rel (%p584) target = $region52
        $region51: #{_lambda_.1} parent=11 // pred_region
          %s588 = ssub.s32 64, 64
          %589 = vsyncadd [#allocation14], %s588
          %s591 = sshll.u32 [#allocation13], 4
          %s592 = int_to_ptr.vmem [resolvable:$true] %s591
          %594 = dma.hbm_to_vmem [thread:$0]  %s11, 64, %s592, [#allocation14]
        $region52: #{_lambda_.1} parent=11 // pred_fallthru
          _
        // Predicated region
        $region53: #{_lambda_.1} parent=11 // pred_check
          %p595 = pneg %p321
        $region54: #{_lambda_.1} parent=11 // pred_check_branch
          %597 = sbr.rel (%p595) target = $region56
        $region55: #{_lambda_.1} parent=11 // pred_region
          %s599 = ssub.s32 512, 512
          %600 = vsyncadd [#allocation14], %s599
          %s601 = sshll.u32 [#allocation15], 4
          %s602 = int_to_ptr.vmem [resolvable:$true] %s601
          %607 = dma.hbm_to_vmem [thread:$0]  %s12, 512, %s602, [#allocation14], 128, 128, 8
        $region56: #{_lambda_.1} parent=11 // pred_fallthru
          _
        // Predicated region
        $region57: #{_lambda_.1} parent=11 // pred_check
          %p608 = pneg %p342
        $region58: #{_lambda_.1} parent=11 // pred_check_branch
          %610 = sbr.rel (%p608) target = $region60
        $region59: #{_lambda_.1} parent=11 // pred_region
          %s612 = ssub.s32 256, 256
          %613 = vsyncadd [#allocation17], %s612
          %s614 = sshll.u32 [#allocation16], 4
          %s615 = int_to_ptr.vmem [resolvable:$true] %s614
          %620 = dma.hbm_to_vmem [thread:$0]  %s13, 256, %s615, [#allocation17], 128, 128, 8
        $region60: #{_lambda_.1} parent=11 // pred_fallthru
          _
        // Predicated region
        $region61: #{_lambda_.1} parent=11 // pred_check
          %p621 = pneg %p363
        $region62: #{_lambda_.1} parent=11 // pred_check_branch
          %623 = sbr.rel (%p621) target = $region64
        $region63: #{_lambda_.1} parent=11 // pred_region
          %s625 = ssub.s32 128, 128
          %626 = vsyncadd [#allocation17], %s625
          %s628 = sshll.u32 [#allocation18], 4
          %s629 = int_to_ptr.vmem [resolvable:$true] %s628
          %631 = dma.hbm_to_vmem [thread:$0]  %s14, 128, %s629, [#allocation17]
        $region64: #{_lambda_.1} parent=11 // pred_fallthru
          _
        // Predicated region
        $region65: #{_lambda_.1} parent=11 // pred_check
          %p632 = pneg %p384
        $region66: #{_lambda_.1} parent=11 // pred_check_branch
          %634 = sbr.rel (%p632) target = $region68
        $region67: #{_lambda_.1} parent=11 // pred_region
          %s636 = ssub.s32 64, 64
          %637 = vsyncadd [#allocation20], %s636
          %s639 = sshll.u32 [#allocation19], 4
          %s640 = int_to_ptr.vmem [resolvable:$true] %s639
          %642 = dma.hbm_to_vmem [thread:$0]  %s15, 64, %s640, [#allocation20]
        $region68: #{_lambda_.1} parent=11 // pred_fallthru
          _
        // Predicated region
        $region69: #{_lambda_.1} parent=11 // pred_check
          %p643 = pneg %p405
        $region70: #{_lambda_.1} parent=11 // pred_check_branch
          %645 = sbr.rel (%p643) target = $region72
        $region71: #{_lambda_.1} parent=11 // pred_region
          %s647 = ssub.s32 1024, 1024
          %648 = vsyncadd [#allocation20], %s647
          %s649 = sshll.u32 [#allocation21], 4
          %s650 = int_to_ptr.vmem [resolvable:$true] %s649
          %655 = dma.hbm_to_vmem [thread:$0]  %s16, 1024, %s650, [#allocation20], 128, 128, 8
        $region72: #{_lambda_.1} parent=11 // pred_fallthru
          _
        // Predicated region
        $region73: #{_lambda_.1} parent=11 // pred_check
          %p656 = pneg %p426
        $region74: #{_lambda_.1} parent=11 // pred_check_branch
          %658 = sbr.rel (%p656) target = $region76
        $region75: #{_lambda_.1} parent=11 // pred_region
          _
        $region76: #{_lambda_.1} parent=11 // pred_fallthru
          _
        // Predicated region
        $region77: #{_lambda_.1} parent=11 // pred_check
          %p659 = pneg %p447
        $region78: #{_lambda_.1} parent=11 // pred_check_branch
          %661 = sbr.rel (%p659) target = $region80
        $region79: #{_lambda_.1} parent=11 // pred_region
          %s663 = ssub.s32 256, 256
          %664 = vsyncadd [#allocation23], %s663
          %s665 = sshll.u32 [#allocation22], 4
          %s666 = int_to_ptr.vmem [resolvable:$true] %s665
          %671 = dma.hbm_to_vmem [thread:$0]  %s18, 256, %s666, [#allocation23], 128, 128, 8
        $region80: #{_lambda_.1} parent=11 // pred_fallthru
          _
        // Predicated region
        $region81: #{_lambda_.1} parent=11 // pred_check
          %p672 = pneg %p468
        $region82: #{_lambda_.1} parent=11 // pred_check_branch
          %674 = sbr.rel (%p672) target = $region84
        $region83: #{_lambda_.1} parent=11 // pred_region
          _
        $region84: #{_lambda_.1} parent=11 // pred_fallthru
          _
      $region12: #{_lambda_.1} parent=5 // pred_fallthru
        _
      %p675 = scmp.lt.s32.totalorder %s38, 2
      // Predicated region
      $region85: #{_lambda_.1} parent=5 // pred_check
        %p676 = pneg %p675
      $region86: #{_lambda_.1} parent=5 // pred_check_branch
        %678 = sbr.rel (%p676) target = $region88
      $region87: #{_lambda_.1} parent=5 // pred_region
        // Predicated region
        $region89: #{_lambda_.1} parent=87 // pred_check
          %p679 = pneg %p58
        $region90: #{_lambda_.1} parent=87 // pred_check_branch
          %681 = sbr.rel (%p679) target = $region92
        $region91: #{_lambda_.1} parent=87 // pred_region
          %s682 = sand.u32 %s48, 1
          %s683 = scalar_lea.sflag [#allocation3], %s682
          %s684 = sand.u32 %s48, 1
          %s685 = smul.addr %s684, 192
          %s686 = scalar_lea.vmem [#allocation2], %s685
          %s688 = ssub.s32 3072, 3072
          %689 = vsyncadd %s683, %s688
          %s690 = smul.addr %s38, 24
          %s691 = smul.addr %s690, 128
          %s692 = scalar_lea.hbm %s0, %s691
          %s693 = sshll.u32 %s686, 4
          %s694 = int_to_ptr.vmem [resolvable:$true] %s693
          %699 = dma.hbm_to_vmem [thread:$0]  %s692, 3072, %s694, %s683, 128, 128, 8
        $region92: #{_lambda_.1} parent=87 // pred_fallthru
          _
        // Predicated region
        $region93: #{_lambda_.1} parent=87 // pred_check
          %p700 = pneg %p84
        $region94: #{_lambda_.1} parent=87 // pred_check_branch
          %702 = sbr.rel (%p700) target = $region96
        $region95: #{_lambda_.1} parent=87 // pred_region
          %s703 = sand.u32 %s38, 1
          %s704 = scalar_lea.sflag [#allocation5], %s703
          %s705 = sand.u32 %s74, 1
          %s706 = smul.addr %s705, 192
          %s707 = scalar_lea.vmem [#allocation4], %s706
          %s709 = ssub.s32 3072, 3072
          %710 = vsyncadd %s704, %s709
          %s711 = smul.addr %s38, 24
          %s712 = smul.addr %s711, 128
          %s713 = scalar_lea.hbm %s1, %s712
          %s714 = sshll.u32 %s707, 4
          %s715 = int_to_ptr.vmem [resolvable:$true] %s714
          %720 = dma.hbm_to_vmem [thread:$0]  %s713, 3072, %s715, %s704, 128, 128, 8
        $region96: #{_lambda_.1} parent=87 // pred_fallthru
          _
      $region88: #{_lambda_.1} parent=5 // pred_fallthru
        _
      %p721 = scmp.le.s32.totalorder 1, %s38
      %p722 = scmp.lt.s32.totalorder %s38, 3
      %p723 = pnand %p721, %p722
      %p724 = pneg %p723
      // Predicated region
      $region97: #{_lambda_.1} parent=5 // pred_check
        _
      $region98: #{_lambda_.1} parent=5 // pred_check_branch
        %726 = sbr.rel (%p723) target = $region100
      $region99: #{_lambda_.1} parent=5 // pred_region
        %s727 = ssub.s32 %s38, 1
        %s728 = sand.u32 %s51, 1
        %s729 = scalar_lea.sflag [#allocation3], %s728
        %s730 = sand.u32 %s51, 1
        %s731 = smul.addr %s730, 192
        %s732 = scalar_lea.vmem [#allocation2], %s731
        // Predicated region
        $region101: #{_lambda_.1} parent=99 // pred_check
          %p733 = pneg %p64
        $region102: #{_lambda_.1} parent=99 // pred_check_branch
          %735 = sbr.rel (%p733) target = $region104
        $region103: #{_lambda_.1} parent=99 // pred_region
          %736 = dma.done %s729, 3072
        $region104: #{_lambda_.1} parent=99 // pred_fallthru
          _
        %s737 = sand.u32 %s43, 1
        %s738 = scalar_lea.sflag [#allocation5], %s737
        %s739 = sand.u32 %s77, 1
        %s740 = smul.addr %s739, 192
        %s741 = scalar_lea.vmem [#allocation4], %s740
        // Predicated region
        $region105: #{_lambda_.1} parent=99 // pred_check
          %p742 = pneg %p90
        $region106: #{_lambda_.1} parent=99 // pred_check_branch
          %744 = sbr.rel (%p742) target = $region108
        $region107: #{_lambda_.1} parent=99 // pred_region
          %745 = dma.done %s738, 3072
        $region108: #{_lambda_.1} parent=99 // pred_fallthru
          _
        // Predicated region
        $region109: #{_lambda_.1} parent=99 // pred_check
          %p746 = pneg %p111
        $region110: #{_lambda_.1} parent=99 // pred_check_branch
          %748 = sbr.rel (%p746) target = $region112
        $region111: #{_lambda_.1} parent=99 // pred_region
          %749 = dma.done [#allocation5], 1024
        $region112: #{_lambda_.1} parent=99 // pred_fallthru
          _
        // Predicated region
        $region113: #{_lambda_.1} parent=99 // pred_check
          %p750 = pneg %p132
        $region114: #{_lambda_.1} parent=99 // pred_check_branch
          %752 = sbr.rel (%p750) target = $region116
        $region115: #{_lambda_.1} parent=99 // pred_region
          %753 = dma.done [#allocation8], 512
        $region116: #{_lambda_.1} parent=99 // pred_fallthru
          _
        // Predicated region
        $region117: #{_lambda_.1} parent=99 // pred_check
          %p754 = pneg %p195
        $region118: #{_lambda_.1} parent=99 // pred_check_branch
          %756 = sbr.rel (%p754) target = $region120
        $region119: #{_lambda_.1} parent=99 // pred_region
          %757 = dma.done [#allocation8], 64
        $region120: #{_lambda_.1} parent=99 // pred_fallthru
          _
        // Predicated region
        $region121: #{_lambda_.1} parent=99 // pred_check
          %p758 = pneg %p216
        $region122: #{_lambda_.1} parent=99 // pred_check_branch
          %760 = sbr.rel (%p758) target = $region124
        $region123: #{_lambda_.1} parent=99 // pred_region
          %761 = dma.done [#allocation11], 1024
        $region124: #{_lambda_.1} parent=99 // pred_fallthru
          _
        // Predicated region
        $region125: #{_lambda_.1} parent=99 // pred_check
          %p762 = pneg %p237
        $region126: #{_lambda_.1} parent=99 // pred_check_branch
          %764 = sbr.rel (%p762) target = $region128
        $region127: #{_lambda_.1} parent=99 // pred_region
          %765 = dma.done [#allocation11], 512
        $region128: #{_lambda_.1} parent=99 // pred_fallthru
          _
        // Predicated region
        $region129: #{_lambda_.1} parent=99 // pred_check
          %p766 = pneg %p300
        $region130: #{_lambda_.1} parent=99 // pred_check_branch
          %768 = sbr.rel (%p766) target = $region132
        $region131: #{_lambda_.1} parent=99 // pred_region
          %769 = dma.done [#allocation14], 64
        $region132: #{_lambda_.1} parent=99 // pred_fallthru
          _
        // Predicated region
        $region133: #{_lambda_.1} parent=99 // pred_check
          %p770 = pneg %p321
        $region134: #{_lambda_.1} parent=99 // pred_check_branch
          %772 = sbr.rel (%p770) target = $region136
        $region135: #{_lambda_.1} parent=99 // pred_region
          %773 = dma.done [#allocation14], 512
        $region136: #{_lambda_.1} parent=99 // pred_fallthru
          _
        // Predicated region
        $region137: #{_lambda_.1} parent=99 // pred_check
          %p774 = pneg %p342
        $region138: #{_lambda_.1} parent=99 // pred_check_branch
          %776 = sbr.rel (%p774) target = $region140
        $region139: #{_lambda_.1} parent=99 // pred_region
          %777 = dma.done [#allocation17], 256
        $region140: #{_lambda_.1} parent=99 // pred_fallthru
          _
        // Predicated region
        $region141: #{_lambda_.1} parent=99 // pred_check
          %p778 = pneg %p363
        $region142: #{_lambda_.1} parent=99 // pred_check_branch
          %780 = sbr.rel (%p778) target = $region144
        $region143: #{_lambda_.1} parent=99 // pred_region
          %781 = dma.done [#allocation17], 128
        $region144: #{_lambda_.1} parent=99 // pred_fallthru
          _
        // Predicated region
        $region145: #{_lambda_.1} parent=99 // pred_check
          %p782 = pneg %p384
        $region146: #{_lambda_.1} parent=99 // pred_check_branch
          %784 = sbr.rel (%p782) target = $region148
        $region147: #{_lambda_.1} parent=99 // pred_region
          %785 = dma.done [#allocation20], 64
        $region148: #{_lambda_.1} parent=99 // pred_fallthru
          _
        // Predicated region
        $region149: #{_lambda_.1} parent=99 // pred_check
          %p786 = pneg %p405
        $region150: #{_lambda_.1} parent=99 // pred_check_branch
          %788 = sbr.rel (%p786) target = $region152
        $region151: #{_lambda_.1} parent=99 // pred_region
          %789 = dma.done [#allocation20], 1024
        $region152: #{_lambda_.1} parent=99 // pred_fallthru
          _
        // Predicated region
        $region153: #{_lambda_.1} parent=99 // pred_check
          %p790 = pneg %p447
        $region154: #{_lambda_.1} parent=99 // pred_check_branch
          %792 = sbr.rel (%p790) target = $region156
        $region155: #{_lambda_.1} parent=99 // pred_region
          %793 = dma.done [#allocation23], 256
        $region156: #{_lambda_.1} parent=99 // pred_fallthru
          _
        %s794 = sand.u32 %s51, 1
        %s795 = scalar_lea.sflag [#allocation3], %s794
        %s796 = sand.u32 %s51, 1
        %s797 = smul.addr %s796, 192
        %s798 = scalar_lea.vmem [#allocation2], %s797
        %p799 = pneg %p64
        %p800 = pneg %p61
        %s801 = sand.u32 %s43, 1
        %s802 = scalar_lea.sflag [#allocation5], %s801
        %s803 = sand.u32 %s77, 1
        %s804 = smul.addr %s803, 192
        %s805 = scalar_lea.vmem [#allocation4], %s804
        %p806 = pneg %p90
        %p807 = pneg %p87
        %p808 = pneg %p111
        %p809 = pneg %p108
        %p810 = pneg %p132
        %p811 = pneg %p129
        %p812 = pneg %p153
        %p813 = pneg %p150
        %p814 = pneg %p174
        %p815 = pneg %p171
        %p816 = pneg %p195
        %p817 = pneg %p192
        %p818 = pneg %p216
        %p819 = pneg %p213
        %p820 = pneg %p237
        %p821 = pneg %p234
        %p822 = pneg %p258
        %p823 = pneg %p255
        %p824 = pneg %p279
        %p825 = pneg %p276
        %p826 = pneg %p300
        %p827 = pneg %p297
        %p828 = pneg %p321
        %p829 = pneg %p318
        %p830 = pneg %p342
        %p831 = pneg %p339
        %p832 = pneg %p363
        %p833 = pneg %p360
        %p834 = pneg %p384
        %p835 = pneg %p381
        %p836 = pneg %p405
        %p837 = pneg %p402
        %p838 = pneg %p426
        %p839 = pneg %p423
        %p840 = pneg %p447
        %p841 = pneg %p444
        %p842 = pneg %p468
        %p843 = pneg %p465
        %p844 = pneg %p494
        %p845 = pneg %p491
        %p846 = scmp.lt.s32.totalorder %s43, 1
        %s847 = scalar_select %p846, %s43, 1
        %s848 = scalar_lea.vmem %s20, %s847
        %p849 = scmp.lt.s32.totalorder %s43, 1
        %s850 = scalar_select %p849, %s43, 1
        %s851 = scalar_lea.vmem %s20, %s850
        %v852 = vld [vmem:[%s732] sm:$0xff]
        %v853 = vld [vmem:[%s732 + $0x8] sm:$0xff]
        %v854 = vld [vmem:[%s732 + $0x10] sm:$0xff]
        %v855 = vld [vmem:[%s732 + $0x18] sm:$0xff]
        %v856 = vld [vmem:[%s732 + $0x20] sm:$0xff]
        %v857 = vld [vmem:[%s732 + $0x28] sm:$0xff]
        %v858 = vld [vmem:[%s732 + $0x30] sm:$0xff]
        %v859 = vld [vmem:[%s732 + $0x38] sm:$0xff]
        %s860 = scalar_lea.vmem %s732, 64 [#allocation2]
        %v861 = vld [vmem:[%s860] sm:$0xff]
        %v862 = vld [vmem:[%s860 + $0x8] sm:$0xff]
        %v863 = vld [vmem:[%s860 + $0x10] sm:$0xff]
        %v864 = vld [vmem:[%s860 + $0x18] sm:$0xff]
        %v865 = vld [vmem:[%s860 + $0x20] sm:$0xff]
        %v866 = vld [vmem:[%s860 + $0x28] sm:$0xff]
        %v867 = vld [vmem:[%s860 + $0x30] sm:$0xff]
        %v868 = vld [vmem:[%s860 + $0x38] sm:$0xff]
        %s869 = scalar_lea.vmem %s732, 128 [#allocation2]
        %v870 = vld [vmem:[%s869] sm:$0xff]
        %v871 = vld [vmem:[%s869 + $0x8] sm:$0xff]
        %v872 = vld [vmem:[%s869 + $0x10] sm:$0xff]
        %v873 = vld [vmem:[%s869 + $0x18] sm:$0xff]
        %v874 = vld [vmem:[%s869 + $0x20] sm:$0xff]
        %v875 = vld [vmem:[%s869 + $0x28] sm:$0xff]
        %v876 = vld [vmem:[%s869 + $0x30] sm:$0xff]
        %v877 = vld [vmem:[%s869 + $0x38] sm:$0xff]
        %v878 = vld [vmem:[%s741] sm:$0xff]
        %v879 = vld [vmem:[%s741 + $0x8] sm:$0xff]
        %v880 = vld [vmem:[%s741 + $0x10] sm:$0xff]
        %v881 = vld [vmem:[%s741 + $0x18] sm:$0xff]
        %v882 = vld [vmem:[%s741 + $0x20] sm:$0xff]
        %v883 = vld [vmem:[%s741 + $0x28] sm:$0xff]
        %v884 = vld [vmem:[%s741 + $0x30] sm:$0xff]
        %v885 = vld [vmem:[%s741 + $0x38] sm:$0xff]
        %s886 = scalar_lea.vmem %s741, 64 [#allocation4]
        %v887 = vld [vmem:[%s886] sm:$0xff]
        %v888 = vld [vmem:[%s886 + $0x8] sm:$0xff]
        %v889 = vld [vmem:[%s886 + $0x10] sm:$0xff]
        %v890 = vld [vmem:[%s886 + $0x18] sm:$0xff]
        %v891 = vld [vmem:[%s886 + $0x20] sm:$0xff]
        %v892 = vld [vmem:[%s886 + $0x28] sm:$0xff]
        %v893 = vld [vmem:[%s886 + $0x30] sm:$0xff]
        %v894 = vld [vmem:[%s886 + $0x38] sm:$0xff]
        %s895 = scalar_lea.vmem %s741, 128 [#allocation4]
        %v896 = vld [vmem:[%s895] sm:$0xff]
        %v897 = vld [vmem:[%s895 + $0x8] sm:$0xff]
        %v898 = vld [vmem:[%s895 + $0x10] sm:$0xff]
        %v899 = vld [vmem:[%s895 + $0x18] sm:$0xff]
        %v900 = vld [vmem:[%s895 + $0x20] sm:$0xff]
        %v901 = vld [vmem:[%s895 + $0x28] sm:$0xff]
        %v902 = vld [vmem:[%s895 + $0x30] sm:$0xff]
        %v903 = vld [vmem:[%s895 + $0x38] sm:$0xff]
        %v904 = vmax.f32 %v852, 0.0001
        %v905 = vmax.f32 %v853, 0.0001
        %v906 = vmax.f32 %v854, 0.0001
        %v907 = vmax.f32 %v855, 0.0001
        %v908 = vmax.f32 %v856, 0.0001
        %v909 = vmax.f32 %v857, 0.0001
        %v910 = vmax.f32 %v858, 0.0001
        %v911 = vmax.f32 %v859, 0.0001
        %v912 = vadd.f32 %v904, 0.055
        %v913 = vadd.f32 %v905, 0.055
        %v914 = vadd.f32 %v906, 0.055
        %v915 = vadd.f32 %v907, 0.055
        %v916 = vadd.f32 %v908, 0.055
        %v917 = vadd.f32 %v909, 0.055
        %v918 = vadd.f32 %v910, 0.055
        %v919 = vadd.f32 %v911, 0.055
        %v920 = vrcp.pop 1.055
        %v921 = vmul.f32 %v912, %v920
        %v922 = vmul.f32 %v913, %v920
        %v923 = vmul.f32 %v914, %v920
        %v924 = vmul.f32 %v915, %v920
        %v925 = vmul.f32 %v916, %v920
        %v926 = vmul.f32 %v917, %v920
        %v927 = vmul.f32 %v918, %v920
        %v928 = vmul.f32 %v919, %v920
        %v929 = vlog2.pop %v921
        %v930 = vmul.f32 %v929, 0.6931472
        %v931 = vlog2.pop %v922
        %v932 = vmul.f32 %v931, 0.6931472
        %v933 = vlog2.pop %v923
        %v934 = vmul.f32 %v933, 0.6931472
        %v935 = vlog2.pop %v924
        %v936 = vmul.f32 %v935, 0.6931472
        %v937 = vlog2.pop %v925
        %v938 = vmul.f32 %v937, 0.6931472
        %v939 = vlog2.pop %v926
        %v940 = vmul.f32 %v939, 0.6931472
        %v941 = vlog2.pop %v927
        %v942 = vmul.f32 %v941, 0.6931472
        %v943 = vlog2.pop %v928
        %v944 = vmul.f32 %v943, 0.6931472
        %v945 = vmul.f32 %v930, 2.4
        %v946 = vmul.f32 %v932, 2.4
        %v947 = vmul.f32 %v934, 2.4
        %v948 = vmul.f32 %v936, 2.4
        %v949 = vmul.f32 %v938, 2.4
        %v950 = vmul.f32 %v940, 2.4
        %v951 = vmul.f32 %v942, 2.4
        %v952 = vmul.f32 %v944, 2.4
        %v953 = vmul.f32 %v945, 1.442695
        %v954 = vpow.pop %v953
        %v955 = vmul.f32 %v946, 1.442695
        %v956 = vpow.pop %v955
        %v957 = vmul.f32 %v947, 1.442695
        %v958 = vpow.pop %v957
        %v959 = vmul.f32 %v948, 1.442695
        %v960 = vpow.pop %v959
        %v961 = vmul.f32 %v949, 1.442695
        %v962 = vpow.pop %v961
        %v963 = vmul.f32 %v950, 1.442695
        %v964 = vpow.pop %v963
        %v965 = vmul.f32 %v951, 1.442695
        %v966 = vpow.pop %v965
        %v967 = vmul.f32 %v952, 1.442695
        %v968 = vpow.pop %v967
        %vm969 = vcmp.le.f32.partialorder %v852, 0.04045
        %vm970 = vcmp.le.f32.partialorder %v853, 0.04045
        %vm971 = vcmp.le.f32.partialorder %v854, 0.04045
        %vm972 = vcmp.le.f32.partialorder %v855, 0.04045
        %vm973 = vcmp.le.f32.partialorder %v856, 0.04045
        %vm974 = vcmp.le.f32.partialorder %v857, 0.04045
        %vm975 = vcmp.le.f32.partialorder %v858, 0.04045
        %vm976 = vcmp.le.f32.partialorder %v859, 0.04045
        %v977 = vrcp.pop 12.92
        %v978 = vmul.f32 %v852, %v977
        %v979 = vmul.f32 %v853, %v977
        %v980 = vmul.f32 %v854, %v977
        %v981 = vmul.f32 %v855, %v977
        %v982 = vmul.f32 %v856, %v977
        %v983 = vmul.f32 %v857, %v977
        %v984 = vmul.f32 %v858, %v977
        %v985 = vmul.f32 %v859, %v977
        %v986 = vsel %vm969, %v978, %v954
        %v987 = vsel %vm970, %v979, %v956
        %v988 = vsel %vm971, %v980, %v958
        %v989 = vsel %vm972, %v981, %v960
        %v990 = vsel %vm973, %v982, %v962
        %v991 = vsel %vm974, %v983, %v964
        %v992 = vsel %vm975, %v984, %v966
        %v993 = vsel %vm976, %v985, %v968
        %v994 = vmax.f32 %v861, 0.0001
        %v995 = vmax.f32 %v862, 0.0001
        %v996 = vmax.f32 %v863, 0.0001
        %v997 = vmax.f32 %v864, 0.0001
        %v998 = vmax.f32 %v865, 0.0001
        %v999 = vmax.f32 %v866, 0.0001
        %v1000 = vmax.f32 %v867, 0.0001
        %v1001 = vmax.f32 %v868, 0.0001
        %v1002 = vadd.f32 %v994, 0.055
        %v1003 = vadd.f32 %v995, 0.055
        %v1004 = vadd.f32 %v996, 0.055
        %v1005 = vadd.f32 %v997, 0.055
        %v1006 = vadd.f32 %v998, 0.055
        %v1007 = vadd.f32 %v999, 0.055
        %v1008 = vadd.f32 %v1000, 0.055
        %v1009 = vadd.f32 %v1001, 0.055
        %v1010 = vmul.f32 %v1002, %v920
        %v1011 = vmul.f32 %v1003, %v920
        %v1012 = vmul.f32 %v1004, %v920
        %v1013 = vmul.f32 %v1005, %v920
        %v1014 = vmul.f32 %v1006, %v920
        %v1015 = vmul.f32 %v1007, %v920
        %v1016 = vmul.f32 %v1008, %v920
        %v1017 = vmul.f32 %v1009, %v920
        %v1018 = vlog2.pop %v1010
        %v1019 = vmul.f32 %v1018, 0.6931472
        %v1020 = vlog2.pop %v1011
        %v1021 = vmul.f32 %v1020, 0.6931472
        %v1022 = vlog2.pop %v1012
        %v1023 = vmul.f32 %v1022, 0.6931472
        %v1024 = vlog2.pop %v1013
        %v1025 = vmul.f32 %v1024, 0.6931472
        %v1026 = vlog2.pop %v1014
        %v1027 = vmul.f32 %v1026, 0.6931472
        %v1028 = vlog2.pop %v1015
        %v1029 = vmul.f32 %v1028, 0.6931472
        %v1030 = vlog2.pop %v1016
        %v1031 = vmul.f32 %v1030, 0.6931472
        %v1032 = vlog2.pop %v1017
        %v1033 = vmul.f32 %v1032, 0.6931472
        %v1034 = vmul.f32 %v1019, 2.4
        %v1035 = vmul.f32 %v1021, 2.4
        %v1036 = vmul.f32 %v1023, 2.4
        %v1037 = vmul.f32 %v1025, 2.4
        %v1038 = vmul.f32 %v1027, 2.4
        %v1039 = vmul.f32 %v1029, 2.4
        %v1040 = vmul.f32 %v1031, 2.4
        %v1041 = vmul.f32 %v1033, 2.4
        %v1042 = vmul.f32 %v1034, 1.442695
        %v1043 = vpow.pop %v1042
        %v1044 = vmul.f32 %v1035, 1.442695
        %v1045 = vpow.pop %v1044
        %v1046 = vmul.f32 %v1036, 1.442695
        %v1047 = vpow.pop %v1046
        %v1048 = vmul.f32 %v1037, 1.442695
        %v1049 = vpow.pop %v1048
        %v1050 = vmul.f32 %v1038, 1.442695
        %v1051 = vpow.pop %v1050
        %v1052 = vmul.f32 %v1039, 1.442695
        %v1053 = vpow.pop %v1052
        %v1054 = vmul.f32 %v1040, 1.442695
        %v1055 = vpow.pop %v1054
        %v1056 = vmul.f32 %v1041, 1.442695
        %v1057 = vpow.pop %v1056
        %vm1058 = vcmp.le.f32.partialorder %v861, 0.04045
        %vm1059 = vcmp.le.f32.partialorder %v862, 0.04045
        %vm1060 = vcmp.le.f32.partialorder %v863, 0.04045
        %vm1061 = vcmp.le.f32.partialorder %v864, 0.04045
        %vm1062 = vcmp.le.f32.partialorder %v865, 0.04045
        %vm1063 = vcmp.le.f32.partialorder %v866, 0.04045
        %vm1064 = vcmp.le.f32.partialorder %v867, 0.04045
        %vm1065 = vcmp.le.f32.partialorder %v868, 0.04045
        %v1066 = vmul.f32 %v861, %v977
        %v1067 = vmul.f32 %v862, %v977
        %v1068 = vmul.f32 %v863, %v977
        %v1069 = vmul.f32 %v864, %v977
        %v1070 = vmul.f32 %v865, %v977
        %v1071 = vmul.f32 %v866, %v977
        %v1072 = vmul.f32 %v867, %v977
        %v1073 = vmul.f32 %v868, %v977
        %v1074 = vsel %vm1058, %v1066, %v1043
        %v1075 = vsel %vm1059, %v1067, %v1045
        %v1076 = vsel %vm1060, %v1068, %v1047
        %v1077 = vsel %vm1061, %v1069, %v1049
        %v1078 = vsel %vm1062, %v1070, %v1051
        %v1079 = vsel %vm1063, %v1071, %v1053
        %v1080 = vsel %vm1064, %v1072, %v1055
        %v1081 = vsel %vm1065, %v1073, %v1057
        %v1082 = vmax.f32 %v870, 0.0001
        %v1083 = vmax.f32 %v871, 0.0001
        %v1084 = vmax.f32 %v872, 0.0001
        %v1085 = vmax.f32 %v873, 0.0001
        %v1086 = vmax.f32 %v874, 0.0001
        %v1087 = vmax.f32 %v875, 0.0001
        %v1088 = vmax.f32 %v876, 0.0001
        %v1089 = vmax.f32 %v877, 0.0001
        %v1090 = vadd.f32 %v1082, 0.055
        %v1091 = vadd.f32 %v1083, 0.055
        %v1092 = vadd.f32 %v1084, 0.055
        %v1093 = vadd.f32 %v1085, 0.055
        %v1094 = vadd.f32 %v1086, 0.055
        %v1095 = vadd.f32 %v1087, 0.055
        %v1096 = vadd.f32 %v1088, 0.055
        %v1097 = vadd.f32 %v1089, 0.055
        %v1098 = vmul.f32 %v1090, %v920
        %v1099 = vmul.f32 %v1091, %v920
        %v1100 = vmul.f32 %v1092, %v920
        %v1101 = vmul.f32 %v1093, %v920
        %v1102 = vmul.f32 %v1094, %v920
        %v1103 = vmul.f32 %v1095, %v920
        %v1104 = vmul.f32 %v1096, %v920
        %v1105 = vmul.f32 %v1097, %v920
        %v1106 = vlog2.pop %v1098
        %v1107 = vmul.f32 %v1106, 0.6931472
        %v1108 = vlog2.pop %v1099
        %v1109 = vmul.f32 %v1108, 0.6931472
        %v1110 = vlog2.pop %v1100
        %v1111 = vmul.f32 %v1110, 0.6931472
        %v1112 = vlog2.pop %v1101
        %v1113 = vmul.f32 %v1112, 0.6931472
        %v1114 = vlog2.pop %v1102
        %v1115 = vmul.f32 %v1114, 0.6931472
        %v1116 = vlog2.pop %v1103
        %v1117 = vmul.f32 %v1116, 0.6931472
        %v1118 = vlog2.pop %v1104
        %v1119 = vmul.f32 %v1118, 0.6931472
        %v1120 = vlog2.pop %v1105
        %v1121 = vmul.f32 %v1120, 0.6931472
        %v1122 = vmul.f32 %v1107, 2.4
        %v1123 = vmul.f32 %v1109, 2.4
        %v1124 = vmul.f32 %v1111, 2.4
        %v1125 = vmul.f32 %v1113, 2.4
        %v1126 = vmul.f32 %v1115, 2.4
        %v1127 = vmul.f32 %v1117, 2.4
        %v1128 = vmul.f32 %v1119, 2.4
        %v1129 = vmul.f32 %v1121, 2.4
        %v1130 = vmul.f32 %v1122, 1.442695
        %v1131 = vpow.pop %v1130
        %v1132 = vmul.f32 %v1123, 1.442695
        %v1133 = vpow.pop %v1132
        %v1134 = vmul.f32 %v1124, 1.442695
        %v1135 = vpow.pop %v1134
        %v1136 = vmul.f32 %v1125, 1.442695
        %v1137 = vpow.pop %v1136
        %v1138 = vmul.f32 %v1126, 1.442695
        %v1139 = vpow.pop %v1138
        %v1140 = vmul.f32 %v1127, 1.442695
        %v1141 = vpow.pop %v1140
        %v1142 = vmul.f32 %v1128, 1.442695
        %v1143 = vpow.pop %v1142
        %v1144 = vmul.f32 %v1129, 1.442695
        %v1145 = vpow.pop %v1144
        %vm1146 = vcmp.le.f32.partialorder %v870, 0.04045
        %vm1147 = vcmp.le.f32.partialorder %v871, 0.04045
        %vm1148 = vcmp.le.f32.partialorder %v872, 0.04045
        %vm1149 = vcmp.le.f32.partialorder %v873, 0.04045
        %vm1150 = vcmp.le.f32.partialorder %v874, 0.04045
        %vm1151 = vcmp.le.f32.partialorder %v875, 0.04045
        %vm1152 = vcmp.le.f32.partialorder %v876, 0.04045
        %vm1153 = vcmp.le.f32.partialorder %v877, 0.04045
        %v1154 = vmul.f32 %v870, %v977
        %v1155 = vmul.f32 %v871, %v977
        %v1156 = vmul.f32 %v872, %v977
        %v1157 = vmul.f32 %v873, %v977
        %v1158 = vmul.f32 %v874, %v977
        %v1159 = vmul.f32 %v875, %v977
        %v1160 = vmul.f32 %v876, %v977
        %v1161 = vmul.f32 %v877, %v977
        %v1162 = vsel %vm1146, %v1154, %v1131
        %v1163 = vsel %vm1147, %v1155, %v1133
        %v1164 = vsel %vm1148, %v1156, %v1135
        %v1165 = vsel %vm1149, %v1157, %v1137
        %v1166 = vsel %vm1150, %v1158, %v1139
        %v1167 = vsel %vm1151, %v1159, %v1141
        %v1168 = vsel %vm1152, %v1160, %v1143
        %v1169 = vsel %vm1153, %v1161, %v1145
        %v1170 = vmul.f32 %v986, 0.412453
        %v1171 = vmul.f32 %v987, 0.412453
        %v1172 = vmul.f32 %v988, 0.412453
        %v1173 = vmul.f32 %v989, 0.412453
        %v1174 = vmul.f32 %v990, 0.412453
        %v1175 = vmul.f32 %v991, 0.412453
        %v1176 = vmul.f32 %v992, 0.412453
        %v1177 = vmul.f32 %v993, 0.412453
        %v1178 = vmul.f32 %v1074, 0.35758
        %v1179 = vmul.f32 %v1075, 0.35758
        %v1180 = vmul.f32 %v1076, 0.35758
        %v1181 = vmul.f32 %v1077, 0.35758
        %v1182 = vmul.f32 %v1078, 0.35758
        %v1183 = vmul.f32 %v1079, 0.35758
        %v1184 = vmul.f32 %v1080, 0.35758
        %v1185 = vmul.f32 %v1081, 0.35758
        %v1186 = vadd.f32 %v1170, %v1178
        %v1187 = vadd.f32 %v1171, %v1179
        %v1188 = vadd.f32 %v1172, %v1180
        %v1189 = vadd.f32 %v1173, %v1181
        %v1190 = vadd.f32 %v1174, %v1182
        %v1191 = vadd.f32 %v1175, %v1183
        %v1192 = vadd.f32 %v1176, %v1184
        %v1193 = vadd.f32 %v1177, %v1185
        %v1194 = vmul.f32 %v1162, 0.180423
        %v1195 = vmul.f32 %v1163, 0.180423
        %v1196 = vmul.f32 %v1164, 0.180423
        %v1197 = vmul.f32 %v1165, 0.180423
        %v1198 = vmul.f32 %v1166, 0.180423
        %v1199 = vmul.f32 %v1167, 0.180423
        %v1200 = vmul.f32 %v1168, 0.180423
        %v1201 = vmul.f32 %v1169, 0.180423
        %v1202 = vadd.f32 %v1186, %v1194
        %v1203 = vadd.f32 %v1187, %v1195
        %v1204 = vadd.f32 %v1188, %v1196
        %v1205 = vadd.f32 %v1189, %v1197
        %v1206 = vadd.f32 %v1190, %v1198
        %v1207 = vadd.f32 %v1191, %v1199
        %v1208 = vadd.f32 %v1192, %v1200
        %v1209 = vadd.f32 %v1193, %v1201
        %v1210 = vmul.f32 %v986, 0.212671
        %v1211 = vmul.f32 %v987, 0.212671
        %v1212 = vmul.f32 %v988, 0.212671
        %v1213 = vmul.f32 %v989, 0.212671
        %v1214 = vmul.f32 %v990, 0.212671
        %v1215 = vmul.f32 %v991, 0.212671
        %v1216 = vmul.f32 %v992, 0.212671
        %v1217 = vmul.f32 %v993, 0.212671
        %v1218 = vmul.f32 %v1074, 0.71516
        %v1219 = vmul.f32 %v1075, 0.71516
        %v1220 = vmul.f32 %v1076, 0.71516
        %v1221 = vmul.f32 %v1077, 0.71516
        %v1222 = vmul.f32 %v1078, 0.71516
        %v1223 = vmul.f32 %v1079, 0.71516
        %v1224 = vmul.f32 %v1080, 0.71516
        %v1225 = vmul.f32 %v1081, 0.71516
        %v1226 = vadd.f32 %v1210, %v1218
        %v1227 = vadd.f32 %v1211, %v1219
        %v1228 = vadd.f32 %v1212, %v1220
        %v1229 = vadd.f32 %v1213, %v1221
        %v1230 = vadd.f32 %v1214, %v1222
        %v1231 = vadd.f32 %v1215, %v1223
        %v1232 = vadd.f32 %v1216, %v1224
        %v1233 = vadd.f32 %v1217, %v1225
        %v1234 = vmul.f32 %v1162, 0.072169
        %v1235 = vmul.f32 %v1163, 0.072169
        %v1236 = vmul.f32 %v1164, 0.072169
        %v1237 = vmul.f32 %v1165, 0.072169
        %v1238 = vmul.f32 %v1166, 0.072169
        %v1239 = vmul.f32 %v1167, 0.072169
        %v1240 = vmul.f32 %v1168, 0.072169
        %v1241 = vmul.f32 %v1169, 0.072169
        %v1242 = vadd.f32 %v1226, %v1234
        %v1243 = vadd.f32 %v1227, %v1235
        %v1244 = vadd.f32 %v1228, %v1236
        %v1245 = vadd.f32 %v1229, %v1237
        %v1246 = vadd.f32 %v1230, %v1238
        %v1247 = vadd.f32 %v1231, %v1239
        %v1248 = vadd.f32 %v1232, %v1240
        %v1249 = vadd.f32 %v1233, %v1241
        %v1250 = vmul.f32 %v986, 0.019334
        %v1251 = vmul.f32 %v987, 0.019334
        %v1252 = vmul.f32 %v988, 0.019334
        %v1253 = vmul.f32 %v989, 0.019334
        %v1254 = vmul.f32 %v990, 0.019334
        %v1255 = vmul.f32 %v991, 0.019334
        %v1256 = vmul.f32 %v992, 0.019334
        %v1257 = vmul.f32 %v993, 0.019334
        %v1258 = vmul.f32 %v1074, 0.119193
        %v1259 = vmul.f32 %v1075, 0.119193
        %v1260 = vmul.f32 %v1076, 0.119193
        %v1261 = vmul.f32 %v1077, 0.119193
        %v1262 = vmul.f32 %v1078, 0.119193
        %v1263 = vmul.f32 %v1079, 0.119193
        %v1264 = vmul.f32 %v1080, 0.119193
        %v1265 = vmul.f32 %v1081, 0.119193
        %v1266 = vadd.f32 %v1250, %v1258
        %v1267 = vadd.f32 %v1251, %v1259
        %v1268 = vadd.f32 %v1252, %v1260
        %v1269 = vadd.f32 %v1253, %v1261
        %v1270 = vadd.f32 %v1254, %v1262
        %v1271 = vadd.f32 %v1255, %v1263
        %v1272 = vadd.f32 %v1256, %v1264
        %v1273 = vadd.f32 %v1257, %v1265
        %v1274 = vmul.f32 %v1162, 0.950227
        %v1275 = vmul.f32 %v1163, 0.950227
        %v1276 = vmul.f32 %v1164, 0.950227
        %v1277 = vmul.f32 %v1165, 0.950227
        %v1278 = vmul.f32 %v1166, 0.950227
        %v1279 = vmul.f32 %v1167, 0.950227
        %v1280 = vmul.f32 %v1168, 0.950227
        %v1281 = vmul.f32 %v1169, 0.950227
        %v1282 = vadd.f32 %v1266, %v1274
        %v1283 = vadd.f32 %v1267, %v1275
        %v1284 = vadd.f32 %v1268, %v1276
        %v1285 = vadd.f32 %v1269, %v1277
        %v1286 = vadd.f32 %v1270, %v1278
        %v1287 = vadd.f32 %v1271, %v1279
        %v1288 = vadd.f32 %v1272, %v1280
        %v1289 = vadd.f32 %v1273, %v1281
        %v1290 = vmul.f32 %v1202, 1.0521265
        %v1291 = vmul.f32 %v1203, 1.0521265
        %v1292 = vmul.f32 %v1204, 1.0521265
        %v1293 = vmul.f32 %v1205, 1.0521265
        %v1294 = vmul.f32 %v1206, 1.0521265
        %v1295 = vmul.f32 %v1207, 1.0521265
        %v1296 = vmul.f32 %v1208, 1.0521265
        %v1297 = vmul.f32 %v1209, 1.0521265
        %v1298 = vmul.f32 %v1282, 0.9184811
        %v1299 = vmul.f32 %v1283, 0.9184811
        %v1300 = vmul.f32 %v1284, 0.9184811
        %v1301 = vmul.f32 %v1285, 0.9184811
        %v1302 = vmul.f32 %v1286, 0.9184811
        %v1303 = vmul.f32 %v1287, 0.9184811
        %v1304 = vmul.f32 %v1288, 0.9184811
        %v1305 = vmul.f32 %v1289, 0.9184811
        %v1306 = vmax.f32 %v1290, 0.0001
        %v1307 = vmax.f32 %v1291, 0.0001
        %v1308 = vmax.f32 %v1292, 0.0001
        %v1309 = vmax.f32 %v1293, 0.0001
        %v1310 = vmax.f32 %v1294, 0.0001
        %v1311 = vmax.f32 %v1295, 0.0001
        %v1312 = vmax.f32 %v1296, 0.0001
        %v1313 = vmax.f32 %v1297, 0.0001
        %v1314 = vlog2.pop %v1306
        %v1315 = vmul.f32 %v1314, 0.6931472
        %v1316 = vlog2.pop %v1307
        %v1317 = vmul.f32 %v1316, 0.6931472
        %v1318 = vlog2.pop %v1308
        %v1319 = vmul.f32 %v1318, 0.6931472
        %v1320 = vlog2.pop %v1309
        %v1321 = vmul.f32 %v1320, 0.6931472
        %v1322 = vlog2.pop %v1310
        %v1323 = vmul.f32 %v1322, 0.6931472
        %v1324 = vlog2.pop %v1311
        %v1325 = vmul.f32 %v1324, 0.6931472
        %v1326 = vlog2.pop %v1312
        %v1327 = vmul.f32 %v1326, 0.6931472
        %v1328 = vlog2.pop %v1313
        %v1329 = vmul.f32 %v1328, 0.6931472
        %v1330 = vmul.f32 %v1315, 0.33333334
        %v1331 = vmul.f32 %v1317, 0.33333334
        %v1332 = vmul.f32 %v1319, 0.33333334
        %v1333 = vmul.f32 %v1321, 0.33333334
        %v1334 = vmul.f32 %v1323, 0.33333334
        %v1335 = vmul.f32 %v1325, 0.33333334
        %v1336 = vmul.f32 %v1327, 0.33333334
        %v1337 = vmul.f32 %v1329, 0.33333334
        %v1338 = vmul.f32 %v1330, 1.442695
        %v1339 = vpow.pop %v1338
        %v1340 = vmul.f32 %v1331, 1.442695
        %v1341 = vpow.pop %v1340
        %v1342 = vmul.f32 %v1332, 1.442695
        %v1343 = vpow.pop %v1342
        %v1344 = vmul.f32 %v1333, 1.442695
        %v1345 = vpow.pop %v1344
        %v1346 = vmul.f32 %v1334, 1.442695
        %v1347 = vpow.pop %v1346
        %v1348 = vmul.f32 %v1335, 1.442695
        %v1349 = vpow.pop %v1348
        %v1350 = vmul.f32 %v1336, 1.442695
        %v1351 = vpow.pop %v1350
        %v1352 = vmul.f32 %v1337, 1.442695
        %v1353 = vpow.pop %v1352
        %vm1354 = vcmp.le.f32.partialorder %v1290, 0.008856452
        %vm1355 = vcmp.le.f32.partialorder %v1291, 0.008856452
        %vm1356 = vcmp.le.f32.partialorder %v1292, 0.008856452
        %vm1357 = vcmp.le.f32.partialorder %v1293, 0.008856452
        %vm1358 = vcmp.le.f32.partialorder %v1294, 0.008856452
        %vm1359 = vcmp.le.f32.partialorder %v1295, 0.008856452
        %vm1360 = vcmp.le.f32.partialorder %v1296, 0.008856452
        %vm1361 = vcmp.le.f32.partialorder %v1297, 0.008856452
        %v1362 = vrcp.pop 0.12841855
        %v1363 = vmul.f32 %v1290, %v1362
        %v1364 = vmul.f32 %v1291, %v1362
        %v1365 = vmul.f32 %v1292, %v1362
        %v1366 = vmul.f32 %v1293, %v1362
        %v1367 = vmul.f32 %v1294, %v1362
        %v1368 = vmul.f32 %v1295, %v1362
        %v1369 = vmul.f32 %v1296, %v1362
        %v1370 = vmul.f32 %v1297, %v1362
        %v1371 = vadd.f32 %v1363, 0.13793103
        %v1372 = vadd.f32 %v1364, 0.13793103
        %v1373 = vadd.f32 %v1365, 0.13793103
        %v1374 = vadd.f32 %v1366, 0.13793103
        %v1375 = vadd.f32 %v1367, 0.13793103
        %v1376 = vadd.f32 %v1368, 0.13793103
        %v1377 = vadd.f32 %v1369, 0.13793103
        %v1378 = vadd.f32 %v1370, 0.13793103
        %v1379 = vsel %vm1354, %v1371, %v1339
        %v1380 = vsel %vm1355, %v1372, %v1341
        %v1381 = vsel %vm1356, %v1373, %v1343
        %v1382 = vsel %vm1357, %v1374, %v1345
        %v1383 = vsel %vm1358, %v1375, %v1347
        %v1384 = vsel %vm1359, %v1376, %v1349
        %v1385 = vsel %vm1360, %v1377, %v1351
        %v1386 = vsel %vm1361, %v1378, %v1353
        %v1387 = vmax.f32 %v1242, 0.0001
        %v1388 = vmax.f32 %v1243, 0.0001
        %v1389 = vmax.f32 %v1244, 0.0001
        %v1390 = vmax.f32 %v1245, 0.0001
        %v1391 = vmax.f32 %v1246, 0.0001
        %v1392 = vmax.f32 %v1247, 0.0001
        %v1393 = vmax.f32 %v1248, 0.0001
        %v1394 = vmax.f32 %v1249, 0.0001
        %v1395 = vlog2.pop %v1387
        %v1396 = vmul.f32 %v1395, 0.6931472
        %v1397 = vlog2.pop %v1388
        %v1398 = vmul.f32 %v1397, 0.6931472
        %v1399 = vlog2.pop %v1389
        %v1400 = vmul.f32 %v1399, 0.6931472
        %v1401 = vlog2.pop %v1390
        %v1402 = vmul.f32 %v1401, 0.6931472
        %v1403 = vlog2.pop %v1391
        %v1404 = vmul.f32 %v1403, 0.6931472
        %v1405 = vlog2.pop %v1392
        %v1406 = vmul.f32 %v1405, 0.6931472
        %v1407 = vlog2.pop %v1393
        %v1408 = vmul.f32 %v1407, 0.6931472
        %v1409 = vlog2.pop %v1394
        %v1410 = vmul.f32 %v1409, 0.6931472
        %v1411 = vmul.f32 %v1396, 0.33333334
        %v1412 = vmul.f32 %v1398, 0.33333334
        %v1413 = vmul.f32 %v1400, 0.33333334
        %v1414 = vmul.f32 %v1402, 0.33333334
        %v1415 = vmul.f32 %v1404, 0.33333334
        %v1416 = vmul.f32 %v1406, 0.33333334
        %v1417 = vmul.f32 %v1408, 0.33333334
        %v1418 = vmul.f32 %v1410, 0.33333334
        %v1419 = vmul.f32 %v1411, 1.442695
        %v1420 = vpow.pop %v1419
        %v1421 = vmul.f32 %v1412, 1.442695
        %v1422 = vpow.pop %v1421
        %v1423 = vmul.f32 %v1413, 1.442695
        %v1424 = vpow.pop %v1423
        %v1425 = vmul.f32 %v1414, 1.442695
        %v1426 = vpow.pop %v1425
        %v1427 = vmul.f32 %v1415, 1.442695
        %v1428 = vpow.pop %v1427
        %v1429 = vmul.f32 %v1416, 1.442695
        %v1430 = vpow.pop %v1429
        %v1431 = vmul.f32 %v1417, 1.442695
        %v1432 = vpow.pop %v1431
        %v1433 = vmul.f32 %v1418, 1.442695
        %v1434 = vpow.pop %v1433
        %vm1435 = vcmp.le.f32.partialorder %v1242, 0.008856452
        %vm1436 = vcmp.le.f32.partialorder %v1243, 0.008856452
        %vm1437 = vcmp.le.f32.partialorder %v1244, 0.008856452
        %vm1438 = vcmp.le.f32.partialorder %v1245, 0.008856452
        %vm1439 = vcmp.le.f32.partialorder %v1246, 0.008856452
        %vm1440 = vcmp.le.f32.partialorder %v1247, 0.008856452
        %vm1441 = vcmp.le.f32.partialorder %v1248, 0.008856452
        %vm1442 = vcmp.le.f32.partialorder %v1249, 0.008856452
        %v1443 = vmul.f32 %v1242, %v1362
        %v1444 = vmul.f32 %v1243, %v1362
        %v1445 = vmul.f32 %v1244, %v1362
        %v1446 = vmul.f32 %v1245, %v1362
        %v1447 = vmul.f32 %v1246, %v1362
        %v1448 = vmul.f32 %v1247, %v1362
        %v1449 = vmul.f32 %v1248, %v1362
        %v1450 = vmul.f32 %v1249, %v1362
        %v1451 = vadd.f32 %v1443, 0.13793103
        %v1452 = vadd.f32 %v1444, 0.13793103
        %v1453 = vadd.f32 %v1445, 0.13793103
        %v1454 = vadd.f32 %v1446, 0.13793103
        %v1455 = vadd.f32 %v1447, 0.13793103
        %v1456 = vadd.f32 %v1448, 0.13793103
        %v1457 = vadd.f32 %v1449, 0.13793103
        %v1458 = vadd.f32 %v1450, 0.13793103
        %v1459 = vsel %vm1435, %v1451, %v1420
        %v1460 = vsel %vm1436, %v1452, %v1422
        %v1461 = vsel %vm1437, %v1453, %v1424
        %v1462 = vsel %vm1438, %v1454, %v1426
        %v1463 = vsel %vm1439, %v1455, %v1428
        %v1464 = vsel %vm1440, %v1456, %v1430
        %v1465 = vsel %vm1441, %v1457, %v1432
        %v1466 = vsel %vm1442, %v1458, %v1434
        %v1467 = vmax.f32 %v1298, 0.0001
        %v1468 = vmax.f32 %v1299, 0.0001
        %v1469 = vmax.f32 %v1300, 0.0001
        %v1470 = vmax.f32 %v1301, 0.0001
        %v1471 = vmax.f32 %v1302, 0.0001
        %v1472 = vmax.f32 %v1303, 0.0001
        %v1473 = vmax.f32 %v1304, 0.0001
        %v1474 = vmax.f32 %v1305, 0.0001
        %v1475 = vlog2.pop %v1467
        %v1476 = vmul.f32 %v1475, 0.6931472
        %v1477 = vlog2.pop %v1468
        %v1478 = vmul.f32 %v1477, 0.6931472
        %v1479 = vlog2.pop %v1469
        %v1480 = vmul.f32 %v1479, 0.6931472
        %v1481 = vlog2.pop %v1470
        %v1482 = vmul.f32 %v1481, 0.6931472
        %v1483 = vlog2.pop %v1471
        %v1484 = vmul.f32 %v1483, 0.6931472
        %v1485 = vlog2.pop %v1472
        %v1486 = vmul.f32 %v1485, 0.6931472
        %v1487 = vlog2.pop %v1473
        %v1488 = vmul.f32 %v1487, 0.6931472
        %v1489 = vlog2.pop %v1474
        %v1490 = vmul.f32 %v1489, 0.6931472
        %v1491 = vmul.f32 %v1476, 0.33333334
        %v1492 = vmul.f32 %v1478, 0.33333334
        %v1493 = vmul.f32 %v1480, 0.33333334
        %v1494 = vmul.f32 %v1482, 0.33333334
        %v1495 = vmul.f32 %v1484, 0.33333334
        %v1496 = vmul.f32 %v1486, 0.33333334
        %v1497 = vmul.f32 %v1488, 0.33333334
        %v1498 = vmul.f32 %v1490, 0.33333334
        %v1499 = vmul.f32 %v1491, 1.442695
        %v1500 = vpow.pop %v1499
        %v1501 = vmul.f32 %v1492, 1.442695
        %v1502 = vpow.pop %v1501
        %v1503 = vmul.f32 %v1493, 1.442695
        %v1504 = vpow.pop %v1503
        %v1505 = vmul.f32 %v1494, 1.442695
        %v1506 = vpow.pop %v1505
        %v1507 = vmul.f32 %v1495, 1.442695
        %v1508 = vpow.pop %v1507
        %v1509 = vmul.f32 %v1496, 1.442695
        %v1510 = vpow.pop %v1509
        %v1511 = vmul.f32 %v1497, 1.442695
        %v1512 = vpow.pop %v1511
        %v1513 = vmul.f32 %v1498, 1.442695
        %v1514 = vpow.pop %v1513
        %vm1515 = vcmp.le.f32.partialorder %v1298, 0.008856452
        %vm1516 = vcmp.le.f32.partialorder %v1299, 0.008856452
        %vm1517 = vcmp.le.f32.partialorder %v1300, 0.008856452
        %vm1518 = vcmp.le.f32.partialorder %v1301, 0.008856452
        %vm1519 = vcmp.le.f32.partialorder %v1302, 0.008856452
        %vm1520 = vcmp.le.f32.partialorder %v1303, 0.008856452
        %vm1521 = vcmp.le.f32.partialorder %v1304, 0.008856452
        %vm1522 = vcmp.le.f32.partialorder %v1305, 0.008856452
        %v1523 = vmul.f32 %v1298, %v1362
        %v1524 = vmul.f32 %v1299, %v1362
        %v1525 = vmul.f32 %v1300, %v1362
        %v1526 = vmul.f32 %v1301, %v1362
        %v1527 = vmul.f32 %v1302, %v1362
        %v1528 = vmul.f32 %v1303, %v1362
        %v1529 = vmul.f32 %v1304, %v1362
        %v1530 = vmul.f32 %v1305, %v1362
        %v1531 = vadd.f32 %v1523, 0.13793103
        %v1532 = vadd.f32 %v1524, 0.13793103
        %v1533 = vadd.f32 %v1525, 0.13793103
        %v1534 = vadd.f32 %v1526, 0.13793103
        %v1535 = vadd.f32 %v1527, 0.13793103
        %v1536 = vadd.f32 %v1528, 0.13793103
        %v1537 = vadd.f32 %v1529, 0.13793103
        %v1538 = vadd.f32 %v1530, 0.13793103
        %v1539 = vsel %vm1515, %v1531, %v1500
        %v1540 = vsel %vm1516, %v1532, %v1502
        %v1541 = vsel %vm1517, %v1533, %v1504
        %v1542 = vsel %vm1518, %v1534, %v1506
        %v1543 = vsel %vm1519, %v1535, %v1508
        %v1544 = vsel %vm1520, %v1536, %v1510
        %v1545 = vsel %vm1521, %v1537, %v1512
        %v1546 = vsel %vm1522, %v1538, %v1514
        %v1547 = vmul.f32 %v1459, 116.0
        %v1548 = vmul.f32 %v1460, 116.0
        %v1549 = vmul.f32 %v1461, 116.0
        %v1550 = vmul.f32 %v1462, 116.0
        %v1551 = vmul.f32 %v1463, 116.0
        %v1552 = vmul.f32 %v1464, 116.0
        %v1553 = vmul.f32 %v1465, 116.0
        %v1554 = vmul.f32 %v1466, 116.0
        %v1555 = vsub.f32 %v1547, 16.0
        %v1556 = vsub.f32 %v1548, 16.0
        %v1557 = vsub.f32 %v1549, 16.0
        %v1558 = vsub.f32 %v1550, 16.0
        %v1559 = vsub.f32 %v1551, 16.0
        %v1560 = vsub.f32 %v1552, 16.0
        %v1561 = vsub.f32 %v1553, 16.0
        %v1562 = vsub.f32 %v1554, 16.0
        %v1563 = vrcp.pop 100.0
        %v1564 = vmul.f32 %v1555, %v1563
        %v1565 = vmul.f32 %v1556, %v1563
        %v1566 = vmul.f32 %v1557, %v1563
        %v1567 = vmul.f32 %v1558, %v1563
        %v1568 = vmul.f32 %v1559, %v1563
        %v1569 = vmul.f32 %v1560, %v1563
        %v1570 = vmul.f32 %v1561, %v1563
        %v1571 = vmul.f32 %v1562, %v1563
        %v1572 = vsub.f32 %v1379, %v1459
        %v1573 = vsub.f32 %v1380, %v1460
        %v1574 = vsub.f32 %v1381, %v1461
        %v1575 = vsub.f32 %v1382, %v1462
        %v1576 = vsub.f32 %v1383, %v1463
        %v1577 = vsub.f32 %v1384, %v1464
        %v1578 = vsub.f32 %v1385, %v1465
        %v1579 = vsub.f32 %v1386, %v1466
        %v1580 = vmul.f32 %v1572, 500.0
        %v1581 = vmul.f32 %v1573, 500.0
        %v1582 = vmul.f32 %v1574, 500.0
        %v1583 = vmul.f32 %v1575, 500.0
        %v1584 = vmul.f32 %v1576, 500.0
        %v1585 = vmul.f32 %v1577, 500.0
        %v1586 = vmul.f32 %v1578, 500.0
        %v1587 = vmul.f32 %v1579, 500.0
        %v1588 = vrcp.pop 110.0
        %v1589 = vmul.f32 %v1580, %v1588
        %v1590 = vmul.f32 %v1581, %v1588
        %v1591 = vmul.f32 %v1582, %v1588
        %v1592 = vmul.f32 %v1583, %v1588
        %v1593 = vmul.f32 %v1584, %v1588
        %v1594 = vmul.f32 %v1585, %v1588
        %v1595 = vmul.f32 %v1586, %v1588
        %v1596 = vmul.f32 %v1587, %v1588
        %v1597 = vadd.f32 %v1589, 1.0
        %v1598 = vadd.f32 %v1590, 1.0
        %v1599 = vadd.f32 %v1591, 1.0
        %v1600 = vadd.f32 %v1592, 1.0
        %v1601 = vadd.f32 %v1593, 1.0
        %v1602 = vadd.f32 %v1594, 1.0
        %v1603 = vadd.f32 %v1595, 1.0
        %v1604 = vadd.f32 %v1596, 1.0
        %v1605 = vrcp.pop 2.0
        %v1606 = vmul.f32 %v1597, %v1605
        %v1607 = vmul.f32 %v1598, %v1605
        %v1608 = vmul.f32 %v1599, %v1605
        %v1609 = vmul.f32 %v1600, %v1605
        %v1610 = vmul.f32 %v1601, %v1605
        %v1611 = vmul.f32 %v1602, %v1605
        %v1612 = vmul.f32 %v1603, %v1605
        %v1613 = vmul.f32 %v1604, %v1605
        %v1614 = vsub.f32 %v1459, %v1539
        %v1615 = vsub.f32 %v1460, %v1540
        %v1616 = vsub.f32 %v1461, %v1541
        %v1617 = vsub.f32 %v1462, %v1542
        %v1618 = vsub.f32 %v1463, %v1543
        %v1619 = vsub.f32 %v1464, %v1544
        %v1620 = vsub.f32 %v1465, %v1545
        %v1621 = vsub.f32 %v1466, %v1546
        %v1622 = vmul.f32 %v1614, 200.0
        %v1623 = vmul.f32 %v1615, 200.0
        %v1624 = vmul.f32 %v1616, 200.0
        %v1625 = vmul.f32 %v1617, 200.0
        %v1626 = vmul.f32 %v1618, 200.0
        %v1627 = vmul.f32 %v1619, 200.0
        %v1628 = vmul.f32 %v1620, 200.0
        %v1629 = vmul.f32 %v1621, 200.0
        %v1630 = vmul.f32 %v1622, %v1588
        %v1631 = vmul.f32 %v1623, %v1588
        %v1632 = vmul.f32 %v1624, %v1588
        %v1633 = vmul.f32 %v1625, %v1588
        %v1634 = vmul.f32 %v1626, %v1588
        %v1635 = vmul.f32 %v1627, %v1588
        %v1636 = vmul.f32 %v1628, %v1588
        %v1637 = vmul.f32 %v1629, %v1588
        %v1638 = vadd.f32 %v1630, 1.0
        %v1639 = vadd.f32 %v1631, 1.0
        %v1640 = vadd.f32 %v1632, 1.0
        %v1641 = vadd.f32 %v1633, 1.0
        %v1642 = vadd.f32 %v1634, 1.0
        %v1643 = vadd.f32 %v1635, 1.0
        %v1644 = vadd.f32 %v1636, 1.0
        %v1645 = vadd.f32 %v1637, 1.0
        %v1646 = vmul.f32 %v1638, %v1605
        %v1647 = vmul.f32 %v1639, %v1605
        %v1648 = vmul.f32 %v1640, %v1605
        %v1649 = vmul.f32 %v1641, %v1605
        %v1650 = vmul.f32 %v1642, %v1605
        %v1651 = vmul.f32 %v1643, %v1605
        %v1652 = vmul.f32 %v1644, %v1605
        %v1653 = vmul.f32 %v1645, %v1605
        %vm1654 = vcmp.ne.f32.partialorder %v1564, %v1564
        %vm1655 = vcmp.ne.f32.partialorder %v1565, %v1565
        %vm1656 = vcmp.ne.f32.partialorder %v1566, %v1566
        %vm1657 = vcmp.ne.f32.partialorder %v1567, %v1567
        %vm1658 = vcmp.ne.f32.partialorder %v1568, %v1568
        %vm1659 = vcmp.ne.f32.partialorder %v1569, %v1569
        %vm1660 = vcmp.ne.f32.partialorder %v1570, %v1570
        %vm1661 = vcmp.ne.f32.partialorder %v1571, %v1571
        %v1662 = vsel %vm1654, 0.0, %v1564
        %v1663 = vsel %vm1655, 0.0, %v1565
        %v1664 = vsel %vm1656, 0.0, %v1566
        %v1665 = vsel %vm1657, 0.0, %v1567
        %v1666 = vsel %vm1658, 0.0, %v1568
        %v1667 = vsel %vm1659, 0.0, %v1569
        %v1668 = vsel %vm1660, 0.0, %v1570
        %v1669 = vsel %vm1661, 0.0, %v1571
        %vm1670 = vcmp.ne.f32.partialorder %v1606, %v1606
        %vm1671 = vcmp.ne.f32.partialorder %v1607, %v1607
        %vm1672 = vcmp.ne.f32.partialorder %v1608, %v1608
        %vm1673 = vcmp.ne.f32.partialorder %v1609, %v1609
        %vm1674 = vcmp.ne.f32.partialorder %v1610, %v1610
        %vm1675 = vcmp.ne.f32.partialorder %v1611, %v1611
        %vm1676 = vcmp.ne.f32.partialorder %v1612, %v1612
        %vm1677 = vcmp.ne.f32.partialorder %v1613, %v1613
        %v1678 = vsel %vm1670, 0.0, %v1606
        %v1679 = vsel %vm1671, 0.0, %v1607
        %v1680 = vsel %vm1672, 0.0, %v1608
        %v1681 = vsel %vm1673, 0.0, %v1609
        %v1682 = vsel %vm1674, 0.0, %v1610
        %v1683 = vsel %vm1675, 0.0, %v1611
        %v1684 = vsel %vm1676, 0.0, %v1612
        %v1685 = vsel %vm1677, 0.0, %v1613
        %vm1686 = vcmp.ne.f32.partialorder %v1646, %v1646
        %vm1687 = vcmp.ne.f32.partialorder %v1647, %v1647
        %vm1688 = vcmp.ne.f32.partialorder %v1648, %v1648
        %vm1689 = vcmp.ne.f32.partialorder %v1649, %v1649
        %vm1690 = vcmp.ne.f32.partialorder %v1650, %v1650
        %vm1691 = vcmp.ne.f32.partialorder %v1651, %v1651
        %vm1692 = vcmp.ne.f32.partialorder %v1652, %v1652
        %vm1693 = vcmp.ne.f32.partialorder %v1653, %v1653
        %v1694 = vsel %vm1686, 0.0, %v1646
        %v1695 = vsel %vm1687, 0.0, %v1647
        %v1696 = vsel %vm1688, 0.0, %v1648
        %v1697 = vsel %vm1689, 0.0, %v1649
        %v1698 = vsel %vm1690, 0.0, %v1650
        %v1699 = vsel %vm1691, 0.0, %v1651
        %v1700 = vsel %vm1692, 0.0, %v1652
        %v1701 = vsel %vm1693, 0.0, %v1653
        %v1702 = vmax.f32 %v878, 0.0001
        %v1703 = vmax.f32 %v879, 0.0001
        %v1704 = vmax.f32 %v880, 0.0001
        %v1705 = vmax.f32 %v881, 0.0001
        %v1706 = vmax.f32 %v882, 0.0001
        %v1707 = vmax.f32 %v883, 0.0001
        %v1708 = vmax.f32 %v884, 0.0001
        %v1709 = vmax.f32 %v885, 0.0001
        %v1710 = vadd.f32 %v1702, 0.055
        %v1711 = vadd.f32 %v1703, 0.055
        %v1712 = vadd.f32 %v1704, 0.055
        %v1713 = vadd.f32 %v1705, 0.055
        %v1714 = vadd.f32 %v1706, 0.055
        %v1715 = vadd.f32 %v1707, 0.055
        %v1716 = vadd.f32 %v1708, 0.055
        %v1717 = vadd.f32 %v1709, 0.055
        %v1718 = vmul.f32 %v1710, %v920
        %v1719 = vmul.f32 %v1711, %v920
        %v1720 = vmul.f32 %v1712, %v920
        %v1721 = vmul.f32 %v1713, %v920
        %v1722 = vmul.f32 %v1714, %v920
        %v1723 = vmul.f32 %v1715, %v920
        %v1724 = vmul.f32 %v1716, %v920
        %v1725 = vmul.f32 %v1717, %v920
        %v1726 = vlog2.pop %v1718
        %v1727 = vmul.f32 %v1726, 0.6931472
        %v1728 = vlog2.pop %v1719
        %v1729 = vmul.f32 %v1728, 0.6931472
        %v1730 = vlog2.pop %v1720
        %v1731 = vmul.f32 %v1730, 0.6931472
        %v1732 = vlog2.pop %v1721
        %v1733 = vmul.f32 %v1732, 0.6931472
        %v1734 = vlog2.pop %v1722
        %v1735 = vmul.f32 %v1734, 0.6931472
        %v1736 = vlog2.pop %v1723
        %v1737 = vmul.f32 %v1736, 0.6931472
        %v1738 = vlog2.pop %v1724
        %v1739 = vmul.f32 %v1738, 0.6931472
        %v1740 = vlog2.pop %v1725
        %v1741 = vmul.f32 %v1740, 0.6931472
        %v1742 = vmul.f32 %v1727, 2.4
        %v1743 = vmul.f32 %v1729, 2.4
        %v1744 = vmul.f32 %v1731, 2.4
        %v1745 = vmul.f32 %v1733, 2.4
        %v1746 = vmul.f32 %v1735, 2.4
        %v1747 = vmul.f32 %v1737, 2.4
        %v1748 = vmul.f32 %v1739, 2.4
        %v1749 = vmul.f32 %v1741, 2.4
        %v1750 = vmul.f32 %v1742, 1.442695
        %v1751 = vpow.pop %v1750
        %v1752 = vmul.f32 %v1743, 1.442695
        %v1753 = vpow.pop %v1752
        %v1754 = vmul.f32 %v1744, 1.442695
        %v1755 = vpow.pop %v1754
        %v1756 = vmul.f32 %v1745, 1.442695
        %v1757 = vpow.pop %v1756
        %v1758 = vmul.f32 %v1746, 1.442695
        %v1759 = vpow.pop %v1758
        %v1760 = vmul.f32 %v1747, 1.442695
        %v1761 = vpow.pop %v1760
        %v1762 = vmul.f32 %v1748, 1.442695
        %v1763 = vpow.pop %v1762
        %v1764 = vmul.f32 %v1749, 1.442695
        %v1765 = vpow.pop %v1764
        %vm1766 = vcmp.le.f32.partialorder %v878, 0.04045
        %vm1767 = vcmp.le.f32.partialorder %v879, 0.04045
        %vm1768 = vcmp.le.f32.partialorder %v880, 0.04045
        %vm1769 = vcmp.le.f32.partialorder %v881, 0.04045
        %vm1770 = vcmp.le.f32.partialorder %v882, 0.04045
        %vm1771 = vcmp.le.f32.partialorder %v883, 0.04045
        %vm1772 = vcmp.le.f32.partialorder %v884, 0.04045
        %vm1773 = vcmp.le.f32.partialorder %v885, 0.04045
        %v1774 = vmul.f32 %v878, %v977
        %v1775 = vmul.f32 %v879, %v977
        %v1776 = vmul.f32 %v880, %v977
        %v1777 = vmul.f32 %v881, %v977
        %v1778 = vmul.f32 %v882, %v977
        %v1779 = vmul.f32 %v883, %v977
        %v1780 = vmul.f32 %v884, %v977
        %v1781 = vmul.f32 %v885, %v977
        %v1782 = vsel %vm1766, %v1774, %v1751
        %v1783 = vsel %vm1767, %v1775, %v1753
        %v1784 = vsel %vm1768, %v1776, %v1755
        %v1785 = vsel %vm1769, %v1777, %v1757
        %v1786 = vsel %vm1770, %v1778, %v1759
        %v1787 = vsel %vm1771, %v1779, %v1761
        %v1788 = vsel %vm1772, %v1780, %v1763
        %v1789 = vsel %vm1773, %v1781, %v1765
        %v1790 = vmax.f32 %v887, 0.0001
        %v1791 = vmax.f32 %v888, 0.0001
        %v1792 = vmax.f32 %v889, 0.0001
        %v1793 = vmax.f32 %v890, 0.0001
        %v1794 = vmax.f32 %v891, 0.0001
        %v1795 = vmax.f32 %v892, 0.0001
        %v1796 = vmax.f32 %v893, 0.0001
        %v1797 = vmax.f32 %v894, 0.0001
        %v1798 = vadd.f32 %v1790, 0.055
        %v1799 = vadd.f32 %v1791, 0.055
        %v1800 = vadd.f32 %v1792, 0.055
        %v1801 = vadd.f32 %v1793, 0.055
        %v1802 = vadd.f32 %v1794, 0.055
        %v1803 = vadd.f32 %v1795, 0.055
        %v1804 = vadd.f32 %v1796, 0.055
        %v1805 = vadd.f32 %v1797, 0.055
        %v1806 = vmul.f32 %v1798, %v920
        %v1807 = vmul.f32 %v1799, %v920
        %v1808 = vmul.f32 %v1800, %v920
        %v1809 = vmul.f32 %v1801, %v920
        %v1810 = vmul.f32 %v1802, %v920
        %v1811 = vmul.f32 %v1803, %v920
        %v1812 = vmul.f32 %v1804, %v920
        %v1813 = vmul.f32 %v1805, %v920
        %v1814 = vlog2.pop %v1806
        %v1815 = vmul.f32 %v1814, 0.6931472
        %v1816 = vlog2.pop %v1807
        %v1817 = vmul.f32 %v1816, 0.6931472
        %v1818 = vlog2.pop %v1808
        %v1819 = vmul.f32 %v1818, 0.6931472
        %v1820 = vlog2.pop %v1809
        %v1821 = vmul.f32 %v1820, 0.6931472
        %v1822 = vlog2.pop %v1810
        %v1823 = vmul.f32 %v1822, 0.6931472
        %v1824 = vlog2.pop %v1811
        %v1825 = vmul.f32 %v1824, 0.6931472
        %v1826 = vlog2.pop %v1812
        %v1827 = vmul.f32 %v1826, 0.6931472
        %v1828 = vlog2.pop %v1813
        %v1829 = vmul.f32 %v1828, 0.6931472
        %v1830 = vmul.f32 %v1815, 2.4
        %v1831 = vmul.f32 %v1817, 2.4
        %v1832 = vmul.f32 %v1819, 2.4
        %v1833 = vmul.f32 %v1821, 2.4
        %v1834 = vmul.f32 %v1823, 2.4
        %v1835 = vmul.f32 %v1825, 2.4
        %v1836 = vmul.f32 %v1827, 2.4
        %v1837 = vmul.f32 %v1829, 2.4
        %v1838 = vmul.f32 %v1830, 1.442695
        %v1839 = vpow.pop %v1838
        %v1840 = vmul.f32 %v1831, 1.442695
        %v1841 = vpow.pop %v1840
        %v1842 = vmul.f32 %v1832, 1.442695
        %v1843 = vpow.pop %v1842
        %v1844 = vmul.f32 %v1833, 1.442695
        %v1845 = vpow.pop %v1844
        %v1846 = vmul.f32 %v1834, 1.442695
        %v1847 = vpow.pop %v1846
        %v1848 = vmul.f32 %v1835, 1.442695
        %v1849 = vpow.pop %v1848
        %v1850 = vmul.f32 %v1836, 1.442695
        %v1851 = vpow.pop %v1850
        %v1852 = vmul.f32 %v1837, 1.442695
        %v1853 = vpow.pop %v1852
        %vm1854 = vcmp.le.f32.partialorder %v887, 0.04045
        %vm1855 = vcmp.le.f32.partialorder %v888, 0.04045
        %vm1856 = vcmp.le.f32.partialorder %v889, 0.04045
        %vm1857 = vcmp.le.f32.partialorder %v890, 0.04045
        %vm1858 = vcmp.le.f32.partialorder %v891, 0.04045
        %vm1859 = vcmp.le.f32.partialorder %v892, 0.04045
        %vm1860 = vcmp.le.f32.partialorder %v893, 0.04045
        %vm1861 = vcmp.le.f32.partialorder %v894, 0.04045
        %v1862 = vmul.f32 %v887, %v977
        %v1863 = vmul.f32 %v888, %v977
        %v1864 = vmul.f32 %v889, %v977
        %v1865 = vmul.f32 %v890, %v977
        %v1866 = vmul.f32 %v891, %v977
        %v1867 = vmul.f32 %v892, %v977
        %v1868 = vmul.f32 %v893, %v977
        %v1869 = vmul.f32 %v894, %v977
        %v1870 = vsel %vm1854, %v1862, %v1839
        %v1871 = vsel %vm1855, %v1863, %v1841
        %v1872 = vsel %vm1856, %v1864, %v1843
        %v1873 = vsel %vm1857, %v1865, %v1845
        %v1874 = vsel %vm1858, %v1866, %v1847
        %v1875 = vsel %vm1859, %v1867, %v1849
        %v1876 = vsel %vm1860, %v1868, %v1851
        %v1877 = vsel %vm1861, %v1869, %v1853
        %v1878 = vmax.f32 %v896, 0.0001
        %v1879 = vmax.f32 %v897, 0.0001
        %v1880 = vmax.f32 %v898, 0.0001
        %v1881 = vmax.f32 %v899, 0.0001
        %v1882 = vmax.f32 %v900, 0.0001
        %v1883 = vmax.f32 %v901, 0.0001
        %v1884 = vmax.f32 %v902, 0.0001
        %v1885 = vmax.f32 %v903, 0.0001
        %v1886 = vadd.f32 %v1878, 0.055
        %v1887 = vadd.f32 %v1879, 0.055
        %v1888 = vadd.f32 %v1880, 0.055
        %v1889 = vadd.f32 %v1881, 0.055
        %v1890 = vadd.f32 %v1882, 0.055
        %v1891 = vadd.f32 %v1883, 0.055
        %v1892 = vadd.f32 %v1884, 0.055
        %v1893 = vadd.f32 %v1885, 0.055
        %v1894 = vmul.f32 %v1886, %v920
        %v1895 = vmul.f32 %v1887, %v920
        %v1896 = vmul.f32 %v1888, %v920
        %v1897 = vmul.f32 %v1889, %v920
        %v1898 = vmul.f32 %v1890, %v920
        %v1899 = vmul.f32 %v1891, %v920
        %v1900 = vmul.f32 %v1892, %v920
        %v1901 = vmul.f32 %v1893, %v920
        %v1902 = vlog2.pop %v1894
        %v1903 = vmul.f32 %v1902, 0.6931472
        %v1904 = vlog2.pop %v1895
        %v1905 = vmul.f32 %v1904, 0.6931472
        %v1906 = vlog2.pop %v1896
        %v1907 = vmul.f32 %v1906, 0.6931472
        %v1908 = vlog2.pop %v1897
        %v1909 = vmul.f32 %v1908, 0.6931472
        %v1910 = vlog2.pop %v1898
        %v1911 = vmul.f32 %v1910, 0.6931472
        %v1912 = vlog2.pop %v1899
        %v1913 = vmul.f32 %v1912, 0.6931472
        %v1914 = vlog2.pop %v1900
        %v1915 = vmul.f32 %v1914, 0.6931472
        %v1916 = vlog2.pop %v1901
        %v1917 = vmul.f32 %v1916, 0.6931472
        %v1918 = vmul.f32 %v1903, 2.4
        %v1919 = vmul.f32 %v1905, 2.4
        %v1920 = vmul.f32 %v1907, 2.4
        %v1921 = vmul.f32 %v1909, 2.4
        %v1922 = vmul.f32 %v1911, 2.4
        %v1923 = vmul.f32 %v1913, 2.4
        %v1924 = vmul.f32 %v1915, 2.4
        %v1925 = vmul.f32 %v1917, 2.4
        %v1926 = vmul.f32 %v1918, 1.442695
        %v1927 = vpow.pop %v1926
        %v1928 = vmul.f32 %v1919, 1.442695
        %v1929 = vpow.pop %v1928
        %v1930 = vmul.f32 %v1920, 1.442695
        %v1931 = vpow.pop %v1930
        %v1932 = vmul.f32 %v1921, 1.442695
        %v1933 = vpow.pop %v1932
        %v1934 = vmul.f32 %v1922, 1.442695
        %v1935 = vpow.pop %v1934
        %v1936 = vmul.f32 %v1923, 1.442695
        %v1937 = vpow.pop %v1936
        %v1938 = vmul.f32 %v1924, 1.442695
        %v1939 = vpow.pop %v1938
        %v1940 = vmul.f32 %v1925, 1.442695
        %v1941 = vpow.pop %v1940
        %vm1942 = vcmp.le.f32.partialorder %v896, 0.04045
        %vm1943 = vcmp.le.f32.partialorder %v897, 0.04045
        %vm1944 = vcmp.le.f32.partialorder %v898, 0.04045
        %vm1945 = vcmp.le.f32.partialorder %v899, 0.04045
        %vm1946 = vcmp.le.f32.partialorder %v900, 0.04045
        %vm1947 = vcmp.le.f32.partialorder %v901, 0.04045
        %vm1948 = vcmp.le.f32.partialorder %v902, 0.04045
        %vm1949 = vcmp.le.f32.partialorder %v903, 0.04045
        %v1950 = vmul.f32 %v896, %v977
        %v1951 = vmul.f32 %v897, %v977
        %v1952 = vmul.f32 %v898, %v977
        %v1953 = vmul.f32 %v899, %v977
        %v1954 = vmul.f32 %v900, %v977
        %v1955 = vmul.f32 %v901, %v977
        %v1956 = vmul.f32 %v902, %v977
        %v1957 = vmul.f32 %v903, %v977
        %v1958 = vsel %vm1942, %v1950, %v1927
        %v1959 = vsel %vm1943, %v1951, %v1929
        %v1960 = vsel %vm1944, %v1952, %v1931
        %v1961 = vsel %vm1945, %v1953, %v1933
        %v1962 = vsel %vm1946, %v1954, %v1935
        %v1963 = vsel %vm1947, %v1955, %v1937
        %v1964 = vsel %vm1948, %v1956, %v1939
        %v1965 = vsel %vm1949, %v1957, %v1941
        %v1966 = vmul.f32 %v1782, 0.412453
        %v1967 = vmul.f32 %v1783, 0.412453
        %v1968 = vmul.f32 %v1784, 0.412453
        %v1969 = vmul.f32 %v1785, 0.412453
        %v1970 = vmul.f32 %v1786, 0.412453
        %v1971 = vmul.f32 %v1787, 0.412453
        %v1972 = vmul.f32 %v1788, 0.412453
        %v1973 = vmul.f32 %v1789, 0.412453
        %v1974 = vmul.f32 %v1870, 0.35758
        %v1975 = vmul.f32 %v1871, 0.35758
        %v1976 = vmul.f32 %v1872, 0.35758
        %v1977 = vmul.f32 %v1873, 0.35758
        %v1978 = vmul.f32 %v1874, 0.35758
        %v1979 = vmul.f32 %v1875, 0.35758
        %v1980 = vmul.f32 %v1876, 0.35758
        %v1981 = vmul.f32 %v1877, 0.35758
        %v1982 = vadd.f32 %v1966, %v1974
        %v1983 = vadd.f32 %v1967, %v1975
        %v1984 = vadd.f32 %v1968, %v1976
        %v1985 = vadd.f32 %v1969, %v1977
        %v1986 = vadd.f32 %v1970, %v1978
        %v1987 = vadd.f32 %v1971, %v1979
        %v1988 = vadd.f32 %v1972, %v1980
        %v1989 = vadd.f32 %v1973, %v1981
        %v1990 = vmul.f32 %v1958, 0.180423
        %v1991 = vmul.f32 %v1959, 0.180423
        %v1992 = vmul.f32 %v1960, 0.180423
        %v1993 = vmul.f32 %v1961, 0.180423
        %v1994 = vmul.f32 %v1962, 0.180423
        %v1995 = vmul.f32 %v1963, 0.180423
        %v1996 = vmul.f32 %v1964, 0.180423
        %v1997 = vmul.f32 %v1965, 0.180423
        %v1998 = vadd.f32 %v1982, %v1990
        %v1999 = vadd.f32 %v1983, %v1991
        %v2000 = vadd.f32 %v1984, %v1992
        %v2001 = vadd.f32 %v1985, %v1993
        %v2002 = vadd.f32 %v1986, %v1994
        %v2003 = vadd.f32 %v1987, %v1995
        %v2004 = vadd.f32 %v1988, %v1996
        %v2005 = vadd.f32 %v1989, %v1997
        %v2006 = vmul.f32 %v1782, 0.212671
        %v2007 = vmul.f32 %v1783, 0.212671
        %v2008 = vmul.f32 %v1784, 0.212671
        %v2009 = vmul.f32 %v1785, 0.212671
        %v2010 = vmul.f32 %v1786, 0.212671
        %v2011 = vmul.f32 %v1787, 0.212671
        %v2012 = vmul.f32 %v1788, 0.212671
        %v2013 = vmul.f32 %v1789, 0.212671
        %v2014 = vmul.f32 %v1870, 0.71516
        %v2015 = vmul.f32 %v1871, 0.71516
        %v2016 = vmul.f32 %v1872, 0.71516
        %v2017 = vmul.f32 %v1873, 0.71516
        %v2018 = vmul.f32 %v1874, 0.71516
        %v2019 = vmul.f32 %v1875, 0.71516
        %v2020 = vmul.f32 %v1876, 0.71516
        %v2021 = vmul.f32 %v1877, 0.71516
        %v2022 = vadd.f32 %v2006, %v2014
        %v2023 = vadd.f32 %v2007, %v2015
        %v2024 = vadd.f32 %v2008, %v2016
        %v2025 = vadd.f32 %v2009, %v2017
        %v2026 = vadd.f32 %v2010, %v2018
        %v2027 = vadd.f32 %v2011, %v2019
        %v2028 = vadd.f32 %v2012, %v2020
        %v2029 = vadd.f32 %v2013, %v2021
        %v2030 = vmul.f32 %v1958, 0.072169
        %v2031 = vmul.f32 %v1959, 0.072169
        %v2032 = vmul.f32 %v1960, 0.072169
        %v2033 = vmul.f32 %v1961, 0.072169
        %v2034 = vmul.f32 %v1962, 0.072169
        %v2035 = vmul.f32 %v1963, 0.072169
        %v2036 = vmul.f32 %v1964, 0.072169
        %v2037 = vmul.f32 %v1965, 0.072169
        %v2038 = vadd.f32 %v2022, %v2030
        %v2039 = vadd.f32 %v2023, %v2031
        %v2040 = vadd.f32 %v2024, %v2032
        %v2041 = vadd.f32 %v2025, %v2033
        %v2042 = vadd.f32 %v2026, %v2034
        %v2043 = vadd.f32 %v2027, %v2035
        %v2044 = vadd.f32 %v2028, %v2036
        %v2045 = vadd.f32 %v2029, %v2037
        %v2046 = vmul.f32 %v1782, 0.019334
        %v2047 = vmul.f32 %v1783, 0.019334
        %v2048 = vmul.f32 %v1784, 0.019334
        %v2049 = vmul.f32 %v1785, 0.019334
        %v2050 = vmul.f32 %v1786, 0.019334
        %v2051 = vmul.f32 %v1787, 0.019334
        %v2052 = vmul.f32 %v1788, 0.019334
        %v2053 = vmul.f32 %v1789, 0.019334
        %v2054 = vmul.f32 %v1870, 0.119193
        %v2055 = vmul.f32 %v1871, 0.119193
        %v2056 = vmul.f32 %v1872, 0.119193
        %v2057 = vmul.f32 %v1873, 0.119193
        %v2058 = vmul.f32 %v1874, 0.119193
        %v2059 = vmul.f32 %v1875, 0.119193
        %v2060 = vmul.f32 %v1876, 0.119193
        %v2061 = vmul.f32 %v1877, 0.119193
        %v2062 = vadd.f32 %v2046, %v2054
        %v2063 = vadd.f32 %v2047, %v2055
        %v2064 = vadd.f32 %v2048, %v2056
        %v2065 = vadd.f32 %v2049, %v2057
        %v2066 = vadd.f32 %v2050, %v2058
        %v2067 = vadd.f32 %v2051, %v2059
        %v2068 = vadd.f32 %v2052, %v2060
        %v2069 = vadd.f32 %v2053, %v2061
        %v2070 = vmul.f32 %v1958, 0.950227
        %v2071 = vmul.f32 %v1959, 0.950227
        %v2072 = vmul.f32 %v1960, 0.950227
        %v2073 = vmul.f32 %v1961, 0.950227
        %v2074 = vmul.f32 %v1962, 0.950227
        %v2075 = vmul.f32 %v1963, 0.950227
        %v2076 = vmul.f32 %v1964, 0.950227
        %v2077 = vmul.f32 %v1965, 0.950227
        %v2078 = vadd.f32 %v2062, %v2070
        %v2079 = vadd.f32 %v2063, %v2071
        %v2080 = vadd.f32 %v2064, %v2072
        %v2081 = vadd.f32 %v2065, %v2073
        %v2082 = vadd.f32 %v2066, %v2074
        %v2083 = vadd.f32 %v2067, %v2075
        %v2084 = vadd.f32 %v2068, %v2076
        %v2085 = vadd.f32 %v2069, %v2077
        %v2086 = vmul.f32 %v1998, 1.0521265
        %v2087 = vmul.f32 %v1999, 1.0521265
        %v2088 = vmul.f32 %v2000, 1.0521265
        %v2089 = vmul.f32 %v2001, 1.0521265
        %v2090 = vmul.f32 %v2002, 1.0521265
        %v2091 = vmul.f32 %v2003, 1.0521265
        %v2092 = vmul.f32 %v2004, 1.0521265
        %v2093 = vmul.f32 %v2005, 1.0521265
        %v2094 = vmul.f32 %v2078, 0.9184811
        %v2095 = vmul.f32 %v2079, 0.9184811
        %v2096 = vmul.f32 %v2080, 0.9184811
        %v2097 = vmul.f32 %v2081, 0.9184811
        %v2098 = vmul.f32 %v2082, 0.9184811
        %v2099 = vmul.f32 %v2083, 0.9184811
        %v2100 = vmul.f32 %v2084, 0.9184811
        %v2101 = vmul.f32 %v2085, 0.9184811
        %v2102 = vmax.f32 %v2086, 0.0001
        %v2103 = vmax.f32 %v2087, 0.0001
        %v2104 = vmax.f32 %v2088, 0.0001
        %v2105 = vmax.f32 %v2089, 0.0001
        %v2106 = vmax.f32 %v2090, 0.0001
        %v2107 = vmax.f32 %v2091, 0.0001
        %v2108 = vmax.f32 %v2092, 0.0001
        %v2109 = vmax.f32 %v2093, 0.0001
        %v2110 = vlog2.pop %v2102
        %v2111 = vmul.f32 %v2110, 0.6931472
        %v2112 = vlog2.pop %v2103
        %v2113 = vmul.f32 %v2112, 0.6931472
        %v2114 = vlog2.pop %v2104
        %v2115 = vmul.f32 %v2114, 0.6931472
        %v2116 = vlog2.pop %v2105
        %v2117 = vmul.f32 %v2116, 0.6931472
        %v2118 = vlog2.pop %v2106
        %v2119 = vmul.f32 %v2118, 0.6931472
        %v2120 = vlog2.pop %v2107
        %v2121 = vmul.f32 %v2120, 0.6931472
        %v2122 = vlog2.pop %v2108
        %v2123 = vmul.f32 %v2122, 0.6931472
        %v2124 = vlog2.pop %v2109
        %v2125 = vmul.f32 %v2124, 0.6931472
        %v2126 = vmul.f32 %v2111, 0.33333334
        %v2127 = vmul.f32 %v2113, 0.33333334
        %v2128 = vmul.f32 %v2115, 0.33333334
        %v2129 = vmul.f32 %v2117, 0.33333334
        %v2130 = vmul.f32 %v2119, 0.33333334
        %v2131 = vmul.f32 %v2121, 0.33333334
        %v2132 = vmul.f32 %v2123, 0.33333334
        %v2133 = vmul.f32 %v2125, 0.33333334
        %v2134 = vmul.f32 %v2126, 1.442695
        %v2135 = vpow.pop %v2134
        %v2136 = vmul.f32 %v2127, 1.442695
        %v2137 = vpow.pop %v2136
        %v2138 = vmul.f32 %v2128, 1.442695
        %v2139 = vpow.pop %v2138
        %v2140 = vmul.f32 %v2129, 1.442695
        %v2141 = vpow.pop %v2140
        %v2142 = vmul.f32 %v2130, 1.442695
        %v2143 = vpow.pop %v2142
        %v2144 = vmul.f32 %v2131, 1.442695
        %v2145 = vpow.pop %v2144
        %v2146 = vmul.f32 %v2132, 1.442695
        %v2147 = vpow.pop %v2146
        %v2148 = vmul.f32 %v2133, 1.442695
        %v2149 = vpow.pop %v2148
        %vm2150 = vcmp.le.f32.partialorder %v2086, 0.008856452
        %vm2151 = vcmp.le.f32.partialorder %v2087, 0.008856452
        %vm2152 = vcmp.le.f32.partialorder %v2088, 0.008856452
        %vm2153 = vcmp.le.f32.partialorder %v2089, 0.008856452
        %vm2154 = vcmp.le.f32.partialorder %v2090, 0.008856452
        %vm2155 = vcmp.le.f32.partialorder %v2091, 0.008856452
        %vm2156 = vcmp.le.f32.partialorder %v2092, 0.008856452
        %vm2157 = vcmp.le.f32.partialorder %v2093, 0.008856452
        %v2158 = vmul.f32 %v2086, %v1362
        %v2159 = vmul.f32 %v2087, %v1362
        %v2160 = vmul.f32 %v2088, %v1362
        %v2161 = vmul.f32 %v2089, %v1362
        %v2162 = vmul.f32 %v2090, %v1362
        %v2163 = vmul.f32 %v2091, %v1362
        %v2164 = vmul.f32 %v2092, %v1362
        %v2165 = vmul.f32 %v2093, %v1362
        %v2166 = vadd.f32 %v2158, 0.13793103
        %v2167 = vadd.f32 %v2159, 0.13793103
        %v2168 = vadd.f32 %v2160, 0.13793103
        %v2169 = vadd.f32 %v2161, 0.13793103
        %v2170 = vadd.f32 %v2162, 0.13793103
        %v2171 = vadd.f32 %v2163, 0.13793103
        %v2172 = vadd.f32 %v2164, 0.13793103
        %v2173 = vadd.f32 %v2165, 0.13793103
        %v2174 = vsel %vm2150, %v2166, %v2135
        %v2175 = vsel %vm2151, %v2167, %v2137
        %v2176 = vsel %vm2152, %v2168, %v2139
        %v2177 = vsel %vm2153, %v2169, %v2141
        %v2178 = vsel %vm2154, %v2170, %v2143
        %v2179 = vsel %vm2155, %v2171, %v2145
        %v2180 = vsel %vm2156, %v2172, %v2147
        %v2181 = vsel %vm2157, %v2173, %v2149
        %v2182 = vmax.f32 %v2038, 0.0001
        %v2183 = vmax.f32 %v2039, 0.0001
        %v2184 = vmax.f32 %v2040, 0.0001
        %v2185 = vmax.f32 %v2041, 0.0001
        %v2186 = vmax.f32 %v2042, 0.0001
        %v2187 = vmax.f32 %v2043, 0.0001
        %v2188 = vmax.f32 %v2044, 0.0001
        %v2189 = vmax.f32 %v2045, 0.0001
        %v2190 = vlog2.pop %v2182
        %v2191 = vmul.f32 %v2190, 0.6931472
        %v2192 = vlog2.pop %v2183
        %v2193 = vmul.f32 %v2192, 0.6931472
        %v2194 = vlog2.pop %v2184
        %v2195 = vmul.f32 %v2194, 0.6931472
        %v2196 = vlog2.pop %v2185
        %v2197 = vmul.f32 %v2196, 0.6931472
        %v2198 = vlog2.pop %v2186
        %v2199 = vmul.f32 %v2198, 0.6931472
        %v2200 = vlog2.pop %v2187
        %v2201 = vmul.f32 %v2200, 0.6931472
        %v2202 = vlog2.pop %v2188
        %v2203 = vmul.f32 %v2202, 0.6931472
        %v2204 = vlog2.pop %v2189
        %v2205 = vmul.f32 %v2204, 0.6931472
        %v2206 = vmul.f32 %v2191, 0.33333334
        %v2207 = vmul.f32 %v2193, 0.33333334
        %v2208 = vmul.f32 %v2195, 0.33333334
        %v2209 = vmul.f32 %v2197, 0.33333334
        %v2210 = vmul.f32 %v2199, 0.33333334
        %v2211 = vmul.f32 %v2201, 0.33333334
        %v2212 = vmul.f32 %v2203, 0.33333334
        %v2213 = vmul.f32 %v2205, 0.33333334
        %v2214 = vmul.f32 %v2206, 1.442695
        %v2215 = vpow.pop %v2214
        %v2216 = vmul.f32 %v2207, 1.442695
        %v2217 = vpow.pop %v2216
        %v2218 = vmul.f32 %v2208, 1.442695
        %v2219 = vpow.pop %v2218
        %v2220 = vmul.f32 %v2209, 1.442695
        %v2221 = vpow.pop %v2220
        %v2222 = vmul.f32 %v2210, 1.442695
        %v2223 = vpow.pop %v2222
        %v2224 = vmul.f32 %v2211, 1.442695
        %v2225 = vpow.pop %v2224
        %v2226 = vmul.f32 %v2212, 1.442695
        %v2227 = vpow.pop %v2226
        %v2228 = vmul.f32 %v2213, 1.442695
        %v2229 = vpow.pop %v2228
        %vm2230 = vcmp.le.f32.partialorder %v2038, 0.008856452
        %vm2231 = vcmp.le.f32.partialorder %v2039, 0.008856452
        %vm2232 = vcmp.le.f32.partialorder %v2040, 0.008856452
        %vm2233 = vcmp.le.f32.partialorder %v2041, 0.008856452
        %vm2234 = vcmp.le.f32.partialorder %v2042, 0.008856452
        %vm2235 = vcmp.le.f32.partialorder %v2043, 0.008856452
        %vm2236 = vcmp.le.f32.partialorder %v2044, 0.008856452
        %vm2237 = vcmp.le.f32.partialorder %v2045, 0.008856452
        %v2238 = vmul.f32 %v2038, %v1362
        %v2239 = vmul.f32 %v2039, %v1362
        %v2240 = vmul.f32 %v2040, %v1362
        %v2241 = vmul.f32 %v2041, %v1362
        %v2242 = vmul.f32 %v2042, %v1362
        %v2243 = vmul.f32 %v2043, %v1362
        %v2244 = vmul.f32 %v2044, %v1362
        %v2245 = vmul.f32 %v2045, %v1362
        %v2246 = vadd.f32 %v2238, 0.13793103
        %v2247 = vadd.f32 %v2239, 0.13793103
        %v2248 = vadd.f32 %v2240, 0.13793103
        %v2249 = vadd.f32 %v2241, 0.13793103
        %v2250 = vadd.f32 %v2242, 0.13793103
        %v2251 = vadd.f32 %v2243, 0.13793103
        %v2252 = vadd.f32 %v2244, 0.13793103
        %v2253 = vadd.f32 %v2245, 0.13793103
        %v2254 = vsel %vm2230, %v2246, %v2215
        %v2255 = vsel %vm2231, %v2247, %v2217
        %v2256 = vsel %vm2232, %v2248, %v2219
        %v2257 = vsel %vm2233, %v2249, %v2221
        %v2258 = vsel %vm2234, %v2250, %v2223
        %v2259 = vsel %vm2235, %v2251, %v2225
        %v2260 = vsel %vm2236, %v2252, %v2227
        %v2261 = vsel %vm2237, %v2253, %v2229
        %v2262 = vmax.f32 %v2094, 0.0001
        %v2263 = vmax.f32 %v2095, 0.0001
        %v2264 = vmax.f32 %v2096, 0.0001
        %v2265 = vmax.f32 %v2097, 0.0001
        %v2266 = vmax.f32 %v2098, 0.0001
        %v2267 = vmax.f32 %v2099, 0.0001
        %v2268 = vmax.f32 %v2100, 0.0001
        %v2269 = vmax.f32 %v2101, 0.0001
        %v2270 = vlog2.pop %v2262
        %v2271 = vmul.f32 %v2270, 0.6931472
        %v2272 = vlog2.pop %v2263
        %v2273 = vmul.f32 %v2272, 0.6931472
        %v2274 = vlog2.pop %v2264
        %v2275 = vmul.f32 %v2274, 0.6931472
        %v2276 = vlog2.pop %v2265
        %v2277 = vmul.f32 %v2276, 0.6931472
        %v2278 = vlog2.pop %v2266
        %v2279 = vmul.f32 %v2278, 0.6931472
        %v2280 = vlog2.pop %v2267
        %v2281 = vmul.f32 %v2280, 0.6931472
        %v2282 = vlog2.pop %v2268
        %v2283 = vmul.f32 %v2282, 0.6931472
        %v2284 = vlog2.pop %v2269
        %v2285 = vmul.f32 %v2284, 0.6931472
        %v2286 = vmul.f32 %v2271, 0.33333334
        %v2287 = vmul.f32 %v2273, 0.33333334
        %v2288 = vmul.f32 %v2275, 0.33333334
        %v2289 = vmul.f32 %v2277, 0.33333334
        %v2290 = vmul.f32 %v2279, 0.33333334
        %v2291 = vmul.f32 %v2281, 0.33333334
        %v2292 = vmul.f32 %v2283, 0.33333334
        %v2293 = vmul.f32 %v2285, 0.33333334
        %v2294 = vmul.f32 %v2286, 1.442695
        %v2295 = vpow.pop %v2294
        %v2296 = vmul.f32 %v2287, 1.442695
        %v2297 = vpow.pop %v2296
        %v2298 = vmul.f32 %v2288, 1.442695
        %v2299 = vpow.pop %v2298
        %v2300 = vmul.f32 %v2289, 1.442695
        %v2301 = vpow.pop %v2300
        %v2302 = vmul.f32 %v2290, 1.442695
        %v2303 = vpow.pop %v2302
        %v2304 = vmul.f32 %v2291, 1.442695
        %v2305 = vpow.pop %v2304
        %v2306 = vmul.f32 %v2292, 1.442695
        %v2307 = vpow.pop %v2306
        %v2308 = vmul.f32 %v2293, 1.442695
        %v2309 = vpow.pop %v2308
        %vm2310 = vcmp.le.f32.partialorder %v2094, 0.008856452
        %vm2311 = vcmp.le.f32.partialorder %v2095, 0.008856452
        %vm2312 = vcmp.le.f32.partialorder %v2096, 0.008856452
        %vm2313 = vcmp.le.f32.partialorder %v2097, 0.008856452
        %vm2314 = vcmp.le.f32.partialorder %v2098, 0.008856452
        %vm2315 = vcmp.le.f32.partialorder %v2099, 0.008856452
        %vm2316 = vcmp.le.f32.partialorder %v2100, 0.008856452
        %vm2317 = vcmp.le.f32.partialorder %v2101, 0.008856452
        %v2318 = vmul.f32 %v2094, %v1362
        %v2319 = vmul.f32 %v2095, %v1362
        %v2320 = vmul.f32 %v2096, %v1362
        %v2321 = vmul.f32 %v2097, %v1362
        %v2322 = vmul.f32 %v2098, %v1362
        %v2323 = vmul.f32 %v2099, %v1362
        %v2324 = vmul.f32 %v2100, %v1362
        %v2325 = vmul.f32 %v2101, %v1362
        %v2326 = vadd.f32 %v2318, 0.13793103
        %v2327 = vadd.f32 %v2319, 0.13793103
        %v2328 = vadd.f32 %v2320, 0.13793103
        %v2329 = vadd.f32 %v2321, 0.13793103
        %v2330 = vadd.f32 %v2322, 0.13793103
        %v2331 = vadd.f32 %v2323, 0.13793103
        %v2332 = vadd.f32 %v2324, 0.13793103
        %v2333 = vadd.f32 %v2325, 0.13793103
        %v2334 = vsel %vm2310, %v2326, %v2295
        %v2335 = vsel %vm2311, %v2327, %v2297
        %v2336 = vsel %vm2312, %v2328, %v2299
        %v2337 = vsel %vm2313, %v2329, %v2301
        %v2338 = vsel %vm2314, %v2330, %v2303
        %v2339 = vsel %vm2315, %v2331, %v2305
        %v2340 = vsel %vm2316, %v2332, %v2307
        %v2341 = vsel %vm2317, %v2333, %v2309
        %v2342 = vmul.f32 %v2254, 116.0
        %v2343 = vmul.f32 %v2255, 116.0
        %v2344 = vmul.f32 %v2256, 116.0
        %v2345 = vmul.f32 %v2257, 116.0
        %v2346 = vmul.f32 %v2258, 116.0
        %v2347 = vmul.f32 %v2259, 116.0
        %v2348 = vmul.f32 %v2260, 116.0
        %v2349 = vmul.f32 %v2261, 116.0
        %v2350 = vsub.f32 %v2342, 16.0
        %v2351 = vsub.f32 %v2343, 16.0
        %v2352 = vsub.f32 %v2344, 16.0
        %v2353 = vsub.f32 %v2345, 16.0
        %v2354 = vsub.f32 %v2346, 16.0
        %v2355 = vsub.f32 %v2347, 16.0
        %v2356 = vsub.f32 %v2348, 16.0
        %v2357 = vsub.f32 %v2349, 16.0
        %v2358 = vmul.f32 %v2350, %v1563
        %v2359 = vmul.f32 %v2351, %v1563
        %v2360 = vmul.f32 %v2352, %v1563
        %v2361 = vmul.f32 %v2353, %v1563
        %v2362 = vmul.f32 %v2354, %v1563
        %v2363 = vmul.f32 %v2355, %v1563
        %v2364 = vmul.f32 %v2356, %v1563
        %v2365 = vmul.f32 %v2357, %v1563
        %v2366 = vsub.f32 %v2174, %v2254
        %v2367 = vsub.f32 %v2175, %v2255
        %v2368 = vsub.f32 %v2176, %v2256
        %v2369 = vsub.f32 %v2177, %v2257
        %v2370 = vsub.f32 %v2178, %v2258
        %v2371 = vsub.f32 %v2179, %v2259
        %v2372 = vsub.f32 %v2180, %v2260
        %v2373 = vsub.f32 %v2181, %v2261
        %v2374 = vmul.f32 %v2366, 500.0
        %v2375 = vmul.f32 %v2367, 500.0
        %v2376 = vmul.f32 %v2368, 500.0
        %v2377 = vmul.f32 %v2369, 500.0
        %v2378 = vmul.f32 %v2370, 500.0
        %v2379 = vmul.f32 %v2371, 500.0
        %v2380 = vmul.f32 %v2372, 500.0
        %v2381 = vmul.f32 %v2373, 500.0
        %v2382 = vmul.f32 %v2374, %v1588
        %v2383 = vmul.f32 %v2375, %v1588
        %v2384 = vmul.f32 %v2376, %v1588
        %v2385 = vmul.f32 %v2377, %v1588
        %v2386 = vmul.f32 %v2378, %v1588
        %v2387 = vmul.f32 %v2379, %v1588
        %v2388 = vmul.f32 %v2380, %v1588
        %v2389 = vmul.f32 %v2381, %v1588
        %v2390 = vadd.f32 %v2382, 1.0
        %v2391 = vadd.f32 %v2383, 1.0
        %v2392 = vadd.f32 %v2384, 1.0
        %v2393 = vadd.f32 %v2385, 1.0
        %v2394 = vadd.f32 %v2386, 1.0
        %v2395 = vadd.f32 %v2387, 1.0
        %v2396 = vadd.f32 %v2388, 1.0
        %v2397 = vadd.f32 %v2389, 1.0
        %v2398 = vmul.f32 %v2390, %v1605
        %v2399 = vmul.f32 %v2391, %v1605
        %v2400 = vmul.f32 %v2392, %v1605
        %v2401 = vmul.f32 %v2393, %v1605
        %v2402 = vmul.f32 %v2394, %v1605
        %v2403 = vmul.f32 %v2395, %v1605
        %v2404 = vmul.f32 %v2396, %v1605
        %v2405 = vmul.f32 %v2397, %v1605
        %v2406 = vsub.f32 %v2254, %v2334
        %v2407 = vsub.f32 %v2255, %v2335
        %v2408 = vsub.f32 %v2256, %v2336
        %v2409 = vsub.f32 %v2257, %v2337
        %v2410 = vsub.f32 %v2258, %v2338
        %v2411 = vsub.f32 %v2259, %v2339
        %v2412 = vsub.f32 %v2260, %v2340
        %v2413 = vsub.f32 %v2261, %v2341
        %v2414 = vmul.f32 %v2406, 200.0
        %v2415 = vmul.f32 %v2407, 200.0
        %v2416 = vmul.f32 %v2408, 200.0
        %v2417 = vmul.f32 %v2409, 200.0
        %v2418 = vmul.f32 %v2410, 200.0
        %v2419 = vmul.f32 %v2411, 200.0
        %v2420 = vmul.f32 %v2412, 200.0
        %v2421 = vmul.f32 %v2413, 200.0
        %v2422 = vmul.f32 %v2414, %v1588
        %v2423 = vmul.f32 %v2415, %v1588
        %v2424 = vmul.f32 %v2416, %v1588
        %v2425 = vmul.f32 %v2417, %v1588
        %v2426 = vmul.f32 %v2418, %v1588
        %v2427 = vmul.f32 %v2419, %v1588
        %v2428 = vmul.f32 %v2420, %v1588
        %v2429 = vmul.f32 %v2421, %v1588
        %v2430 = vadd.f32 %v2422, 1.0
        %v2431 = vadd.f32 %v2423, 1.0
        %v2432 = vadd.f32 %v2424, 1.0
        %v2433 = vadd.f32 %v2425, 1.0
        %v2434 = vadd.f32 %v2426, 1.0
        %v2435 = vadd.f32 %v2427, 1.0
        %v2436 = vadd.f32 %v2428, 1.0
        %v2437 = vadd.f32 %v2429, 1.0
        %v2438 = vmul.f32 %v2430, %v1605
        %v2439 = vmul.f32 %v2431, %v1605
        %v2440 = vmul.f32 %v2432, %v1605
        %v2441 = vmul.f32 %v2433, %v1605
        %v2442 = vmul.f32 %v2434, %v1605
        %v2443 = vmul.f32 %v2435, %v1605
        %v2444 = vmul.f32 %v2436, %v1605
        %v2445 = vmul.f32 %v2437, %v1605
        %vm2446 = vcmp.ne.f32.partialorder %v2358, %v2358
        %vm2447 = vcmp.ne.f32.partialorder %v2359, %v2359
        %vm2448 = vcmp.ne.f32.partialorder %v2360, %v2360
        %vm2449 = vcmp.ne.f32.partialorder %v2361, %v2361
        %vm2450 = vcmp.ne.f32.partialorder %v2362, %v2362
        %vm2451 = vcmp.ne.f32.partialorder %v2363, %v2363
        %vm2452 = vcmp.ne.f32.partialorder %v2364, %v2364
        %vm2453 = vcmp.ne.f32.partialorder %v2365, %v2365
        %v2454 = vsel %vm2446, 0.0, %v2358
        %v2455 = vsel %vm2447, 0.0, %v2359
        %v2456 = vsel %vm2448, 0.0, %v2360
        %v2457 = vsel %vm2449, 0.0, %v2361
        %v2458 = vsel %vm2450, 0.0, %v2362
        %v2459 = vsel %vm2451, 0.0, %v2363
        %v2460 = vsel %vm2452, 0.0, %v2364
        %v2461 = vsel %vm2453, 0.0, %v2365
        %vm2462 = vcmp.ne.f32.partialorder %v2398, %v2398
        %vm2463 = vcmp.ne.f32.partialorder %v2399, %v2399
        %vm2464 = vcmp.ne.f32.partialorder %v2400, %v2400
        %vm2465 = vcmp.ne.f32.partialorder %v2401, %v2401
        %vm2466 = vcmp.ne.f32.partialorder %v2402, %v2402
        %vm2467 = vcmp.ne.f32.partialorder %v2403, %v2403
        %vm2468 = vcmp.ne.f32.partialorder %v2404, %v2404
        %vm2469 = vcmp.ne.f32.partialorder %v2405, %v2405
        %v2470 = vsel %vm2462, 0.0, %v2398
        %v2471 = vsel %vm2463, 0.0, %v2399
        %v2472 = vsel %vm2464, 0.0, %v2400
        %v2473 = vsel %vm2465, 0.0, %v2401
        %v2474 = vsel %vm2466, 0.0, %v2402
        %v2475 = vsel %vm2467, 0.0, %v2403
        %v2476 = vsel %vm2468, 0.0, %v2404
        %v2477 = vsel %vm2469, 0.0, %v2405
        %vm2478 = vcmp.ne.f32.partialorder %v2438, %v2438
        %vm2479 = vcmp.ne.f32.partialorder %v2439, %v2439
        %vm2480 = vcmp.ne.f32.partialorder %v2440, %v2440
        %vm2481 = vcmp.ne.f32.partialorder %v2441, %v2441
        %vm2482 = vcmp.ne.f32.partialorder %v2442, %v2442
        %vm2483 = vcmp.ne.f32.partialorder %v2443, %v2443
        %vm2484 = vcmp.ne.f32.partialorder %v2444, %v2444
        %vm2485 = vcmp.ne.f32.partialorder %v2445, %v2445
        %v2486 = vsel %vm2478, 0.0, %v2438
        %v2487 = vsel %vm2479, 0.0, %v2439
        %v2488 = vsel %vm2480, 0.0, %v2440
        %v2489 = vsel %vm2481, 0.0, %v2441
        %v2490 = vsel %vm2482, 0.0, %v2442
        %v2491 = vsel %vm2483, 0.0, %v2443
        %v2492 = vsel %vm2484, 0.0, %v2444
        %v2493 = vsel %vm2485, 0.0, %v2445
        %v2494 = vsub.f32 %v1662, %v2454
        %v2495 = vsub.f32 %v1663, %v2455
        %v2496 = vsub.f32 %v1664, %v2456
        %v2497 = vsub.f32 %v1665, %v2457
        %v2498 = vsub.f32 %v1666, %v2458
        %v2499 = vsub.f32 %v1667, %v2459
        %v2500 = vsub.f32 %v1668, %v2460
        %v2501 = vsub.f32 %v1669, %v2461
        %v2502 = vand.u32 2147483647, %v2494
        %v2503 = vand.u32 2147483647, %v2495
        %v2504 = vand.u32 2147483647, %v2496
        %v2505 = vand.u32 2147483647, %v2497
        %v2506 = vand.u32 2147483647, %v2498
        %v2507 = vand.u32 2147483647, %v2499
        %v2508 = vand.u32 2147483647, %v2500
        %v2509 = vand.u32 2147483647, %v2501
        %vm2510 = vcmask 523264
        %v2511 = vsel %vm2510, %v2502, 0.0
        %2512 = vadd.xlane.f32.xlu0 %v2511
        %v2513 = vpop.xlane.xlu0 %2512
        %v2514 = vsel %vm2510, %v2503, 0.0
        %2515 = vadd.xlane.f32.xlu0 %v2514
        %v2516 = vpop.xlane.xlu0 %2515
        %v2517 = vsel %vm2510, %v2504, 0.0
        %2518 = vadd.xlane.f32.xlu0 %v2517
        %v2519 = vpop.xlane.xlu0 %2518
        %v2520 = vsel %vm2510, %v2505, 0.0
        %2521 = vadd.xlane.f32.xlu0 %v2520
        %v2522 = vpop.xlane.xlu0 %2521
        %v2523 = vsel %vm2510, %v2506, 0.0
        %2524 = vadd.xlane.f32.xlu0 %v2523
        %v2525 = vpop.xlane.xlu0 %2524
        %v2526 = vsel %vm2510, %v2507, 0.0
        %2527 = vadd.xlane.f32.xlu0 %v2526
        %v2528 = vpop.xlane.xlu0 %2527
        %v2529 = vsel %vm2510, %v2508, 0.0
        %2530 = vadd.xlane.f32.xlu0 %v2529
        %v2531 = vpop.xlane.xlu0 %2530
        %v2532 = vsel %vm2510, %v2509, 0.0
        %2533 = vadd.xlane.f32.xlu0 %v2532
        %v2534 = vpop.xlane.xlu0 %2533
        %v2535 = vadd.f32 %v2513, %v2516
        %v2536 = vadd.f32 %v2535, %v2519
        %v2537 = vadd.f32 %v2536, %v2522
        %v2538 = vadd.f32 %v2537, %v2525
        %v2539 = vadd.f32 %v2538, %v2528
        %v2540 = vadd.f32 %v2539, %v2531
        %v2541 = vadd.f32 %v2540, %v2534
        %v2542 = vrot.slane %v2541, 4
        %v2543 = vadd.f32 %v2541, %v2542
        %v2544 = vrot.slane %v2543, 2
        %v2545 = vadd.f32 %v2543, %v2544
        %v2546 = vrot.slane %v2545, 1
        %v2547 = vadd.f32 %v2545, %v2546
        %v2548 = vsub.f32 %v1678, %v2470
        %v2549 = vsub.f32 %v1679, %v2471
        %v2550 = vsub.f32 %v1680, %v2472
        %v2551 = vsub.f32 %v1681, %v2473
        %v2552 = vsub.f32 %v1682, %v2474
        %v2553 = vsub.f32 %v1683, %v2475
        %v2554 = vsub.f32 %v1684, %v2476
        %v2555 = vsub.f32 %v1685, %v2477
        %v2556 = vand.u32 2147483647, %v2548
        %v2557 = vand.u32 2147483647, %v2549
        %v2558 = vand.u32 2147483647, %v2550
        %v2559 = vand.u32 2147483647, %v2551
        %v2560 = vand.u32 2147483647, %v2552
        %v2561 = vand.u32 2147483647, %v2553
        %v2562 = vand.u32 2147483647, %v2554
        %v2563 = vand.u32 2147483647, %v2555
        %v2564 = vsel %vm2510, %v2556, 0.0
        %2565 = vadd.xlane.f32.xlu0 %v2564
        %v2566 = vpop.xlane.xlu0 %2565
        %v2567 = vsel %vm2510, %v2557, 0.0
        %2568 = vadd.xlane.f32.xlu0 %v2567
        %v2569 = vpop.xlane.xlu0 %2568
        %v2570 = vsel %vm2510, %v2558, 0.0
        %2571 = vadd.xlane.f32.xlu0 %v2570
        %v2572 = vpop.xlane.xlu0 %2571
        %v2573 = vsel %vm2510, %v2559, 0.0
        %2574 = vadd.xlane.f32.xlu0 %v2573
        %v2575 = vpop.xlane.xlu0 %2574
        %v2576 = vsel %vm2510, %v2560, 0.0
        %2577 = vadd.xlane.f32.xlu0 %v2576
        %v2578 = vpop.xlane.xlu0 %2577
        %v2579 = vsel %vm2510, %v2561, 0.0
        %2580 = vadd.xlane.f32.xlu0 %v2579
        %v2581 = vpop.xlane.xlu0 %2580
        %v2582 = vsel %vm2510, %v2562, 0.0
        %2583 = vadd.xlane.f32.xlu0 %v2582
        %v2584 = vpop.xlane.xlu0 %2583
        %v2585 = vsel %vm2510, %v2563, 0.0
        %2586 = vadd.xlane.f32.xlu0 %v2585
        %v2587 = vpop.xlane.xlu0 %2586
        %v2588 = vadd.f32 %v2566, %v2569
        %v2589 = vadd.f32 %v2588, %v2572
        %v2590 = vadd.f32 %v2589, %v2575
        %v2591 = vadd.f32 %v2590, %v2578
        %v2592 = vadd.f32 %v2591, %v2581
        %v2593 = vadd.f32 %v2592, %v2584
        %v2594 = vadd.f32 %v2593, %v2587
        %v2595 = vrot.slane %v2594, 4
        %v2596 = vadd.f32 %v2594, %v2595
        %v2597 = vrot.slane %v2596, 2
        %v2598 = vadd.f32 %v2596, %v2597
        %v2599 = vrot.slane %v2598, 1
        %v2600 = vadd.f32 %v2598, %v2599
        %v2601 = vadd.f32 %v2547, %v2600
        %v2602 = vsub.f32 %v1694, %v2486
        %v2603 = vsub.f32 %v1695, %v2487
        %v2604 = vsub.f32 %v1696, %v2488
        %v2605 = vsub.f32 %v1697, %v2489
        %v2606 = vsub.f32 %v1698, %v2490
        %v2607 = vsub.f32 %v1699, %v2491
        %v2608 = vsub.f32 %v1700, %v2492
        %v2609 = vsub.f32 %v1701, %v2493
        %v2610 = vand.u32 2147483647, %v2602
        %v2611 = vand.u32 2147483647, %v2603
        %v2612 = vand.u32 2147483647, %v2604
        %v2613 = vand.u32 2147483647, %v2605
        %v2614 = vand.u32 2147483647, %v2606
        %v2615 = vand.u32 2147483647, %v2607
        %v2616 = vand.u32 2147483647, %v2608
        %v2617 = vand.u32 2147483647, %v2609
        %v2618 = vsel %vm2510, %v2610, 0.0
        %2619 = vadd.xlane.f32.xlu0 %v2618
        %v2620 = vpop.xlane.xlu0 %2619
        %v2621 = vsel %vm2510, %v2611, 0.0
        %2622 = vadd.xlane.f32.xlu0 %v2621
        %v2623 = vpop.xlane.xlu0 %2622
        %v2624 = vsel %vm2510, %v2612, 0.0
        %2625 = vadd.xlane.f32.xlu0 %v2624
        %v2626 = vpop.xlane.xlu0 %2625
        %v2627 = vsel %vm2510, %v2613, 0.0
        %2628 = vadd.xlane.f32.xlu0 %v2627
        %v2629 = vpop.xlane.xlu0 %2628
        %v2630 = vsel %vm2510, %v2614, 0.0
        %2631 = vadd.xlane.f32.xlu0 %v2630
        %v2632 = vpop.xlane.xlu0 %2631
        %v2633 = vsel %vm2510, %v2615, 0.0
        %2634 = vadd.xlane.f32.xlu0 %v2633
        %v2635 = vpop.xlane.xlu0 %2634
        %v2636 = vsel %vm2510, %v2616, 0.0
        %2637 = vadd.xlane.f32.xlu0 %v2636
        %v2638 = vpop.xlane.xlu0 %2637
        %v2639 = vsel %vm2510, %v2617, 0.0
        %2640 = vadd.xlane.f32.xlu0 %v2639
        %v2641 = vpop.xlane.xlu0 %2640
        %v2642 = vadd.f32 %v2620, %v2623
        %v2643 = vadd.f32 %v2642, %v2626
        %v2644 = vadd.f32 %v2643, %v2629
        %v2645 = vadd.f32 %v2644, %v2632
        %v2646 = vadd.f32 %v2645, %v2635
        %v2647 = vadd.f32 %v2646, %v2638
        %v2648 = vadd.f32 %v2647, %v2641
        %v2649 = vrot.slane %v2648, 4
        %v2650 = vadd.f32 %v2648, %v2649
        %v2651 = vrot.slane %v2650, 2
        %v2652 = vadd.f32 %v2650, %v2651
        %v2653 = vrot.slane %v2652, 1
        %v2654 = vadd.f32 %v2652, %v2653
        %v2655 = vadd.f32 %v2601, %v2654
        %v2656 = vmul.f32 %v2655, 8.138021e-05
        %v2657 = vmul.f32 %v852, %v878
        %v2658 = vmul.f32 %v853, %v879
        %v2659 = vmul.f32 %v854, %v880
        %v2660 = vmul.f32 %v855, %v881
        %v2661 = vmul.f32 %v856, %v882
        %v2662 = vmul.f32 %v857, %v883
        %v2663 = vmul.f32 %v858, %v884
        %v2664 = vmul.f32 %v859, %v885
        %v2665 = vmul.f32 %v861, %v887
        %v2666 = vmul.f32 %v862, %v888
        %v2667 = vmul.f32 %v863, %v889
        %v2668 = vmul.f32 %v864, %v890
        %v2669 = vmul.f32 %v865, %v891
        %v2670 = vmul.f32 %v866, %v892
        %v2671 = vmul.f32 %v867, %v893
        %v2672 = vmul.f32 %v868, %v894
        %v2673 = vadd.f32 %v2657, %v2665
        %v2674 = vadd.f32 %v2658, %v2666
        %v2675 = vadd.f32 %v2659, %v2667
        %v2676 = vadd.f32 %v2660, %v2668
        %v2677 = vadd.f32 %v2661, %v2669
        %v2678 = vadd.f32 %v2662, %v2670
        %v2679 = vadd.f32 %v2663, %v2671
        %v2680 = vadd.f32 %v2664, %v2672
        %v2681 = vmul.f32 %v870, %v896
        %v2682 = vmul.f32 %v871, %v897
        %v2683 = vmul.f32 %v872, %v898
        %v2684 = vmul.f32 %v873, %v899
        %v2685 = vmul.f32 %v874, %v900
        %v2686 = vmul.f32 %v875, %v901
        %v2687 = vmul.f32 %v876, %v902
        %v2688 = vmul.f32 %v877, %v903
        %v2689 = vadd.f32 %v2673, %v2681
        %v2690 = vadd.f32 %v2674, %v2682
        %v2691 = vadd.f32 %v2675, %v2683
        %v2692 = vadd.f32 %v2676, %v2684
        %v2693 = vadd.f32 %v2677, %v2685
        %v2694 = vadd.f32 %v2678, %v2686
        %v2695 = vadd.f32 %v2679, %v2687
        %v2696 = vadd.f32 %v2680, %v2688
        %v2697 = vmul.f32 %v852, %v852
        %v2698 = vmul.f32 %v853, %v853
        %v2699 = vmul.f32 %v854, %v854
        %v2700 = vmul.f32 %v855, %v855
        %v2701 = vmul.f32 %v856, %v856
        %v2702 = vmul.f32 %v857, %v857
        %v2703 = vmul.f32 %v858, %v858
        %v2704 = vmul.f32 %v859, %v859
        %v2705 = vmul.f32 %v861, %v861
        %v2706 = vmul.f32 %v862, %v862
        %v2707 = vmul.f32 %v863, %v863
        %v2708 = vmul.f32 %v864, %v864
        %v2709 = vmul.f32 %v865, %v865
        %v2710 = vmul.f32 %v866, %v866
        %v2711 = vmul.f32 %v867, %v867
        %v2712 = vmul.f32 %v868, %v868
        %v2713 = vadd.f32 %v2697, %v2705
        %v2714 = vadd.f32 %v2698, %v2706
        %v2715 = vadd.f32 %v2699, %v2707
        %v2716 = vadd.f32 %v2700, %v2708
        %v2717 = vadd.f32 %v2701, %v2709
        %v2718 = vadd.f32 %v2702, %v2710
        %v2719 = vadd.f32 %v2703, %v2711
        %v2720 = vadd.f32 %v2704, %v2712
        %v2721 = vmul.f32 %v870, %v870
        %v2722 = vmul.f32 %v871, %v871
        %v2723 = vmul.f32 %v872, %v872
        %v2724 = vmul.f32 %v873, %v873
        %v2725 = vmul.f32 %v874, %v874
        %v2726 = vmul.f32 %v875, %v875
        %v2727 = vmul.f32 %v876, %v876
        %v2728 = vmul.f32 %v877, %v877
        %v2729 = vadd.f32 %v2713, %v2721
        %v2730 = vadd.f32 %v2714, %v2722
        %v2731 = vadd.f32 %v2715, %v2723
        %v2732 = vadd.f32 %v2716, %v2724
        %v2733 = vadd.f32 %v2717, %v2725
        %v2734 = vadd.f32 %v2718, %v2726
        %v2735 = vadd.f32 %v2719, %v2727
        %v2736 = vadd.f32 %v2720, %v2728
        %v2737 = vrsqrt.pop %v2729
        %v2738 = vmul.f32 %v2729, %v2737
        %vm2739 = vcmp.eq.f32.partialorder %v2729, inf
        %v2740 = vsel %vm2739, %v2729, %v2738
        %vm2741 = vcmp.eq.f32.partialorder %v2729, 0.0
        %v2742 = vand.u32 %v2729, 2147483648
        %v2743 = vsel %vm2741, %v2742, %v2740
        %v2744 = vrsqrt.pop %v2730
        %v2745 = vmul.f32 %v2730, %v2744
        %vm2746 = vcmp.eq.f32.partialorder %v2730, inf
        %v2747 = vsel %vm2746, %v2730, %v2745
        %vm2748 = vcmp.eq.f32.partialorder %v2730, 0.0
        %v2749 = vand.u32 %v2730, 2147483648
        %v2750 = vsel %vm2748, %v2749, %v2747
        %v2751 = vrsqrt.pop %v2731
        %v2752 = vmul.f32 %v2731, %v2751
        %vm2753 = vcmp.eq.f32.partialorder %v2731, inf
        %v2754 = vsel %vm2753, %v2731, %v2752
        %vm2755 = vcmp.eq.f32.partialorder %v2731, 0.0
        %v2756 = vand.u32 %v2731, 2147483648
        %v2757 = vsel %vm2755, %v2756, %v2754
        %v2758 = vrsqrt.pop %v2732
        %v2759 = vmul.f32 %v2732, %v2758
        %vm2760 = vcmp.eq.f32.partialorder %v2732, inf
        %v2761 = vsel %vm2760, %v2732, %v2759
        %vm2762 = vcmp.eq.f32.partialorder %v2732, 0.0
        %v2763 = vand.u32 %v2732, 2147483648
        %v2764 = vsel %vm2762, %v2763, %v2761
        %v2765 = vrsqrt.pop %v2733
        %v2766 = vmul.f32 %v2733, %v2765
        %vm2767 = vcmp.eq.f32.partialorder %v2733, inf
        %v2768 = vsel %vm2767, %v2733, %v2766
        %vm2769 = vcmp.eq.f32.partialorder %v2733, 0.0
        %v2770 = vand.u32 %v2733, 2147483648
        %v2771 = vsel %vm2769, %v2770, %v2768
        %v2772 = vrsqrt.pop %v2734
        %v2773 = vmul.f32 %v2734, %v2772
        %vm2774 = vcmp.eq.f32.partialorder %v2734, inf
        %v2775 = vsel %vm2774, %v2734, %v2773
        %vm2776 = vcmp.eq.f32.partialorder %v2734, 0.0
        %v2777 = vand.u32 %v2734, 2147483648
        %v2778 = vsel %vm2776, %v2777, %v2775
        %v2779 = vrsqrt.pop %v2735
        %v2780 = vmul.f32 %v2735, %v2779
        %vm2781 = vcmp.eq.f32.partialorder %v2735, inf
        %v2782 = vsel %vm2781, %v2735, %v2780
        %vm2783 = vcmp.eq.f32.partialorder %v2735, 0.0
        %v2784 = vand.u32 %v2735, 2147483648
        %v2785 = vsel %vm2783, %v2784, %v2782
        %v2786 = vrsqrt.pop %v2736
        %v2787 = vmul.f32 %v2736, %v2786
        %vm2788 = vcmp.eq.f32.partialorder %v2736, inf
        %v2789 = vsel %vm2788, %v2736, %v2787
        %vm2790 = vcmp.eq.f32.partialorder %v2736, 0.0
        %v2791 = vand.u32 %v2736, 2147483648
        %v2792 = vsel %vm2790, %v2791, %v2789
        %v2793 = vmul.f32 %v878, %v878
        %v2794 = vmul.f32 %v879, %v879
        %v2795 = vmul.f32 %v880, %v880
        %v2796 = vmul.f32 %v881, %v881
        %v2797 = vmul.f32 %v882, %v882
        %v2798 = vmul.f32 %v883, %v883
        %v2799 = vmul.f32 %v884, %v884
        %v2800 = vmul.f32 %v885, %v885
        %v2801 = vmul.f32 %v887, %v887
        %v2802 = vmul.f32 %v888, %v888
        %v2803 = vmul.f32 %v889, %v889
        %v2804 = vmul.f32 %v890, %v890
        %v2805 = vmul.f32 %v891, %v891
        %v2806 = vmul.f32 %v892, %v892
        %v2807 = vmul.f32 %v893, %v893
        %v2808 = vmul.f32 %v894, %v894
        %v2809 = vadd.f32 %v2793, %v2801
        %v2810 = vadd.f32 %v2794, %v2802
        %v2811 = vadd.f32 %v2795, %v2803
        %v2812 = vadd.f32 %v2796, %v2804
        %v2813 = vadd.f32 %v2797, %v2805
        %v2814 = vadd.f32 %v2798, %v2806
        %v2815 = vadd.f32 %v2799, %v2807
        %v2816 = vadd.f32 %v2800, %v2808
        %v2817 = vmul.f32 %v896, %v896
        %v2818 = vmul.f32 %v897, %v897
        %v2819 = vmul.f32 %v898, %v898
        %v2820 = vmul.f32 %v899, %v899
        %v2821 = vmul.f32 %v900, %v900
        %v2822 = vmul.f32 %v901, %v901
        %v2823 = vmul.f32 %v902, %v902
        %v2824 = vmul.f32 %v903, %v903
        %v2825 = vadd.f32 %v2809, %v2817
        %v2826 = vadd.f32 %v2810, %v2818
        %v2827 = vadd.f32 %v2811, %v2819
        %v2828 = vadd.f32 %v2812, %v2820
        %v2829 = vadd.f32 %v2813, %v2821
        %v2830 = vadd.f32 %v2814, %v2822
        %v2831 = vadd.f32 %v2815, %v2823
        %v2832 = vadd.f32 %v2816, %v2824
        %v2833 = vrsqrt.pop %v2825
        %v2834 = vmul.f32 %v2825, %v2833
        %vm2835 = vcmp.eq.f32.partialorder %v2825, inf
        %v2836 = vsel %vm2835, %v2825, %v2834
        %vm2837 = vcmp.eq.f32.partialorder %v2825, 0.0
        %v2838 = vand.u32 %v2825, 2147483648
        %v2839 = vsel %vm2837, %v2838, %v2836
        %v2840 = vrsqrt.pop %v2826
        %v2841 = vmul.f32 %v2826, %v2840
        %vm2842 = vcmp.eq.f32.partialorder %v2826, inf
        %v2843 = vsel %vm2842, %v2826, %v2841
        %vm2844 = vcmp.eq.f32.partialorder %v2826, 0.0
        %v2845 = vand.u32 %v2826, 2147483648
        %v2846 = vsel %vm2844, %v2845, %v2843
        %v2847 = vrsqrt.pop %v2827
        %v2848 = vmul.f32 %v2827, %v2847
        %vm2849 = vcmp.eq.f32.partialorder %v2827, inf
        %v2850 = vsel %vm2849, %v2827, %v2848
        %vm2851 = vcmp.eq.f32.partialorder %v2827, 0.0
        %v2852 = vand.u32 %v2827, 2147483648
        %v2853 = vsel %vm2851, %v2852, %v2850
        %v2854 = vrsqrt.pop %v2828
        %v2855 = vmul.f32 %v2828, %v2854
        %vm2856 = vcmp.eq.f32.partialorder %v2828, inf
        %v2857 = vsel %vm2856, %v2828, %v2855
        %vm2858 = vcmp.eq.f32.partialorder %v2828, 0.0
        %v2859 = vand.u32 %v2828, 2147483648
        %v2860 = vsel %vm2858, %v2859, %v2857
        %v2861 = vrsqrt.pop %v2829
        %v2862 = vmul.f32 %v2829, %v2861
        %vm2863 = vcmp.eq.f32.partialorder %v2829, inf
        %v2864 = vsel %vm2863, %v2829, %v2862
        %vm2865 = vcmp.eq.f32.partialorder %v2829, 0.0
        %v2866 = vand.u32 %v2829, 2147483648
        %v2867 = vsel %vm2865, %v2866, %v2864
        %v2868 = vrsqrt.pop %v2830
        %v2869 = vmul.f32 %v2830, %v2868
        %vm2870 = vcmp.eq.f32.partialorder %v2830, inf
        %v2871 = vsel %vm2870, %v2830, %v2869
        %vm2872 = vcmp.eq.f32.partialorder %v2830, 0.0
        %v2873 = vand.u32 %v2830, 2147483648
        %v2874 = vsel %vm2872, %v2873, %v2871
        %v2875 = vrsqrt.pop %v2831
        %v2876 = vmul.f32 %v2831, %v2875
        %vm2877 = vcmp.eq.f32.partialorder %v2831, inf
        %v2878 = vsel %vm2877, %v2831, %v2876
        %vm2879 = vcmp.eq.f32.partialorder %v2831, 0.0
        %v2880 = vand.u32 %v2831, 2147483648
        %v2881 = vsel %vm2879, %v2880, %v2878
        %v2882 = vrsqrt.pop %v2832
        %v2883 = vmul.f32 %v2832, %v2882
        %vm2884 = vcmp.eq.f32.partialorder %v2832, inf
        %v2885 = vsel %vm2884, %v2832, %v2883
        %vm2886 = vcmp.eq.f32.partialorder %v2832, 0.0
        %v2887 = vand.u32 %v2832, 2147483648
        %v2888 = vsel %vm2886, %v2887, %v2885
        %v2889 = vmax.f32 %v2743, 1e-08
        %v2890 = vmax.f32 %v2750, 1e-08
        %v2891 = vmax.f32 %v2757, 1e-08
        %v2892 = vmax.f32 %v2764, 1e-08
        %v2893 = vmax.f32 %v2771, 1e-08
        %v2894 = vmax.f32 %v2778, 1e-08
        %v2895 = vmax.f32 %v2785, 1e-08
        %v2896 = vmax.f32 %v2792, 1e-08
        %v2897 = vmax.f32 %v2839, 1e-08
        %v2898 = vmax.f32 %v2846, 1e-08
        %v2899 = vmax.f32 %v2853, 1e-08
        %v2900 = vmax.f32 %v2860, 1e-08
        %v2901 = vmax.f32 %v2867, 1e-08
        %v2902 = vmax.f32 %v2874, 1e-08
        %v2903 = vmax.f32 %v2881, 1e-08
        %v2904 = vmax.f32 %v2888, 1e-08
        %v2905 = vmul.f32 %v2889, %v2897
        %v2906 = vmul.f32 %v2890, %v2898
        %v2907 = vmul.f32 %v2891, %v2899
        %v2908 = vmul.f32 %v2892, %v2900
        %v2909 = vmul.f32 %v2893, %v2901
        %v2910 = vmul.f32 %v2894, %v2902
        %v2911 = vmul.f32 %v2895, %v2903
        %v2912 = vmul.f32 %v2896, %v2904
        %v2913 = vrcp.pop %v2905
        %v2914 = vmul.f32 %v2689, %v2913
        %v2915 = vrcp.pop %v2906
        %v2916 = vmul.f32 %v2690, %v2915
        %v2917 = vrcp.pop %v2907
        %v2918 = vmul.f32 %v2691, %v2917
        %v2919 = vrcp.pop %v2908
        %v2920 = vmul.f32 %v2692, %v2919
        %v2921 = vrcp.pop %v2909
        %v2922 = vmul.f32 %v2693, %v2921
        %v2923 = vrcp.pop %v2910
        %v2924 = vmul.f32 %v2694, %v2923
        %v2925 = vrcp.pop %v2911
        %v2926 = vmul.f32 %v2695, %v2925
        %v2927 = vrcp.pop %v2912
        %v2928 = vmul.f32 %v2696, %v2927
        %v2929 = vsel %vm2510, %v2914, 0.0
        %2930 = vadd.xlane.f32.xlu0 %v2929
        %v2931 = vpop.xlane.xlu0 %2930
        %v2932 = vsel %vm2510, %v2916, 0.0
        %2933 = vadd.xlane.f32.xlu0 %v2932
        %v2934 = vpop.xlane.xlu0 %2933
        %v2935 = vsel %vm2510, %v2918, 0.0
        %2936 = vadd.xlane.f32.xlu0 %v2935
        %v2937 = vpop.xlane.xlu0 %2936
        %v2938 = vsel %vm2510, %v2920, 0.0
        %2939 = vadd.xlane.f32.xlu0 %v2938
        %v2940 = vpop.xlane.xlu0 %2939
        %v2941 = vsel %vm2510, %v2922, 0.0
        %2942 = vadd.xlane.f32.xlu0 %v2941
        %v2943 = vpop.xlane.xlu0 %2942
        %v2944 = vsel %vm2510, %v2924, 0.0
        %2945 = vadd.xlane.f32.xlu0 %v2944
        %v2946 = vpop.xlane.xlu0 %2945
        %v2947 = vsel %vm2510, %v2926, 0.0
        %2948 = vadd.xlane.f32.xlu0 %v2947
        %v2949 = vpop.xlane.xlu0 %2948
        %v2950 = vsel %vm2510, %v2928, 0.0
        %2951 = vadd.xlane.f32.xlu0 %v2950
        %v2952 = vpop.xlane.xlu0 %2951
        %v2953 = vadd.f32 %v2931, %v2934
        %v2954 = vadd.f32 %v2953, %v2937
        %v2955 = vadd.f32 %v2954, %v2940
        %v2956 = vadd.f32 %v2955, %v2943
        %v2957 = vadd.f32 %v2956, %v2946
        %v2958 = vadd.f32 %v2957, %v2949
        %v2959 = vadd.f32 %v2958, %v2952
        %v2960 = vrot.slane %v2959, 4
        %v2961 = vadd.f32 %v2959, %v2960
        %v2962 = vrot.slane %v2961, 2
        %v2963 = vadd.f32 %v2961, %v2962
        %v2964 = vrot.slane %v2963, 1
        %v2965 = vadd.f32 %v2963, %v2964
        %v2966 = vmul.f32 %v2965, 0.00024414063
        %v2967 = vld [vmem:[#allocation6] sm:$0xff]
        %v2968 = vld [vmem:[#allocation6 + $0x8] sm:$0xff]
        %v2969 = vld [vmem:[#allocation6 + $0x10] sm:$0xff]
        %v2970 = vld [vmem:[#allocation6 + $0x18] sm:$0xff]
        %v2971 = vld [vmem:[#allocation6 + $0x20] sm:$0xff]
        %v2972 = vld [vmem:[#allocation6 + $0x28] sm:$0xff]
        %v2973 = vld [vmem:[#allocation6 + $0x30] sm:$0xff]
        %v2974 = vld [vmem:[#allocation6 + $0x38] sm:$0xff]
        %v2975 = vld [vmem:[#allocation10] sm:$0xff]
        %v2976 = vld [vmem:[#allocation10 + $0x8] sm:$0xff]
        %v2977 = vld [vmem:[#allocation10 + $0x10] sm:$0xff]
        %v2978 = vld [vmem:[#allocation10 + $0x18] sm:$0xff]
        %v2979 = vld [vmem:[#allocation10 + $0x20] sm:$0xff]
        %v2980 = vld [vmem:[#allocation10 + $0x28] sm:$0xff]
        %v2981 = vld [vmem:[#allocation10 + $0x30] sm:$0xff]
        %v2982 = vld [vmem:[#allocation10 + $0x38] sm:$0xff]
        %v2984 = vsel %vm2510, %v2967, 0
        %v2987 = vsel %vm2510, %v2968, 0
        %v2990 = vsel %vm2510, %v2969, 0
        %v2993 = vsel %vm2510, %v2970, 0
        %v2996 = vsel %vm2510, %v2971, 0
        %v2999 = vsel %vm2510, %v2972, 0
        %v3002 = vsel %vm2510, %v2973, 0
        %v3005 = vsel %vm2510, %v2974, 0
        %3007 = vmatprep.subr.mxu0 0.0
        %3008 = vmatpush1.msra.mxu0 %v1662
        %3009 = vmatprep.subr.mxu0 0.0
        %3010 = vmatpush1.msra.mxu0 %v1663
        %3011 = vmatprep.subr.mxu0 0.0
        %3012 = vmatpush1.msra.mxu0 %v1664
        %3013 = vmatprep.subr.mxu0 0.0
        %3014 = vmatpush1.msra.mxu0 %v1665
        %3015 = vmatprep.subr.mxu0 0.0
        %3016 = vmatpush1.msra.mxu0 %v1666
        %3017 = vmatprep.subr.mxu0 0.0
        %3018 = vmatpush1.msra.mxu0 %v1667
        %3019 = vmatprep.subr.mxu0 0.0
        %3020 = vmatpush1.msra.mxu0 %v1668
        %3021 = vmatprep.subr.mxu0 0.0
        %3022 = vmatpush1.msra.mxu0 %v1669
        %3023 = vmatprep.subr.mxu0 0.0
        %3024 = vmatpush1.msra.mxu0 0.0
        %3025 = vmatprep.subr.mxu0 0.0
        %3026 = vmatpush1.msra.mxu0 0.0
        %3027 = vmatprep.subr.mxu0 0.0
        %3028 = vmatpush1.msra.mxu0 0.0
        %3029 = vmatprep.subr.mxu0 0.0
        %3030 = vmatpush1.msra.mxu0 0.0
        %3031 = vmatprep.subr.mxu0 0.0
        %3032 = vmatpush1.msra.mxu0 0.0
        %3033 = vmatprep.subr.mxu0 0.0
        %3034 = vmatpush1.msra.mxu0 0.0
        %3035 = vmatprep.subr.mxu0 0.0
        %3036 = vmatpush1.msra.mxu0 0.0
        %3037 = vmatprep.subr.mxu0 0.0
        %3038 = vmatpush1.msra.mxu0 0.0
        %3039 = vmatprep.subr.mxu0 0.0
        %3040 = vmatpush1.msra.mxu0 0.0
        %3041 = vmatprep.subr.mxu0 0.0
        %3042 = vmatpush1.msra.mxu0 0.0
        %3043 = vmatprep.subr.mxu0 0.0
        %3044 = vmatpush1.msra.mxu0 0.0
        %3045 = vmatprep.subr.mxu0 0.0
        %3046 = vmatpush1.msra.mxu0 0.0
        %3047 = vmatprep.subr.mxu0 0.0
        %3048 = vmatpush1.msra.mxu0 0.0
        %3049 = vmatprep.subr.mxu0 0.0
        %3050 = vmatpush1.msra.mxu0 0.0
        %3051 = vmatprep.subr.mxu0 0.0
        %3052 = vmatpush1.msra.mxu0 0.0
        %3053 = vmatprep.subr.mxu0 0.0
        %3054 = vmatpush1.msra.mxu0 0.0
        %3055 = vmatprep.subr.mxu0 0.0
        %3056 = vmatpush1.msra.mxu0 0.0
        %3057 = vmatprep.subr.mxu0 0.0
        %3058 = vmatpush1.msra.mxu0 0.0
        %3059 = vmatprep.subr.mxu0 0.0
        %3060 = vmatpush1.msra.mxu0 0.0
        %3061 = vmatprep.subr.mxu0 0.0
        %3062 = vmatpush1.msra.mxu0 0.0
        %3063 = vmatprep.subr.mxu0 0.0
        %3064 = vmatpush1.msra.mxu0 0.0
        %3065 = vmatprep.subr.mxu0 0.0
        %3066 = vmatpush1.msra.mxu0 0.0
        %3067 = vmatprep.subr.mxu0 0.0
        %3068 = vmatpush1.msra.mxu0 0.0
        %3069 = vmatprep.subr.mxu0 0.0
        %3070 = vmatpush1.msra.mxu0 0.0
        %3071 = vmatprep.mubr.f32.mxu0 0.0
        %3072 = vmatmul.mubr.f32.gmra.mrb[0].mxu0 %v2984
        %v3073 = vpop.f32.mrb[0].mxu0
        %v3074 = vadd.f32 0.0, %v3073
        %v3075 = vpop.f32.mrb[0].mxu0
        %3076 = vmatprep.mubr.f32.mxu0 0.0
        %3077 = vmatmul.mubr.f32.gmra.mrb[0].mxu0 %v2987
        %v3078 = vpop.f32.mrb[0].mxu0
        %v3079 = vadd.f32 0.0, %v3078
        %v3080 = vpop.f32.mrb[0].mxu0
        %3081 = vmatprep.mubr.f32.mxu0 0.0
        %3082 = vmatmul.mubr.f32.gmra.mrb[0].mxu0 %v2990
        %v3083 = vpop.f32.mrb[0].mxu0
        %v3084 = vadd.f32 0.0, %v3083
        %v3085 = vpop.f32.mrb[0].mxu0
        %3086 = vmatprep.mubr.f32.mxu0 0.0
        %3087 = vmatmul.mubr.f32.gmra.mrb[0].mxu0 %v2993
        %v3088 = vpop.f32.mrb[0].mxu0
        %v3089 = vadd.f32 0.0, %v3088
        %v3090 = vpop.f32.mrb[0].mxu0
        %3091 = vmatprep.mubr.f32.mxu0 0.0
        %3092 = vmatmul.mubr.f32.gmra.mrb[0].mxu0 %v2996
        %v3093 = vpop.f32.mrb[0].mxu0
        %v3094 = vadd.f32 0.0, %v3093
        %v3095 = vpop.f32.mrb[0].mxu0
        %3096 = vmatprep.mubr.f32.mxu0 0.0
        %3097 = vmatmul.mubr.f32.gmra.mrb[0].mxu0 %v2999
        %v3098 = vpop.f32.mrb[0].mxu0
        %v3099 = vadd.f32 0.0, %v3098
        %v3100 = vpop.f32.mrb[0].mxu0
        %3101 = vmatprep.mubr.f32.mxu0 0.0
        %3102 = vmatmul.mubr.f32.gmra.mrb[0].mxu0 %v3002
        %v3103 = vpop.f32.mrb[0].mxu0
        %v3104 = vadd.f32 0.0, %v3103
        %v3105 = vpop.f32.mrb[0].mxu0
        %3106 = vmatprep.mubr.f32.mxu0 0.0
        %3107 = vmatmul.mubr.f32.gmra.mrb[0].mxu0 %v3005
        %v3108 = vpop.f32.mrb[0].mxu0
        %v3109 = vadd.f32 0.0, %v3108
        %v3110 = vpop.f32.mrb[0].mxu0
        %3111 = vdwg.mxu0
        %v3113 = vsel %vm2510, %v3074, 0
        %v3116 = vsel %vm2510, %v3079, 0
        %v3119 = vsel %vm2510, %v3084, 0
        %v3122 = vsel %vm2510, %v3089, 0
        %v3125 = vsel %vm2510, %v3094, 0
        %v3128 = vsel %vm2510, %v3099, 0
        %v3131 = vsel %vm2510, %v3104, 0
        %v3134 = vsel %vm2510, %v3109, 0
        %3136 = vmatprep.subr.mxu0 0.0
        %3137 = vmatpush1.msra.mxu0 %v2975
        %3138 = vmatprep.subr.mxu0 0.0
        %3139 = vmatpush1.msra.mxu0 %v2976
        %3140 = vmatprep.subr.mxu0 0.0
        %3141 = vmatpush1.msra.mxu0 %v2977
        %3142 = vmatprep.subr.mxu0 0.0
        %3143 = vmatpush1.msra.mxu0 %v2978
        %3144 = vmatprep.subr.mxu0 0.0
        %3145 = vmatpush1.msra.mxu0 %v2979
        %3146 = vmatprep.subr.mxu0 0.0
        %3147 = vmatpush1.msra.mxu0 %v2980
        %3148 = vmatprep.subr.mxu0 0.0
        %3149 = vmatpush1.msra.mxu0 %v2981
        %3150 = vmatprep.subr.mxu0 0.0
        %3151 = vmatpush1.msra.mxu0 %v2982
        %3152 = vmatprep.subr.mxu0 0.0
        %3153 = vmatpush1.msra.mxu0 0.0
        %3154 = vmatprep.subr.mxu0 0.0
        %3155 = vmatpush1.msra.mxu0 0.0
        %3156 = vmatprep.subr.mxu0 0.0
        %3157 = vmatpush1.msra.mxu0 0.0
        %3158 = vmatprep.subr.mxu0 0.0
        %3159 = vmatpush1.msra.mxu0 0.0
        %3160 = vmatprep.subr.mxu0 0.0
        %3161 = vmatpush1.msra.mxu0 0.0
        %3162 = vmatprep.subr.mxu0 0.0
        %3163 = vmatpush1.msra.mxu0 0.0
        %3164 = vmatprep.subr.mxu0 0.0
        %3165 = vmatpush1.msra.mxu0 0.0
        %3166 = vmatprep.subr.mxu0 0.0
        %3167 = vmatpush1.msra.mxu0 0.0
        %3168 = vmatprep.subr.mxu0 0.0
        %3169 = vmatpush1.msra.mxu0 0.0
        %3170 = vmatprep.subr.mxu0 0.0
        %3171 = vmatpush1.msra.mxu0 0.0
        %3172 = vmatprep.subr.mxu0 0.0
        %3173 = vmatpush1.msra.mxu0 0.0
        %3174 = vmatprep.subr.mxu0 0.0
        %3175 = vmatpush1.msra.mxu0 0.0
        %3176 = vmatprep.subr.mxu0 0.0
        %3177 = vmatpush1.msra.mxu0 0.0
        %3178 = vmatprep.subr.mxu0 0.0
        %3179 = vmatpush1.msra.mxu0 0.0
        %3180 = vmatprep.subr.mxu0 0.0
        %3181 = vmatpush1.msra.mxu0 0.0
        %3182 = vmatprep.subr.mxu0 0.0
        %3183 = vmatpush1.msra.mxu0 0.0
        %3184 = vmatprep.subr.mxu0 0.0
        %3185 = vmatpush1.msra.mxu0 0.0
        %3186 = vmatprep.subr.mxu0 0.0
        %3187 = vmatpush1.msra.mxu0 0.0
        %3188 = vmatprep.subr.mxu0 0.0
        %3189 = vmatpush1.msra.mxu0 0.0
        %3190 = vmatprep.subr.mxu0 0.0
        %3191 = vmatpush1.msra.mxu0 0.0
        %3192 = vmatprep.subr.mxu0 0.0
        %3193 = vmatpush1.msra.mxu0 0.0
        %3194 = vmatprep.subr.mxu0 0.0
        %3195 = vmatpush1.msra.mxu0 0.0
        %3196 = vmatprep.subr.mxu0 0.0
        %3197 = vmatpush1.msra.mxu0 0.0
        %3198 = vmatprep.subr.mxu0 0.0
        %3199 = vmatpush1.msra.mxu0 0.0
        %3200 = vmatprep.mubr.f32.mxu0 0.0
        %3201 = vmatmul.mubr.f32.gmra.mrb[0].mxu0 %v3113
        %v3202 = vpop.f32.mrb[0].mxu0
        %v3203 = vadd.f32 0.0, %v3202
        %v3204 = vpop.f32.mrb[0].mxu0
        %3205 = vmatprep.mubr.f32.mxu0 0.0
        %3206 = vmatmul.mubr.f32.gmra.mrb[0].mxu0 %v3116
        %v3207 = vpop.f32.mrb[0].mxu0
        %v3208 = vadd.f32 0.0, %v3207
        %v3209 = vpop.f32.mrb[0].mxu0
        %3210 = vmatprep.mubr.f32.mxu0 0.0
        %3211 = vmatmul.mubr.f32.gmra.mrb[0].mxu0 %v3119
        %v3212 = vpop.f32.mrb[0].mxu0
        %v3213 = vadd.f32 0.0, %v3212
        %v3214 = vpop.f32.mrb[0].mxu0
        %3215 = vmatprep.mubr.f32.mxu0 0.0
        %3216 = vmatmul.mubr.f32.gmra.mrb[0].mxu0 %v3122
        %v3217 = vpop.f32.mrb[0].mxu0
        %v3218 = vadd.f32 0.0, %v3217
        %v3219 = vpop.f32.mrb[0].mxu0
        %3220 = vmatprep.mubr.f32.mxu0 0.0
        %3221 = vmatmul.mubr.f32.gmra.mrb[0].mxu0 %v3125
        %v3222 = vpop.f32.mrb[0].mxu0
        %v3223 = vadd.f32 0.0, %v3222
        %v3224 = vpop.f32.mrb[0].mxu0
        %3225 = vmatprep.mubr.f32.mxu0 0.0
        %3226 = vmatmul.mubr.f32.gmra.mrb[0].mxu0 %v3128
        %v3227 = vpop.f32.mrb[0].mxu0
        %v3228 = vadd.f32 0.0, %v3227
        %v3229 = vpop.f32.mrb[0].mxu0
        %3230 = vmatprep.mubr.f32.mxu0 0.0
        %3231 = vmatmul.mubr.f32.gmra.mrb[0].mxu0 %v3131
        %v3232 = vpop.f32.mrb[0].mxu0
        %v3233 = vadd.f32 0.0, %v3232
        %v3234 = vpop.f32.mrb[0].mxu0
        %3235 = vmatprep.mubr.f32.mxu0 0.0
        %3236 = vmatmul.mubr.f32.gmra.mrb[0].mxu0 %v3134
        %v3237 = vpop.f32.mrb[0].mxu0
        %v3238 = vadd.f32 0.0, %v3237
        %v3239 = vpop.f32.mrb[0].mxu0
        %3240 = vdwg.mxu0
        %3241 = vmatprep.subr.mxu0 0.0
        %3242 = vmatpush1.msra.mxu0 %v2454
        %3243 = vmatprep.subr.mxu0 0.0
        %3244 = vmatpush1.msra.mxu0 %v2455
        %3245 = vmatprep.subr.mxu0 0.0
        %3246 = vmatpush1.msra.mxu0 %v2456
        %3247 = vmatprep.subr.mxu0 0.0
        %3248 = vmatpush1.msra.mxu0 %v2457
        %3249 = vmatprep.subr.mxu0 0.0
        %3250 = vmatpush1.msra.mxu0 %v2458
        %3251 = vmatprep.subr.mxu0 0.0
        %3252 = vmatpush1.msra.mxu0 %v2459
        %3253 = vmatprep.subr.mxu0 0.0
        %3254 = vmatpush1.msra.mxu0 %v2460
        %3255 = vmatprep.subr.mxu0 0.0
        %3256 = vmatpush1.msra.mxu0 %v2461
        %3257 = vmatprep.subr.mxu0 0.0
        %3258 = vmatpush1.msra.mxu0 0.0
        %3259 = vmatprep.subr.mxu0 0.0
        %3260 = vmatpush1.msra.mxu0 0.0
        %3261 = vmatprep.subr.mxu0 0.0
        %3262 = vmatpush1.msra.mxu0 0.0
        %3263 = vmatprep.subr.mxu0 0.0
        %3264 = vmatpush1.msra.mxu0 0.0
        %3265 = vmatprep.subr.mxu0 0.0
        %3266 = vmatpush1.msra.mxu0 0.0
        %3267 = vmatprep.subr.mxu0 0.0
        %3268 = vmatpush1.msra.mxu0 0.0
        %3269 = vmatprep.subr.mxu0 0.0
        %3270 = vmatpush1.msra.mxu0 0.0
        %3271 = vmatprep.subr.mxu0 0.0
        %3272 = vmatpush1.msra.mxu0 0.0
        %3273 = vmatprep.subr.mxu0 0.0
        %3274 = vmatpush1.msra.mxu0 0.0
        %3275 = vmatprep.subr.mxu0 0.0
        %3276 = vmatpush1.msra.mxu0 0.0
        %3277 = vmatprep.subr.mxu0 0.0
        %3278 = vmatpush1.msra.mxu0 0.0
        %3279 = vmatprep.subr.mxu0 0.0
        %3280 = vmatpush1.msra.mxu0 0.0
        %3281 = vmatprep.subr.mxu0 0.0
        %3282 = vmatpush1.msra.mxu0 0.0
        %3283 = vmatprep.subr.mxu0 0.0
        %3284 = vmatpush1.msra.mxu0 0.0
        %3285 = vmatprep.subr.mxu0 0.0
        %3286 = vmatpush1.msra.mxu0 0.0
        %3287 = vmatprep.subr.mxu0 0.0
        %3288 = vmatpush1.msra.mxu0 0.0
        %3289 = vmatprep.subr.mxu0 0.0
        %3290 = vmatpush1.msra.mxu0 0.0
        %3291 = vmatprep.subr.mxu0 0.0
        %3292 = vmatpush1.msra.mxu0 0.0
        %3293 = vmatprep.subr.mxu0 0.0
        %3294 = vmatpush1.msra.mxu0 0.0
        %3295 = vmatprep.subr.mxu0 0.0
        %3296 = vmatpush1.msra.mxu0 0.0
        %3297 = vmatprep.subr.mxu0 0.0
        %3298 = vmatpush1.msra.mxu0 0.0
        %3299 = vmatprep.subr.mxu0 0.0
        %3300 = vmatpush1.msra.mxu0 0.0
        %3301 = vmatprep.subr.mxu0 0.0
        %3302 = vmatpush1.msra.mxu0 0.0
        %3303 = vmatprep.subr.mxu0 0.0
        %3304 = vmatpush1.msra.mxu0 0.0
        %3305 = vmatprep.mubr.f32.mxu0 0.0
        %3306 = vmatmul.mubr.f32.gmra.mrb[0].mxu0 %v2984
        %v3307 = vpop.f32.mrb[0].mxu0
        %v3308 = vadd.f32 0.0, %v3307
        %v3309 = vpop.f32.mrb[0].mxu0
        %3310 = vmatprep.mubr.f32.mxu0 0.0
        %3311 = vmatmul.mubr.f32.gmra.mrb[0].mxu0 %v2987
        %v3312 = vpop.f32.mrb[0].mxu0
        %v3313 = vadd.f32 0.0, %v3312
        %v3314 = vpop.f32.mrb[0].mxu0
        %3315 = vmatprep.mubr.f32.mxu0 0.0
        %3316 = vmatmul.mubr.f32.gmra.mrb[0].mxu0 %v2990
        %v3317 = vpop.f32.mrb[0].mxu0
        %v3318 = vadd.f32 0.0, %v3317
        %v3319 = vpop.f32.mrb[0].mxu0
        %3320 = vmatprep.mubr.f32.mxu0 0.0
        %3321 = vmatmul.mubr.f32.gmra.mrb[0].mxu0 %v2993
        %v3322 = vpop.f32.mrb[0].mxu0
        %v3323 = vadd.f32 0.0, %v3322
        %v3324 = vpop.f32.mrb[0].mxu0
        %3325 = vmatprep.mubr.f32.mxu0 0.0
        %3326 = vmatmul.mubr.f32.gmra.mrb[0].mxu0 %v2996
        %v3327 = vpop.f32.mrb[0].mxu0
        %v3328 = vadd.f32 0.0, %v3327
        %v3329 = vpop.f32.mrb[0].mxu0
        %3330 = vmatprep.mubr.f32.mxu0 0.0
        %3331 = vmatmul.mubr.f32.gmra.mrb[0].mxu0 %v2999
        %v3332 = vpop.f32.mrb[0].mxu0
        %v3333 = vadd.f32 0.0, %v3332
        %v3334 = vpop.f32.mrb[0].mxu0
        %3335 = vmatprep.mubr.f32.mxu0 0.0
        %3336 = vmatmul.mubr.f32.gmra.mrb[0].mxu0 %v3002
        %v3337 = vpop.f32.mrb[0].mxu0
        %v3338 = vadd.f32 0.0, %v3337
        %v3339 = vpop.f32.mrb[0].mxu0
        %3340 = vmatprep.mubr.f32.mxu0 0.0
        %3341 = vmatmul.mubr.f32.gmra.mrb[0].mxu0 %v3005
        %v3342 = vpop.f32.mrb[0].mxu0
        %v3343 = vadd.f32 0.0, %v3342
        %v3344 = vpop.f32.mrb[0].mxu0
        %3345 = vdwg.mxu0
        %v3347 = vsel %vm2510, %v3308, 0
        %v3350 = vsel %vm2510, %v3313, 0
        %v3353 = vsel %vm2510, %v3318, 0
        %v3356 = vsel %vm2510, %v3323, 0
        %v3359 = vsel %vm2510, %v3328, 0
        %v3362 = vsel %vm2510, %v3333, 0
        %v3365 = vsel %vm2510, %v3338, 0
        %v3368 = vsel %vm2510, %v3343, 0
        %3370 = vmatprep.subr.mxu0 0.0
        %3371 = vmatpush1.msra.mxu0 %v2975
        %3372 = vmatprep.subr.mxu0 0.0
        %3373 = vmatpush1.msra.mxu0 %v2976
        %3374 = vmatprep.subr.mxu0 0.0
        %3375 = vmatpush1.msra.mxu0 %v2977
        %3376 = vmatprep.subr.mxu0 0.0
        %3377 = vmatpush1.msra.mxu0 %v2978
        %3378 = vmatprep.subr.mxu0 0.0
        %3379 = vmatpush1.msra.mxu0 %v2979
        %3380 = vmatprep.subr.mxu0 0.0
        %3381 = vmatpush1.msra.mxu0 %v2980
        %3382 = vmatprep.subr.mxu0 0.0
        %3383 = vmatpush1.msra.mxu0 %v2981
        %3384 = vmatprep.subr.mxu0 0.0
        %3385 = vmatpush1.msra.mxu0 %v2982
        %3386 = vmatprep.subr.mxu0 0.0
        %3387 = vmatpush1.msra.mxu0 0.0
        %3388 = vmatprep.subr.mxu0 0.0
        %3389 = vmatpush1.msra.mxu0 0.0
        %3390 = vmatprep.subr.mxu0 0.0
        %3391 = vmatpush1.msra.mxu0 0.0
        %3392 = vmatprep.subr.mxu0 0.0
        %3393 = vmatpush1.msra.mxu0 0.0
        %3394 = vmatprep.subr.mxu0 0.0
        %3395 = vmatpush1.msra.mxu0 0.0
        %3396 = vmatprep.subr.mxu0 0.0
        %3397 = vmatpush1.msra.mxu0 0.0
        %3398 = vmatprep.subr.mxu0 0.0
        %3399 = vmatpush1.msra.mxu0 0.0
        %3400 = vmatprep.subr.mxu0 0.0
        %3401 = vmatpush1.msra.mxu0 0.0
        %3402 = vmatprep.subr.mxu0 0.0
        %3403 = vmatpush1.msra.mxu0 0.0
        %3404 = vmatprep.subr.mxu0 0.0
        %3405 = vmatpush1.msra.mxu0 0.0
        %3406 = vmatprep.subr.mxu0 0.0
        %3407 = vmatpush1.msra.mxu0 0.0
        %3408 = vmatprep.subr.mxu0 0.0
        %3409 = vmatpush1.msra.mxu0 0.0
        %3410 = vmatprep.subr.mxu0 0.0
        %3411 = vmatpush1.msra.mxu0 0.0
        %3412 = vmatprep.subr.mxu0 0.0
        %3413 = vmatpush1.msra.mxu0 0.0
        %3414 = vmatprep.subr.mxu0 0.0
        %3415 = vmatpush1.msra.mxu0 0.0
        %3416 = vmatprep.subr.mxu0 0.0
        %3417 = vmatpush1.msra.mxu0 0.0
        %3418 = vmatprep.subr.mxu0 0.0
        %3419 = vmatpush1.msra.mxu0 0.0
        %3420 = vmatprep.subr.mxu0 0.0
        %3421 = vmatpush1.msra.mxu0 0.0
        %3422 = vmatprep.subr.mxu0 0.0
        %3423 = vmatpush1.msra.mxu0 0.0
        %3424 = vmatprep.subr.mxu0 0.0
        %3425 = vmatpush1.msra.mxu0 0.0
        %3426 = vmatprep.subr.mxu0 0.0
        %3427 = vmatpush1.msra.mxu0 0.0
        %3428 = vmatprep.subr.mxu0 0.0
        %3429 = vmatpush1.msra.mxu0 0.0
        %3430 = vmatprep.subr.mxu0 0.0
        %3431 = vmatpush1.msra.mxu0 0.0
        %3432 = vmatprep.subr.mxu0 0.0
        %3433 = vmatpush1.msra.mxu0 0.0
        %3434 = vmatprep.mubr.f32.mxu0 0.0
        %3435 = vmatmul.mubr.f32.gmra.mrb[0].mxu0 %v3347
        %v3436 = vpop.f32.mrb[0].mxu0
        %v3437 = vadd.f32 0.0, %v3436
        %v3438 = vpop.f32.mrb[0].mxu0
        %3439 = vmatprep.mubr.f32.mxu0 0.0
        %3440 = vmatmul.mubr.f32.gmra.mrb[0].mxu0 %v3350
        %v3441 = vpop.f32.mrb[0].mxu0
        %v3442 = vadd.f32 0.0, %v3441
        %v3443 = vpop.f32.mrb[0].mxu0
        %3444 = vmatprep.mubr.f32.mxu0 0.0
        %3445 = vmatmul.mubr.f32.gmra.mrb[0].mxu0 %v3353
        %v3446 = vpop.f32.mrb[0].mxu0
        %v3447 = vadd.f32 0.0, %v3446
        %v3448 = vpop.f32.mrb[0].mxu0
        %3449 = vmatprep.mubr.f32.mxu0 0.0
        %3450 = vmatmul.mubr.f32.gmra.mrb[0].mxu0 %v3356
        %v3451 = vpop.f32.mrb[0].mxu0
        %v3452 = vadd.f32 0.0, %v3451
        %v3453 = vpop.f32.mrb[0].mxu0
        %3454 = vmatprep.mubr.f32.mxu0 0.0
        %3455 = vmatmul.mubr.f32.gmra.mrb[0].mxu0 %v3359
        %v3456 = vpop.f32.mrb[0].mxu0
        %v3457 = vadd.f32 0.0, %v3456
        %v3458 = vpop.f32.mrb[0].mxu0
        %3459 = vmatprep.mubr.f32.mxu0 0.0
        %3460 = vmatmul.mubr.f32.gmra.mrb[0].mxu0 %v3362
        %v3461 = vpop.f32.mrb[0].mxu0
        %v3462 = vadd.f32 0.0, %v3461
        %v3463 = vpop.f32.mrb[0].mxu0
        %3464 = vmatprep.mubr.f32.mxu0 0.0
        %3465 = vmatmul.mubr.f32.gmra.mrb[0].mxu0 %v3365
        %v3466 = vpop.f32.mrb[0].mxu0
        %v3467 = vadd.f32 0.0, %v3466
        %v3468 = vpop.f32.mrb[0].mxu0
        %3469 = vmatprep.mubr.f32.mxu0 0.0
        %3470 = vmatmul.mubr.f32.gmra.mrb[0].mxu0 %v3368
        %v3471 = vpop.f32.mrb[0].mxu0
        %v3472 = vadd.f32 0.0, %v3471
        %v3473 = vpop.f32.mrb[0].mxu0
        %3474 = vdwg.mxu0
        %v3475 = vmul.f32 %v1662, %v1662
        %v3476 = vmul.f32 %v1663, %v1663
        %v3477 = vmul.f32 %v1664, %v1664
        %v3478 = vmul.f32 %v1665, %v1665
        %v3479 = vmul.f32 %v1666, %v1666
        %v3480 = vmul.f32 %v1667, %v1667
        %v3481 = vmul.f32 %v1668, %v1668
        %v3482 = vmul.f32 %v1669, %v1669
        %3483 = vmatprep.subr.mxu0 0.0
        %3484 = vmatpush1.msra.mxu0 %v3475
        %3485 = vmatprep.subr.mxu0 0.0
        %3486 = vmatpush1.msra.mxu0 %v3476
        %3487 = vmatprep.subr.mxu0 0.0
        %3488 = vmatpush1.msra.mxu0 %v3477
        %3489 = vmatprep.subr.mxu0 0.0
        %3490 = vmatpush1.msra.mxu0 %v3478
        %3491 = vmatprep.subr.mxu0 0.0
        %3492 = vmatpush1.msra.mxu0 %v3479
        %3493 = vmatprep.subr.mxu0 0.0
        %3494 = vmatpush1.msra.mxu0 %v3480
        %3495 = vmatprep.subr.mxu0 0.0
        %3496 = vmatpush1.msra.mxu0 %v3481
        %3497 = vmatprep.subr.mxu0 0.0
        %3498 = vmatpush1.msra.mxu0 %v3482
        %3499 = vmatprep.subr.mxu0 0.0
        %3500 = vmatpush1.msra.mxu0 0.0
        %3501 = vmatprep.subr.mxu0 0.0
        %3502 = vmatpush1.msra.mxu0 0.0
        %3503 = vmatprep.subr.mxu0 0.0
        %3504 = vmatpush1.msra.mxu0 0.0
        %3505 = vmatprep.subr.mxu0 0.0
        %3506 = vmatpush1.msra.mxu0 0.0
        %3507 = vmatprep.subr.mxu0 0.0
        %3508 = vmatpush1.msra.mxu0 0.0
        %3509 = vmatprep.subr.mxu0 0.0
        %3510 = vmatpush1.msra.mxu0 0.0
        %3511 = vmatprep.subr.mxu0 0.0
        %3512 = vmatpush1.msra.mxu0 0.0
        %3513 = vmatprep.subr.mxu0 0.0
        %3514 = vmatpush1.msra.mxu0 0.0
        %3515 = vmatprep.subr.mxu0 0.0
        %3516 = vmatpush1.msra.mxu0 0.0
        %3517 = vmatprep.subr.mxu0 0.0
        %3518 = vmatpush1.msra.mxu0 0.0
        %3519 = vmatprep.subr.mxu0 0.0
        %3520 = vmatpush1.msra.mxu0 0.0
        %3521 = vmatprep.subr.mxu0 0.0
        %3522 = vmatpush1.msra.mxu0 0.0
        %3523 = vmatprep.subr.mxu0 0.0
        %3524 = vmatpush1.msra.mxu0 0.0
        %3525 = vmatprep.subr.mxu0 0.0
        %3526 = vmatpush1.msra.mxu0 0.0
        %3527 = vmatprep.subr.mxu0 0.0
        %3528 = vmatpush1.msra.mxu0 0.0
        %3529 = vmatprep.subr.mxu0 0.0
        %3530 = vmatpush1.msra.mxu0 0.0
        %3531 = vmatprep.subr.mxu0 0.0
        %3532 = vmatpush1.msra.mxu0 0.0
        %3533 = vmatprep.subr.mxu0 0.0
        %3534 = vmatpush1.msra.mxu0 0.0
        %3535 = vmatprep.subr.mxu0 0.0
        %3536 = vmatpush1.msra.mxu0 0.0
        %3537 = vmatprep.subr.mxu0 0.0
        %3538 = vmatpush1.msra.mxu0 0.0
        %3539 = vmatprep.subr.mxu0 0.0
        %3540 = vmatpush1.msra.mxu0 0.0
        %3541 = vmatprep.subr.mxu0 0.0
        %3542 = vmatpush1.msra.mxu0 0.0
        %3543 = vmatprep.subr.mxu0 0.0
        %3544 = vmatpush1.msra.mxu0 0.0
        %3545 = vmatprep.subr.mxu0 0.0
        %3546 = vmatpush1.msra.mxu0 0.0
        %3547 = vmatprep.mubr.f32.mxu0 0.0
        %3548 = vmatmul.mubr.f32.gmra.mrb[0].mxu0 %v2984
        %v3549 = vpop.f32.mrb[0].mxu0
        %v3550 = vadd.f32 0.0, %v3549
        %v3551 = vpop.f32.mrb[0].mxu0
        %3552 = vmatprep.mubr.f32.mxu0 0.0
        %3553 = vmatmul.mubr.f32.gmra.mrb[0].mxu0 %v2987
        %v3554 = vpop.f32.mrb[0].mxu0
        %v3555 = vadd.f32 0.0, %v3554
        %v3556 = vpop.f32.mrb[0].mxu0
        %3557 = vmatprep.mubr.f32.mxu0 0.0
        %3558 = vmatmul.mubr.f32.gmra.mrb[0].mxu0 %v2990
        %v3559 = vpop.f32.mrb[0].mxu0
        %v3560 = vadd.f32 0.0, %v3559
        %v3561 = vpop.f32.mrb[0].mxu0
        %3562 = vmatprep.mubr.f32.mxu0 0.0
        %3563 = vmatmul.mubr.f32.gmra.mrb[0].mxu0 %v2993
        %v3564 = vpop.f32.mrb[0].mxu0
        %v3565 = vadd.f32 0.0, %v3564
        %v3566 = vpop.f32.mrb[0].mxu0
        %3567 = vmatprep.mubr.f32.mxu0 0.0
        %3568 = vmatmul.mubr.f32.gmra.mrb[0].mxu0 %v2996
        %v3569 = vpop.f32.mrb[0].mxu0
        %v3570 = vadd.f32 0.0, %v3569
        %v3571 = vpop.f32.mrb[0].mxu0
        %3572 = vmatprep.mubr.f32.mxu0 0.0
        %3573 = vmatmul.mubr.f32.gmra.mrb[0].mxu0 %v2999
        %v3574 = vpop.f32.mrb[0].mxu0
        %v3575 = vadd.f32 0.0, %v3574
        %v3576 = vpop.f32.mrb[0].mxu0
        %3577 = vmatprep.mubr.f32.mxu0 0.0
        %3578 = vmatmul.mubr.f32.gmra.mrb[0].mxu0 %v3002
        %v3579 = vpop.f32.mrb[0].mxu0
        %v3580 = vadd.f32 0.0, %v3579
        %v3581 = vpop.f32.mrb[0].mxu0
        %3582 = vmatprep.mubr.f32.mxu0 0.0
        %3583 = vmatmul.mubr.f32.gmra.mrb[0].mxu0 %v3005
        %v3584 = vpop.f32.mrb[0].mxu0
        %v3585 = vadd.f32 0.0, %v3584
        %v3586 = vpop.f32.mrb[0].mxu0
        %3587 = vdwg.mxu0
        %v3589 = vsel %vm2510, %v3550, 0
        %v3592 = vsel %vm2510, %v3555, 0
        %v3595 = vsel %vm2510, %v3560, 0
        %v3598 = vsel %vm2510, %v3565, 0
        %v3601 = vsel %vm2510, %v3570, 0
        %v3604 = vsel %vm2510, %v3575, 0
        %v3607 = vsel %vm2510, %v3580, 0
        %v3610 = vsel %vm2510, %v3585, 0
        %3612 = vmatprep.subr.mxu0 0.0
        %3613 = vmatpush1.msra.mxu0 %v2975
        %3614 = vmatprep.subr.mxu0 0.0
        %3615 = vmatpush1.msra.mxu0 %v2976
        %3616 = vmatprep.subr.mxu0 0.0
        %3617 = vmatpush1.msra.mxu0 %v2977
        %3618 = vmatprep.subr.mxu0 0.0
        %3619 = vmatpush1.msra.mxu0 %v2978
        %3620 = vmatprep.subr.mxu0 0.0
        %3621 = vmatpush1.msra.mxu0 %v2979
        %3622 = vmatprep.subr.mxu0 0.0
        %3623 = vmatpush1.msra.mxu0 %v2980
        %3624 = vmatprep.subr.mxu0 0.0
        %3625 = vmatpush1.msra.mxu0 %v2981
        %3626 = vmatprep.subr.mxu0 0.0
        %3627 = vmatpush1.msra.mxu0 %v2982
        %3628 = vmatprep.subr.mxu0 0.0
        %3629 = vmatpush1.msra.mxu0 0.0
        %3630 = vmatprep.subr.mxu0 0.0
        %3631 = vmatpush1.msra.mxu0 0.0
        %3632 = vmatprep.subr.mxu0 0.0
        %3633 = vmatpush1.msra.mxu0 0.0
        %3634 = vmatprep.subr.mxu0 0.0
        %3635 = vmatpush1.msra.mxu0 0.0
        %3636 = vmatprep.subr.mxu0 0.0
        %3637 = vmatpush1.msra.mxu0 0.0
        %3638 = vmatprep.subr.mxu0 0.0
        %3639 = vmatpush1.msra.mxu0 0.0
        %3640 = vmatprep.subr.mxu0 0.0
        %3641 = vmatpush1.msra.mxu0 0.0
        %3642 = vmatprep.subr.mxu0 0.0
        %3643 = vmatpush1.msra.mxu0 0.0
        %3644 = vmatprep.subr.mxu0 0.0
        %3645 = vmatpush1.msra.mxu0 0.0
        %3646 = vmatprep.subr.mxu0 0.0
        %3647 = vmatpush1.msra.mxu0 0.0
        %3648 = vmatprep.subr.mxu0 0.0
        %3649 = vmatpush1.msra.mxu0 0.0
        %3650 = vmatprep.subr.mxu0 0.0
        %3651 = vmatpush1.msra.mxu0 0.0
        %3652 = vmatprep.subr.mxu0 0.0
        %3653 = vmatpush1.msra.mxu0 0.0
        %3654 = vmatprep.subr.mxu0 0.0
        %3655 = vmatpush1.msra.mxu0 0.0
        %3656 = vmatprep.subr.mxu0 0.0
        %3657 = vmatpush1.msra.mxu0 0.0
        %3658 = vmatprep.subr.mxu0 0.0
        %3659 = vmatpush1.msra.mxu0 0.0
        %3660 = vmatprep.subr.mxu0 0.0
        %3661 = vmatpush1.msra.mxu0 0.0
        %3662 = vmatprep.subr.mxu0 0.0
        %3663 = vmatpush1.msra.mxu0 0.0
        %3664 = vmatprep.subr.mxu0 0.0
        %3665 = vmatpush1.msra.mxu0 0.0
        %3666 = vmatprep.subr.mxu0 0.0
        %3667 = vmatpush1.msra.mxu0 0.0
        %3668 = vmatprep.subr.mxu0 0.0
        %3669 = vmatpush1.msra.mxu0 0.0
        %3670 = vmatprep.subr.mxu0 0.0
        %3671 = vmatpush1.msra.mxu0 0.0
        %3672 = vmatprep.subr.mxu0 0.0
        %3673 = vmatpush1.msra.mxu0 0.0
        %3674 = vmatprep.subr.mxu0 0.0
        %3675 = vmatpush1.msra.mxu0 0.0
        %3676 = vmatprep.mubr.f32.mxu0 0.0
        %3677 = vmatmul.mubr.f32.gmra.mrb[0].mxu0 %v3589
        %v3678 = vpop.f32.mrb[0].mxu0
        %v3679 = vadd.f32 0.0, %v3678
        %v3680 = vpop.f32.mrb[0].mxu0
        %3681 = vmatprep.mubr.f32.mxu0 0.0
        %3682 = vmatmul.mubr.f32.gmra.mrb[0].mxu0 %v3592
        %v3683 = vpop.f32.mrb[0].mxu0
        %v3684 = vadd.f32 0.0, %v3683
        %v3685 = vpop.f32.mrb[0].mxu0
        %3686 = vmatprep.mubr.f32.mxu0 0.0
        %3687 = vmatmul.mubr.f32.gmra.mrb[0].mxu0 %v3595
        %v3688 = vpop.f32.mrb[0].mxu0
        %v3689 = vadd.f32 0.0, %v3688
        %v3690 = vpop.f32.mrb[0].mxu0
        %3691 = vmatprep.mubr.f32.mxu0 0.0
        %3692 = vmatmul.mubr.f32.gmra.mrb[0].mxu0 %v3598
        %v3693 = vpop.f32.mrb[0].mxu0
        %v3694 = vadd.f32 0.0, %v3693
        %v3695 = vpop.f32.mrb[0].mxu0
        %3696 = vmatprep.mubr.f32.mxu0 0.0
        %3697 = vmatmul.mubr.f32.gmra.mrb[0].mxu0 %v3601
        %v3698 = vpop.f32.mrb[0].mxu0
        %v3699 = vadd.f32 0.0, %v3698
        %v3700 = vpop.f32.mrb[0].mxu0
        %3701 = vmatprep.mubr.f32.mxu0 0.0
        %3702 = vmatmul.mubr.f32.gmra.mrb[0].mxu0 %v3604
        %v3703 = vpop.f32.mrb[0].mxu0
        %v3704 = vadd.f32 0.0, %v3703
        %v3705 = vpop.f32.mrb[0].mxu0
        %3706 = vmatprep.mubr.f32.mxu0 0.0
        %3707 = vmatmul.mubr.f32.gmra.mrb[0].mxu0 %v3607
        %v3708 = vpop.f32.mrb[0].mxu0
        %v3709 = vadd.f32 0.0, %v3708
        %v3710 = vpop.f32.mrb[0].mxu0
        %3711 = vmatprep.mubr.f32.mxu0 0.0
        %3712 = vmatmul.mubr.f32.gmra.mrb[0].mxu0 %v3610
        %v3713 = vpop.f32.mrb[0].mxu0
        %v3714 = vadd.f32 0.0, %v3713
        %v3715 = vpop.f32.mrb[0].mxu0
        %3716 = vdwg.mxu0
        %v3717 = vmul.f32 %v2454, %v2454
        %v3718 = vmul.f32 %v2455, %v2455
        %v3719 = vmul.f32 %v2456, %v2456
        %v3720 = vmul.f32 %v2457, %v2457
        %v3721 = vmul.f32 %v2458, %v2458
        %v3722 = vmul.f32 %v2459, %v2459
        %v3723 = vmul.f32 %v2460, %v2460
        %v3724 = vmul.f32 %v2461, %v2461
        %3725 = vmatprep.subr.mxu0 0.0
        %3726 = vmatpush1.msra.mxu0 %v3717
        %3727 = vmatprep.subr.mxu0 0.0
        %3728 = vmatpush1.msra.mxu0 %v3718
        %3729 = vmatprep.subr.mxu0 0.0
        %3730 = vmatpush1.msra.mxu0 %v3719
        %3731 = vmatprep.subr.mxu0 0.0
        %3732 = vmatpush1.msra.mxu0 %v3720
        %3733 = vmatprep.subr.mxu0 0.0
        %3734 = vmatpush1.msra.mxu0 %v3721
        %3735 = vmatprep.subr.mxu0 0.0
        %3736 = vmatpush1.msra.mxu0 %v3722
        %3737 = vmatprep.subr.mxu0 0.0
        %3738 = vmatpush1.msra.mxu0 %v3723
        %3739 = vmatprep.subr.mxu0 0.0
        %3740 = vmatpush1.msra.mxu0 %v3724
        %3741 = vmatprep.subr.mxu0 0.0
        %3742 = vmatpush1.msra.mxu0 0.0
        %3743 = vmatprep.subr.mxu0 0.0
        %3744 = vmatpush1.msra.mxu0 0.0
        %3745 = vmatprep.subr.mxu0 0.0
        %3746 = vmatpush1.msra.mxu0 0.0
        %3747 = vmatprep.subr.mxu0 0.0
        %3748 = vmatpush1.msra.mxu0 0.0
        %3749 = vmatprep.subr.mxu0 0.0
        %3750 = vmatpush1.msra.mxu0 0.0
        %3751 = vmatprep.subr.mxu0 0.0
        %3752 = vmatpush1.msra.mxu0 0.0
        %3753 = vmatprep.subr.mxu0 0.0
        %3754 = vmatpush1.msra.mxu0 0.0
        %3755 = vmatprep.subr.mxu0 0.0
        %3756 = vmatpush1.msra.mxu0 0.0
        %3757 = vmatprep.subr.mxu0 0.0
        %3758 = vmatpush1.msra.mxu0 0.0
        %3759 = vmatprep.subr.mxu0 0.0
        %3760 = vmatpush1.msra.mxu0 0.0
        %3761 = vmatprep.subr.mxu0 0.0
        %3762 = vmatpush1.msra.mxu0 0.0
        %3763 = vmatprep.subr.mxu0 0.0
        %3764 = vmatpush1.msra.mxu0 0.0
        %3765 = vmatprep.subr.mxu0 0.0
        %3766 = vmatpush1.msra.mxu0 0.0
        %3767 = vmatprep.subr.mxu0 0.0
        %3768 = vmatpush1.msra.mxu0 0.0
        %3769 = vmatprep.subr.mxu0 0.0
        %3770 = vmatpush1.msra.mxu0 0.0
        %3771 = vmatprep.subr.mxu0 0.0
        %3772 = vmatpush1.msra.mxu0 0.0
        %3773 = vmatprep.subr.mxu0 0.0
        %3774 = vmatpush1.msra.mxu0 0.0
        %3775 = vmatprep.subr.mxu0 0.0
        %3776 = vmatpush1.msra.mxu0 0.0
        %3777 = vmatprep.subr.mxu0 0.0
        %3778 = vmatpush1.msra.mxu0 0.0
        %3779 = vmatprep.subr.mxu0 0.0
        %3780 = vmatpush1.msra.mxu0 0.0
        %3781 = vmatprep.subr.mxu0 0.0
        %3782 = vmatpush1.msra.mxu0 0.0
        %3783 = vmatprep.subr.mxu0 0.0
        %3784 = vmatpush1.msra.mxu0 0.0
        %3785 = vmatprep.subr.mxu0 0.0
        %3786 = vmatpush1.msra.mxu0 0.0
        %3787 = vmatprep.subr.mxu0 0.0
        %3788 = vmatpush1.msra.mxu0 0.0
        %3789 = vmatprep.mubr.f32.mxu0 0.0
        %3790 = vmatmul.mubr.f32.gmra.mrb[0].mxu0 %v2984
        %v3791 = vpop.f32.mrb[0].mxu0
        %v3792 = vadd.f32 0.0, %v3791
        %v3793 = vpop.f32.mrb[0].mxu0
        %3794 = vmatprep.mubr.f32.mxu0 0.0
        %3795 = vmatmul.mubr.f32.gmra.mrb[0].mxu0 %v2987
        %v3796 = vpop.f32.mrb[0].mxu0
        %v3797 = vadd.f32 0.0, %v3796
        %v3798 = vpop.f32.mrb[0].mxu0
        %3799 = vmatprep.mubr.f32.mxu0 0.0
        %3800 = vmatmul.mubr.f32.gmra.mrb[0].mxu0 %v2990
        %v3801 = vpop.f32.mrb[0].mxu0
        %v3802 = vadd.f32 0.0, %v3801
        %v3803 = vpop.f32.mrb[0].mxu0
        %3804 = vmatprep.mubr.f32.mxu0 0.0
        %3805 = vmatmul.mubr.f32.gmra.mrb[0].mxu0 %v2993
        %v3806 = vpop.f32.mrb[0].mxu0
        %v3807 = vadd.f32 0.0, %v3806
        %v3808 = vpop.f32.mrb[0].mxu0
        %3809 = vmatprep.mubr.f32.mxu0 0.0
        %3810 = vmatmul.mubr.f32.gmra.mrb[0].mxu0 %v2996
        %v3811 = vpop.f32.mrb[0].mxu0
        %v3812 = vadd.f32 0.0, %v3811
        %v3813 = vpop.f32.mrb[0].mxu0
        %3814 = vmatprep.mubr.f32.mxu0 0.0
        %3815 = vmatmul.mubr.f32.gmra.mrb[0].mxu0 %v2999
        %v3816 = vpop.f32.mrb[0].mxu0
        %v3817 = vadd.f32 0.0, %v3816
        %v3818 = vpop.f32.mrb[0].mxu0
        %3819 = vmatprep.mubr.f32.mxu0 0.0
        %3820 = vmatmul.mubr.f32.gmra.mrb[0].mxu0 %v3002
        %v3821 = vpop.f32.mrb[0].mxu0
        %v3822 = vadd.f32 0.0, %v3821
        %v3823 = vpop.f32.mrb[0].mxu0
        %3824 = vmatprep.mubr.f32.mxu0 0.0
        %3825 = vmatmul.mubr.f32.gmra.mrb[0].mxu0 %v3005
        %v3826 = vpop.f32.mrb[0].mxu0
        %v3827 = vadd.f32 0.0, %v3826
        %v3828 = vpop.f32.mrb[0].mxu0
        %3829 = vdwg.mxu0
        %v3831 = vsel %vm2510, %v3792, 0
        %v3834 = vsel %vm2510, %v3797, 0
        %v3837 = vsel %vm2510, %v3802, 0
        %v3840 = vsel %vm2510, %v3807, 0
        %v3843 = vsel %vm2510, %v3812, 0
        %v3846 = vsel %vm2510, %v3817, 0
        %v3849 = vsel %vm2510, %v3822, 0
        %v3852 = vsel %vm2510, %v3827, 0
        %3854 = vmatprep.subr.mxu0 0.0
        %3855 = vmatpush1.msra.mxu0 %v2975
        %3856 = vmatprep.subr.mxu0 0.0
        %3857 = vmatpush1.msra.mxu0 %v2976
        %3858 = vmatprep.subr.mxu0 0.0
        %3859 = vmatpush1.msra.mxu0 %v2977
        %3860 = vmatprep.subr.mxu0 0.0
        %3861 = vmatpush1.msra.mxu0 %v2978
        %3862 = vmatprep.subr.mxu0 0.0
        %3863 = vmatpush1.msra.mxu0 %v2979
        %3864 = vmatprep.subr.mxu0 0.0
        %3865 = vmatpush1.msra.mxu0 %v2980
        %3866 = vmatprep.subr.mxu0 0.0
        %3867 = vmatpush1.msra.mxu0 %v2981
        %3868 = vmatprep.subr.mxu0 0.0
        %3869 = vmatpush1.msra.mxu0 %v2982
        %3870 = vmatprep.subr.mxu0 0.0
        %3871 = vmatpush1.msra.mxu0 0.0
        %3872 = vmatprep.subr.mxu0 0.0
        %3873 = vmatpush1.msra.mxu0 0.0
        %3874 = vmatprep.subr.mxu0 0.0
        %3875 = vmatpush1.msra.mxu0 0.0
        %3876 = vmatprep.subr.mxu0 0.0
        %3877 = vmatpush1.msra.mxu0 0.0
        %3878 = vmatprep.subr.mxu0 0.0
        %3879 = vmatpush1.msra.mxu0 0.0
        %3880 = vmatprep.subr.mxu0 0.0
        %3881 = vmatpush1.msra.mxu0 0.0
        %3882 = vmatprep.subr.mxu0 0.0
        %3883 = vmatpush1.msra.mxu0 0.0
        %3884 = vmatprep.subr.mxu0 0.0
        %3885 = vmatpush1.msra.mxu0 0.0
        %3886 = vmatprep.subr.mxu0 0.0
        %3887 = vmatpush1.msra.mxu0 0.0
        %3888 = vmatprep.subr.mxu0 0.0
        %3889 = vmatpush1.msra.mxu0 0.0
        %3890 = vmatprep.subr.mxu0 0.0
        %3891 = vmatpush1.msra.mxu0 0.0
        %3892 = vmatprep.subr.mxu0 0.0
        %3893 = vmatpush1.msra.mxu0 0.0
        %3894 = vmatprep.subr.mxu0 0.0
        %3895 = vmatpush1.msra.mxu0 0.0
        %3896 = vmatprep.subr.mxu0 0.0
        %3897 = vmatpush1.msra.mxu0 0.0
        %3898 = vmatprep.subr.mxu0 0.0
        %3899 = vmatpush1.msra.mxu0 0.0
        %3900 = vmatprep.subr.mxu0 0.0
        %3901 = vmatpush1.msra.mxu0 0.0
        %3902 = vmatprep.subr.mxu0 0.0
        %3903 = vmatpush1.msra.mxu0 0.0
        %3904 = vmatprep.subr.mxu0 0.0
        %3905 = vmatpush1.msra.mxu0 0.0
        %3906 = vmatprep.subr.mxu0 0.0
        %3907 = vmatpush1.msra.mxu0 0.0
        %3908 = vmatprep.subr.mxu0 0.0
        %3909 = vmatpush1.msra.mxu0 0.0
        %3910 = vmatprep.subr.mxu0 0.0
        %3911 = vmatpush1.msra.mxu0 0.0
        %3912 = vmatprep.subr.mxu0 0.0
        %3913 = vmatpush1.msra.mxu0 0.0
        %3914 = vmatprep.subr.mxu0 0.0
        %3915 = vmatpush1.msra.mxu0 0.0
        %3916 = vmatprep.subr.mxu0 0.0
        %3917 = vmatpush1.msra.mxu0 0.0
        %3918 = vmatprep.mubr.f32.mxu0 0.0
        %3919 = vmatmul.mubr.f32.gmra.mrb[0].mxu0 %v3831
        %v3920 = vpop.f32.mrb[0].mxu0
        %v3921 = vadd.f32 0.0, %v3920
        %v3922 = vpop.f32.mrb[0].mxu0
        %3923 = vmatprep.mubr.f32.mxu0 0.0
        %3924 = vmatmul.mubr.f32.gmra.mrb[0].mxu0 %v3834
        %v3925 = vpop.f32.mrb[0].mxu0
        %v3926 = vadd.f32 0.0, %v3925
        %v3927 = vpop.f32.mrb[0].mxu0
        %3928 = vmatprep.mubr.f32.mxu0 0.0
        %3929 = vmatmul.mubr.f32.gmra.mrb[0].mxu0 %v3837
        %v3930 = vpop.f32.mrb[0].mxu0
        %v3931 = vadd.f32 0.0, %v3930
        %v3932 = vpop.f32.mrb[0].mxu0
        %3933 = vmatprep.mubr.f32.mxu0 0.0
        %3934 = vmatmul.mubr.f32.gmra.mrb[0].mxu0 %v3840
        %v3935 = vpop.f32.mrb[0].mxu0
        %v3936 = vadd.f32 0.0, %v3935
        %v3937 = vpop.f32.mrb[0].mxu0
        %3938 = vmatprep.mubr.f32.mxu0 0.0
        %3939 = vmatmul.mubr.f32.gmra.mrb[0].mxu0 %v3843
        %v3940 = vpop.f32.mrb[0].mxu0
        %v3941 = vadd.f32 0.0, %v3940
        %v3942 = vpop.f32.mrb[0].mxu0
        %3943 = vmatprep.mubr.f32.mxu0 0.0
        %3944 = vmatmul.mubr.f32.gmra.mrb[0].mxu0 %v3846
        %v3945 = vpop.f32.mrb[0].mxu0
        %v3946 = vadd.f32 0.0, %v3945
        %v3947 = vpop.f32.mrb[0].mxu0
        %3948 = vmatprep.mubr.f32.mxu0 0.0
        %3949 = vmatmul.mubr.f32.gmra.mrb[0].mxu0 %v3849
        %v3950 = vpop.f32.mrb[0].mxu0
        %v3951 = vadd.f32 0.0, %v3950
        %v3952 = vpop.f32.mrb[0].mxu0
        %3953 = vmatprep.mubr.f32.mxu0 0.0
        %3954 = vmatmul.mubr.f32.gmra.mrb[0].mxu0 %v3852
        %v3955 = vpop.f32.mrb[0].mxu0
        %v3956 = vadd.f32 0.0, %v3955
        %v3957 = vpop.f32.mrb[0].mxu0
        %3958 = vdwg.mxu0
        %v3959 = vmul.f32 %v1662, %v2454
        %v3960 = vmul.f32 %v1663, %v2455
        %v3961 = vmul.f32 %v1664, %v2456
        %v3962 = vmul.f32 %v1665, %v2457
        %v3963 = vmul.f32 %v1666, %v2458
        %v3964 = vmul.f32 %v1667, %v2459
        %v3965 = vmul.f32 %v1668, %v2460
        %v3966 = vmul.f32 %v1669, %v2461
        %3967 = vmatprep.subr.mxu0 0.0
        %3968 = vmatpush1.msra.mxu0 %v3959
        %3969 = vmatprep.subr.mxu0 0.0
        %3970 = vmatpush1.msra.mxu0 %v3960
        %3971 = vmatprep.subr.mxu0 0.0
        %3972 = vmatpush1.msra.mxu0 %v3961
        %3973 = vmatprep.subr.mxu0 0.0
        %3974 = vmatpush1.msra.mxu0 %v3962
        %3975 = vmatprep.subr.mxu0 0.0
        %3976 = vmatpush1.msra.mxu0 %v3963
        %3977 = vmatprep.subr.mxu0 0.0
        %3978 = vmatpush1.msra.mxu0 %v3964
        %3979 = vmatprep.subr.mxu0 0.0
        %3980 = vmatpush1.msra.mxu0 %v3965
        %3981 = vmatprep.subr.mxu0 0.0
        %3982 = vmatpush1.msra.mxu0 %v3966
        %3983 = vmatprep.subr.mxu0 0.0
        %3984 = vmatpush1.msra.mxu0 0.0
        %3985 = vmatprep.subr.mxu0 0.0
        %3986 = vmatpush1.msra.mxu0 0.0
        %3987 = vmatprep.subr.mxu0 0.0
        %3988 = vmatpush1.msra.mxu0 0.0
        %3989 = vmatprep.subr.mxu0 0.0
        %3990 = vmatpush1.msra.mxu0 0.0
        %3991 = vmatprep.subr.mxu0 0.0
        %3992 = vmatpush1.msra.mxu0 0.0
        %3993 = vmatprep.subr.mxu0 0.0
        %3994 = vmatpush1.msra.mxu0 0.0
        %3995 = vmatprep.subr.mxu0 0.0
        %3996 = vmatpush1.msra.mxu0 0.0
        %3997 = vmatprep.subr.mxu0 0.0
        %3998 = vmatpush1.msra.mxu0 0.0
        %3999 = vmatprep.subr.mxu0 0.0
        %4000 = vmatpush1.msra.mxu0 0.0
        %4001 = vmatprep.subr.mxu0 0.0
        %4002 = vmatpush1.msra.mxu0 0.0
        %4003 = vmatprep.subr.mxu0 0.0
        %4004 = vmatpush1.msra.mxu0 0.0
        %4005 = vmatprep.subr.mxu0 0.0
        %4006 = vmatpush1.msra.mxu0 0.0
        %4007 = vmatprep.subr.mxu0 0.0
        %4008 = vmatpush1.msra.mxu0 0.0
        %4009 = vmatprep.subr.mxu0 0.0
        %4010 = vmatpush1.msra.mxu0 0.0
        %4011 = vmatprep.subr.mxu0 0.0
        %4012 = vmatpush1.msra.mxu0 0.0
        %4013 = vmatprep.subr.mxu0 0.0
        %4014 = vmatpush1.msra.mxu0 0.0
        %4015 = vmatprep.subr.mxu0 0.0
        %4016 = vmatpush1.msra.mxu0 0.0
        %4017 = vmatprep.subr.mxu0 0.0
        %4018 = vmatpush1.msra.mxu0 0.0
        %4019 = vmatprep.subr.mxu0 0.0
        %4020 = vmatpush1.msra.mxu0 0.0
        %4021 = vmatprep.subr.mxu0 0.0
        %4022 = vmatpush1.msra.mxu0 0.0
        %4023 = vmatprep.subr.mxu0 0.0
        %4024 = vmatpush1.msra.mxu0 0.0
        %4025 = vmatprep.subr.mxu0 0.0
        %4026 = vmatpush1.msra.mxu0 0.0
        %4027 = vmatprep.subr.mxu0 0.0
        %4028 = vmatpush1.msra.mxu0 0.0
        %4029 = vmatprep.subr.mxu0 0.0
        %4030 = vmatpush1.msra.mxu0 0.0
        %4031 = vmatprep.mubr.f32.mxu0 0.0
        %4032 = vmatmul.mubr.f32.gmra.mrb[0].mxu0 %v2984
        %v4033 = vpop.f32.mrb[0].mxu0
        %v4034 = vadd.f32 0.0, %v4033
        %v4035 = vpop.f32.mrb[0].mxu0
        %4036 = vmatprep.mubr.f32.mxu0 0.0
        %4037 = vmatmul.mubr.f32.gmra.mrb[0].mxu0 %v2987
        %v4038 = vpop.f32.mrb[0].mxu0
        %v4039 = vadd.f32 0.0, %v4038
        %v4040 = vpop.f32.mrb[0].mxu0
        %4041 = vmatprep.mubr.f32.mxu0 0.0
        %4042 = vmatmul.mubr.f32.gmra.mrb[0].mxu0 %v2990
        %v4043 = vpop.f32.mrb[0].mxu0
        %v4044 = vadd.f32 0.0, %v4043
        %v4045 = vpop.f32.mrb[0].mxu0
        %4046 = vmatprep.mubr.f32.mxu0 0.0
        %4047 = vmatmul.mubr.f32.gmra.mrb[0].mxu0 %v2993
        %v4048 = vpop.f32.mrb[0].mxu0
        %v4049 = vadd.f32 0.0, %v4048
        %v4050 = vpop.f32.mrb[0].mxu0
        %4051 = vmatprep.mubr.f32.mxu0 0.0
        %4052 = vmatmul.mubr.f32.gmra.mrb[0].mxu0 %v2996
        %v4053 = vpop.f32.mrb[0].mxu0
        %v4054 = vadd.f32 0.0, %v4053
        %v4055 = vpop.f32.mrb[0].mxu0
        %4056 = vmatprep.mubr.f32.mxu0 0.0
        %4057 = vmatmul.mubr.f32.gmra.mrb[0].mxu0 %v2999
        %v4058 = vpop.f32.mrb[0].mxu0
        %v4059 = vadd.f32 0.0, %v4058
        %v4060 = vpop.f32.mrb[0].mxu0
        %4061 = vmatprep.mubr.f32.mxu0 0.0
        %4062 = vmatmul.mubr.f32.gmra.mrb[0].mxu0 %v3002
        %v4063 = vpop.f32.mrb[0].mxu0
        %v4064 = vadd.f32 0.0, %v4063
        %v4065 = vpop.f32.mrb[0].mxu0
        %4066 = vmatprep.mubr.f32.mxu0 0.0
        %4067 = vmatmul.mubr.f32.gmra.mrb[0].mxu0 %v3005
        %v4068 = vpop.f32.mrb[0].mxu0
        %v4069 = vadd.f32 0.0, %v4068
        %v4070 = vpop.f32.mrb[0].mxu0
        %4071 = vdwg.mxu0
        %v4073 = vsel %vm2510, %v4034, 0
        %v4076 = vsel %vm2510, %v4039, 0
        %v4079 = vsel %vm2510, %v4044, 0
        %v4082 = vsel %vm2510, %v4049, 0
        %v4085 = vsel %vm2510, %v4054, 0
        %v4088 = vsel %vm2510, %v4059, 0
        %v4091 = vsel %vm2510, %v4064, 0
        %v4094 = vsel %vm2510, %v4069, 0
        %4096 = vmatprep.subr.mxu0 0.0
        %4097 = vmatpush1.msra.mxu0 %v2975
        %4098 = vmatprep.subr.mxu0 0.0
        %4099 = vmatpush1.msra.mxu0 %v2976
        %4100 = vmatprep.subr.mxu0 0.0
        %4101 = vmatpush1.msra.mxu0 %v2977
        %4102 = vmatprep.subr.mxu0 0.0
        %4103 = vmatpush1.msra.mxu0 %v2978
        %4104 = vmatprep.subr.mxu0 0.0
        %4105 = vmatpush1.msra.mxu0 %v2979
        %4106 = vmatprep.subr.mxu0 0.0
        %4107 = vmatpush1.msra.mxu0 %v2980
        %4108 = vmatprep.subr.mxu0 0.0
        %4109 = vmatpush1.msra.mxu0 %v2981
        %4110 = vmatprep.subr.mxu0 0.0
        %4111 = vmatpush1.msra.mxu0 %v2982
        %4112 = vmatprep.subr.mxu0 0.0
        %4113 = vmatpush1.msra.mxu0 0.0
        %4114 = vmatprep.subr.mxu0 0.0
        %4115 = vmatpush1.msra.mxu0 0.0
        %4116 = vmatprep.subr.mxu0 0.0
        %4117 = vmatpush1.msra.mxu0 0.0
        %4118 = vmatprep.subr.mxu0 0.0
        %4119 = vmatpush1.msra.mxu0 0.0
        %4120 = vmatprep.subr.mxu0 0.0
        %4121 = vmatpush1.msra.mxu0 0.0
        %4122 = vmatprep.subr.mxu0 0.0
        %4123 = vmatpush1.msra.mxu0 0.0
        %4124 = vmatprep.subr.mxu0 0.0
        %4125 = vmatpush1.msra.mxu0 0.0
        %4126 = vmatprep.subr.mxu0 0.0
        %4127 = vmatpush1.msra.mxu0 0.0
        %4128 = vmatprep.subr.mxu0 0.0
        %4129 = vmatpush1.msra.mxu0 0.0
        %4130 = vmatprep.subr.mxu0 0.0
        %4131 = vmatpush1.msra.mxu0 0.0
        %4132 = vmatprep.subr.mxu0 0.0
        %4133 = vmatpush1.msra.mxu0 0.0
        %4134 = vmatprep.subr.mxu0 0.0
        %4135 = vmatpush1.msra.mxu0 0.0
        %4136 = vmatprep.subr.mxu0 0.0
        %4137 = vmatpush1.msra.mxu0 0.0
        %4138 = vmatprep.subr.mxu0 0.0
        %4139 = vmatpush1.msra.mxu0 0.0
        %4140 = vmatprep.subr.mxu0 0.0
        %4141 = vmatpush1.msra.mxu0 0.0
        %4142 = vmatprep.subr.mxu0 0.0
        %4143 = vmatpush1.msra.mxu0 0.0
        %4144 = vmatprep.subr.mxu0 0.0
        %4145 = vmatpush1.msra.mxu0 0.0
        %4146 = vmatprep.subr.mxu0 0.0
        %4147 = vmatpush1.msra.mxu0 0.0
        %4148 = vmatprep.subr.mxu0 0.0
        %4149 = vmatpush1.msra.mxu0 0.0
        %4150 = vmatprep.subr.mxu0 0.0
        %4151 = vmatpush1.msra.mxu0 0.0
        %4152 = vmatprep.subr.mxu0 0.0
        %4153 = vmatpush1.msra.mxu0 0.0
        %4154 = vmatprep.subr.mxu0 0.0
        %4155 = vmatpush1.msra.mxu0 0.0
        %4156 = vmatprep.subr.mxu0 0.0
        %4157 = vmatpush1.msra.mxu0 0.0
        %4158 = vmatprep.subr.mxu0 0.0
        %4159 = vmatpush1.msra.mxu0 0.0
        %4160 = vmatprep.mubr.f32.mxu0 0.0
        %4161 = vmatmul.mubr.f32.gmra.mrb[0].mxu0 %v4073
        %v4162 = vpop.f32.mrb[0].mxu0
        %v4163 = vadd.f32 0.0, %v4162
        %v4164 = vpop.f32.mrb[0].mxu0
        %4165 = vmatprep.mubr.f32.mxu0 0.0
        %4166 = vmatmul.mubr.f32.gmra.mrb[0].mxu0 %v4076
        %v4167 = vpop.f32.mrb[0].mxu0
        %v4168 = vadd.f32 0.0, %v4167
        %v4169 = vpop.f32.mrb[0].mxu0
        %4170 = vmatprep.mubr.f32.mxu0 0.0
        %4171 = vmatmul.mubr.f32.gmra.mrb[0].mxu0 %v4079
        %v4172 = vpop.f32.mrb[0].mxu0
        %v4173 = vadd.f32 0.0, %v4172
        %v4174 = vpop.f32.mrb[0].mxu0
        %4175 = vmatprep.mubr.f32.mxu0 0.0
        %4176 = vmatmul.mubr.f32.gmra.mrb[0].mxu0 %v4082
        %v4177 = vpop.f32.mrb[0].mxu0
        %v4178 = vadd.f32 0.0, %v4177
        %v4179 = vpop.f32.mrb[0].mxu0
        %4180 = vmatprep.mubr.f32.mxu0 0.0
        %4181 = vmatmul.mubr.f32.gmra.mrb[0].mxu0 %v4085
        %v4182 = vpop.f32.mrb[0].mxu0
        %v4183 = vadd.f32 0.0, %v4182
        %v4184 = vpop.f32.mrb[0].mxu0
        %4185 = vmatprep.mubr.f32.mxu0 0.0
        %4186 = vmatmul.mubr.f32.gmra.mrb[0].mxu0 %v4088
        %v4187 = vpop.f32.mrb[0].mxu0
        %v4188 = vadd.f32 0.0, %v4187
        %v4189 = vpop.f32.mrb[0].mxu0
        %4190 = vmatprep.mubr.f32.mxu0 0.0
        %4191 = vmatmul.mubr.f32.gmra.mrb[0].mxu0 %v4091
        %v4192 = vpop.f32.mrb[0].mxu0
        %v4193 = vadd.f32 0.0, %v4192
        %v4194 = vpop.f32.mrb[0].mxu0
        %4195 = vmatprep.mubr.f32.mxu0 0.0
        %4196 = vmatmul.mubr.f32.gmra.mrb[0].mxu0 %v4094
        %v4197 = vpop.f32.mrb[0].mxu0
        %v4198 = vadd.f32 0.0, %v4197
        %v4199 = vpop.f32.mrb[0].mxu0
        %4200 = vdwg.mxu0
        %v4201 = vmul.f32 %v3203, %v3203
        %v4202 = vmul.f32 %v3208, %v3208
        %v4203 = vmul.f32 %v3213, %v3213
        %v4204 = vmul.f32 %v3218, %v3218
        %v4205 = vmul.f32 %v3223, %v3223
        %v4206 = vmul.f32 %v3228, %v3228
        %v4207 = vmul.f32 %v3233, %v3233
        %v4208 = vmul.f32 %v3238, %v3238
        %v4209 = vmul.f32 %v3437, %v3437
        %v4210 = vmul.f32 %v3442, %v3442
        %v4211 = vmul.f32 %v3447, %v3447
        %v4212 = vmul.f32 %v3452, %v3452
        %v4213 = vmul.f32 %v3457, %v3457
        %v4214 = vmul.f32 %v3462, %v3462
        %v4215 = vmul.f32 %v3467, %v3467
        %v4216 = vmul.f32 %v3472, %v3472
        %v4217 = vmul.f32 %v3203, %v3437
        %v4218 = vmul.f32 %v3208, %v3442
        %v4219 = vmul.f32 %v3213, %v3447
        %v4220 = vmul.f32 %v3218, %v3452
        %v4221 = vmul.f32 %v3223, %v3457
        %v4222 = vmul.f32 %v3228, %v3462
        %v4223 = vmul.f32 %v3233, %v3467
        %v4224 = vmul.f32 %v3238, %v3472
        %v4225 = vsub.f32 %v3679, %v4201
        %v4226 = vsub.f32 %v3684, %v4202
        %v4227 = vsub.f32 %v3689, %v4203
        %v4228 = vsub.f32 %v3694, %v4204
        %v4229 = vsub.f32 %v3699, %v4205
        %v4230 = vsub.f32 %v3704, %v4206
        %v4231 = vsub.f32 %v3709, %v4207
        %v4232 = vsub.f32 %v3714, %v4208
        %v4233 = vsub.f32 %v3921, %v4209
        %v4234 = vsub.f32 %v3926, %v4210
        %v4235 = vsub.f32 %v3931, %v4211
        %v4236 = vsub.f32 %v3936, %v4212
        %v4237 = vsub.f32 %v3941, %v4213
        %v4238 = vsub.f32 %v3946, %v4214
        %v4239 = vsub.f32 %v3951, %v4215
        %v4240 = vsub.f32 %v3956, %v4216
        %v4241 = vsub.f32 %v4163, %v4217
        %v4242 = vsub.f32 %v4168, %v4218
        %v4243 = vsub.f32 %v4173, %v4219
        %v4244 = vsub.f32 %v4178, %v4220
        %v4245 = vsub.f32 %v4183, %v4221
        %v4246 = vsub.f32 %v4188, %v4222
        %v4247 = vsub.f32 %v4193, %v4223
        %v4248 = vsub.f32 %v4198, %v4224
        %v4249 = vmul.f32 %v4241, 2.0
        %v4250 = vmul.f32 %v4242, 2.0
        %v4251 = vmul.f32 %v4243, 2.0
        %v4252 = vmul.f32 %v4244, 2.0
        %v4253 = vmul.f32 %v4245, 2.0
        %v4254 = vmul.f32 %v4246, 2.0
        %v4255 = vmul.f32 %v4247, 2.0
        %v4256 = vmul.f32 %v4248, 2.0
        %v4257 = vadd.f32 %v4249, 0.0009
        %v4258 = vadd.f32 %v4250, 0.0009
        %v4259 = vadd.f32 %v4251, 0.0009
        %v4260 = vadd.f32 %v4252, 0.0009
        %v4261 = vadd.f32 %v4253, 0.0009
        %v4262 = vadd.f32 %v4254, 0.0009
        %v4263 = vadd.f32 %v4255, 0.0009
        %v4264 = vadd.f32 %v4256, 0.0009
        %v4265 = vadd.f32 %v4225, %v4233
        %v4266 = vadd.f32 %v4226, %v4234
        %v4267 = vadd.f32 %v4227, %v4235
        %v4268 = vadd.f32 %v4228, %v4236
        %v4269 = vadd.f32 %v4229, %v4237
        %v4270 = vadd.f32 %v4230, %v4238
        %v4271 = vadd.f32 %v4231, %v4239
        %v4272 = vadd.f32 %v4232, %v4240
        %v4273 = vadd.f32 %v4265, 0.0009
        %v4274 = vadd.f32 %v4266, 0.0009
        %v4275 = vadd.f32 %v4267, 0.0009
        %v4276 = vadd.f32 %v4268, 0.0009
        %v4277 = vadd.f32 %v4269, 0.0009
        %v4278 = vadd.f32 %v4270, 0.0009
        %v4279 = vadd.f32 %v4271, 0.0009
        %v4280 = vadd.f32 %v4272, 0.0009
        %v4281 = vrcp.pop %v4273
        %v4282 = vmul.f32 %v4257, %v4281
        %v4283 = vrcp.pop %v4274
        %v4284 = vmul.f32 %v4258, %v4283
        %v4285 = vrcp.pop %v4275
        %v4286 = vmul.f32 %v4259, %v4285
        %v4287 = vrcp.pop %v4276
        %v4288 = vmul.f32 %v4260, %v4287
        %v4289 = vrcp.pop %v4277
        %v4290 = vmul.f32 %v4261, %v4289
        %v4291 = vrcp.pop %v4278
        %v4292 = vmul.f32 %v4262, %v4291
        %v4293 = vrcp.pop %v4279
        %v4294 = vmul.f32 %v4263, %v4293
        %v4295 = vrcp.pop %v4280
        %v4296 = vmul.f32 %v4264, %v4295
        %v4297 = vsel %vm2510, %v4282, 0.0
        %4298 = vadd.xlane.f32.xlu0 %v4297
        %v4299 = vpop.xlane.xlu0 %4298
        %v4300 = vsel %vm2510, %v4284, 0.0
        %4301 = vadd.xlane.f32.xlu0 %v4300
        %v4302 = vpop.xlane.xlu0 %4301
        %v4303 = vsel %vm2510, %v4286, 0.0
        %4304 = vadd.xlane.f32.xlu0 %v4303
        %v4305 = vpop.xlane.xlu0 %4304
        %v4306 = vsel %vm2510, %v4288, 0.0
        %4307 = vadd.xlane.f32.xlu0 %v4306
        %v4308 = vpop.xlane.xlu0 %4307
        %v4309 = vsel %vm2510, %v4290, 0.0
        %4310 = vadd.xlane.f32.xlu0 %v4309
        %v4311 = vpop.xlane.xlu0 %4310
        %v4312 = vsel %vm2510, %v4292, 0.0
        %4313 = vadd.xlane.f32.xlu0 %v4312
        %v4314 = vpop.xlane.xlu0 %4313
        %v4315 = vsel %vm2510, %v4294, 0.0
        %4316 = vadd.xlane.f32.xlu0 %v4315
        %v4317 = vpop.xlane.xlu0 %4316
        %v4318 = vsel %vm2510, %v4296, 0.0
        %4319 = vadd.xlane.f32.xlu0 %v4318
        %v4320 = vpop.xlane.xlu0 %4319
        %v4321 = vadd.f32 %v4299, %v4302
        %v4322 = vadd.f32 %v4321, %v4305
        %v4323 = vadd.f32 %v4322, %v4308
        %v4324 = vadd.f32 %v4323, %v4311
        %v4325 = vadd.f32 %v4324, %v4314
        %v4326 = vadd.f32 %v4325, %v4317
        %v4327 = vadd.f32 %v4326, %v4320
        %v4328 = vrot.slane %v4327, 4
        %v4329 = vadd.f32 %v4327, %v4328
        %v4330 = vrot.slane %v4329, 2
        %v4331 = vadd.f32 %v4329, %v4330
        %v4332 = vrot.slane %v4331, 1
        %v4333 = vadd.f32 %v4331, %v4332
        %v4334 = vmul.f32 %v4333, 0.00024414063
        %v4335 = vadd.f32 %v4334, 1.0
        %v4336 = vmul.f32 %v4335, 0.5
        %v4337 = vmax.f32 %v4336, 1e-12
        %v4338 = vlog2.pop %v4337
        %v4339 = vmul.f32 %v4338, 0.6931472
        %v4340 = vmul.f32 %v4339, 0.0448
        %v4341 = vmul.f32 %v4340, 1.442695
        %v4342 = vpow.pop %v4341
        %v4343 = vld [vmem:[#allocation15] sm:$0xff]
        %v4344 = vld [vmem:[#allocation15 + $0x8] sm:$0xff]
        %v4345 = vld [vmem:[#allocation15 + $0x10] sm:$0xff]
        %v4346 = vld [vmem:[#allocation15 + $0x18] sm:$0xff]
        %v4347 = vld [vmem:[#allocation21] sm:$0xff]
        %v4348 = vld [vmem:[#allocation21 + $0x8] sm:$0xff]
        %v4349 = vld [vmem:[#allocation21 + $0x10] sm:$0xff]
        %v4350 = vld [vmem:[#allocation21 + $0x18] sm:$0xff]
        %v4351 = vld [vmem:[#allocation21 + $0x20] sm:$0xff]
        %v4352 = vld [vmem:[#allocation21 + $0x28] sm:$0xff]
        %v4353 = vld [vmem:[#allocation21 + $0x30] sm:$0xff]
        %v4354 = vld [vmem:[#allocation21 + $0x38] sm:$0xff]
        %v4356 = vsel %vm2510, %v4343, 0
        %v4359 = vsel %vm2510, %v4344, 0
        %v4362 = vsel %vm2510, %v4345, 0
        %v4365 = vsel %vm2510, %v4346, 0
        %4367 = vmatprep.subr.mxu0 0.0
        %4368 = vmatpush1.msra.mxu0 %v1662
        %4369 = vmatprep.subr.mxu0 0.0
        %4370 = vmatpush1.msra.mxu0 %v1663
        %4371 = vmatprep.subr.mxu0 0.0
        %4372 = vmatpush1.msra.mxu0 %v1664
        %4373 = vmatprep.subr.mxu0 0.0
        %4374 = vmatpush1.msra.mxu0 %v1665
        %4375 = vmatprep.subr.mxu0 0.0
        %4376 = vmatpush1.msra.mxu0 %v1666
        %4377 = vmatprep.subr.mxu0 0.0
        %4378 = vmatpush1.msra.mxu0 %v1667
        %4379 = vmatprep.subr.mxu0 0.0
        %4380 = vmatpush1.msra.mxu0 %v1668
        %4381 = vmatprep.subr.mxu0 0.0
        %4382 = vmatpush1.msra.mxu0 %v1669
        %4383 = vmatprep.subr.mxu0 0.0
        %4384 = vmatpush1.msra.mxu0 0.0
        %4385 = vmatprep.subr.mxu0 0.0
        %4386 = vmatpush1.msra.mxu0 0.0
        %4387 = vmatprep.subr.mxu0 0.0
        %4388 = vmatpush1.msra.mxu0 0.0
        %4389 = vmatprep.subr.mxu0 0.0
        %4390 = vmatpush1.msra.mxu0 0.0
        %4391 = vmatprep.subr.mxu0 0.0
        %4392 = vmatpush1.msra.mxu0 0.0
        %4393 = vmatprep.subr.mxu0 0.0
        %4394 = vmatpush1.msra.mxu0 0.0
        %4395 = vmatprep.subr.mxu0 0.0
        %4396 = vmatpush1.msra.mxu0 0.0
        %4397 = vmatprep.subr.mxu0 0.0
        %4398 = vmatpush1.msra.mxu0 0.0
        %4399 = vmatprep.subr.mxu0 0.0
        %4400 = vmatpush1.msra.mxu0 0.0
        %4401 = vmatprep.subr.mxu0 0.0
        %4402 = vmatpush1.msra.mxu0 0.0
        %4403 = vmatprep.subr.mxu0 0.0
        %4404 = vmatpush1.msra.mxu0 0.0
        %4405 = vmatprep.subr.mxu0 0.0
        %4406 = vmatpush1.msra.mxu0 0.0
        %4407 = vmatprep.subr.mxu0 0.0
        %4408 = vmatpush1.msra.mxu0 0.0
        %4409 = vmatprep.subr.mxu0 0.0
        %4410 = vmatpush1.msra.mxu0 0.0
        %4411 = vmatprep.subr.mxu0 0.0
        %4412 = vmatpush1.msra.mxu0 0.0
        %4413 = vmatprep.subr.mxu0 0.0
        %4414 = vmatpush1.msra.mxu0 0.0
        %4415 = vmatprep.subr.mxu0 0.0
        %4416 = vmatpush1.msra.mxu0 0.0
        %4417 = vmatprep.subr.mxu0 0.0
        %4418 = vmatpush1.msra.mxu0 0.0
        %4419 = vmatprep.subr.mxu0 0.0
        %4420 = vmatpush1.msra.mxu0 0.0
        %4421 = vmatprep.subr.mxu0 0.0
        %4422 = vmatpush1.msra.mxu0 0.0
        %4423 = vmatprep.subr.mxu0 0.0
        %4424 = vmatpush1.msra.mxu0 0.0
        %4425 = vmatprep.subr.mxu0 0.0
        %4426 = vmatpush1.msra.mxu0 0.0
        %4427 = vmatprep.subr.mxu0 0.0
        %4428 = vmatpush1.msra.mxu0 0.0
        %4429 = vmatprep.subr.mxu0 0.0
        %4430 = vmatpush1.msra.mxu0 0.0
        %4431 = vmatprep.mubr.f32.mxu0 0.0
        %4432 = vmatmul.mubr.f32.gmra.mrb[0].mxu0 %v4356
        %v4433 = vpop.f32.mrb[0].mxu0
        %v4434 = vadd.f32 0.0, %v4433
        %v4435 = vpop.f32.mrb[0].mxu0
        %4436 = vmatprep.mubr.f32.mxu0 0.0
        %4437 = vmatmul.mubr.f32.gmra.mrb[0].mxu0 %v4359
        %v4438 = vpop.f32.mrb[0].mxu0
        %v4439 = vadd.f32 0.0, %v4438
        %v4440 = vpop.f32.mrb[0].mxu0
        %4441 = vmatprep.mubr.f32.mxu0 0.0
        %4442 = vmatmul.mubr.f32.gmra.mrb[0].mxu0 %v4362
        %v4443 = vpop.f32.mrb[0].mxu0
        %v4444 = vadd.f32 0.0, %v4443
        %v4445 = vpop.f32.mrb[0].mxu0
        %4446 = vmatprep.mubr.f32.mxu0 0.0
        %4447 = vmatmul.mubr.f32.gmra.mrb[0].mxu0 %v4365
        %v4448 = vpop.f32.mrb[0].mxu0
        %v4449 = vadd.f32 0.0, %v4448
        %v4450 = vpop.f32.mrb[0].mxu0
        %4451 = vdwg.mxu0
        %v4453 = vsel %vm2510, %v4434, 0
        %v4456 = vsel %vm2510, %v4439, 0
        %v4459 = vsel %vm2510, %v4444, 0
        %v4462 = vsel %vm2510, %v4449, 0
        %4464 = vmatprep.subr.mxu0 0.0
        %4465 = vmatpush1.msra.mxu0 %v4347
        %4466 = vmatprep.subr.mxu0 0.0
        %4467 = vmatpush1.msra.mxu0 %v4348
        %4468 = vmatprep.subr.mxu0 0.0
        %4469 = vmatpush1.msra.mxu0 %v4349
        %4470 = vmatprep.subr.mxu0 0.0
        %4471 = vmatpush1.msra.mxu0 %v4350
        %4472 = vmatprep.subr.mxu0 0.0
        %4473 = vmatpush1.msra.mxu0 %v4351
        %4474 = vmatprep.subr.mxu0 0.0
        %4475 = vmatpush1.msra.mxu0 %v4352
        %4476 = vmatprep.subr.mxu0 0.0
        %4477 = vmatpush1.msra.mxu0 %v4353
        %4478 = vmatprep.subr.mxu0 0.0
        %4479 = vmatpush1.msra.mxu0 %v4354
        %4480 = vmatprep.subr.mxu0 0.0
        %4481 = vmatpush1.msra.mxu0 0.0
        %4482 = vmatprep.subr.mxu0 0.0
        %4483 = vmatpush1.msra.mxu0 0.0
        %4484 = vmatprep.subr.mxu0 0.0
        %4485 = vmatpush1.msra.mxu0 0.0
        %4486 = vmatprep.subr.mxu0 0.0
        %4487 = vmatpush1.msra.mxu0 0.0
        %4488 = vmatprep.subr.mxu0 0.0
        %4489 = vmatpush1.msra.mxu0 0.0
        %4490 = vmatprep.subr.mxu0 0.0
        %4491 = vmatpush1.msra.mxu0 0.0
        %4492 = vmatprep.subr.mxu0 0.0
        %4493 = vmatpush1.msra.mxu0 0.0
        %4494 = vmatprep.subr.mxu0 0.0
        %4495 = vmatpush1.msra.mxu0 0.0
        %4496 = vmatprep.subr.mxu0 0.0
        %4497 = vmatpush1.msra.mxu0 0.0
        %4498 = vmatprep.subr.mxu0 0.0
        %4499 = vmatpush1.msra.mxu0 0.0
        %4500 = vmatprep.subr.mxu0 0.0
        %4501 = vmatpush1.msra.mxu0 0.0
        %4502 = vmatprep.subr.mxu0 0.0
        %4503 = vmatpush1.msra.mxu0 0.0
        %4504 = vmatprep.subr.mxu0 0.0
        %4505 = vmatpush1.msra.mxu0 0.0
        %4506 = vmatprep.subr.mxu0 0.0
        %4507 = vmatpush1.msra.mxu0 0.0
        %4508 = vmatprep.subr.mxu0 0.0
        %4509 = vmatpush1.msra.mxu0 0.0
        %4510 = vmatprep.subr.mxu0 0.0
        %4511 = vmatpush1.msra.mxu0 0.0
        %4512 = vmatprep.subr.mxu0 0.0
        %4513 = vmatpush1.msra.mxu0 0.0
        %4514 = vmatprep.subr.mxu0 0.0
        %4515 = vmatpush1.msra.mxu0 0.0
        %4516 = vmatprep.subr.mxu0 0.0
        %4517 = vmatpush1.msra.mxu0 0.0
        %4518 = vmatprep.subr.mxu0 0.0
        %4519 = vmatpush1.msra.mxu0 0.0
        %4520 = vmatprep.subr.mxu0 0.0
        %4521 = vmatpush1.msra.mxu0 0.0
        %4522 = vmatprep.subr.mxu0 0.0
        %4523 = vmatpush1.msra.mxu0 0.0
        %4524 = vmatprep.subr.mxu0 0.0
        %4525 = vmatpush1.msra.mxu0 0.0
        %4526 = vmatprep.subr.mxu0 0.0
        %4527 = vmatpush1.msra.mxu0 0.0
        %4528 = vmatprep.mubr.f32.mxu0 0.0
        %4529 = vmatmul.mubr.f32.gmra.mrb[0].mxu0 %v4453
        %v4530 = vpop.f32.mrb[0].mxu0
        %v4531 = vadd.f32 0.0, %v4530
        %v4532 = vpop.f32.mrb[0].mxu0
        %4533 = vmatprep.mubr.f32.mxu0 0.0
        %4534 = vmatmul.mubr.f32.gmra.mrb[0].mxu0 %v4456
        %v4535 = vpop.f32.mrb[0].mxu0
        %v4536 = vadd.f32 0.0, %v4535
        %v4537 = vpop.f32.mrb[0].mxu0
        %4538 = vmatprep.mubr.f32.mxu0 0.0
        %4539 = vmatmul.mubr.f32.gmra.mrb[0].mxu0 %v4459
        %v4540 = vpop.f32.mrb[0].mxu0
        %v4541 = vadd.f32 0.0, %v4540
        %v4542 = vpop.f32.mrb[0].mxu0
        %4543 = vmatprep.mubr.f32.mxu0 0.0
        %4544 = vmatmul.mubr.f32.gmra.mrb[0].mxu0 %v4462
        %v4545 = vpop.f32.mrb[0].mxu0
        %v4546 = vadd.f32 0.0, %v4545
        %v4547 = vpop.f32.mrb[0].mxu0
        %4548 = vdwg.mxu0
        %4549 = vmatprep.subr.mxu0 0.0
        %4550 = vmatpush1.msra.mxu0 %v2454
        %4551 = vmatprep.subr.mxu0 0.0
        %4552 = vmatpush1.msra.mxu0 %v2455
        %4553 = vmatprep.subr.mxu0 0.0
        %4554 = vmatpush1.msra.mxu0 %v2456
        %4555 = vmatprep.subr.mxu0 0.0
        %4556 = vmatpush1.msra.mxu0 %v2457
        %4557 = vmatprep.subr.mxu0 0.0
        %4558 = vmatpush1.msra.mxu0 %v2458
        %4559 = vmatprep.subr.mxu0 0.0
        %4560 = vmatpush1.msra.mxu0 %v2459
        %4561 = vmatprep.subr.mxu0 0.0
        %4562 = vmatpush1.msra.mxu0 %v2460
        %4563 = vmatprep.subr.mxu0 0.0
        %4564 = vmatpush1.msra.mxu0 %v2461
        %4565 = vmatprep.subr.mxu0 0.0
        %4566 = vmatpush1.msra.mxu0 0.0
        %4567 = vmatprep.subr.mxu0 0.0
        %4568 = vmatpush1.msra.mxu0 0.0
        %4569 = vmatprep.subr.mxu0 0.0
        %4570 = vmatpush1.msra.mxu0 0.0
        %4571 = vmatprep.subr.mxu0 0.0
        %4572 = vmatpush1.msra.mxu0 0.0
        %4573 = vmatprep.subr.mxu0 0.0
        %4574 = vmatpush1.msra.mxu0 0.0
        %4575 = vmatprep.subr.mxu0 0.0
        %4576 = vmatpush1.msra.mxu0 0.0
        %4577 = vmatprep.subr.mxu0 0.0
        %4578 = vmatpush1.msra.mxu0 0.0
        %4579 = vmatprep.subr.mxu0 0.0
        %4580 = vmatpush1.msra.mxu0 0.0
        %4581 = vmatprep.subr.mxu0 0.0
        %4582 = vmatpush1.msra.mxu0 0.0
        %4583 = vmatprep.subr.mxu0 0.0
        %4584 = vmatpush1.msra.mxu0 0.0
        %4585 = vmatprep.subr.mxu0 0.0
        %4586 = vmatpush1.msra.mxu0 0.0
        %4587 = vmatprep.subr.mxu0 0.0
        %4588 = vmatpush1.msra.mxu0 0.0
        %4589 = vmatprep.subr.mxu0 0.0
        %4590 = vmatpush1.msra.mxu0 0.0
        %4591 = vmatprep.subr.mxu0 0.0
        %4592 = vmatpush1.msra.mxu0 0.0
        %4593 = vmatprep.subr.mxu0 0.0
        %4594 = vmatpush1.msra.mxu0 0.0
        %4595 = vmatprep.subr.mxu0 0.0
        %4596 = vmatpush1.msra.mxu0 0.0
        %4597 = vmatprep.subr.mxu0 0.0
        %4598 = vmatpush1.msra.mxu0 0.0
        %4599 = vmatprep.subr.mxu0 0.0
        %4600 = vmatpush1.msra.mxu0 0.0
        %4601 = vmatprep.subr.mxu0 0.0
        %4602 = vmatpush1.msra.mxu0 0.0
        %4603 = vmatprep.subr.mxu0 0.0
        %4604 = vmatpush1.msra.mxu0 0.0
        %4605 = vmatprep.subr.mxu0 0.0
        %4606 = vmatpush1.msra.mxu0 0.0
        %4607 = vmatprep.subr.mxu0 0.0
        %4608 = vmatpush1.msra.mxu0 0.0
        %4609 = vmatprep.subr.mxu0 0.0
        %4610 = vmatpush1.msra.mxu0 0.0
        %4611 = vmatprep.subr.mxu0 0.0
        %4612 = vmatpush1.msra.mxu0 0.0
        %4613 = vmatprep.mubr.f32.mxu0 0.0
        %4614 = vmatmul.mubr.f32.gmra.mrb[0].mxu0 %v4356
        %v4615 = vpop.f32.mrb[0].mxu0
        %v4616 = vadd.f32 0.0, %v4615
        %v4617 = vpop.f32.mrb[0].mxu0
        %4618 = vmatprep.mubr.f32.mxu0 0.0
        %4619 = vmatmul.mubr.f32.gmra.mrb[0].mxu0 %v4359
        %v4620 = vpop.f32.mrb[0].mxu0
        %v4621 = vadd.f32 0.0, %v4620
        %v4622 = vpop.f32.mrb[0].mxu0
        %4623 = vmatprep.mubr.f32.mxu0 0.0
        %4624 = vmatmul.mubr.f32.gmra.mrb[0].mxu0 %v4362
        %v4625 = vpop.f32.mrb[0].mxu0
        %v4626 = vadd.f32 0.0, %v4625
        %v4627 = vpop.f32.mrb[0].mxu0
        %4628 = vmatprep.mubr.f32.mxu0 0.0
        %4629 = vmatmul.mubr.f32.gmra.mrb[0].mxu0 %v4365
        %v4630 = vpop.f32.mrb[0].mxu0
        %v4631 = vadd.f32 0.0, %v4630
        %v4632 = vpop.f32.mrb[0].mxu0
        %4633 = vdwg.mxu0
        %v4635 = vsel %vm2510, %v4616, 0
        %v4638 = vsel %vm2510, %v4621, 0
        %v4641 = vsel %vm2510, %v4626, 0
        %v4644 = vsel %vm2510, %v4631, 0
        %4646 = vmatprep.subr.mxu0 0.0
        %4647 = vmatpush1.msra.mxu0 %v4347
        %4648 = vmatprep.subr.mxu0 0.0
        %4649 = vmatpush1.msra.mxu0 %v4348
        %4650 = vmatprep.subr.mxu0 0.0
        %4651 = vmatpush1.msra.mxu0 %v4349
        %4652 = vmatprep.subr.mxu0 0.0
        %4653 = vmatpush1.msra.mxu0 %v4350
        %4654 = vmatprep.subr.mxu0 0.0
        %4655 = vmatpush1.msra.mxu0 %v4351
        %4656 = vmatprep.subr.mxu0 0.0
        %4657 = vmatpush1.msra.mxu0 %v4352
        %4658 = vmatprep.subr.mxu0 0.0
        %4659 = vmatpush1.msra.mxu0 %v4353
        %4660 = vmatprep.subr.mxu0 0.0
        %4661 = vmatpush1.msra.mxu0 %v4354
        %4662 = vmatprep.subr.mxu0 0.0
        %4663 = vmatpush1.msra.mxu0 0.0
        %4664 = vmatprep.subr.mxu0 0.0
        %4665 = vmatpush1.msra.mxu0 0.0
        %4666 = vmatprep.subr.mxu0 0.0
        %4667 = vmatpush1.msra.mxu0 0.0
        %4668 = vmatprep.subr.mxu0 0.0
        %4669 = vmatpush1.msra.mxu0 0.0
        %4670 = vmatprep.subr.mxu0 0.0
        %4671 = vmatpush1.msra.mxu0 0.0
        %4672 = vmatprep.subr.mxu0 0.0
        %4673 = vmatpush1.msra.mxu0 0.0
        %4674 = vmatprep.subr.mxu0 0.0
        %4675 = vmatpush1.msra.mxu0 0.0
        %4676 = vmatprep.subr.mxu0 0.0
        %4677 = vmatpush1.msra.mxu0 0.0
        %4678 = vmatprep.subr.mxu0 0.0
        %4679 = vmatpush1.msra.mxu0 0.0
        %4680 = vmatprep.subr.mxu0 0.0
        %4681 = vmatpush1.msra.mxu0 0.0
        %4682 = vmatprep.subr.mxu0 0.0
        %4683 = vmatpush1.msra.mxu0 0.0
        %4684 = vmatprep.subr.mxu0 0.0
        %4685 = vmatpush1.msra.mxu0 0.0
        %4686 = vmatprep.subr.mxu0 0.0
        %4687 = vmatpush1.msra.mxu0 0.0
        %4688 = vmatprep.subr.mxu0 0.0
        %4689 = vmatpush1.msra.mxu0 0.0
        %4690 = vmatprep.subr.mxu0 0.0
        %4691 = vmatpush1.msra.mxu0 0.0
        %4692 = vmatprep.subr.mxu0 0.0
        %4693 = vmatpush1.msra.mxu0 0.0
        %4694 = vmatprep.subr.mxu0 0.0
        %4695 = vmatpush1.msra.mxu0 0.0
        %4696 = vmatprep.subr.mxu0 0.0
        %4697 = vmatpush1.msra.mxu0 0.0
        %4698 = vmatprep.subr.mxu0 0.0
        %4699 = vmatpush1.msra.mxu0 0.0
        %4700 = vmatprep.subr.mxu0 0.0
        %4701 = vmatpush1.msra.mxu0 0.0
        %4702 = vmatprep.subr.mxu0 0.0
        %4703 = vmatpush1.msra.mxu0 0.0
        %4704 = vmatprep.subr.mxu0 0.0
        %4705 = vmatpush1.msra.mxu0 0.0
        %4706 = vmatprep.subr.mxu0 0.0
        %4707 = vmatpush1.msra.mxu0 0.0
        %4708 = vmatprep.subr.mxu0 0.0
        %4709 = vmatpush1.msra.mxu0 0.0
        %4710 = vmatprep.mubr.f32.mxu0 0.0
        %4711 = vmatmul.mubr.f32.gmra.mrb[0].mxu0 %v4635
        %v4712 = vpop.f32.mrb[0].mxu0
        %v4713 = vadd.f32 0.0, %v4712
        %v4714 = vpop.f32.mrb[0].mxu0
        %4715 = vmatprep.mubr.f32.mxu0 0.0
        %4716 = vmatmul.mubr.f32.gmra.mrb[0].mxu0 %v4638
        %v4717 = vpop.f32.mrb[0].mxu0
        %v4718 = vadd.f32 0.0, %v4717
        %v4719 = vpop.f32.mrb[0].mxu0
        %4720 = vmatprep.mubr.f32.mxu0 0.0
        %4721 = vmatmul.mubr.f32.gmra.mrb[0].mxu0 %v4641
        %v4722 = vpop.f32.mrb[0].mxu0
        %v4723 = vadd.f32 0.0, %v4722
        %v4724 = vpop.f32.mrb[0].mxu0
        %4725 = vmatprep.mubr.f32.mxu0 0.0
        %4726 = vmatmul.mubr.f32.gmra.mrb[0].mxu0 %v4644
        %v4727 = vpop.f32.mrb[0].mxu0
        %v4728 = vadd.f32 0.0, %v4727
        %v4729 = vpop.f32.mrb[0].mxu0
        %4730 = vdwg.mxu0
        %v4731 = vld [vmem:[#allocation7] sm:$0xff]
        %v4732 = vld [vmem:[#allocation7 + $0x8] sm:$0xff]
        %v4733 = vld [vmem:[#allocation7 + $0x10] sm:$0xff]
        %v4734 = vld [vmem:[#allocation7 + $0x18] sm:$0xff]
        %v4735 = vld [vmem:[#allocation12] sm:$0xff]
        %v4736 = vld [vmem:[#allocation12 + $0x8] sm:$0xff]
        %v4737 = vld [vmem:[#allocation12 + $0x10] sm:$0xff]
        %v4738 = vld [vmem:[#allocation12 + $0x18] sm:$0xff]
        %vm4739 = vcmask 261120
        %v4741 = vsel %vm4739, %v4731, 0
        %v4744 = vsel %vm4739, %v4732, 0
        %v4747 = vsel %vm4739, %v4733, 0
        %v4750 = vsel %vm4739, %v4734, 0
        %4752 = vmatprep.subr.mxu0 0.0
        %4753 = vmatpush1.msra.mxu0 %v4531
        %4754 = vmatprep.subr.mxu0 0.0
        %4755 = vmatpush1.msra.mxu0 %v4536
        %4756 = vmatprep.subr.mxu0 0.0
        %4757 = vmatpush1.msra.mxu0 %v4541
        %4758 = vmatprep.subr.mxu0 0.0
        %4759 = vmatpush1.msra.mxu0 %v4546
        %4760 = vmatprep.subr.mxu0 0.0
        %4761 = vmatpush1.msra.mxu0 0.0
        %4762 = vmatprep.subr.mxu0 0.0
        %4763 = vmatpush1.msra.mxu0 0.0
        %4764 = vmatprep.subr.mxu0 0.0
        %4765 = vmatpush1.msra.mxu0 0.0
        %4766 = vmatprep.subr.mxu0 0.0
        %4767 = vmatpush1.msra.mxu0 0.0
        %4768 = vmatprep.subr.mxu0 0.0
        %4769 = vmatpush1.msra.mxu0 0.0
        %4770 = vmatprep.subr.mxu0 0.0
        %4771 = vmatpush1.msra.mxu0 0.0
        %4772 = vmatprep.subr.mxu0 0.0
        %4773 = vmatpush1.msra.mxu0 0.0
        %4774 = vmatprep.subr.mxu0 0.0
        %4775 = vmatpush1.msra.mxu0 0.0
        %4776 = vmatprep.subr.mxu0 0.0
        %4777 = vmatpush1.msra.mxu0 0.0
        %4778 = vmatprep.subr.mxu0 0.0
        %4779 = vmatpush1.msra.mxu0 0.0
        %4780 = vmatprep.subr.mxu0 0.0
        %4781 = vmatpush1.msra.mxu0 0.0
        %4782 = vmatprep.subr.mxu0 0.0
        %4783 = vmatpush1.msra.mxu0 0.0
        %4784 = vmatprep.subr.mxu0 0.0
        %4785 = vmatpush1.msra.mxu0 0.0
        %4786 = vmatprep.subr.mxu0 0.0
        %4787 = vmatpush1.msra.mxu0 0.0
        %4788 = vmatprep.subr.mxu0 0.0
        %4789 = vmatpush1.msra.mxu0 0.0
        %4790 = vmatprep.subr.mxu0 0.0
        %4791 = vmatpush1.msra.mxu0 0.0
        %4792 = vmatprep.subr.mxu0 0.0
        %4793 = vmatpush1.msra.mxu0 0.0
        %4794 = vmatprep.subr.mxu0 0.0
        %4795 = vmatpush1.msra.mxu0 0.0
        %4796 = vmatprep.subr.mxu0 0.0
        %4797 = vmatpush1.msra.mxu0 0.0
        %4798 = vmatprep.subr.mxu0 0.0
        %4799 = vmatpush1.msra.mxu0 0.0
        %4800 = vmatprep.subr.mxu0 0.0
        %4801 = vmatpush1.msra.mxu0 0.0
        %4802 = vmatprep.subr.mxu0 0.0
        %4803 = vmatpush1.msra.mxu0 0.0
        %4804 = vmatprep.subr.mxu0 0.0
        %4805 = vmatpush1.msra.mxu0 0.0
        %4806 = vmatprep.subr.mxu0 0.0
        %4807 = vmatpush1.msra.mxu0 0.0
        %4808 = vmatprep.subr.mxu0 0.0
        %4809 = vmatpush1.msra.mxu0 0.0
        %4810 = vmatprep.subr.mxu0 0.0
        %4811 = vmatpush1.msra.mxu0 0.0
        %4812 = vmatprep.subr.mxu0 0.0
        %4813 = vmatpush1.msra.mxu0 0.0
        %4814 = vmatprep.subr.mxu0 0.0
        %4815 = vmatpush1.msra.mxu0 0.0
        %4816 = vmatprep.mubr.f32.mxu0 0.0
        %4817 = vmatmul.mubr.f32.gmra.mrb[0].mxu0 %v4741
        %v4818 = vpop.f32.mrb[0].mxu0
        %v4819 = vadd.f32 0.0, %v4818
        %v4820 = vpop.f32.mrb[0].mxu0
        %4821 = vmatprep.mubr.f32.mxu0 0.0
        %4822 = vmatmul.mubr.f32.gmra.mrb[0].mxu0 %v4744
        %v4823 = vpop.f32.mrb[0].mxu0
        %v4824 = vadd.f32 0.0, %v4823
        %v4825 = vpop.f32.mrb[0].mxu0
        %4826 = vmatprep.mubr.f32.mxu0 0.0
        %4827 = vmatmul.mubr.f32.gmra.mrb[0].mxu0 %v4747
        %v4828 = vpop.f32.mrb[0].mxu0
        %v4829 = vadd.f32 0.0, %v4828
        %v4830 = vpop.f32.mrb[0].mxu0
        %4831 = vmatprep.mubr.f32.mxu0 0.0
        %4832 = vmatmul.mubr.f32.gmra.mrb[0].mxu0 %v4750
        %v4833 = vpop.f32.mrb[0].mxu0
        %v4834 = vadd.f32 0.0, %v4833
        %v4835 = vpop.f32.mrb[0].mxu0
        %4836 = vdwg.mxu0
        %v4838 = vsel %vm4739, %v4819, 0
        %v4841 = vsel %vm4739, %v4824, 0
        %v4844 = vsel %vm4739, %v4829, 0
        %v4847 = vsel %vm4739, %v4834, 0
        %4849 = vmatprep.subr.mxu0 0.0
        %4850 = vmatpush1.msra.mxu0 %v4735
        %4851 = vmatprep.subr.mxu0 0.0
        %4852 = vmatpush1.msra.mxu0 %v4736
        %4853 = vmatprep.subr.mxu0 0.0
        %4854 = vmatpush1.msra.mxu0 %v4737
        %4855 = vmatprep.subr.mxu0 0.0
        %4856 = vmatpush1.msra.mxu0 %v4738
        %4857 = vmatprep.subr.mxu0 0.0
        %4858 = vmatpush1.msra.mxu0 0.0
        %4859 = vmatprep.subr.mxu0 0.0
        %4860 = vmatpush1.msra.mxu0 0.0
        %4861 = vmatprep.subr.mxu0 0.0
        %4862 = vmatpush1.msra.mxu0 0.0
        %4863 = vmatprep.subr.mxu0 0.0
        %4864 = vmatpush1.msra.mxu0 0.0
        %4865 = vmatprep.subr.mxu0 0.0
        %4866 = vmatpush1.msra.mxu0 0.0
        %4867 = vmatprep.subr.mxu0 0.0
        %4868 = vmatpush1.msra.mxu0 0.0
        %4869 = vmatprep.subr.mxu0 0.0
        %4870 = vmatpush1.msra.mxu0 0.0
        %4871 = vmatprep.subr.mxu0 0.0
        %4872 = vmatpush1.msra.mxu0 0.0
        %4873 = vmatprep.subr.mxu0 0.0
        %4874 = vmatpush1.msra.mxu0 0.0
        %4875 = vmatprep.subr.mxu0 0.0
        %4876 = vmatpush1.msra.mxu0 0.0
        %4877 = vmatprep.subr.mxu0 0.0
        %4878 = vmatpush1.msra.mxu0 0.0
        %4879 = vmatprep.subr.mxu0 0.0
        %4880 = vmatpush1.msra.mxu0 0.0
        %4881 = vmatprep.subr.mxu0 0.0
        %4882 = vmatpush1.msra.mxu0 0.0
        %4883 = vmatprep.subr.mxu0 0.0
        %4884 = vmatpush1.msra.mxu0 0.0
        %4885 = vmatprep.subr.mxu0 0.0
        %4886 = vmatpush1.msra.mxu0 0.0
        %4887 = vmatprep.subr.mxu0 0.0
        %4888 = vmatpush1.msra.mxu0 0.0
        %4889 = vmatprep.subr.mxu0 0.0
        %4890 = vmatpush1.msra.mxu0 0.0
        %4891 = vmatprep.subr.mxu0 0.0
        %4892 = vmatpush1.msra.mxu0 0.0
        %4893 = vmatprep.subr.mxu0 0.0
        %4894 = vmatpush1.msra.mxu0 0.0
        %4895 = vmatprep.subr.mxu0 0.0
        %4896 = vmatpush1.msra.mxu0 0.0
        %4897 = vmatprep.subr.mxu0 0.0
        %4898 = vmatpush1.msra.mxu0 0.0
        %4899 = vmatprep.subr.mxu0 0.0
        %4900 = vmatpush1.msra.mxu0 0.0
        %4901 = vmatprep.subr.mxu0 0.0
        %4902 = vmatpush1.msra.mxu0 0.0
        %4903 = vmatprep.subr.mxu0 0.0
        %4904 = vmatpush1.msra.mxu0 0.0
        %4905 = vmatprep.subr.mxu0 0.0
        %4906 = vmatpush1.msra.mxu0 0.0
        %4907 = vmatprep.subr.mxu0 0.0
        %4908 = vmatpush1.msra.mxu0 0.0
        %4909 = vmatprep.subr.mxu0 0.0
        %4910 = vmatpush1.msra.mxu0 0.0
        %4911 = vmatprep.subr.mxu0 0.0
        %4912 = vmatpush1.msra.mxu0 0.0
        %4913 = vmatprep.mubr.f32.mxu0 0.0
        %4914 = vmatmul.mubr.f32.gmra.mrb[0].mxu0 %v4838
        %v4915 = vpop.f32.mrb[0].mxu0
        %v4916 = vadd.f32 0.0, %v4915
        %v4917 = vpop.f32.mrb[0].mxu0
        %4918 = vmatprep.mubr.f32.mxu0 0.0
        %4919 = vmatmul.mubr.f32.gmra.mrb[0].mxu0 %v4841
        %v4920 = vpop.f32.mrb[0].mxu0
        %v4921 = vadd.f32 0.0, %v4920
        %v4922 = vpop.f32.mrb[0].mxu0
        %4923 = vmatprep.mubr.f32.mxu0 0.0
        %4924 = vmatmul.mubr.f32.gmra.mrb[0].mxu0 %v4844
        %v4925 = vpop.f32.mrb[0].mxu0
        %v4926 = vadd.f32 0.0, %v4925
        %v4927 = vpop.f32.mrb[0].mxu0
        %4928 = vmatprep.mubr.f32.mxu0 0.0
        %4929 = vmatmul.mubr.f32.gmra.mrb[0].mxu0 %v4847
        %v4930 = vpop.f32.mrb[0].mxu0
        %v4931 = vadd.f32 0.0, %v4930
        %v4932 = vpop.f32.mrb[0].mxu0
        %4933 = vdwg.mxu0
        %4934 = vmatprep.subr.mxu0 0.0
        %4935 = vmatpush1.msra.mxu0 %v4713
        %4936 = vmatprep.subr.mxu0 0.0
        %4937 = vmatpush1.msra.mxu0 %v4718
        %4938 = vmatprep.subr.mxu0 0.0
        %4939 = vmatpush1.msra.mxu0 %v4723
        %4940 = vmatprep.subr.mxu0 0.0
        %4941 = vmatpush1.msra.mxu0 %v4728
        %4942 = vmatprep.subr.mxu0 0.0
        %4943 = vmatpush1.msra.mxu0 0.0
        %4944 = vmatprep.subr.mxu0 0.0
        %4945 = vmatpush1.msra.mxu0 0.0
        %4946 = vmatprep.subr.mxu0 0.0
        %4947 = vmatpush1.msra.mxu0 0.0
        %4948 = vmatprep.subr.mxu0 0.0
        %4949 = vmatpush1.msra.mxu0 0.0
        %4950 = vmatprep.subr.mxu0 0.0
        %4951 = vmatpush1.msra.mxu0 0.0
        %4952 = vmatprep.subr.mxu0 0.0
        %4953 = vmatpush1.msra.mxu0 0.0
        %4954 = vmatprep.subr.mxu0 0.0
        %4955 = vmatpush1.msra.mxu0 0.0
        %4956 = vmatprep.subr.mxu0 0.0
        %4957 = vmatpush1.msra.mxu0 0.0
        %4958 = vmatprep.subr.mxu0 0.0
        %4959 = vmatpush1.msra.mxu0 0.0
        %4960 = vmatprep.subr.mxu0 0.0
        %4961 = vmatpush1.msra.mxu0 0.0
        %4962 = vmatprep.subr.mxu0 0.0
        %4963 = vmatpush1.msra.mxu0 0.0
        %4964 = vmatprep.subr.mxu0 0.0
        %4965 = vmatpush1.msra.mxu0 0.0
        %4966 = vmatprep.subr.mxu0 0.0
        %4967 = vmatpush1.msra.mxu0 0.0
        %4968 = vmatprep.subr.mxu0 0.0
        %4969 = vmatpush1.msra.mxu0 0.0
        %4970 = vmatprep.subr.mxu0 0.0
        %4971 = vmatpush1.msra.mxu0 0.0
        %4972 = vmatprep.subr.mxu0 0.0
        %4973 = vmatpush1.msra.mxu0 0.0
        %4974 = vmatprep.subr.mxu0 0.0
        %4975 = vmatpush1.msra.mxu0 0.0
        %4976 = vmatprep.subr.mxu0 0.0
        %4977 = vmatpush1.msra.mxu0 0.0
        %4978 = vmatprep.subr.mxu0 0.0
        %4979 = vmatpush1.msra.mxu0 0.0
        %4980 = vmatprep.subr.mxu0 0.0
        %4981 = vmatpush1.msra.mxu0 0.0
        %4982 = vmatprep.subr.mxu0 0.0
        %4983 = vmatpush1.msra.mxu0 0.0
        %4984 = vmatprep.subr.mxu0 0.0
        %4985 = vmatpush1.msra.mxu0 0.0
        %4986 = vmatprep.subr.mxu0 0.0
        %4987 = vmatpush1.msra.mxu0 0.0
        %4988 = vmatprep.subr.mxu0 0.0
        %4989 = vmatpush1.msra.mxu0 0.0
        %4990 = vmatprep.subr.mxu0 0.0
        %4991 = vmatpush1.msra.mxu0 0.0
        %4992 = vmatprep.subr.mxu0 0.0
        %4993 = vmatpush1.msra.mxu0 0.0
        %4994 = vmatprep.subr.mxu0 0.0
        %4995 = vmatpush1.msra.mxu0 0.0
        %4996 = vmatprep.subr.mxu0 0.0
        %4997 = vmatpush1.msra.mxu0 0.0
        %4998 = vmatprep.mubr.f32.mxu0 0.0
        %4999 = vmatmul.mubr.f32.gmra.mrb[0].mxu0 %v4741
        %v5000 = vpop.f32.mrb[0].mxu0
        %v5001 = vadd.f32 0.0, %v5000
        %v5002 = vpop.f32.mrb[0].mxu0
        %5003 = vmatprep.mubr.f32.mxu0 0.0
        %5004 = vmatmul.mubr.f32.gmra.mrb[0].mxu0 %v4744
        %v5005 = vpop.f32.mrb[0].mxu0
        %v5006 = vadd.f32 0.0, %v5005
        %v5007 = vpop.f32.mrb[0].mxu0
        %5008 = vmatprep.mubr.f32.mxu0 0.0
        %5009 = vmatmul.mubr.f32.gmra.mrb[0].mxu0 %v4747
        %v5010 = vpop.f32.mrb[0].mxu0
        %v5011 = vadd.f32 0.0, %v5010
        %v5012 = vpop.f32.mrb[0].mxu0
        %5013 = vmatprep.mubr.f32.mxu0 0.0
        %5014 = vmatmul.mubr.f32.gmra.mrb[0].mxu0 %v4750
        %v5015 = vpop.f32.mrb[0].mxu0
        %v5016 = vadd.f32 0.0, %v5015
        %v5017 = vpop.f32.mrb[0].mxu0
        %5018 = vdwg.mxu0
        %v5020 = vsel %vm4739, %v5001, 0
        %v5023 = vsel %vm4739, %v5006, 0
        %v5026 = vsel %vm4739, %v5011, 0
        %v5029 = vsel %vm4739, %v5016, 0
        %5031 = vmatprep.subr.mxu0 0.0
        %5032 = vmatpush1.msra.mxu0 %v4735
        %5033 = vmatprep.subr.mxu0 0.0
        %5034 = vmatpush1.msra.mxu0 %v4736
        %5035 = vmatprep.subr.mxu0 0.0
        %5036 = vmatpush1.msra.mxu0 %v4737
        %5037 = vmatprep.subr.mxu0 0.0
        %5038 = vmatpush1.msra.mxu0 %v4738
        %5039 = vmatprep.subr.mxu0 0.0
        %5040 = vmatpush1.msra.mxu0 0.0
        %5041 = vmatprep.subr.mxu0 0.0
        %5042 = vmatpush1.msra.mxu0 0.0
        %5043 = vmatprep.subr.mxu0 0.0
        %5044 = vmatpush1.msra.mxu0 0.0
        %5045 = vmatprep.subr.mxu0 0.0
        %5046 = vmatpush1.msra.mxu0 0.0
        %5047 = vmatprep.subr.mxu0 0.0
        %5048 = vmatpush1.msra.mxu0 0.0
        %5049 = vmatprep.subr.mxu0 0.0
        %5050 = vmatpush1.msra.mxu0 0.0
        %5051 = vmatprep.subr.mxu0 0.0
        %5052 = vmatpush1.msra.mxu0 0.0
        %5053 = vmatprep.subr.mxu0 0.0
        %5054 = vmatpush1.msra.mxu0 0.0
        %5055 = vmatprep.subr.mxu0 0.0
        %5056 = vmatpush1.msra.mxu0 0.0
        %5057 = vmatprep.subr.mxu0 0.0
        %5058 = vmatpush1.msra.mxu0 0.0
        %5059 = vmatprep.subr.mxu0 0.0
        %5060 = vmatpush1.msra.mxu0 0.0
        %5061 = vmatprep.subr.mxu0 0.0
        %5062 = vmatpush1.msra.mxu0 0.0
        %5063 = vmatprep.subr.mxu0 0.0
        %5064 = vmatpush1.msra.mxu0 0.0
        %5065 = vmatprep.subr.mxu0 0.0
        %5066 = vmatpush1.msra.mxu0 0.0
        %5067 = vmatprep.subr.mxu0 0.0
        %5068 = vmatpush1.msra.mxu0 0.0
        %5069 = vmatprep.subr.mxu0 0.0
        %5070 = vmatpush1.msra.mxu0 0.0
        %5071 = vmatprep.subr.mxu0 0.0
        %5072 = vmatpush1.msra.mxu0 0.0
        %5073 = vmatprep.subr.mxu0 0.0
        %5074 = vmatpush1.msra.mxu0 0.0
        %5075 = vmatprep.subr.mxu0 0.0
        %5076 = vmatpush1.msra.mxu0 0.0
        %5077 = vmatprep.subr.mxu0 0.0
        %5078 = vmatpush1.msra.mxu0 0.0
        %5079 = vmatprep.subr.mxu0 0.0
        %5080 = vmatpush1.msra.mxu0 0.0
        %5081 = vmatprep.subr.mxu0 0.0
        %5082 = vmatpush1.msra.mxu0 0.0
        %5083 = vmatprep.subr.mxu0 0.0
        %5084 = vmatpush1.msra.mxu0 0.0
        %5085 = vmatprep.subr.mxu0 0.0
        %5086 = vmatpush1.msra.mxu0 0.0
        %5087 = vmatprep.subr.mxu0 0.0
        %5088 = vmatpush1.msra.mxu0 0.0
        %5089 = vmatprep.subr.mxu0 0.0
        %5090 = vmatpush1.msra.mxu0 0.0
        %5091 = vmatprep.subr.mxu0 0.0
        %5092 = vmatpush1.msra.mxu0 0.0
        %5093 = vmatprep.subr.mxu0 0.0
        %5094 = vmatpush1.msra.mxu0 0.0
        %5095 = vmatprep.mubr.f32.mxu0 0.0
        %5096 = vmatmul.mubr.f32.gmra.mrb[0].mxu0 %v5020
        %v5097 = vpop.f32.mrb[0].mxu0
        %v5098 = vadd.f32 0.0, %v5097
        %v5099 = vpop.f32.mrb[0].mxu0
        %5100 = vmatprep.mubr.f32.mxu0 0.0
        %5101 = vmatmul.mubr.f32.gmra.mrb[0].mxu0 %v5023
        %v5102 = vpop.f32.mrb[0].mxu0
        %v5103 = vadd.f32 0.0, %v5102
        %v5104 = vpop.f32.mrb[0].mxu0
        %5105 = vmatprep.mubr.f32.mxu0 0.0
        %5106 = vmatmul.mubr.f32.gmra.mrb[0].mxu0 %v5026
        %v5107 = vpop.f32.mrb[0].mxu0
        %v5108 = vadd.f32 0.0, %v5107
        %v5109 = vpop.f32.mrb[0].mxu0
        %5110 = vmatprep.mubr.f32.mxu0 0.0
        %5111 = vmatmul.mubr.f32.gmra.mrb[0].mxu0 %v5029
        %v5112 = vpop.f32.mrb[0].mxu0
        %v5113 = vadd.f32 0.0, %v5112
        %v5114 = vpop.f32.mrb[0].mxu0
        %5115 = vdwg.mxu0
        %v5116 = vmul.f32 %v4531, %v4531
        %v5117 = vmul.f32 %v4536, %v4536
        %v5118 = vmul.f32 %v4541, %v4541
        %v5119 = vmul.f32 %v4546, %v4546
        %5120 = vmatprep.subr.mxu0 0.0
        %5121 = vmatpush1.msra.mxu0 %v5116
        %5122 = vmatprep.subr.mxu0 0.0
        %5123 = vmatpush1.msra.mxu0 %v5117
        %5124 = vmatprep.subr.mxu0 0.0
        %5125 = vmatpush1.msra.mxu0 %v5118
        %5126 = vmatprep.subr.mxu0 0.0
        %5127 = vmatpush1.msra.mxu0 %v5119
        %5128 = vmatprep.subr.mxu0 0.0
        %5129 = vmatpush1.msra.mxu0 0.0
        %5130 = vmatprep.subr.mxu0 0.0
        %5131 = vmatpush1.msra.mxu0 0.0
        %5132 = vmatprep.subr.mxu0 0.0
        %5133 = vmatpush1.msra.mxu0 0.0
        %5134 = vmatprep.subr.mxu0 0.0
        %5135 = vmatpush1.msra.mxu0 0.0
        %5136 = vmatprep.subr.mxu0 0.0
        %5137 = vmatpush1.msra.mxu0 0.0
        %5138 = vmatprep.subr.mxu0 0.0
        %5139 = vmatpush1.msra.mxu0 0.0
        %5140 = vmatprep.subr.mxu0 0.0
        %5141 = vmatpush1.msra.mxu0 0.0
        %5142 = vmatprep.subr.mxu0 0.0
        %5143 = vmatpush1.msra.mxu0 0.0
        %5144 = vmatprep.subr.mxu0 0.0
        %5145 = vmatpush1.msra.mxu0 0.0
        %5146 = vmatprep.subr.mxu0 0.0
        %5147 = vmatpush1.msra.mxu0 0.0
        %5148 = vmatprep.subr.mxu0 0.0
        %5149 = vmatpush1.msra.mxu0 0.0
        %5150 = vmatprep.subr.mxu0 0.0
        %5151 = vmatpush1.msra.mxu0 0.0
        %5152 = vmatprep.subr.mxu0 0.0
        %5153 = vmatpush1.msra.mxu0 0.0
        %5154 = vmatprep.subr.mxu0 0.0
        %5155 = vmatpush1.msra.mxu0 0.0
        %5156 = vmatprep.subr.mxu0 0.0
        %5157 = vmatpush1.msra.mxu0 0.0
        %5158 = vmatprep.subr.mxu0 0.0
        %5159 = vmatpush1.msra.mxu0 0.0
        %5160 = vmatprep.subr.mxu0 0.0
        %5161 = vmatpush1.msra.mxu0 0.0
        %5162 = vmatprep.subr.mxu0 0.0
        %5163 = vmatpush1.msra.mxu0 0.0
        %5164 = vmatprep.subr.mxu0 0.0
        %5165 = vmatpush1.msra.mxu0 0.0
        %5166 = vmatprep.subr.mxu0 0.0
        %5167 = vmatpush1.msra.mxu0 0.0
        %5168 = vmatprep.subr.mxu0 0.0
        %5169 = vmatpush1.msra.mxu0 0.0
        %5170 = vmatprep.subr.mxu0 0.0
        %5171 = vmatpush1.msra.mxu0 0.0
        %5172 = vmatprep.subr.mxu0 0.0
        %5173 = vmatpush1.msra.mxu0 0.0
        %5174 = vmatprep.subr.mxu0 0.0
        %5175 = vmatpush1.msra.mxu0 0.0
        %5176 = vmatprep.subr.mxu0 0.0
        %5177 = vmatpush1.msra.mxu0 0.0
        %5178 = vmatprep.subr.mxu0 0.0
        %5179 = vmatpush1.msra.mxu0 0.0
        %5180 = vmatprep.subr.mxu0 0.0
        %5181 = vmatpush1.msra.mxu0 0.0
        %5182 = vmatprep.subr.mxu0 0.0
        %5183 = vmatpush1.msra.mxu0 0.0
        %5184 = vmatprep.mubr.f32.mxu0 0.0
        %5185 = vmatmul.mubr.f32.gmra.mrb[0].mxu0 %v4741
        %v5186 = vpop.f32.mrb[0].mxu0
        %v5187 = vadd.f32 0.0, %v5186
        %v5188 = vpop.f32.mrb[0].mxu0
        %5189 = vmatprep.mubr.f32.mxu0 0.0
        %5190 = vmatmul.mubr.f32.gmra.mrb[0].mxu0 %v4744
        %v5191 = vpop.f32.mrb[0].mxu0
        %v5192 = vadd.f32 0.0, %v5191
        %v5193 = vpop.f32.mrb[0].mxu0
        %5194 = vmatprep.mubr.f32.mxu0 0.0
        %5195 = vmatmul.mubr.f32.gmra.mrb[0].mxu0 %v4747
        %v5196 = vpop.f32.mrb[0].mxu0
        %v5197 = vadd.f32 0.0, %v5196
        %v5198 = vpop.f32.mrb[0].mxu0
        %5199 = vmatprep.mubr.f32.mxu0 0.0
        %5200 = vmatmul.mubr.f32.gmra.mrb[0].mxu0 %v4750
        %v5201 = vpop.f32.mrb[0].mxu0
        %v5202 = vadd.f32 0.0, %v5201
        %v5203 = vpop.f32.mrb[0].mxu0
        %5204 = vdwg.mxu0
        %v5206 = vsel %vm4739, %v5187, 0
        %v5209 = vsel %vm4739, %v5192, 0
        %v5212 = vsel %vm4739, %v5197, 0
        %v5215 = vsel %vm4739, %v5202, 0
        %5217 = vmatprep.subr.mxu0 0.0
        %5218 = vmatpush1.msra.mxu0 %v4735
        %5219 = vmatprep.subr.mxu0 0.0
        %5220 = vmatpush1.msra.mxu0 %v4736
        %5221 = vmatprep.subr.mxu0 0.0
        %5222 = vmatpush1.msra.mxu0 %v4737
        %5223 = vmatprep.subr.mxu0 0.0
        %5224 = vmatpush1.msra.mxu0 %v4738
        %5225 = vmatprep.subr.mxu0 0.0
        %5226 = vmatpush1.msra.mxu0 0.0
        %5227 = vmatprep.subr.mxu0 0.0
        %5228 = vmatpush1.msra.mxu0 0.0
        %5229 = vmatprep.subr.mxu0 0.0
        %5230 = vmatpush1.msra.mxu0 0.0
        %5231 = vmatprep.subr.mxu0 0.0
        %5232 = vmatpush1.msra.mxu0 0.0
        %5233 = vmatprep.subr.mxu0 0.0
        %5234 = vmatpush1.msra.mxu0 0.0
        %5235 = vmatprep.subr.mxu0 0.0
        %5236 = vmatpush1.msra.mxu0 0.0
        %5237 = vmatprep.subr.mxu0 0.0
        %5238 = vmatpush1.msra.mxu0 0.0
        %5239 = vmatprep.subr.mxu0 0.0
        %5240 = vmatpush1.msra.mxu0 0.0
        %5241 = vmatprep.subr.mxu0 0.0
        %5242 = vmatpush1.msra.mxu0 0.0
        %5243 = vmatprep.subr.mxu0 0.0
        %5244 = vmatpush1.msra.mxu0 0.0
        %5245 = vmatprep.subr.mxu0 0.0
        %5246 = vmatpush1.msra.mxu0 0.0
        %5247 = vmatprep.subr.mxu0 0.0
        %5248 = vmatpush1.msra.mxu0 0.0
        %5249 = vmatprep.subr.mxu0 0.0
        %5250 = vmatpush1.msra.mxu0 0.0
        %5251 = vmatprep.subr.mxu0 0.0
        %5252 = vmatpush1.msra.mxu0 0.0
        %5253 = vmatprep.subr.mxu0 0.0
        %5254 = vmatpush1.msra.mxu0 0.0
        %5255 = vmatprep.subr.mxu0 0.0
        %5256 = vmatpush1.msra.mxu0 0.0
        %5257 = vmatprep.subr.mxu0 0.0
        %5258 = vmatpush1.msra.mxu0 0.0
        %5259 = vmatprep.subr.mxu0 0.0
        %5260 = vmatpush1.msra.mxu0 0.0
        %5261 = vmatprep.subr.mxu0 0.0
        %5262 = vmatpush1.msra.mxu0 0.0
        %5263 = vmatprep.subr.mxu0 0.0
        %5264 = vmatpush1.msra.mxu0 0.0
        %5265 = vmatprep.subr.mxu0 0.0
        %5266 = vmatpush1.msra.mxu0 0.0
        %5267 = vmatprep.subr.mxu0 0.0
        %5268 = vmatpush1.msra.mxu0 0.0
        %5269 = vmatprep.subr.mxu0 0.0
        %5270 = vmatpush1.msra.mxu0 0.0
        %5271 = vmatprep.subr.mxu0 0.0
        %5272 = vmatpush1.msra.mxu0 0.0
        %5273 = vmatprep.subr.mxu0 0.0
        %5274 = vmatpush1.msra.mxu0 0.0
        %5275 = vmatprep.subr.mxu0 0.0
        %5276 = vmatpush1.msra.mxu0 0.0
        %5277 = vmatprep.subr.mxu0 0.0
        %5278 = vmatpush1.msra.mxu0 0.0
        %5279 = vmatprep.subr.mxu0 0.0
        %5280 = vmatpush1.msra.mxu0 0.0
        %5281 = vmatprep.mubr.f32.mxu0 0.0
        %5282 = vmatmul.mubr.f32.gmra.mrb[0].mxu0 %v5206
        %v5283 = vpop.f32.mrb[0].mxu0
        %v5284 = vadd.f32 0.0, %v5283
        %v5285 = vpop.f32.mrb[0].mxu0
        %5286 = vmatprep.mubr.f32.mxu0 0.0
        %5287 = vmatmul.mubr.f32.gmra.mrb[0].mxu0 %v5209
        %v5288 = vpop.f32.mrb[0].mxu0
        %v5289 = vadd.f32 0.0, %v5288
        %v5290 = vpop.f32.mrb[0].mxu0
        %5291 = vmatprep.mubr.f32.mxu0 0.0
        %5292 = vmatmul.mubr.f32.gmra.mrb[0].mxu0 %v5212
        %v5293 = vpop.f32.mrb[0].mxu0
        %v5294 = vadd.f32 0.0, %v5293
        %v5295 = vpop.f32.mrb[0].mxu0
        %5296 = vmatprep.mubr.f32.mxu0 0.0
        %5297 = vmatmul.mubr.f32.gmra.mrb[0].mxu0 %v5215
        %v5298 = vpop.f32.mrb[0].mxu0
        %v5299 = vadd.f32 0.0, %v5298
        %v5300 = vpop.f32.mrb[0].mxu0
        %5301 = vdwg.mxu0
        %v5302 = vmul.f32 %v4713, %v4713
        %v5303 = vmul.f32 %v4718, %v4718
        %v5304 = vmul.f32 %v4723, %v4723
        %v5305 = vmul.f32 %v4728, %v4728
        %5306 = vmatprep.subr.mxu0 0.0
        %5307 = vmatpush1.msra.mxu0 %v5302
        %5308 = vmatprep.subr.mxu0 0.0
        %5309 = vmatpush1.msra.mxu0 %v5303
        %5310 = vmatprep.subr.mxu0 0.0
        %5311 = vmatpush1.msra.mxu0 %v5304
        %5312 = vmatprep.subr.mxu0 0.0
        %5313 = vmatpush1.msra.mxu0 %v5305
        %5314 = vmatprep.subr.mxu0 0.0
        %5315 = vmatpush1.msra.mxu0 0.0
        %5316 = vmatprep.subr.mxu0 0.0
        %5317 = vmatpush1.msra.mxu0 0.0
        %5318 = vmatprep.subr.mxu0 0.0
        %5319 = vmatpush1.msra.mxu0 0.0
        %5320 = vmatprep.subr.mxu0 0.0
        %5321 = vmatpush1.msra.mxu0 0.0
        %5322 = vmatprep.subr.mxu0 0.0
        %5323 = vmatpush1.msra.mxu0 0.0
        %5324 = vmatprep.subr.mxu0 0.0
        %5325 = vmatpush1.msra.mxu0 0.0
        %5326 = vmatprep.subr.mxu0 0.0
        %5327 = vmatpush1.msra.mxu0 0.0
        %5328 = vmatprep.subr.mxu0 0.0
        %5329 = vmatpush1.msra.mxu0 0.0
        %5330 = vmatprep.subr.mxu0 0.0
        %5331 = vmatpush1.msra.mxu0 0.0
        %5332 = vmatprep.subr.mxu0 0.0
        %5333 = vmatpush1.msra.mxu0 0.0
        %5334 = vmatprep.subr.mxu0 0.0
        %5335 = vmatpush1.msra.mxu0 0.0
        %5336 = vmatprep.subr.mxu0 0.0
        %5337 = vmatpush1.msra.mxu0 0.0
        %5338 = vmatprep.subr.mxu0 0.0
        %5339 = vmatpush1.msra.mxu0 0.0
        %5340 = vmatprep.subr.mxu0 0.0
        %5341 = vmatpush1.msra.mxu0 0.0
        %5342 = vmatprep.subr.mxu0 0.0
        %5343 = vmatpush1.msra.mxu0 0.0
        %5344 = vmatprep.subr.mxu0 0.0
        %5345 = vmatpush1.msra.mxu0 0.0
        %5346 = vmatprep.subr.mxu0 0.0
        %5347 = vmatpush1.msra.mxu0 0.0
        %5348 = vmatprep.subr.mxu0 0.0
        %5349 = vmatpush1.msra.mxu0 0.0
        %5350 = vmatprep.subr.mxu0 0.0
        %5351 = vmatpush1.msra.mxu0 0.0
        %5352 = vmatprep.subr.mxu0 0.0
        %5353 = vmatpush1.msra.mxu0 0.0
        %5354 = vmatprep.subr.mxu0 0.0
        %5355 = vmatpush1.msra.mxu0 0.0
        %5356 = vmatprep.subr.mxu0 0.0
        %5357 = vmatpush1.msra.mxu0 0.0
        %5358 = vmatprep.subr.mxu0 0.0
        %5359 = vmatpush1.msra.mxu0 0.0
        %5360 = vmatprep.subr.mxu0 0.0
        %5361 = vmatpush1.msra.mxu0 0.0
        %5362 = vmatprep.subr.mxu0 0.0
        %5363 = vmatpush1.msra.mxu0 0.0
        %5364 = vmatprep.subr.mxu0 0.0
        %5365 = vmatpush1.msra.mxu0 0.0
        %5366 = vmatprep.subr.mxu0 0.0
        %5367 = vmatpush1.msra.mxu0 0.0
        %5368 = vmatprep.subr.mxu0 0.0
        %5369 = vmatpush1.msra.mxu0 0.0
        %5370 = vmatprep.mubr.f32.mxu0 0.0
        %5371 = vmatmul.mubr.f32.gmra.mrb[0].mxu0 %v4741
        %v5372 = vpop.f32.mrb[0].mxu0
        %v5373 = vadd.f32 0.0, %v5372
        %v5374 = vpop.f32.mrb[0].mxu0
        %5375 = vmatprep.mubr.f32.mxu0 0.0
        %5376 = vmatmul.mubr.f32.gmra.mrb[0].mxu0 %v4744
        %v5377 = vpop.f32.mrb[0].mxu0
        %v5378 = vadd.f32 0.0, %v5377
        %v5379 = vpop.f32.mrb[0].mxu0
        %5380 = vmatprep.mubr.f32.mxu0 0.0
        %5381 = vmatmul.mubr.f32.gmra.mrb[0].mxu0 %v4747
        %v5382 = vpop.f32.mrb[0].mxu0
        %v5383 = vadd.f32 0.0, %v5382
        %v5384 = vpop.f32.mrb[0].mxu0
        %5385 = vmatprep.mubr.f32.mxu0 0.0
        %5386 = vmatmul.mubr.f32.gmra.mrb[0].mxu0 %v4750
        %v5387 = vpop.f32.mrb[0].mxu0
        %v5388 = vadd.f32 0.0, %v5387
        %v5389 = vpop.f32.mrb[0].mxu0
        %5390 = vdwg.mxu0
        %v5392 = vsel %vm4739, %v5373, 0
        %v5395 = vsel %vm4739, %v5378, 0
        %v5398 = vsel %vm4739, %v5383, 0
        %v5401 = vsel %vm4739, %v5388, 0
        %5403 = vmatprep.subr.mxu0 0.0
        %5404 = vmatpush1.msra.mxu0 %v4735
        %5405 = vmatprep.subr.mxu0 0.0
        %5406 = vmatpush1.msra.mxu0 %v4736
        %5407 = vmatprep.subr.mxu0 0.0
        %5408 = vmatpush1.msra.mxu0 %v4737
        %5409 = vmatprep.subr.mxu0 0.0
        %5410 = vmatpush1.msra.mxu0 %v4738
        %5411 = vmatprep.subr.mxu0 0.0
        %5412 = vmatpush1.msra.mxu0 0.0
        %5413 = vmatprep.subr.mxu0 0.0
        %5414 = vmatpush1.msra.mxu0 0.0
        %5415 = vmatprep.subr.mxu0 0.0
        %5416 = vmatpush1.msra.mxu0 0.0
        %5417 = vmatprep.subr.mxu0 0.0
        %5418 = vmatpush1.msra.mxu0 0.0
        %5419 = vmatprep.subr.mxu0 0.0
        %5420 = vmatpush1.msra.mxu0 0.0
        %5421 = vmatprep.subr.mxu0 0.0
        %5422 = vmatpush1.msra.mxu0 0.0
        %5423 = vmatprep.subr.mxu0 0.0
        %5424 = vmatpush1.msra.mxu0 0.0
        %5425 = vmatprep.subr.mxu0 0.0
        %5426 = vmatpush1.msra.mxu0 0.0
        %5427 = vmatprep.subr.mxu0 0.0
        %5428 = vmatpush1.msra.mxu0 0.0
        %5429 = vmatprep.subr.mxu0 0.0
        %5430 = vmatpush1.msra.mxu0 0.0
        %5431 = vmatprep.subr.mxu0 0.0
        %5432 = vmatpush1.msra.mxu0 0.0
        %5433 = vmatprep.subr.mxu0 0.0
        %5434 = vmatpush1.msra.mxu0 0.0
        %5435 = vmatprep.subr.mxu0 0.0
        %5436 = vmatpush1.msra.mxu0 0.0
        %5437 = vmatprep.subr.mxu0 0.0
        %5438 = vmatpush1.msra.mxu0 0.0
        %5439 = vmatprep.subr.mxu0 0.0
        %5440 = vmatpush1.msra.mxu0 0.0
        %5441 = vmatprep.subr.mxu0 0.0
        %5442 = vmatpush1.msra.mxu0 0.0
        %5443 = vmatprep.subr.mxu0 0.0
        %5444 = vmatpush1.msra.mxu0 0.0
        %5445 = vmatprep.subr.mxu0 0.0
        %5446 = vmatpush1.msra.mxu0 0.0
        %5447 = vmatprep.subr.mxu0 0.0
        %5448 = vmatpush1.msra.mxu0 0.0
        %5449 = vmatprep.subr.mxu0 0.0
        %5450 = vmatpush1.msra.mxu0 0.0
        %5451 = vmatprep.subr.mxu0 0.0
        %5452 = vmatpush1.msra.mxu0 0.0
        %5453 = vmatprep.subr.mxu0 0.0
        %5454 = vmatpush1.msra.mxu0 0.0
        %5455 = vmatprep.subr.mxu0 0.0
        %5456 = vmatpush1.msra.mxu0 0.0
        %5457 = vmatprep.subr.mxu0 0.0
        %5458 = vmatpush1.msra.mxu0 0.0
        %5459 = vmatprep.subr.mxu0 0.0
        %5460 = vmatpush1.msra.mxu0 0.0
        %5461 = vmatprep.subr.mxu0 0.0
        %5462 = vmatpush1.msra.mxu0 0.0
        %5463 = vmatprep.subr.mxu0 0.0
        %5464 = vmatpush1.msra.mxu0 0.0
        %5465 = vmatprep.subr.mxu0 0.0
        %5466 = vmatpush1.msra.mxu0 0.0
        %5467 = vmatprep.mubr.f32.mxu0 0.0
        %5468 = vmatmul.mubr.f32.gmra.mrb[0].mxu0 %v5392
        %v5469 = vpop.f32.mrb[0].mxu0
        %v5470 = vadd.f32 0.0, %v5469
        %v5471 = vpop.f32.mrb[0].mxu0
        %5472 = vmatprep.mubr.f32.mxu0 0.0
        %5473 = vmatmul.mubr.f32.gmra.mrb[0].mxu0 %v5395
        %v5474 = vpop.f32.mrb[0].mxu0
        %v5475 = vadd.f32 0.0, %v5474
        %v5476 = vpop.f32.mrb[0].mxu0
        %5477 = vmatprep.mubr.f32.mxu0 0.0
        %5478 = vmatmul.mubr.f32.gmra.mrb[0].mxu0 %v5398
        %v5479 = vpop.f32.mrb[0].mxu0
        %v5480 = vadd.f32 0.0, %v5479
        %v5481 = vpop.f32.mrb[0].mxu0
        %5482 = vmatprep.mubr.f32.mxu0 0.0
        %5483 = vmatmul.mubr.f32.gmra.mrb[0].mxu0 %v5401
        %v5484 = vpop.f32.mrb[0].mxu0
        %v5485 = vadd.f32 0.0, %v5484
        %v5486 = vpop.f32.mrb[0].mxu0
        %5487 = vdwg.mxu0
        %v5488 = vmul.f32 %v4531, %v4713
        %v5489 = vmul.f32 %v4536, %v4718
        %v5490 = vmul.f32 %v4541, %v4723
        %v5491 = vmul.f32 %v4546, %v4728
        %5492 = vmatprep.subr.mxu0 0.0
        %5493 = vmatpush1.msra.mxu0 %v5488
        %5494 = vmatprep.subr.mxu0 0.0
        %5495 = vmatpush1.msra.mxu0 %v5489
        %5496 = vmatprep.subr.mxu0 0.0
        %5497 = vmatpush1.msra.mxu0 %v5490
        %5498 = vmatprep.subr.mxu0 0.0
        %5499 = vmatpush1.msra.mxu0 %v5491
        %5500 = vmatprep.subr.mxu0 0.0
        %5501 = vmatpush1.msra.mxu0 0.0
        %5502 = vmatprep.subr.mxu0 0.0
        %5503 = vmatpush1.msra.mxu0 0.0
        %5504 = vmatprep.subr.mxu0 0.0
        %5505 = vmatpush1.msra.mxu0 0.0
        %5506 = vmatprep.subr.mxu0 0.0
        %5507 = vmatpush1.msra.mxu0 0.0
        %5508 = vmatprep.subr.mxu0 0.0
        %5509 = vmatpush1.msra.mxu0 0.0
        %5510 = vmatprep.subr.mxu0 0.0
        %5511 = vmatpush1.msra.mxu0 0.0
        %5512 = vmatprep.subr.mxu0 0.0
        %5513 = vmatpush1.msra.mxu0 0.0
        %5514 = vmatprep.subr.mxu0 0.0
        %5515 = vmatpush1.msra.mxu0 0.0
        %5516 = vmatprep.subr.mxu0 0.0
        %5517 = vmatpush1.msra.mxu0 0.0
        %5518 = vmatprep.subr.mxu0 0.0
        %5519 = vmatpush1.msra.mxu0 0.0
        %5520 = vmatprep.subr.mxu0 0.0
        %5521 = vmatpush1.msra.mxu0 0.0
        %5522 = vmatprep.subr.mxu0 0.0
        %5523 = vmatpush1.msra.mxu0 0.0
        %5524 = vmatprep.subr.mxu0 0.0
        %5525 = vmatpush1.msra.mxu0 0.0
        %5526 = vmatprep.subr.mxu0 0.0
        %5527 = vmatpush1.msra.mxu0 0.0
        %5528 = vmatprep.subr.mxu0 0.0
        %5529 = vmatpush1.msra.mxu0 0.0
        %5530 = vmatprep.subr.mxu0 0.0
        %5531 = vmatpush1.msra.mxu0 0.0
        %5532 = vmatprep.subr.mxu0 0.0
        %5533 = vmatpush1.msra.mxu0 0.0
        %5534 = vmatprep.subr.mxu0 0.0
        %5535 = vmatpush1.msra.mxu0 0.0
        %5536 = vmatprep.subr.mxu0 0.0
        %5537 = vmatpush1.msra.mxu0 0.0
        %5538 = vmatprep.subr.mxu0 0.0
        %5539 = vmatpush1.msra.mxu0 0.0
        %5540 = vmatprep.subr.mxu0 0.0
        %5541 = vmatpush1.msra.mxu0 0.0
        %5542 = vmatprep.subr.mxu0 0.0
        %5543 = vmatpush1.msra.mxu0 0.0
        %5544 = vmatprep.subr.mxu0 0.0
        %5545 = vmatpush1.msra.mxu0 0.0
        %5546 = vmatprep.subr.mxu0 0.0
        %5547 = vmatpush1.msra.mxu0 0.0
        %5548 = vmatprep.subr.mxu0 0.0
        %5549 = vmatpush1.msra.mxu0 0.0
        %5550 = vmatprep.subr.mxu0 0.0
        %5551 = vmatpush1.msra.mxu0 0.0
        %5552 = vmatprep.subr.mxu0 0.0
        %5553 = vmatpush1.msra.mxu0 0.0
        %5554 = vmatprep.subr.mxu0 0.0
        %5555 = vmatpush1.msra.mxu0 0.0
        %5556 = vmatprep.mubr.f32.mxu0 0.0
        %5557 = vmatmul.mubr.f32.gmra.mrb[0].mxu0 %v4741
        %v5558 = vpop.f32.mrb[0].mxu0
        %v5559 = vadd.f32 0.0, %v5558
        %v5560 = vpop.f32.mrb[0].mxu0
        %5561 = vmatprep.mubr.f32.mxu0 0.0
        %5562 = vmatmul.mubr.f32.gmra.mrb[0].mxu0 %v4744
        %v5563 = vpop.f32.mrb[0].mxu0
        %v5564 = vadd.f32 0.0, %v5563
        %v5565 = vpop.f32.mrb[0].mxu0
        %5566 = vmatprep.mubr.f32.mxu0 0.0
        %5567 = vmatmul.mubr.f32.gmra.mrb[0].mxu0 %v4747
        %v5568 = vpop.f32.mrb[0].mxu0
        %v5569 = vadd.f32 0.0, %v5568
        %v5570 = vpop.f32.mrb[0].mxu0
        %5571 = vmatprep.mubr.f32.mxu0 0.0
        %5572 = vmatmul.mubr.f32.gmra.mrb[0].mxu0 %v4750
        %v5573 = vpop.f32.mrb[0].mxu0
        %v5574 = vadd.f32 0.0, %v5573
        %v5575 = vpop.f32.mrb[0].mxu0
        %5576 = vdwg.mxu0
        %v5578 = vsel %vm4739, %v5559, 0
        %v5581 = vsel %vm4739, %v5564, 0
        %v5584 = vsel %vm4739, %v5569, 0
        %v5587 = vsel %vm4739, %v5574, 0
        %5589 = vmatprep.subr.mxu0 0.0
        %5590 = vmatpush1.msra.mxu0 %v4735
        %5591 = vmatprep.subr.mxu0 0.0
        %5592 = vmatpush1.msra.mxu0 %v4736
        %5593 = vmatprep.subr.mxu0 0.0
        %5594 = vmatpush1.msra.mxu0 %v4737
        %5595 = vmatprep.subr.mxu0 0.0
        %5596 = vmatpush1.msra.mxu0 %v4738
        %5597 = vmatprep.subr.mxu0 0.0
        %5598 = vmatpush1.msra.mxu0 0.0
        %5599 = vmatprep.subr.mxu0 0.0
        %5600 = vmatpush1.msra.mxu0 0.0
        %5601 = vmatprep.subr.mxu0 0.0
        %5602 = vmatpush1.msra.mxu0 0.0
        %5603 = vmatprep.subr.mxu0 0.0
        %5604 = vmatpush1.msra.mxu0 0.0
        %5605 = vmatprep.subr.mxu0 0.0
        %5606 = vmatpush1.msra.mxu0 0.0
        %5607 = vmatprep.subr.mxu0 0.0
        %5608 = vmatpush1.msra.mxu0 0.0
        %5609 = vmatprep.subr.mxu0 0.0
        %5610 = vmatpush1.msra.mxu0 0.0
        %5611 = vmatprep.subr.mxu0 0.0
        %5612 = vmatpush1.msra.mxu0 0.0
        %5613 = vmatprep.subr.mxu0 0.0
        %5614 = vmatpush1.msra.mxu0 0.0
        %5615 = vmatprep.subr.mxu0 0.0
        %5616 = vmatpush1.msra.mxu0 0.0
        %5617 = vmatprep.subr.mxu0 0.0
        %5618 = vmatpush1.msra.mxu0 0.0
        %5619 = vmatprep.subr.mxu0 0.0
        %5620 = vmatpush1.msra.mxu0 0.0
        %5621 = vmatprep.subr.mxu0 0.0
        %5622 = vmatpush1.msra.mxu0 0.0
        %5623 = vmatprep.subr.mxu0 0.0
        %5624 = vmatpush1.msra.mxu0 0.0
        %5625 = vmatprep.subr.mxu0 0.0
        %5626 = vmatpush1.msra.mxu0 0.0
        %5627 = vmatprep.subr.mxu0 0.0
        %5628 = vmatpush1.msra.mxu0 0.0
        %5629 = vmatprep.subr.mxu0 0.0
        %5630 = vmatpush1.msra.mxu0 0.0
        %5631 = vmatprep.subr.mxu0 0.0
        %5632 = vmatpush1.msra.mxu0 0.0
        %5633 = vmatprep.subr.mxu0 0.0
        %5634 = vmatpush1.msra.mxu0 0.0
        %5635 = vmatprep.subr.mxu0 0.0
        %5636 = vmatpush1.msra.mxu0 0.0
        %5637 = vmatprep.subr.mxu0 0.0
        %5638 = vmatpush1.msra.mxu0 0.0
        %5639 = vmatprep.subr.mxu0 0.0
        %5640 = vmatpush1.msra.mxu0 0.0
        %5641 = vmatprep.subr.mxu0 0.0
        %5642 = vmatpush1.msra.mxu0 0.0
        %5643 = vmatprep.subr.mxu0 0.0
        %5644 = vmatpush1.msra.mxu0 0.0
        %5645 = vmatprep.subr.mxu0 0.0
        %5646 = vmatpush1.msra.mxu0 0.0
        %5647 = vmatprep.subr.mxu0 0.0
        %5648 = vmatpush1.msra.mxu0 0.0
        %5649 = vmatprep.subr.mxu0 0.0
        %5650 = vmatpush1.msra.mxu0 0.0
        %5651 = vmatprep.subr.mxu0 0.0
        %5652 = vmatpush1.msra.mxu0 0.0
        %5653 = vmatprep.mubr.f32.mxu0 0.0
        %5654 = vmatmul.mubr.f32.gmra.mrb[0].mxu0 %v5578
        %v5655 = vpop.f32.mrb[0].mxu0
        %v5656 = vadd.f32 0.0, %v5655
        %v5657 = vpop.f32.mrb[0].mxu0
        %5658 = vmatprep.mubr.f32.mxu0 0.0
        %5659 = vmatmul.mubr.f32.gmra.mrb[0].mxu0 %v5581
        %v5660 = vpop.f32.mrb[0].mxu0
        %v5661 = vadd.f32 0.0, %v5660
        %v5662 = vpop.f32.mrb[0].mxu0
        %5663 = vmatprep.mubr.f32.mxu0 0.0
        %5664 = vmatmul.mubr.f32.gmra.mrb[0].mxu0 %v5584
        %v5665 = vpop.f32.mrb[0].mxu0
        %v5666 = vadd.f32 0.0, %v5665
        %v5667 = vpop.f32.mrb[0].mxu0
        %5668 = vmatprep.mubr.f32.mxu0 0.0
        %5669 = vmatmul.mubr.f32.gmra.mrb[0].mxu0 %v5587
        %v5670 = vpop.f32.mrb[0].mxu0
        %v5671 = vadd.f32 0.0, %v5670
        %v5672 = vpop.f32.mrb[0].mxu0
        %5673 = vdwg.mxu0
        %v5674 = vmul.f32 %v4916, %v4916
        %v5675 = vmul.f32 %v4921, %v4921
        %v5676 = vmul.f32 %v4926, %v4926
        %v5677 = vmul.f32 %v4931, %v4931
        %v5678 = vmul.f32 %v5098, %v5098
        %v5679 = vmul.f32 %v5103, %v5103
        %v5680 = vmul.f32 %v5108, %v5108
        %v5681 = vmul.f32 %v5113, %v5113
        %v5682 = vmul.f32 %v4916, %v5098
        %v5683 = vmul.f32 %v4921, %v5103
        %v5684 = vmul.f32 %v4926, %v5108
        %v5685 = vmul.f32 %v4931, %v5113
        %v5686 = vsub.f32 %v5284, %v5674
        %v5687 = vsub.f32 %v5289, %v5675
        %v5688 = vsub.f32 %v5294, %v5676
        %v5689 = vsub.f32 %v5299, %v5677
        %v5690 = vsub.f32 %v5470, %v5678
        %v5691 = vsub.f32 %v5475, %v5679
        %v5692 = vsub.f32 %v5480, %v5680
        %v5693 = vsub.f32 %v5485, %v5681
        %v5694 = vsub.f32 %v5656, %v5682
        %v5695 = vsub.f32 %v5661, %v5683
        %v5696 = vsub.f32 %v5666, %v5684
        %v5697 = vsub.f32 %v5671, %v5685
        %v5698 = vmul.f32 %v5694, 2.0
        %v5699 = vmul.f32 %v5695, 2.0
        %v5700 = vmul.f32 %v5696, 2.0
        %v5701 = vmul.f32 %v5697, 2.0
        %v5702 = vadd.f32 %v5698, 0.0009
        %v5703 = vadd.f32 %v5699, 0.0009
        %v5704 = vadd.f32 %v5700, 0.0009
        %v5705 = vadd.f32 %v5701, 0.0009
        %v5706 = vadd.f32 %v5686, %v5690
        %v5707 = vadd.f32 %v5687, %v5691
        %v5708 = vadd.f32 %v5688, %v5692
        %v5709 = vadd.f32 %v5689, %v5693
        %v5710 = vadd.f32 %v5706, 0.0009
        %v5711 = vadd.f32 %v5707, 0.0009
        %v5712 = vadd.f32 %v5708, 0.0009
        %v5713 = vadd.f32 %v5709, 0.0009
        %v5714 = vrcp.pop %v5710
        %v5715 = vmul.f32 %v5702, %v5714
        %v5716 = vrcp.pop %v5711
        %v5717 = vmul.f32 %v5703, %v5716
        %v5718 = vrcp.pop %v5712
        %v5719 = vmul.f32 %v5704, %v5718
        %v5720 = vrcp.pop %v5713
        %v5721 = vmul.f32 %v5705, %v5720
        %v5722 = vsel %vm4739, %v5715, 0.0
        %5723 = vadd.xlane.f32.xlu0 %v5722
        %v5724 = vpop.xlane.xlu0 %5723
        %v5725 = vsel %vm4739, %v5717, 0.0
        %5726 = vadd.xlane.f32.xlu0 %v5725
        %v5727 = vpop.xlane.xlu0 %5726
        %v5728 = vsel %vm4739, %v5719, 0.0
        %5729 = vadd.xlane.f32.xlu0 %v5728
        %v5730 = vpop.xlane.xlu0 %5729
        %v5731 = vsel %vm4739, %v5721, 0.0
        %5732 = vadd.xlane.f32.xlu0 %v5731
        %v5733 = vpop.xlane.xlu0 %5732
        %v5734 = vadd.f32 %v5724, %v5727
        %v5735 = vadd.f32 %v5734, %v5730
        %v5736 = vadd.f32 %v5735, %v5733
        %v5737 = vrot.slane %v5736, 4
        %v5738 = vadd.f32 %v5736, %v5737
        %v5739 = vrot.slane %v5738, 2
        %v5740 = vadd.f32 %v5738, %v5739
        %v5741 = vrot.slane %v5740, 1
        %v5742 = vadd.f32 %v5740, %v5741
        %v5743 = vmul.f32 %v5742, 0.0009765625
        %v5744 = vadd.f32 %v5743, 1.0
        %v5745 = vmul.f32 %v5744, 0.5
        %v5746 = vmax.f32 %v5745, 1e-12
        %v5747 = vlog2.pop %v5746
        %v5748 = vmul.f32 %v5747, 0.6931472
        %v5749 = vmul.f32 %v5748, 0.2856
        %v5750 = vmul.f32 %v5749, 1.442695
        %v5751 = vpow.pop %v5750
        %v5752 = vmul.f32 %v4342, %v5751
        %v5753 = vld [vmem:[#allocation16] sm:$0xff]
        %v5754 = vld [vmem:[#allocation16 + $0x8] sm:$0xff]
        %v5755 = vld [vmem:[%s17] sm:$0xff]
        %v5756 = vld [vmem:[%s17 + $0x8] sm:$0xff]
        %v5757 = vld [vmem:[%s17 + $0x10] sm:$0xff]
        %v5758 = vld [vmem:[%s17 + $0x18] sm:$0xff]
        %v5760 = vsel %vm4739, %v5753, 0
        %v5763 = vsel %vm4739, %v5754, 0
        %5765 = vmatprep.subr.mxu0 0.0
        %5766 = vmatpush1.msra.mxu0 %v4531
        %5767 = vmatprep.subr.mxu0 0.0
        %5768 = vmatpush1.msra.mxu0 %v4536
        %5769 = vmatprep.subr.mxu0 0.0
        %5770 = vmatpush1.msra.mxu0 %v4541
        %5771 = vmatprep.subr.mxu0 0.0
        %5772 = vmatpush1.msra.mxu0 %v4546
        %5773 = vmatprep.subr.mxu0 0.0
        %5774 = vmatpush1.msra.mxu0 0.0
        %5775 = vmatprep.subr.mxu0 0.0
        %5776 = vmatpush1.msra.mxu0 0.0
        %5777 = vmatprep.subr.mxu0 0.0
        %5778 = vmatpush1.msra.mxu0 0.0
        %5779 = vmatprep.subr.mxu0 0.0
        %5780 = vmatpush1.msra.mxu0 0.0
        %5781 = vmatprep.subr.mxu0 0.0
        %5782 = vmatpush1.msra.mxu0 0.0
        %5783 = vmatprep.subr.mxu0 0.0
        %5784 = vmatpush1.msra.mxu0 0.0
        %5785 = vmatprep.subr.mxu0 0.0
        %5786 = vmatpush1.msra.mxu0 0.0
        %5787 = vmatprep.subr.mxu0 0.0
        %5788 = vmatpush1.msra.mxu0 0.0
        %5789 = vmatprep.subr.mxu0 0.0
        %5790 = vmatpush1.msra.mxu0 0.0
        %5791 = vmatprep.subr.mxu0 0.0
        %5792 = vmatpush1.msra.mxu0 0.0
        %5793 = vmatprep.subr.mxu0 0.0
        %5794 = vmatpush1.msra.mxu0 0.0
        %5795 = vmatprep.subr.mxu0 0.0
        %5796 = vmatpush1.msra.mxu0 0.0
        %5797 = vmatprep.subr.mxu0 0.0
        %5798 = vmatpush1.msra.mxu0 0.0
        %5799 = vmatprep.subr.mxu0 0.0
        %5800 = vmatpush1.msra.mxu0 0.0
        %5801 = vmatprep.subr.mxu0 0.0
        %5802 = vmatpush1.msra.mxu0 0.0
        %5803 = vmatprep.subr.mxu0 0.0
        %5804 = vmatpush1.msra.mxu0 0.0
        %5805 = vmatprep.subr.mxu0 0.0
        %5806 = vmatpush1.msra.mxu0 0.0
        %5807 = vmatprep.subr.mxu0 0.0
        %5808 = vmatpush1.msra.mxu0 0.0
        %5809 = vmatprep.subr.mxu0 0.0
        %5810 = vmatpush1.msra.mxu0 0.0
        %5811 = vmatprep.subr.mxu0 0.0
        %5812 = vmatpush1.msra.mxu0 0.0
        %5813 = vmatprep.subr.mxu0 0.0
        %5814 = vmatpush1.msra.mxu0 0.0
        %5815 = vmatprep.subr.mxu0 0.0
        %5816 = vmatpush1.msra.mxu0 0.0
        %5817 = vmatprep.subr.mxu0 0.0
        %5818 = vmatpush1.msra.mxu0 0.0
        %5819 = vmatprep.subr.mxu0 0.0
        %5820 = vmatpush1.msra.mxu0 0.0
        %5821 = vmatprep.subr.mxu0 0.0
        %5822 = vmatpush1.msra.mxu0 0.0
        %5823 = vmatprep.subr.mxu0 0.0
        %5824 = vmatpush1.msra.mxu0 0.0
        %5825 = vmatprep.subr.mxu0 0.0
        %5826 = vmatpush1.msra.mxu0 0.0
        %5827 = vmatprep.subr.mxu0 0.0
        %5828 = vmatpush1.msra.mxu0 0.0
        %5829 = vmatprep.mubr.f32.mxu0 0.0
        %5830 = vmatmul.mubr.f32.gmra.mrb[0].mxu0 %v5760
        %v5831 = vpop.f32.mrb[0].mxu0
        %v5832 = vadd.f32 0.0, %v5831
        %v5833 = vpop.f32.mrb[0].mxu0
        %5834 = vmatprep.mubr.f32.mxu0 0.0
        %5835 = vmatmul.mubr.f32.gmra.mrb[0].mxu0 %v5763
        %v5836 = vpop.f32.mrb[0].mxu0
        %v5837 = vadd.f32 0.0, %v5836
        %v5838 = vpop.f32.mrb[0].mxu0
        %5839 = vdwg.mxu0
        %v5841 = vsel %vm4739, %v5832, 0
        %v5844 = vsel %vm4739, %v5837, 0
        %5846 = vmatprep.subr.mxu0 0.0
        %5847 = vmatpush1.msra.mxu0 %v5755
        %5848 = vmatprep.subr.mxu0 0.0
        %5849 = vmatpush1.msra.mxu0 %v5756
        %5850 = vmatprep.subr.mxu0 0.0
        %5851 = vmatpush1.msra.mxu0 %v5757
        %5852 = vmatprep.subr.mxu0 0.0
        %5853 = vmatpush1.msra.mxu0 %v5758
        %5854 = vmatprep.subr.mxu0 0.0
        %5855 = vmatpush1.msra.mxu0 0.0
        %5856 = vmatprep.subr.mxu0 0.0
        %5857 = vmatpush1.msra.mxu0 0.0
        %5858 = vmatprep.subr.mxu0 0.0
        %5859 = vmatpush1.msra.mxu0 0.0
        %5860 = vmatprep.subr.mxu0 0.0
        %5861 = vmatpush1.msra.mxu0 0.0
        %5862 = vmatprep.subr.mxu0 0.0
        %5863 = vmatpush1.msra.mxu0 0.0
        %5864 = vmatprep.subr.mxu0 0.0
        %5865 = vmatpush1.msra.mxu0 0.0
        %5866 = vmatprep.subr.mxu0 0.0
        %5867 = vmatpush1.msra.mxu0 0.0
        %5868 = vmatprep.subr.mxu0 0.0
        %5869 = vmatpush1.msra.mxu0 0.0
        %5870 = vmatprep.subr.mxu0 0.0
        %5871 = vmatpush1.msra.mxu0 0.0
        %5872 = vmatprep.subr.mxu0 0.0
        %5873 = vmatpush1.msra.mxu0 0.0
        %5874 = vmatprep.subr.mxu0 0.0
        %5875 = vmatpush1.msra.mxu0 0.0
        %5876 = vmatprep.subr.mxu0 0.0
        %5877 = vmatpush1.msra.mxu0 0.0
        %5878 = vmatprep.subr.mxu0 0.0
        %5879 = vmatpush1.msra.mxu0 0.0
        %5880 = vmatprep.subr.mxu0 0.0
        %5881 = vmatpush1.msra.mxu0 0.0
        %5882 = vmatprep.subr.mxu0 0.0
        %5883 = vmatpush1.msra.mxu0 0.0
        %5884 = vmatprep.subr.mxu0 0.0
        %5885 = vmatpush1.msra.mxu0 0.0
        %5886 = vmatprep.subr.mxu0 0.0
        %5887 = vmatpush1.msra.mxu0 0.0
        %5888 = vmatprep.subr.mxu0 0.0
        %5889 = vmatpush1.msra.mxu0 0.0
        %5890 = vmatprep.subr.mxu0 0.0
        %5891 = vmatpush1.msra.mxu0 0.0
        %5892 = vmatprep.subr.mxu0 0.0
        %5893 = vmatpush1.msra.mxu0 0.0
        %5894 = vmatprep.subr.mxu0 0.0
        %5895 = vmatpush1.msra.mxu0 0.0
        %5896 = vmatprep.subr.mxu0 0.0
        %5897 = vmatpush1.msra.mxu0 0.0
        %5898 = vmatprep.subr.mxu0 0.0
        %5899 = vmatpush1.msra.mxu0 0.0
        %5900 = vmatprep.subr.mxu0 0.0
        %5901 = vmatpush1.msra.mxu0 0.0
        %5902 = vmatprep.subr.mxu0 0.0
        %5903 = vmatpush1.msra.mxu0 0.0
        %5904 = vmatprep.subr.mxu0 0.0
        %5905 = vmatpush1.msra.mxu0 0.0
        %5906 = vmatprep.subr.mxu0 0.0
        %5907 = vmatpush1.msra.mxu0 0.0
        %5908 = vmatprep.subr.mxu0 0.0
        %5909 = vmatpush1.msra.mxu0 0.0
        %5910 = vmatprep.mubr.f32.mxu0 0.0
        %5911 = vmatmul.mubr.f32.gmra.mrb[0].mxu0 %v5841
        %v5912 = vpop.f32.mrb[0].mxu0
        %v5913 = vadd.f32 0.0, %v5912
        %v5914 = vpop.f32.mrb[0].mxu0
        %5915 = vmatprep.mubr.f32.mxu0 0.0
        %5916 = vmatmul.mubr.f32.gmra.mrb[0].mxu0 %v5844
        %v5917 = vpop.f32.mrb[0].mxu0
        %v5918 = vadd.f32 0.0, %v5917
        %v5919 = vpop.f32.mrb[0].mxu0
        %5920 = vdwg.mxu0
        %5921 = vmatprep.subr.mxu0 0.0
        %5922 = vmatpush1.msra.mxu0 %v4713
        %5923 = vmatprep.subr.mxu0 0.0
        %5924 = vmatpush1.msra.mxu0 %v4718
        %5925 = vmatprep.subr.mxu0 0.0
        %5926 = vmatpush1.msra.mxu0 %v4723
        %5927 = vmatprep.subr.mxu0 0.0
        %5928 = vmatpush1.msra.mxu0 %v4728
        %5929 = vmatprep.subr.mxu0 0.0
        %5930 = vmatpush1.msra.mxu0 0.0
        %5931 = vmatprep.subr.mxu0 0.0
        %5932 = vmatpush1.msra.mxu0 0.0
        %5933 = vmatprep.subr.mxu0 0.0
        %5934 = vmatpush1.msra.mxu0 0.0
        %5935 = vmatprep.subr.mxu0 0.0
        %5936 = vmatpush1.msra.mxu0 0.0
        %5937 = vmatprep.subr.mxu0 0.0
        %5938 = vmatpush1.msra.mxu0 0.0
        %5939 = vmatprep.subr.mxu0 0.0
        %5940 = vmatpush1.msra.mxu0 0.0
        %5941 = vmatprep.subr.mxu0 0.0
        %5942 = vmatpush1.msra.mxu0 0.0
        %5943 = vmatprep.subr.mxu0 0.0
        %5944 = vmatpush1.msra.mxu0 0.0
        %5945 = vmatprep.subr.mxu0 0.0
        %5946 = vmatpush1.msra.mxu0 0.0
        %5947 = vmatprep.subr.mxu0 0.0
        %5948 = vmatpush1.msra.mxu0 0.0
        %5949 = vmatprep.subr.mxu0 0.0
        %5950 = vmatpush1.msra.mxu0 0.0
        %5951 = vmatprep.subr.mxu0 0.0
        %5952 = vmatpush1.msra.mxu0 0.0
        %5953 = vmatprep.subr.mxu0 0.0
        %5954 = vmatpush1.msra.mxu0 0.0
        %5955 = vmatprep.subr.mxu0 0.0
        %5956 = vmatpush1.msra.mxu0 0.0
        %5957 = vmatprep.subr.mxu0 0.0
        %5958 = vmatpush1.msra.mxu0 0.0
        %5959 = vmatprep.subr.mxu0 0.0
        %5960 = vmatpush1.msra.mxu0 0.0
        %5961 = vmatprep.subr.mxu0 0.0
        %5962 = vmatpush1.msra.mxu0 0.0
        %5963 = vmatprep.subr.mxu0 0.0
        %5964 = vmatpush1.msra.mxu0 0.0
        %5965 = vmatprep.subr.mxu0 0.0
        %5966 = vmatpush1.msra.mxu0 0.0
        %5967 = vmatprep.subr.mxu0 0.0
        %5968 = vmatpush1.msra.mxu0 0.0
        %5969 = vmatprep.subr.mxu0 0.0
        %5970 = vmatpush1.msra.mxu0 0.0
        %5971 = vmatprep.subr.mxu0 0.0
        %5972 = vmatpush1.msra.mxu0 0.0
        %5973 = vmatprep.subr.mxu0 0.0
        %5974 = vmatpush1.msra.mxu0 0.0
        %5975 = vmatprep.subr.mxu0 0.0
        %5976 = vmatpush1.msra.mxu0 0.0
        %5977 = vmatprep.subr.mxu0 0.0
        %5978 = vmatpush1.msra.mxu0 0.0
        %5979 = vmatprep.subr.mxu0 0.0
        %5980 = vmatpush1.msra.mxu0 0.0
        %5981 = vmatprep.subr.mxu0 0.0
        %5982 = vmatpush1.msra.mxu0 0.0
        %5983 = vmatprep.subr.mxu0 0.0
        %5984 = vmatpush1.msra.mxu0 0.0
        %5985 = vmatprep.mubr.f32.mxu0 0.0
        %5986 = vmatmul.mubr.f32.gmra.mrb[0].mxu0 %v5760
        %v5987 = vpop.f32.mrb[0].mxu0
        %v5988 = vadd.f32 0.0, %v5987
        %v5989 = vpop.f32.mrb[0].mxu0
        %5990 = vmatprep.mubr.f32.mxu0 0.0
        %5991 = vmatmul.mubr.f32.gmra.mrb[0].mxu0 %v5763
        %v5992 = vpop.f32.mrb[0].mxu0
        %v5993 = vadd.f32 0.0, %v5992
        %v5994 = vpop.f32.mrb[0].mxu0
        %5995 = vdwg.mxu0
        %v5997 = vsel %vm4739, %v5988, 0
        %v6000 = vsel %vm4739, %v5993, 0
        %6002 = vmatprep.subr.mxu0 0.0
        %6003 = vmatpush1.msra.mxu0 %v5755
        %6004 = vmatprep.subr.mxu0 0.0
        %6005 = vmatpush1.msra.mxu0 %v5756
        %6006 = vmatprep.subr.mxu0 0.0
        %6007 = vmatpush1.msra.mxu0 %v5757
        %6008 = vmatprep.subr.mxu0 0.0
        %6009 = vmatpush1.msra.mxu0 %v5758
        %6010 = vmatprep.subr.mxu0 0.0
        %6011 = vmatpush1.msra.mxu0 0.0
        %6012 = vmatprep.subr.mxu0 0.0
        %6013 = vmatpush1.msra.mxu0 0.0
        %6014 = vmatprep.subr.mxu0 0.0
        %6015 = vmatpush1.msra.mxu0 0.0
        %6016 = vmatprep.subr.mxu0 0.0
        %6017 = vmatpush1.msra.mxu0 0.0
        %6018 = vmatprep.subr.mxu0 0.0
        %6019 = vmatpush1.msra.mxu0 0.0
        %6020 = vmatprep.subr.mxu0 0.0
        %6021 = vmatpush1.msra.mxu0 0.0
        %6022 = vmatprep.subr.mxu0 0.0
        %6023 = vmatpush1.msra.mxu0 0.0
        %6024 = vmatprep.subr.mxu0 0.0
        %6025 = vmatpush1.msra.mxu0 0.0
        %6026 = vmatprep.subr.mxu0 0.0
        %6027 = vmatpush1.msra.mxu0 0.0
        %6028 = vmatprep.subr.mxu0 0.0
        %6029 = vmatpush1.msra.mxu0 0.0
        %6030 = vmatprep.subr.mxu0 0.0
        %6031 = vmatpush1.msra.mxu0 0.0
        %6032 = vmatprep.subr.mxu0 0.0
        %6033 = vmatpush1.msra.mxu0 0.0
        %6034 = vmatprep.subr.mxu0 0.0
        %6035 = vmatpush1.msra.mxu0 0.0
        %6036 = vmatprep.subr.mxu0 0.0
        %6037 = vmatpush1.msra.mxu0 0.0
        %6038 = vmatprep.subr.mxu0 0.0
        %6039 = vmatpush1.msra.mxu0 0.0
        %6040 = vmatprep.subr.mxu0 0.0
        %6041 = vmatpush1.msra.mxu0 0.0
        %6042 = vmatprep.subr.mxu0 0.0
        %6043 = vmatpush1.msra.mxu0 0.0
        %6044 = vmatprep.subr.mxu0 0.0
        %6045 = vmatpush1.msra.mxu0 0.0
        %6046 = vmatprep.subr.mxu0 0.0
        %6047 = vmatpush1.msra.mxu0 0.0
        %6048 = vmatprep.subr.mxu0 0.0
        %6049 = vmatpush1.msra.mxu0 0.0
        %6050 = vmatprep.subr.mxu0 0.0
        %6051 = vmatpush1.msra.mxu0 0.0
        %6052 = vmatprep.subr.mxu0 0.0
        %6053 = vmatpush1.msra.mxu0 0.0
        %6054 = vmatprep.subr.mxu0 0.0
        %6055 = vmatpush1.msra.mxu0 0.0
        %6056 = vmatprep.subr.mxu0 0.0
        %6057 = vmatpush1.msra.mxu0 0.0
        %6058 = vmatprep.subr.mxu0 0.0
        %6059 = vmatpush1.msra.mxu0 0.0
        %6060 = vmatprep.subr.mxu0 0.0
        %6061 = vmatpush1.msra.mxu0 0.0
        %6062 = vmatprep.subr.mxu0 0.0
        %6063 = vmatpush1.msra.mxu0 0.0
        %6064 = vmatprep.subr.mxu0 0.0
        %6065 = vmatpush1.msra.mxu0 0.0
        %6066 = vmatprep.mubr.f32.mxu0 0.0
        %6067 = vmatmul.mubr.f32.gmra.mrb[0].mxu0 %v5997
        %v6068 = vpop.f32.mrb[0].mxu0
        %v6069 = vadd.f32 0.0, %v6068
        %v6070 = vpop.f32.mrb[0].mxu0
        %6071 = vmatprep.mubr.f32.mxu0 0.0
        %6072 = vmatmul.mubr.f32.gmra.mrb[0].mxu0 %v6000
        %v6073 = vpop.f32.mrb[0].mxu0
        %v6074 = vadd.f32 0.0, %v6073
        %v6075 = vpop.f32.mrb[0].mxu0
        %6076 = vdwg.mxu0
        %v6077 = vld [vmem:[%s4] sm:$0xff]
        %v6078 = vld [vmem:[%s4 + $0x8] sm:$0xff]
        %v6079 = vld [vmem:[%s9] sm:$0xff]
        %v6080 = vld [vmem:[%s9 + $0x8] sm:$0xff]
        %vm6081 = vcmask 130048
        %v6083 = vsel %vm6081, %v6077, 0
        %v6086 = vsel %vm6081, %v6078, 0
        %6088 = vmatprep.subr.mxu0 0.0
        %6089 = vmatpush1.msra.mxu0 %v5913
        %6090 = vmatprep.subr.mxu0 0.0
        %6091 = vmatpush1.msra.mxu0 %v5918
        %6092 = vmatprep.subr.mxu0 0.0
        %6093 = vmatpush1.msra.mxu0 0.0
        %6094 = vmatprep.subr.mxu0 0.0
        %6095 = vmatpush1.msra.mxu0 0.0
        %6096 = vmatprep.subr.mxu0 0.0
        %6097 = vmatpush1.msra.mxu0 0.0
        %6098 = vmatprep.subr.mxu0 0.0
        %6099 = vmatpush1.msra.mxu0 0.0
        %6100 = vmatprep.subr.mxu0 0.0
        %6101 = vmatpush1.msra.mxu0 0.0
        %6102 = vmatprep.subr.mxu0 0.0
        %6103 = vmatpush1.msra.mxu0 0.0
        %6104 = vmatprep.subr.mxu0 0.0
        %6105 = vmatpush1.msra.mxu0 0.0
        %6106 = vmatprep.subr.mxu0 0.0
        %6107 = vmatpush1.msra.mxu0 0.0
        %6108 = vmatprep.subr.mxu0 0.0
        %6109 = vmatpush1.msra.mxu0 0.0
        %6110 = vmatprep.subr.mxu0 0.0
        %6111 = vmatpush1.msra.mxu0 0.0
        %6112 = vmatprep.subr.mxu0 0.0
        %6113 = vmatpush1.msra.mxu0 0.0
        %6114 = vmatprep.subr.mxu0 0.0
        %6115 = vmatpush1.msra.mxu0 0.0
        %6116 = vmatprep.subr.mxu0 0.0
        %6117 = vmatpush1.msra.mxu0 0.0
        %6118 = vmatprep.subr.mxu0 0.0
        %6119 = vmatpush1.msra.mxu0 0.0
        %6120 = vmatprep.subr.mxu0 0.0
        %6121 = vmatpush1.msra.mxu0 0.0
        %6122 = vmatprep.subr.mxu0 0.0
        %6123 = vmatpush1.msra.mxu0 0.0
        %6124 = vmatprep.subr.mxu0 0.0
        %6125 = vmatpush1.msra.mxu0 0.0
        %6126 = vmatprep.subr.mxu0 0.0
        %6127 = vmatpush1.msra.mxu0 0.0
        %6128 = vmatprep.subr.mxu0 0.0
        %6129 = vmatpush1.msra.mxu0 0.0
        %6130 = vmatprep.subr.mxu0 0.0
        %6131 = vmatpush1.msra.mxu0 0.0
        %6132 = vmatprep.subr.mxu0 0.0
        %6133 = vmatpush1.msra.mxu0 0.0
        %6134 = vmatprep.subr.mxu0 0.0
        %6135 = vmatpush1.msra.mxu0 0.0
        %6136 = vmatprep.subr.mxu0 0.0
        %6137 = vmatpush1.msra.mxu0 0.0
        %6138 = vmatprep.subr.mxu0 0.0
        %6139 = vmatpush1.msra.mxu0 0.0
        %6140 = vmatprep.subr.mxu0 0.0
        %6141 = vmatpush1.msra.mxu0 0.0
        %6142 = vmatprep.subr.mxu0 0.0
        %6143 = vmatpush1.msra.mxu0 0.0
        %6144 = vmatprep.subr.mxu0 0.0
        %6145 = vmatpush1.msra.mxu0 0.0
        %6146 = vmatprep.subr.mxu0 0.0
        %6147 = vmatpush1.msra.mxu0 0.0
        %6148 = vmatprep.subr.mxu0 0.0
        %6149 = vmatpush1.msra.mxu0 0.0
        %6150 = vmatprep.subr.mxu0 0.0
        %6151 = vmatpush1.msra.mxu0 0.0
        %6152 = vmatprep.mubr.f32.mxu0 0.0
        %6153 = vmatmul.mubr.f32.gmra.mrb[0].mxu0 %v6083
        %v6154 = vpop.f32.mrb[0].mxu0
        %v6155 = vadd.f32 0.0, %v6154
        %v6156 = vpop.f32.mrb[0].mxu0
        %6157 = vmatprep.mubr.f32.mxu0 0.0
        %6158 = vmatmul.mubr.f32.gmra.mrb[0].mxu0 %v6086
        %v6159 = vpop.f32.mrb[0].mxu0
        %v6160 = vadd.f32 0.0, %v6159
        %v6161 = vpop.f32.mrb[0].mxu0
        %6162 = vdwg.mxu0
        %v6164 = vsel %vm6081, %v6155, 0
        %v6167 = vsel %vm6081, %v6160, 0
        %6169 = vmatprep.subr.mxu0 0.0
        %6170 = vmatpush1.msra.mxu0 %v6079
        %6171 = vmatprep.subr.mxu0 0.0
        %6172 = vmatpush1.msra.mxu0 %v6080
        %6173 = vmatprep.subr.mxu0 0.0
        %6174 = vmatpush1.msra.mxu0 0.0
        %6175 = vmatprep.subr.mxu0 0.0
        %6176 = vmatpush1.msra.mxu0 0.0
        %6177 = vmatprep.subr.mxu0 0.0
        %6178 = vmatpush1.msra.mxu0 0.0
        %6179 = vmatprep.subr.mxu0 0.0
        %6180 = vmatpush1.msra.mxu0 0.0
        %6181 = vmatprep.subr.mxu0 0.0
        %6182 = vmatpush1.msra.mxu0 0.0
        %6183 = vmatprep.subr.mxu0 0.0
        %6184 = vmatpush1.msra.mxu0 0.0
        %6185 = vmatprep.subr.mxu0 0.0
        %6186 = vmatpush1.msra.mxu0 0.0
        %6187 = vmatprep.subr.mxu0 0.0
        %6188 = vmatpush1.msra.mxu0 0.0
        %6189 = vmatprep.subr.mxu0 0.0
        %6190 = vmatpush1.msra.mxu0 0.0
        %6191 = vmatprep.subr.mxu0 0.0
        %6192 = vmatpush1.msra.mxu0 0.0
        %6193 = vmatprep.subr.mxu0 0.0
        %6194 = vmatpush1.msra.mxu0 0.0
        %6195 = vmatprep.subr.mxu0 0.0
        %6196 = vmatpush1.msra.mxu0 0.0
        %6197 = vmatprep.subr.mxu0 0.0
        %6198 = vmatpush1.msra.mxu0 0.0
        %6199 = vmatprep.subr.mxu0 0.0
        %6200 = vmatpush1.msra.mxu0 0.0
        %6201 = vmatprep.subr.mxu0 0.0
        %6202 = vmatpush1.msra.mxu0 0.0
        %6203 = vmatprep.subr.mxu0 0.0
        %6204 = vmatpush1.msra.mxu0 0.0
        %6205 = vmatprep.subr.mxu0 0.0
        %6206 = vmatpush1.msra.mxu0 0.0
        %6207 = vmatprep.subr.mxu0 0.0
        %6208 = vmatpush1.msra.mxu0 0.0
        %6209 = vmatprep.subr.mxu0 0.0
        %6210 = vmatpush1.msra.mxu0 0.0
        %6211 = vmatprep.subr.mxu0 0.0
        %6212 = vmatpush1.msra.mxu0 0.0
        %6213 = vmatprep.subr.mxu0 0.0
        %6214 = vmatpush1.msra.mxu0 0.0
        %6215 = vmatprep.subr.mxu0 0.0
        %6216 = vmatpush1.msra.mxu0 0.0
        %6217 = vmatprep.subr.mxu0 0.0
        %6218 = vmatpush1.msra.mxu0 0.0
        %6219 = vmatprep.subr.mxu0 0.0
        %6220 = vmatpush1.msra.mxu0 0.0
        %6221 = vmatprep.subr.mxu0 0.0
        %6222 = vmatpush1.msra.mxu0 0.0
        %6223 = vmatprep.subr.mxu0 0.0
        %6224 = vmatpush1.msra.mxu0 0.0
        %6225 = vmatprep.subr.mxu0 0.0
        %6226 = vmatpush1.msra.mxu0 0.0
        %6227 = vmatprep.subr.mxu0 0.0
        %6228 = vmatpush1.msra.mxu0 0.0
        %6229 = vmatprep.subr.mxu0 0.0
        %6230 = vmatpush1.msra.mxu0 0.0
        %6231 = vmatprep.subr.mxu0 0.0
        %6232 = vmatpush1.msra.mxu0 0.0
        %6233 = vmatprep.mubr.f32.mxu0 0.0
        %6234 = vmatmul.mubr.f32.gmra.mrb[0].mxu0 %v6164
        %v6235 = vpop.f32.mrb[0].mxu0
        %v6236 = vadd.f32 0.0, %v6235
        %v6237 = vpop.f32.mrb[0].mxu0
        %6238 = vmatprep.mubr.f32.mxu0 0.0
        %6239 = vmatmul.mubr.f32.gmra.mrb[0].mxu0 %v6167
        %v6240 = vpop.f32.mrb[0].mxu0
        %v6241 = vadd.f32 0.0, %v6240
        %v6242 = vpop.f32.mrb[0].mxu0
        %6243 = vdwg.mxu0
        %6244 = vmatprep.subr.mxu0 0.0
        %6245 = vmatpush1.msra.mxu0 %v6069
        %6246 = vmatprep.subr.mxu0 0.0
        %6247 = vmatpush1.msra.mxu0 %v6074
        %6248 = vmatprep.subr.mxu0 0.0
        %6249 = vmatpush1.msra.mxu0 0.0
        %6250 = vmatprep.subr.mxu0 0.0
        %6251 = vmatpush1.msra.mxu0 0.0
        %6252 = vmatprep.subr.mxu0 0.0
        %6253 = vmatpush1.msra.mxu0 0.0
        %6254 = vmatprep.subr.mxu0 0.0
        %6255 = vmatpush1.msra.mxu0 0.0
        %6256 = vmatprep.subr.mxu0 0.0
        %6257 = vmatpush1.msra.mxu0 0.0
        %6258 = vmatprep.subr.mxu0 0.0
        %6259 = vmatpush1.msra.mxu0 0.0
        %6260 = vmatprep.subr.mxu0 0.0
        %6261 = vmatpush1.msra.mxu0 0.0
        %6262 = vmatprep.subr.mxu0 0.0
        %6263 = vmatpush1.msra.mxu0 0.0
        %6264 = vmatprep.subr.mxu0 0.0
        %6265 = vmatpush1.msra.mxu0 0.0
        %6266 = vmatprep.subr.mxu0 0.0
        %6267 = vmatpush1.msra.mxu0 0.0
        %6268 = vmatprep.subr.mxu0 0.0
        %6269 = vmatpush1.msra.mxu0 0.0
        %6270 = vmatprep.subr.mxu0 0.0
        %6271 = vmatpush1.msra.mxu0 0.0
        %6272 = vmatprep.subr.mxu0 0.0
        %6273 = vmatpush1.msra.mxu0 0.0
        %6274 = vmatprep.subr.mxu0 0.0
        %6275 = vmatpush1.msra.mxu0 0.0
        %6276 = vmatprep.subr.mxu0 0.0
        %6277 = vmatpush1.msra.mxu0 0.0
        %6278 = vmatprep.subr.mxu0 0.0
        %6279 = vmatpush1.msra.mxu0 0.0
        %6280 = vmatprep.subr.mxu0 0.0
        %6281 = vmatpush1.msra.mxu0 0.0
        %6282 = vmatprep.subr.mxu0 0.0
        %6283 = vmatpush1.msra.mxu0 0.0
        %6284 = vmatprep.subr.mxu0 0.0
        %6285 = vmatpush1.msra.mxu0 0.0
        %6286 = vmatprep.subr.mxu0 0.0
        %6287 = vmatpush1.msra.mxu0 0.0
        %6288 = vmatprep.subr.mxu0 0.0
        %6289 = vmatpush1.msra.mxu0 0.0
        %6290 = vmatprep.subr.mxu0 0.0
        %6291 = vmatpush1.msra.mxu0 0.0
        %6292 = vmatprep.subr.mxu0 0.0
        %6293 = vmatpush1.msra.mxu0 0.0
        %6294 = vmatprep.subr.mxu0 0.0
        %6295 = vmatpush1.msra.mxu0 0.0
        %6296 = vmatprep.subr.mxu0 0.0
        %6297 = vmatpush1.msra.mxu0 0.0
        %6298 = vmatprep.subr.mxu0 0.0
        %6299 = vmatpush1.msra.mxu0 0.0
        %6300 = vmatprep.subr.mxu0 0.0
        %6301 = vmatpush1.msra.mxu0 0.0
        %6302 = vmatprep.subr.mxu0 0.0
        %6303 = vmatpush1.msra.mxu0 0.0
        %6304 = vmatprep.subr.mxu0 0.0
        %6305 = vmatpush1.msra.mxu0 0.0
        %6306 = vmatprep.subr.mxu0 0.0
        %6307 = vmatpush1.msra.mxu0 0.0
        %6308 = vmatprep.mubr.f32.mxu0 0.0
        %6309 = vmatmul.mubr.f32.gmra.mrb[0].mxu0 %v6083
        %v6310 = vpop.f32.mrb[0].mxu0
        %v6311 = vadd.f32 0.0, %v6310
        %v6312 = vpop.f32.mrb[0].mxu0
        %6313 = vmatprep.mubr.f32.mxu0 0.0
        %6314 = vmatmul.mubr.f32.gmra.mrb[0].mxu0 %v6086
        %v6315 = vpop.f32.mrb[0].mxu0
        %v6316 = vadd.f32 0.0, %v6315
        %v6317 = vpop.f32.mrb[0].mxu0
        %6318 = vdwg.mxu0
        %v6320 = vsel %vm6081, %v6311, 0
        %v6323 = vsel %vm6081, %v6316, 0
        %6325 = vmatprep.subr.mxu0 0.0
        %6326 = vmatpush1.msra.mxu0 %v6079
        %6327 = vmatprep.subr.mxu0 0.0
        %6328 = vmatpush1.msra.mxu0 %v6080
        %6329 = vmatprep.subr.mxu0 0.0
        %6330 = vmatpush1.msra.mxu0 0.0
        %6331 = vmatprep.subr.mxu0 0.0
        %6332 = vmatpush1.msra.mxu0 0.0
        %6333 = vmatprep.subr.mxu0 0.0
        %6334 = vmatpush1.msra.mxu0 0.0
        %6335 = vmatprep.subr.mxu0 0.0
        %6336 = vmatpush1.msra.mxu0 0.0
        %6337 = vmatprep.subr.mxu0 0.0
        %6338 = vmatpush1.msra.mxu0 0.0
        %6339 = vmatprep.subr.mxu0 0.0
        %6340 = vmatpush1.msra.mxu0 0.0
        %6341 = vmatprep.subr.mxu0 0.0
        %6342 = vmatpush1.msra.mxu0 0.0
        %6343 = vmatprep.subr.mxu0 0.0
        %6344 = vmatpush1.msra.mxu0 0.0
        %6345 = vmatprep.subr.mxu0 0.0
        %6346 = vmatpush1.msra.mxu0 0.0
        %6347 = vmatprep.subr.mxu0 0.0
        %6348 = vmatpush1.msra.mxu0 0.0
        %6349 = vmatprep.subr.mxu0 0.0
        %6350 = vmatpush1.msra.mxu0 0.0
        %6351 = vmatprep.subr.mxu0 0.0
        %6352 = vmatpush1.msra.mxu0 0.0
        %6353 = vmatprep.subr.mxu0 0.0
        %6354 = vmatpush1.msra.mxu0 0.0
        %6355 = vmatprep.subr.mxu0 0.0
        %6356 = vmatpush1.msra.mxu0 0.0
        %6357 = vmatprep.subr.mxu0 0.0
        %6358 = vmatpush1.msra.mxu0 0.0
        %6359 = vmatprep.subr.mxu0 0.0
        %6360 = vmatpush1.msra.mxu0 0.0
        %6361 = vmatprep.subr.mxu0 0.0
        %6362 = vmatpush1.msra.mxu0 0.0
        %6363 = vmatprep.subr.mxu0 0.0
        %6364 = vmatpush1.msra.mxu0 0.0
        %6365 = vmatprep.subr.mxu0 0.0
        %6366 = vmatpush1.msra.mxu0 0.0
        %6367 = vmatprep.subr.mxu0 0.0
        %6368 = vmatpush1.msra.mxu0 0.0
        %6369 = vmatprep.subr.mxu0 0.0
        %6370 = vmatpush1.msra.mxu0 0.0
        %6371 = vmatprep.subr.mxu0 0.0
        %6372 = vmatpush1.msra.mxu0 0.0
        %6373 = vmatprep.subr.mxu0 0.0
        %6374 = vmatpush1.msra.mxu0 0.0
        %6375 = vmatprep.subr.mxu0 0.0
        %6376 = vmatpush1.msra.mxu0 0.0
        %6377 = vmatprep.subr.mxu0 0.0
        %6378 = vmatpush1.msra.mxu0 0.0
        %6379 = vmatprep.subr.mxu0 0.0
        %6380 = vmatpush1.msra.mxu0 0.0
        %6381 = vmatprep.subr.mxu0 0.0
        %6382 = vmatpush1.msra.mxu0 0.0
        %6383 = vmatprep.subr.mxu0 0.0
        %6384 = vmatpush1.msra.mxu0 0.0
        %6385 = vmatprep.subr.mxu0 0.0
        %6386 = vmatpush1.msra.mxu0 0.0
        %6387 = vmatprep.subr.mxu0 0.0
        %6388 = vmatpush1.msra.mxu0 0.0
        %6389 = vmatprep.mubr.f32.mxu0 0.0
        %6390 = vmatmul.mubr.f32.gmra.mrb[0].mxu0 %v6320
        %v6391 = vpop.f32.mrb[0].mxu0
        %v6392 = vadd.f32 0.0, %v6391
        %v6393 = vpop.f32.mrb[0].mxu0
        %6394 = vmatprep.mubr.f32.mxu0 0.0
        %6395 = vmatmul.mubr.f32.gmra.mrb[0].mxu0 %v6323
        %v6396 = vpop.f32.mrb[0].mxu0
        %v6397 = vadd.f32 0.0, %v6396
        %v6398 = vpop.f32.mrb[0].mxu0
        %6399 = vdwg.mxu0
        %v6400 = vmul.f32 %v5913, %v5913
        %v6401 = vmul.f32 %v5918, %v5918
        %6402 = vmatprep.subr.mxu0 0.0
        %6403 = vmatpush1.msra.mxu0 %v6400
        %6404 = vmatprep.subr.mxu0 0.0
        %6405 = vmatpush1.msra.mxu0 %v6401
        %6406 = vmatprep.subr.mxu0 0.0
        %6407 = vmatpush1.msra.mxu0 0.0
        %6408 = vmatprep.subr.mxu0 0.0
        %6409 = vmatpush1.msra.mxu0 0.0
        %6410 = vmatprep.subr.mxu0 0.0
        %6411 = vmatpush1.msra.mxu0 0.0
        %6412 = vmatprep.subr.mxu0 0.0
        %6413 = vmatpush1.msra.mxu0 0.0
        %6414 = vmatprep.subr.mxu0 0.0
        %6415 = vmatpush1.msra.mxu0 0.0
        %6416 = vmatprep.subr.mxu0 0.0
        %6417 = vmatpush1.msra.mxu0 0.0
        %6418 = vmatprep.subr.mxu0 0.0
        %6419 = vmatpush1.msra.mxu0 0.0
        %6420 = vmatprep.subr.mxu0 0.0
        %6421 = vmatpush1.msra.mxu0 0.0
        %6422 = vmatprep.subr.mxu0 0.0
        %6423 = vmatpush1.msra.mxu0 0.0
        %6424 = vmatprep.subr.mxu0 0.0
        %6425 = vmatpush1.msra.mxu0 0.0
        %6426 = vmatprep.subr.mxu0 0.0
        %6427 = vmatpush1.msra.mxu0 0.0
        %6428 = vmatprep.subr.mxu0 0.0
        %6429 = vmatpush1.msra.mxu0 0.0
        %6430 = vmatprep.subr.mxu0 0.0
        %6431 = vmatpush1.msra.mxu0 0.0
        %6432 = vmatprep.subr.mxu0 0.0
        %6433 = vmatpush1.msra.mxu0 0.0
        %6434 = vmatprep.subr.mxu0 0.0
        %6435 = vmatpush1.msra.mxu0 0.0
        %6436 = vmatprep.subr.mxu0 0.0
        %6437 = vmatpush1.msra.mxu0 0.0
        %6438 = vmatprep.subr.mxu0 0.0
        %6439 = vmatpush1.msra.mxu0 0.0
        %6440 = vmatprep.subr.mxu0 0.0
        %6441 = vmatpush1.msra.mxu0 0.0
        %6442 = vmatprep.subr.mxu0 0.0
        %6443 = vmatpush1.msra.mxu0 0.0
        %6444 = vmatprep.subr.mxu0 0.0
        %6445 = vmatpush1.msra.mxu0 0.0
        %6446 = vmatprep.subr.mxu0 0.0
        %6447 = vmatpush1.msra.mxu0 0.0
        %6448 = vmatprep.subr.mxu0 0.0
        %6449 = vmatpush1.msra.mxu0 0.0
        %6450 = vmatprep.subr.mxu0 0.0
        %6451 = vmatpush1.msra.mxu0 0.0
        %6452 = vmatprep.subr.mxu0 0.0
        %6453 = vmatpush1.msra.mxu0 0.0
        %6454 = vmatprep.subr.mxu0 0.0
        %6455 = vmatpush1.msra.mxu0 0.0
        %6456 = vmatprep.subr.mxu0 0.0
        %6457 = vmatpush1.msra.mxu0 0.0
        %6458 = vmatprep.subr.mxu0 0.0
        %6459 = vmatpush1.msra.mxu0 0.0
        %6460 = vmatprep.subr.mxu0 0.0
        %6461 = vmatpush1.msra.mxu0 0.0
        %6462 = vmatprep.subr.mxu0 0.0
        %6463 = vmatpush1.msra.mxu0 0.0
        %6464 = vmatprep.subr.mxu0 0.0
        %6465 = vmatpush1.msra.mxu0 0.0
        %6466 = vmatprep.mubr.f32.mxu0 0.0
        %6467 = vmatmul.mubr.f32.gmra.mrb[0].mxu0 %v6083
        %v6468 = vpop.f32.mrb[0].mxu0
        %v6469 = vadd.f32 0.0, %v6468
        %v6470 = vpop.f32.mrb[0].mxu0
        %6471 = vmatprep.mubr.f32.mxu0 0.0
        %6472 = vmatmul.mubr.f32.gmra.mrb[0].mxu0 %v6086
        %v6473 = vpop.f32.mrb[0].mxu0
        %v6474 = vadd.f32 0.0, %v6473
        %v6475 = vpop.f32.mrb[0].mxu0
        %6476 = vdwg.mxu0
        %v6478 = vsel %vm6081, %v6469, 0
        %v6481 = vsel %vm6081, %v6474, 0
        %6483 = vmatprep.subr.mxu0 0.0
        %6484 = vmatpush1.msra.mxu0 %v6079
        %6485 = vmatprep.subr.mxu0 0.0
        %6486 = vmatpush1.msra.mxu0 %v6080
        %6487 = vmatprep.subr.mxu0 0.0
        %6488 = vmatpush1.msra.mxu0 0.0
        %6489 = vmatprep.subr.mxu0 0.0
        %6490 = vmatpush1.msra.mxu0 0.0
        %6491 = vmatprep.subr.mxu0 0.0
        %6492 = vmatpush1.msra.mxu0 0.0
        %6493 = vmatprep.subr.mxu0 0.0
        %6494 = vmatpush1.msra.mxu0 0.0
        %6495 = vmatprep.subr.mxu0 0.0
        %6496 = vmatpush1.msra.mxu0 0.0
        %6497 = vmatprep.subr.mxu0 0.0
        %6498 = vmatpush1.msra.mxu0 0.0
        %6499 = vmatprep.subr.mxu0 0.0
        %6500 = vmatpush1.msra.mxu0 0.0
        %6501 = vmatprep.subr.mxu0 0.0
        %6502 = vmatpush1.msra.mxu0 0.0
        %6503 = vmatprep.subr.mxu0 0.0
        %6504 = vmatpush1.msra.mxu0 0.0
        %6505 = vmatprep.subr.mxu0 0.0
        %6506 = vmatpush1.msra.mxu0 0.0
        %6507 = vmatprep.subr.mxu0 0.0
        %6508 = vmatpush1.msra.mxu0 0.0
        %6509 = vmatprep.subr.mxu0 0.0
        %6510 = vmatpush1.msra.mxu0 0.0
        %6511 = vmatprep.subr.mxu0 0.0
        %6512 = vmatpush1.msra.mxu0 0.0
        %6513 = vmatprep.subr.mxu0 0.0
        %6514 = vmatpush1.msra.mxu0 0.0
        %6515 = vmatprep.subr.mxu0 0.0
        %6516 = vmatpush1.msra.mxu0 0.0
        %6517 = vmatprep.subr.mxu0 0.0
        %6518 = vmatpush1.msra.mxu0 0.0
        %6519 = vmatprep.subr.mxu0 0.0
        %6520 = vmatpush1.msra.mxu0 0.0
        %6521 = vmatprep.subr.mxu0 0.0
        %6522 = vmatpush1.msra.mxu0 0.0
        %6523 = vmatprep.subr.mxu0 0.0
        %6524 = vmatpush1.msra.mxu0 0.0
        %6525 = vmatprep.subr.mxu0 0.0
        %6526 = vmatpush1.msra.mxu0 0.0
        %6527 = vmatprep.subr.mxu0 0.0
        %6528 = vmatpush1.msra.mxu0 0.0
        %6529 = vmatprep.subr.mxu0 0.0
        %6530 = vmatpush1.msra.mxu0 0.0
        %6531 = vmatprep.subr.mxu0 0.0
        %6532 = vmatpush1.msra.mxu0 0.0
        %6533 = vmatprep.subr.mxu0 0.0
        %6534 = vmatpush1.msra.mxu0 0.0
        %6535 = vmatprep.subr.mxu0 0.0
        %6536 = vmatpush1.msra.mxu0 0.0
        %6537 = vmatprep.subr.mxu0 0.0
        %6538 = vmatpush1.msra.mxu0 0.0
        %6539 = vmatprep.subr.mxu0 0.0
        %6540 = vmatpush1.msra.mxu0 0.0
        %6541 = vmatprep.subr.mxu0 0.0
        %6542 = vmatpush1.msra.mxu0 0.0
        %6543 = vmatprep.subr.mxu0 0.0
        %6544 = vmatpush1.msra.mxu0 0.0
        %6545 = vmatprep.subr.mxu0 0.0
        %6546 = vmatpush1.msra.mxu0 0.0
        %6547 = vmatprep.mubr.f32.mxu0 0.0
        %6548 = vmatmul.mubr.f32.gmra.mrb[0].mxu0 %v6478
        %v6549 = vpop.f32.mrb[0].mxu0
        %v6550 = vadd.f32 0.0, %v6549
        %v6551 = vpop.f32.mrb[0].mxu0
        %6552 = vmatprep.mubr.f32.mxu0 0.0
        %6553 = vmatmul.mubr.f32.gmra.mrb[0].mxu0 %v6481
        %v6554 = vpop.f32.mrb[0].mxu0
        %v6555 = vadd.f32 0.0, %v6554
        %v6556 = vpop.f32.mrb[0].mxu0
        %6557 = vdwg.mxu0
        %v6558 = vmul.f32 %v6069, %v6069
        %v6559 = vmul.f32 %v6074, %v6074
        %6560 = vmatprep.subr.mxu0 0.0
        %6561 = vmatpush1.msra.mxu0 %v6558
        %6562 = vmatprep.subr.mxu0 0.0
        %6563 = vmatpush1.msra.mxu0 %v6559
        %6564 = vmatprep.subr.mxu0 0.0
        %6565 = vmatpush1.msra.mxu0 0.0
        %6566 = vmatprep.subr.mxu0 0.0
        %6567 = vmatpush1.msra.mxu0 0.0
        %6568 = vmatprep.subr.mxu0 0.0
        %6569 = vmatpush1.msra.mxu0 0.0
        %6570 = vmatprep.subr.mxu0 0.0
        %6571 = vmatpush1.msra.mxu0 0.0
        %6572 = vmatprep.subr.mxu0 0.0
        %6573 = vmatpush1.msra.mxu0 0.0
        %6574 = vmatprep.subr.mxu0 0.0
        %6575 = vmatpush1.msra.mxu0 0.0
        %6576 = vmatprep.subr.mxu0 0.0
        %6577 = vmatpush1.msra.mxu0 0.0
        %6578 = vmatprep.subr.mxu0 0.0
        %6579 = vmatpush1.msra.mxu0 0.0
        %6580 = vmatprep.subr.mxu0 0.0
        %6581 = vmatpush1.msra.mxu0 0.0
        %6582 = vmatprep.subr.mxu0 0.0
        %6583 = vmatpush1.msra.mxu0 0.0
        %6584 = vmatprep.subr.mxu0 0.0
        %6585 = vmatpush1.msra.mxu0 0.0
        %6586 = vmatprep.subr.mxu0 0.0
        %6587 = vmatpush1.msra.mxu0 0.0
        %6588 = vmatprep.subr.mxu0 0.0
        %6589 = vmatpush1.msra.mxu0 0.0
        %6590 = vmatprep.subr.mxu0 0.0
        %6591 = vmatpush1.msra.mxu0 0.0
        %6592 = vmatprep.subr.mxu0 0.0
        %6593 = vmatpush1.msra.mxu0 0.0
        %6594 = vmatprep.subr.mxu0 0.0
        %6595 = vmatpush1.msra.mxu0 0.0
        %6596 = vmatprep.subr.mxu0 0.0
        %6597 = vmatpush1.msra.mxu0 0.0
        %6598 = vmatprep.subr.mxu0 0.0
        %6599 = vmatpush1.msra.mxu0 0.0
        %6600 = vmatprep.subr.mxu0 0.0
        %6601 = vmatpush1.msra.mxu0 0.0
        %6602 = vmatprep.subr.mxu0 0.0
        %6603 = vmatpush1.msra.mxu0 0.0
        %6604 = vmatprep.subr.mxu0 0.0
        %6605 = vmatpush1.msra.mxu0 0.0
        %6606 = vmatprep.subr.mxu0 0.0
        %6607 = vmatpush1.msra.mxu0 0.0
        %6608 = vmatprep.subr.mxu0 0.0
        %6609 = vmatpush1.msra.mxu0 0.0
        %6610 = vmatprep.subr.mxu0 0.0
        %6611 = vmatpush1.msra.mxu0 0.0
        %6612 = vmatprep.subr.mxu0 0.0
        %6613 = vmatpush1.msra.mxu0 0.0
        %6614 = vmatprep.subr.mxu0 0.0
        %6615 = vmatpush1.msra.mxu0 0.0
        %6616 = vmatprep.subr.mxu0 0.0
        %6617 = vmatpush1.msra.mxu0 0.0
        %6618 = vmatprep.subr.mxu0 0.0
        %6619 = vmatpush1.msra.mxu0 0.0
        %6620 = vmatprep.subr.mxu0 0.0
        %6621 = vmatpush1.msra.mxu0 0.0
        %6622 = vmatprep.subr.mxu0 0.0
        %6623 = vmatpush1.msra.mxu0 0.0
        %6624 = vmatprep.mubr.f32.mxu0 0.0
        %6625 = vmatmul.mubr.f32.gmra.mrb[0].mxu0 %v6083
        %v6626 = vpop.f32.mrb[0].mxu0
        %v6627 = vadd.f32 0.0, %v6626
        %v6628 = vpop.f32.mrb[0].mxu0
        %6629 = vmatprep.mubr.f32.mxu0 0.0
        %6630 = vmatmul.mubr.f32.gmra.mrb[0].mxu0 %v6086
        %v6631 = vpop.f32.mrb[0].mxu0
        %v6632 = vadd.f32 0.0, %v6631
        %v6633 = vpop.f32.mrb[0].mxu0
        %6634 = vdwg.mxu0
        %v6636 = vsel %vm6081, %v6627, 0
        %v6639 = vsel %vm6081, %v6632, 0
        %6641 = vmatprep.subr.mxu0 0.0
        %6642 = vmatpush1.msra.mxu0 %v6079
        %6643 = vmatprep.subr.mxu0 0.0
        %6644 = vmatpush1.msra.mxu0 %v6080
        %6645 = vmatprep.subr.mxu0 0.0
        %6646 = vmatpush1.msra.mxu0 0.0
        %6647 = vmatprep.subr.mxu0 0.0
        %6648 = vmatpush1.msra.mxu0 0.0
        %6649 = vmatprep.subr.mxu0 0.0
        %6650 = vmatpush1.msra.mxu0 0.0
        %6651 = vmatprep.subr.mxu0 0.0
        %6652 = vmatpush1.msra.mxu0 0.0
        %6653 = vmatprep.subr.mxu0 0.0
        %6654 = vmatpush1.msra.mxu0 0.0
        %6655 = vmatprep.subr.mxu0 0.0
        %6656 = vmatpush1.msra.mxu0 0.0
        %6657 = vmatprep.subr.mxu0 0.0
        %6658 = vmatpush1.msra.mxu0 0.0
        %6659 = vmatprep.subr.mxu0 0.0
        %6660 = vmatpush1.msra.mxu0 0.0
        %6661 = vmatprep.subr.mxu0 0.0
        %6662 = vmatpush1.msra.mxu0 0.0
        %6663 = vmatprep.subr.mxu0 0.0
        %6664 = vmatpush1.msra.mxu0 0.0
        %6665 = vmatprep.subr.mxu0 0.0
        %6666 = vmatpush1.msra.mxu0 0.0
        %6667 = vmatprep.subr.mxu0 0.0
        %6668 = vmatpush1.msra.mxu0 0.0
        %6669 = vmatprep.subr.mxu0 0.0
        %6670 = vmatpush1.msra.mxu0 0.0
        %6671 = vmatprep.subr.mxu0 0.0
        %6672 = vmatpush1.msra.mxu0 0.0
        %6673 = vmatprep.subr.mxu0 0.0
        %6674 = vmatpush1.msra.mxu0 0.0
        %6675 = vmatprep.subr.mxu0 0.0
        %6676 = vmatpush1.msra.mxu0 0.0
        %6677 = vmatprep.subr.mxu0 0.0
        %6678 = vmatpush1.msra.mxu0 0.0
        %6679 = vmatprep.subr.mxu0 0.0
        %6680 = vmatpush1.msra.mxu0 0.0
        %6681 = vmatprep.subr.mxu0 0.0
        %6682 = vmatpush1.msra.mxu0 0.0
        %6683 = vmatprep.subr.mxu0 0.0
        %6684 = vmatpush1.msra.mxu0 0.0
        %6685 = vmatprep.subr.mxu0 0.0
        %6686 = vmatpush1.msra.mxu0 0.0
        %6687 = vmatprep.subr.mxu0 0.0
        %6688 = vmatpush1.msra.mxu0 0.0
        %6689 = vmatprep.subr.mxu0 0.0
        %6690 = vmatpush1.msra.mxu0 0.0
        %6691 = vmatprep.subr.mxu0 0.0
        %6692 = vmatpush1.msra.mxu0 0.0
        %6693 = vmatprep.subr.mxu0 0.0
        %6694 = vmatpush1.msra.mxu0 0.0
        %6695 = vmatprep.subr.mxu0 0.0
        %6696 = vmatpush1.msra.mxu0 0.0
        %6697 = vmatprep.subr.mxu0 0.0
        %6698 = vmatpush1.msra.mxu0 0.0
        %6699 = vmatprep.subr.mxu0 0.0
        %6700 = vmatpush1.msra.mxu0 0.0
        %6701 = vmatprep.subr.mxu0 0.0
        %6702 = vmatpush1.msra.mxu0 0.0
        %6703 = vmatprep.subr.mxu0 0.0
        %6704 = vmatpush1.msra.mxu0 0.0
        %6705 = vmatprep.mubr.f32.mxu0 0.0
        %6706 = vmatmul.mubr.f32.gmra.mrb[0].mxu0 %v6636
        %v6707 = vpop.f32.mrb[0].mxu0
        %v6708 = vadd.f32 0.0, %v6707
        %v6709 = vpop.f32.mrb[0].mxu0
        %6710 = vmatprep.mubr.f32.mxu0 0.0
        %6711 = vmatmul.mubr.f32.gmra.mrb[0].mxu0 %v6639
        %v6712 = vpop.f32.mrb[0].mxu0
        %v6713 = vadd.f32 0.0, %v6712
        %v6714 = vpop.f32.mrb[0].mxu0
        %6715 = vdwg.mxu0
        %v6716 = vmul.f32 %v5913, %v6069
        %v6717 = vmul.f32 %v5918, %v6074
        %6718 = vmatprep.subr.mxu0 0.0
        %6719 = vmatpush1.msra.mxu0 %v6716
        %6720 = vmatprep.subr.mxu0 0.0
        %6721 = vmatpush1.msra.mxu0 %v6717
        %6722 = vmatprep.subr.mxu0 0.0
        %6723 = vmatpush1.msra.mxu0 0.0
        %6724 = vmatprep.subr.mxu0 0.0
        %6725 = vmatpush1.msra.mxu0 0.0
        %6726 = vmatprep.subr.mxu0 0.0
        %6727 = vmatpush1.msra.mxu0 0.0
        %6728 = vmatprep.subr.mxu0 0.0
        %6729 = vmatpush1.msra.mxu0 0.0
        %6730 = vmatprep.subr.mxu0 0.0
        %6731 = vmatpush1.msra.mxu0 0.0
        %6732 = vmatprep.subr.mxu0 0.0
        %6733 = vmatpush1.msra.mxu0 0.0
        %6734 = vmatprep.subr.mxu0 0.0
        %6735 = vmatpush1.msra.mxu0 0.0
        %6736 = vmatprep.subr.mxu0 0.0
        %6737 = vmatpush1.msra.mxu0 0.0
        %6738 = vmatprep.subr.mxu0 0.0
        %6739 = vmatpush1.msra.mxu0 0.0
        %6740 = vmatprep.subr.mxu0 0.0
        %6741 = vmatpush1.msra.mxu0 0.0
        %6742 = vmatprep.subr.mxu0 0.0
        %6743 = vmatpush1.msra.mxu0 0.0
        %6744 = vmatprep.subr.mxu0 0.0
        %6745 = vmatpush1.msra.mxu0 0.0
        %6746 = vmatprep.subr.mxu0 0.0
        %6747 = vmatpush1.msra.mxu0 0.0
        %6748 = vmatprep.subr.mxu0 0.0
        %6749 = vmatpush1.msra.mxu0 0.0
        %6750 = vmatprep.subr.mxu0 0.0
        %6751 = vmatpush1.msra.mxu0 0.0
        %6752 = vmatprep.subr.mxu0 0.0
        %6753 = vmatpush1.msra.mxu0 0.0
        %6754 = vmatprep.subr.mxu0 0.0
        %6755 = vmatpush1.msra.mxu0 0.0
        %6756 = vmatprep.subr.mxu0 0.0
        %6757 = vmatpush1.msra.mxu0 0.0
        %6758 = vmatprep.subr.mxu0 0.0
        %6759 = vmatpush1.msra.mxu0 0.0
        %6760 = vmatprep.subr.mxu0 0.0
        %6761 = vmatpush1.msra.mxu0 0.0
        %6762 = vmatprep.subr.mxu0 0.0
        %6763 = vmatpush1.msra.mxu0 0.0
        %6764 = vmatprep.subr.mxu0 0.0
        %6765 = vmatpush1.msra.mxu0 0.0
        %6766 = vmatprep.subr.mxu0 0.0
        %6767 = vmatpush1.msra.mxu0 0.0
        %6768 = vmatprep.subr.mxu0 0.0
        %6769 = vmatpush1.msra.mxu0 0.0
        %6770 = vmatprep.subr.mxu0 0.0
        %6771 = vmatpush1.msra.mxu0 0.0
        %6772 = vmatprep.subr.mxu0 0.0
        %6773 = vmatpush1.msra.mxu0 0.0
        %6774 = vmatprep.subr.mxu0 0.0
        %6775 = vmatpush1.msra.mxu0 0.0
        %6776 = vmatprep.subr.mxu0 0.0
        %6777 = vmatpush1.msra.mxu0 0.0
        %6778 = vmatprep.subr.mxu0 0.0
        %6779 = vmatpush1.msra.mxu0 0.0
        %6780 = vmatprep.subr.mxu0 0.0
        %6781 = vmatpush1.msra.mxu0 0.0
        %6782 = vmatprep.mubr.f32.mxu0 0.0
        %6783 = vmatmul.mubr.f32.gmra.mrb[0].mxu0 %v6083
        %v6784 = vpop.f32.mrb[0].mxu0
        %v6785 = vadd.f32 0.0, %v6784
        %v6786 = vpop.f32.mrb[0].mxu0
        %6787 = vmatprep.mubr.f32.mxu0 0.0
        %6788 = vmatmul.mubr.f32.gmra.mrb[0].mxu0 %v6086
        %v6789 = vpop.f32.mrb[0].mxu0
        %v6790 = vadd.f32 0.0, %v6789
        %v6791 = vpop.f32.mrb[0].mxu0
        %6792 = vdwg.mxu0
        %v6794 = vsel %vm6081, %v6785, 0
        %v6797 = vsel %vm6081, %v6790, 0
        %6799 = vmatprep.subr.mxu0 0.0
        %6800 = vmatpush1.msra.mxu0 %v6079
        %6801 = vmatprep.subr.mxu0 0.0
        %6802 = vmatpush1.msra.mxu0 %v6080
        %6803 = vmatprep.subr.mxu0 0.0
        %6804 = vmatpush1.msra.mxu0 0.0
        %6805 = vmatprep.subr.mxu0 0.0
        %6806 = vmatpush1.msra.mxu0 0.0
        %6807 = vmatprep.subr.mxu0 0.0
        %6808 = vmatpush1.msra.mxu0 0.0
        %6809 = vmatprep.subr.mxu0 0.0
        %6810 = vmatpush1.msra.mxu0 0.0
        %6811 = vmatprep.subr.mxu0 0.0
        %6812 = vmatpush1.msra.mxu0 0.0
        %6813 = vmatprep.subr.mxu0 0.0
        %6814 = vmatpush1.msra.mxu0 0.0
        %6815 = vmatprep.subr.mxu0 0.0
        %6816 = vmatpush1.msra.mxu0 0.0
        %6817 = vmatprep.subr.mxu0 0.0
        %6818 = vmatpush1.msra.mxu0 0.0
        %6819 = vmatprep.subr.mxu0 0.0
        %6820 = vmatpush1.msra.mxu0 0.0
        %6821 = vmatprep.subr.mxu0 0.0
        %6822 = vmatpush1.msra.mxu0 0.0
        %6823 = vmatprep.subr.mxu0 0.0
        %6824 = vmatpush1.msra.mxu0 0.0
        %6825 = vmatprep.subr.mxu0 0.0
        %6826 = vmatpush1.msra.mxu0 0.0
        %6827 = vmatprep.subr.mxu0 0.0
        %6828 = vmatpush1.msra.mxu0 0.0
        %6829 = vmatprep.subr.mxu0 0.0
        %6830 = vmatpush1.msra.mxu0 0.0
        %6831 = vmatprep.subr.mxu0 0.0
        %6832 = vmatpush1.msra.mxu0 0.0
        %6833 = vmatprep.subr.mxu0 0.0
        %6834 = vmatpush1.msra.mxu0 0.0
        %6835 = vmatprep.subr.mxu0 0.0
        %6836 = vmatpush1.msra.mxu0 0.0
        %6837 = vmatprep.subr.mxu0 0.0
        %6838 = vmatpush1.msra.mxu0 0.0
        %6839 = vmatprep.subr.mxu0 0.0
        %6840 = vmatpush1.msra.mxu0 0.0
        %6841 = vmatprep.subr.mxu0 0.0
        %6842 = vmatpush1.msra.mxu0 0.0
        %6843 = vmatprep.subr.mxu0 0.0
        %6844 = vmatpush1.msra.mxu0 0.0
        %6845 = vmatprep.subr.mxu0 0.0
        %6846 = vmatpush1.msra.mxu0 0.0
        %6847 = vmatprep.subr.mxu0 0.0
        %6848 = vmatpush1.msra.mxu0 0.0
        %6849 = vmatprep.subr.mxu0 0.0
        %6850 = vmatpush1.msra.mxu0 0.0
        %6851 = vmatprep.subr.mxu0 0.0
        %6852 = vmatpush1.msra.mxu0 0.0
        %6853 = vmatprep.subr.mxu0 0.0
        %6854 = vmatpush1.msra.mxu0 0.0
        %6855 = vmatprep.subr.mxu0 0.0
        %6856 = vmatpush1.msra.mxu0 0.0
        %6857 = vmatprep.subr.mxu0 0.0
        %6858 = vmatpush1.msra.mxu0 0.0
        %6859 = vmatprep.subr.mxu0 0.0
        %6860 = vmatpush1.msra.mxu0 0.0
        %6861 = vmatprep.subr.mxu0 0.0
        %6862 = vmatpush1.msra.mxu0 0.0
        %6863 = vmatprep.mubr.f32.mxu0 0.0
        %6864 = vmatmul.mubr.f32.gmra.mrb[0].mxu0 %v6794
        %v6865 = vpop.f32.mrb[0].mxu0
        %v6866 = vadd.f32 0.0, %v6865
        %v6867 = vpop.f32.mrb[0].mxu0
        %6868 = vmatprep.mubr.f32.mxu0 0.0
        %6869 = vmatmul.mubr.f32.gmra.mrb[0].mxu0 %v6797
        %v6870 = vpop.f32.mrb[0].mxu0
        %v6871 = vadd.f32 0.0, %v6870
        %v6872 = vpop.f32.mrb[0].mxu0
        %6873 = vdwg.mxu0
        %v6874 = vmul.f32 %v6236, %v6236
        %v6875 = vmul.f32 %v6241, %v6241
        %v6876 = vmul.f32 %v6392, %v6392
        %v6877 = vmul.f32 %v6397, %v6397
        %v6878 = vmul.f32 %v6236, %v6392
        %v6879 = vmul.f32 %v6241, %v6397
        %v6880 = vsub.f32 %v6550, %v6874
        %v6881 = vsub.f32 %v6555, %v6875
        %v6882 = vsub.f32 %v6708, %v6876
        %v6883 = vsub.f32 %v6713, %v6877
        %v6884 = vsub.f32 %v6866, %v6878
        %v6885 = vsub.f32 %v6871, %v6879
        %v6886 = vmul.f32 %v6884, 2.0
        %v6887 = vmul.f32 %v6885, 2.0
        %v6888 = vadd.f32 %v6886, 0.0009
        %v6889 = vadd.f32 %v6887, 0.0009
        %v6890 = vadd.f32 %v6880, %v6882
        %v6891 = vadd.f32 %v6881, %v6883
        %v6892 = vadd.f32 %v6890, 0.0009
        %v6893 = vadd.f32 %v6891, 0.0009
        %v6894 = vrcp.pop %v6892
        %v6895 = vmul.f32 %v6888, %v6894
        %v6896 = vrcp.pop %v6893
        %v6897 = vmul.f32 %v6889, %v6896
        %v6898 = vsel %vm6081, %v6895, 0.0
        %6899 = vadd.xlane.f32.xlu0 %v6898
        %v6900 = vpop.xlane.xlu0 %6899
        %v6901 = vsel %vm6081, %v6897, 0.0
        %6902 = vadd.xlane.f32.xlu0 %v6901
        %v6903 = vpop.xlane.xlu0 %6902
        %v6904 = vadd.f32 %v6900, %v6903
        %v6905 = vrot.slane %v6904, 4
        %v6906 = vadd.f32 %v6904, %v6905
        %v6907 = vrot.slane %v6906, 2
        %v6908 = vadd.f32 %v6906, %v6907
        %v6909 = vrot.slane %v6908, 1
        %v6910 = vadd.f32 %v6908, %v6909
        %v6911 = vmul.f32 %v6910, 0.00390625
        %v6912 = vadd.f32 %v6911, 1.0
        %v6913 = vmul.f32 %v6912, 0.5
        %v6914 = vmax.f32 %v6913, 1e-12
        %v6915 = vlog2.pop %v6914
        %v6916 = vmul.f32 %v6915, 0.6931472
        %v6917 = vmul.f32 %v6916, 0.3001
        %v6918 = vmul.f32 %v6917, 1.442695
        %v6919 = vpow.pop %v6918
        %v6920 = vmul.f32 %v5752, %v6919
        %v6921 = vld [vmem:[#allocation18] sm:$0xff]
        %v6922 = vld [vmem:[#allocation22] sm:$0xff]
        %v6923 = vld [vmem:[#allocation22 + $0x8] sm:$0xff]
        %v6925 = vsel %vm6081, %v6921, 0
        %6927 = vmatprep.subr.mxu0 0.0
        %6928 = vmatpush1.msra.mxu0 %v5913
        %6929 = vmatprep.subr.mxu0 0.0
        %6930 = vmatpush1.msra.mxu0 %v5918
        %6931 = vmatprep.subr.mxu0 0.0
        %6932 = vmatpush1.msra.mxu0 0.0
        %6933 = vmatprep.subr.mxu0 0.0
        %6934 = vmatpush1.msra.mxu0 0.0
        %6935 = vmatprep.subr.mxu0 0.0
        %6936 = vmatpush1.msra.mxu0 0.0
        %6937 = vmatprep.subr.mxu0 0.0
        %6938 = vmatpush1.msra.mxu0 0.0
        %6939 = vmatprep.subr.mxu0 0.0
        %6940 = vmatpush1.msra.mxu0 0.0
        %6941 = vmatprep.subr.mxu0 0.0
        %6942 = vmatpush1.msra.mxu0 0.0
        %6943 = vmatprep.subr.mxu0 0.0
        %6944 = vmatpush1.msra.mxu0 0.0
        %6945 = vmatprep.subr.mxu0 0.0
        %6946 = vmatpush1.msra.mxu0 0.0
        %6947 = vmatprep.subr.mxu0 0.0
        %6948 = vmatpush1.msra.mxu0 0.0
        %6949 = vmatprep.subr.mxu0 0.0
        %6950 = vmatpush1.msra.mxu0 0.0
        %6951 = vmatprep.subr.mxu0 0.0
        %6952 = vmatpush1.msra.mxu0 0.0
        %6953 = vmatprep.subr.mxu0 0.0
        %6954 = vmatpush1.msra.mxu0 0.0
        %6955 = vmatprep.subr.mxu0 0.0
        %6956 = vmatpush1.msra.mxu0 0.0
        %6957 = vmatprep.subr.mxu0 0.0
        %6958 = vmatpush1.msra.mxu0 0.0
        %6959 = vmatprep.subr.mxu0 0.0
        %6960 = vmatpush1.msra.mxu0 0.0
        %6961 = vmatprep.subr.mxu0 0.0
        %6962 = vmatpush1.msra.mxu0 0.0
        %6963 = vmatprep.subr.mxu0 0.0
        %6964 = vmatpush1.msra.mxu0 0.0
        %6965 = vmatprep.subr.mxu0 0.0
        %6966 = vmatpush1.msra.mxu0 0.0
        %6967 = vmatprep.subr.mxu0 0.0
        %6968 = vmatpush1.msra.mxu0 0.0
        %6969 = vmatprep.subr.mxu0 0.0
        %6970 = vmatpush1.msra.mxu0 0.0
        %6971 = vmatprep.subr.mxu0 0.0
        %6972 = vmatpush1.msra.mxu0 0.0
        %6973 = vmatprep.subr.mxu0 0.0
        %6974 = vmatpush1.msra.mxu0 0.0
        %6975 = vmatprep.subr.mxu0 0.0
        %6976 = vmatpush1.msra.mxu0 0.0
        %6977 = vmatprep.subr.mxu0 0.0
        %6978 = vmatpush1.msra.mxu0 0.0
        %6979 = vmatprep.subr.mxu0 0.0
        %6980 = vmatpush1.msra.mxu0 0.0
        %6981 = vmatprep.subr.mxu0 0.0
        %6982 = vmatpush1.msra.mxu0 0.0
        %6983 = vmatprep.subr.mxu0 0.0
        %6984 = vmatpush1.msra.mxu0 0.0
        %6985 = vmatprep.subr.mxu0 0.0
        %6986 = vmatpush1.msra.mxu0 0.0
        %6987 = vmatprep.subr.mxu0 0.0
        %6988 = vmatpush1.msra.mxu0 0.0
        %6989 = vmatprep.subr.mxu0 0.0
        %6990 = vmatpush1.msra.mxu0 0.0
        %6991 = vmatprep.mubr.f32.mxu0 0.0
        %6992 = vmatmul.mubr.f32.gmra.mrb[0].mxu0 %v6925
        %v6993 = vpop.f32.mrb[0].mxu0
        %v6994 = vadd.f32 0.0, %v6993
        %v6995 = vpop.f32.mrb[0].mxu0
        %6996 = vdwg.mxu0
        %v6998 = vsel %vm6081, %v6994, 0
        %7000 = vmatprep.subr.mxu0 0.0
        %7001 = vmatpush1.msra.mxu0 %v6922
        %7002 = vmatprep.subr.mxu0 0.0
        %7003 = vmatpush1.msra.mxu0 %v6923
        %7004 = vmatprep.subr.mxu0 0.0
        %7005 = vmatpush1.msra.mxu0 0.0
        %7006 = vmatprep.subr.mxu0 0.0
        %7007 = vmatpush1.msra.mxu0 0.0
        %7008 = vmatprep.subr.mxu0 0.0
        %7009 = vmatpush1.msra.mxu0 0.0
        %7010 = vmatprep.subr.mxu0 0.0
        %7011 = vmatpush1.msra.mxu0 0.0
        %7012 = vmatprep.subr.mxu0 0.0
        %7013 = vmatpush1.msra.mxu0 0.0
        %7014 = vmatprep.subr.mxu0 0.0
        %7015 = vmatpush1.msra.mxu0 0.0
        %7016 = vmatprep.subr.mxu0 0.0
        %7017 = vmatpush1.msra.mxu0 0.0
        %7018 = vmatprep.subr.mxu0 0.0
        %7019 = vmatpush1.msra.mxu0 0.0
        %7020 = vmatprep.subr.mxu0 0.0
        %7021 = vmatpush1.msra.mxu0 0.0
        %7022 = vmatprep.subr.mxu0 0.0
        %7023 = vmatpush1.msra.mxu0 0.0
        %7024 = vmatprep.subr.mxu0 0.0
        %7025 = vmatpush1.msra.mxu0 0.0
        %7026 = vmatprep.subr.mxu0 0.0
        %7027 = vmatpush1.msra.mxu0 0.0
        %7028 = vmatprep.subr.mxu0 0.0
        %7029 = vmatpush1.msra.mxu0 0.0
        %7030 = vmatprep.subr.mxu0 0.0
        %7031 = vmatpush1.msra.mxu0 0.0
        %7032 = vmatprep.subr.mxu0 0.0
        %7033 = vmatpush1.msra.mxu0 0.0
        %7034 = vmatprep.subr.mxu0 0.0
        %7035 = vmatpush1.msra.mxu0 0.0
        %7036 = vmatprep.subr.mxu0 0.0
        %7037 = vmatpush1.msra.mxu0 0.0
        %7038 = vmatprep.subr.mxu0 0.0
        %7039 = vmatpush1.msra.mxu0 0.0
        %7040 = vmatprep.subr.mxu0 0.0
        %7041 = vmatpush1.msra.mxu0 0.0
        %7042 = vmatprep.subr.mxu0 0.0
        %7043 = vmatpush1.msra.mxu0 0.0
        %7044 = vmatprep.subr.mxu0 0.0
        %7045 = vmatpush1.msra.mxu0 0.0
        %7046 = vmatprep.subr.mxu0 0.0
        %7047 = vmatpush1.msra.mxu0 0.0
        %7048 = vmatprep.subr.mxu0 0.0
        %7049 = vmatpush1.msra.mxu0 0.0
        %7050 = vmatprep.subr.mxu0 0.0
        %7051 = vmatpush1.msra.mxu0 0.0
        %7052 = vmatprep.subr.mxu0 0.0
        %7053 = vmatpush1.msra.mxu0 0.0
        %7054 = vmatprep.subr.mxu0 0.0
        %7055 = vmatpush1.msra.mxu0 0.0
        %7056 = vmatprep.subr.mxu0 0.0
        %7057 = vmatpush1.msra.mxu0 0.0
        %7058 = vmatprep.subr.mxu0 0.0
        %7059 = vmatpush1.msra.mxu0 0.0
        %7060 = vmatprep.subr.mxu0 0.0
        %7061 = vmatpush1.msra.mxu0 0.0
        %7062 = vmatprep.subr.mxu0 0.0
        %7063 = vmatpush1.msra.mxu0 0.0
        %7064 = vmatprep.mubr.f32.mxu0 0.0
        %7065 = vmatmul.mubr.f32.gmra.mrb[0].mxu0 %v6998
        %v7066 = vpop.f32.mrb[0].mxu0
        %v7067 = vadd.f32 0.0, %v7066
        %v7068 = vpop.f32.mrb[0].mxu0
        %7069 = vdwg.mxu0
        %7070 = vmatprep.subr.mxu0 0.0
        %7071 = vmatpush1.msra.mxu0 %v6069
        %7072 = vmatprep.subr.mxu0 0.0
        %7073 = vmatpush1.msra.mxu0 %v6074
        %7074 = vmatprep.subr.mxu0 0.0
        %7075 = vmatpush1.msra.mxu0 0.0
        %7076 = vmatprep.subr.mxu0 0.0
        %7077 = vmatpush1.msra.mxu0 0.0
        %7078 = vmatprep.subr.mxu0 0.0
        %7079 = vmatpush1.msra.mxu0 0.0
        %7080 = vmatprep.subr.mxu0 0.0
        %7081 = vmatpush1.msra.mxu0 0.0
        %7082 = vmatprep.subr.mxu0 0.0
        %7083 = vmatpush1.msra.mxu0 0.0
        %7084 = vmatprep.subr.mxu0 0.0
        %7085 = vmatpush1.msra.mxu0 0.0
        %7086 = vmatprep.subr.mxu0 0.0
        %7087 = vmatpush1.msra.mxu0 0.0
        %7088 = vmatprep.subr.mxu0 0.0
        %7089 = vmatpush1.msra.mxu0 0.0
        %7090 = vmatprep.subr.mxu0 0.0
        %7091 = vmatpush1.msra.mxu0 0.0
        %7092 = vmatprep.subr.mxu0 0.0
        %7093 = vmatpush1.msra.mxu0 0.0
        %7094 = vmatprep.subr.mxu0 0.0
        %7095 = vmatpush1.msra.mxu0 0.0
        %7096 = vmatprep.subr.mxu0 0.0
        %7097 = vmatpush1.msra.mxu0 0.0
        %7098 = vmatprep.subr.mxu0 0.0
        %7099 = vmatpush1.msra.mxu0 0.0
        %7100 = vmatprep.subr.mxu0 0.0
        %7101 = vmatpush1.msra.mxu0 0.0
        %7102 = vmatprep.subr.mxu0 0.0
        %7103 = vmatpush1.msra.mxu0 0.0
        %7104 = vmatprep.subr.mxu0 0.0
        %7105 = vmatpush1.msra.mxu0 0.0
        %7106 = vmatprep.subr.mxu0 0.0
        %7107 = vmatpush1.msra.mxu0 0.0
        %7108 = vmatprep.subr.mxu0 0.0
        %7109 = vmatpush1.msra.mxu0 0.0
        %7110 = vmatprep.subr.mxu0 0.0
        %7111 = vmatpush1.msra.mxu0 0.0
        %7112 = vmatprep.subr.mxu0 0.0
        %7113 = vmatpush1.msra.mxu0 0.0
        %7114 = vmatprep.subr.mxu0 0.0
        %7115 = vmatpush1.msra.mxu0 0.0
        %7116 = vmatprep.subr.mxu0 0.0
        %7117 = vmatpush1.msra.mxu0 0.0
        %7118 = vmatprep.subr.mxu0 0.0
        %7119 = vmatpush1.msra.mxu0 0.0
        %7120 = vmatprep.subr.mxu0 0.0
        %7121 = vmatpush1.msra.mxu0 0.0
        %7122 = vmatprep.subr.mxu0 0.0
        %7123 = vmatpush1.msra.mxu0 0.0
        %7124 = vmatprep.subr.mxu0 0.0
        %7125 = vmatpush1.msra.mxu0 0.0
        %7126 = vmatprep.subr.mxu0 0.0
        %7127 = vmatpush1.msra.mxu0 0.0
        %7128 = vmatprep.subr.mxu0 0.0
        %7129 = vmatpush1.msra.mxu0 0.0
        %7130 = vmatprep.subr.mxu0 0.0
        %7131 = vmatpush1.msra.mxu0 0.0
        %7132 = vmatprep.subr.mxu0 0.0
        %7133 = vmatpush1.msra.mxu0 0.0
        %7134 = vmatprep.mubr.f32.mxu0 0.0
        %7135 = vmatmul.mubr.f32.gmra.mrb[0].mxu0 %v6925
        %v7136 = vpop.f32.mrb[0].mxu0
        %v7137 = vadd.f32 0.0, %v7136
        %v7138 = vpop.f32.mrb[0].mxu0
        %7139 = vdwg.mxu0
        %v7141 = vsel %vm6081, %v7137, 0
        %7143 = vmatprep.subr.mxu0 0.0
        %7144 = vmatpush1.msra.mxu0 %v6922
        %7145 = vmatprep.subr.mxu0 0.0
        %7146 = vmatpush1.msra.mxu0 %v6923
        %7147 = vmatprep.subr.mxu0 0.0
        %7148 = vmatpush1.msra.mxu0 0.0
        %7149 = vmatprep.subr.mxu0 0.0
        %7150 = vmatpush1.msra.mxu0 0.0
        %7151 = vmatprep.subr.mxu0 0.0
        %7152 = vmatpush1.msra.mxu0 0.0
        %7153 = vmatprep.subr.mxu0 0.0
        %7154 = vmatpush1.msra.mxu0 0.0
        %7155 = vmatprep.subr.mxu0 0.0
        %7156 = vmatpush1.msra.mxu0 0.0
        %7157 = vmatprep.subr.mxu0 0.0
        %7158 = vmatpush1.msra.mxu0 0.0
        %7159 = vmatprep.subr.mxu0 0.0
        %7160 = vmatpush1.msra.mxu0 0.0
        %7161 = vmatprep.subr.mxu0 0.0
        %7162 = vmatpush1.msra.mxu0 0.0
        %7163 = vmatprep.subr.mxu0 0.0
        %7164 = vmatpush1.msra.mxu0 0.0
        %7165 = vmatprep.subr.mxu0 0.0
        %7166 = vmatpush1.msra.mxu0 0.0
        %7167 = vmatprep.subr.mxu0 0.0
        %7168 = vmatpush1.msra.mxu0 0.0
        %7169 = vmatprep.subr.mxu0 0.0
        %7170 = vmatpush1.msra.mxu0 0.0
        %7171 = vmatprep.subr.mxu0 0.0
        %7172 = vmatpush1.msra.mxu0 0.0
        %7173 = vmatprep.subr.mxu0 0.0
        %7174 = vmatpush1.msra.mxu0 0.0
        %7175 = vmatprep.subr.mxu0 0.0
        %7176 = vmatpush1.msra.mxu0 0.0
        %7177 = vmatprep.subr.mxu0 0.0
        %7178 = vmatpush1.msra.mxu0 0.0
        %7179 = vmatprep.subr.mxu0 0.0
        %7180 = vmatpush1.msra.mxu0 0.0
        %7181 = vmatprep.subr.mxu0 0.0
        %7182 = vmatpush1.msra.mxu0 0.0
        %7183 = vmatprep.subr.mxu0 0.0
        %7184 = vmatpush1.msra.mxu0 0.0
        %7185 = vmatprep.subr.mxu0 0.0
        %7186 = vmatpush1.msra.mxu0 0.0
        %7187 = vmatprep.subr.mxu0 0.0
        %7188 = vmatpush1.msra.mxu0 0.0
        %7189 = vmatprep.subr.mxu0 0.0
        %7190 = vmatpush1.msra.mxu0 0.0
        %7191 = vmatprep.subr.mxu0 0.0
        %7192 = vmatpush1.msra.mxu0 0.0
        %7193 = vmatprep.subr.mxu0 0.0
        %7194 = vmatpush1.msra.mxu0 0.0
        %7195 = vmatprep.subr.mxu0 0.0
        %7196 = vmatpush1.msra.mxu0 0.0
        %7197 = vmatprep.subr.mxu0 0.0
        %7198 = vmatpush1.msra.mxu0 0.0
        %7199 = vmatprep.subr.mxu0 0.0
        %7200 = vmatpush1.msra.mxu0 0.0
        %7201 = vmatprep.subr.mxu0 0.0
        %7202 = vmatpush1.msra.mxu0 0.0
        %7203 = vmatprep.subr.mxu0 0.0
        %7204 = vmatpush1.msra.mxu0 0.0
        %7205 = vmatprep.subr.mxu0 0.0
        %7206 = vmatpush1.msra.mxu0 0.0
        %7207 = vmatprep.mubr.f32.mxu0 0.0
        %7208 = vmatmul.mubr.f32.gmra.mrb[0].mxu0 %v7141
        %v7209 = vpop.f32.mrb[0].mxu0
        %v7210 = vadd.f32 0.0, %v7209
        %v7211 = vpop.f32.mrb[0].mxu0
        %7212 = vdwg.mxu0
        %v7213 = vld [vmem:[%s5] sm:$0xff]
        %v7214 = vld [vmem:[%s10] sm:$0xff]
        %vm7215 = vcmask 64512
        %v7217 = vsel %vm7215, %v7213, 0
        %7219 = vmatprep.subr.mxu0 0.0
        %7220 = vmatpush1.msra.mxu0 %v7067
        %7221 = vmatprep.subr.mxu0 0.0
        %7222 = vmatpush1.msra.mxu0 0.0
        %7223 = vmatprep.subr.mxu0 0.0
        %7224 = vmatpush1.msra.mxu0 0.0
        %7225 = vmatprep.subr.mxu0 0.0
        %7226 = vmatpush1.msra.mxu0 0.0
        %7227 = vmatprep.subr.mxu0 0.0
        %7228 = vmatpush1.msra.mxu0 0.0
        %7229 = vmatprep.subr.mxu0 0.0
        %7230 = vmatpush1.msra.mxu0 0.0
        %7231 = vmatprep.subr.mxu0 0.0
        %7232 = vmatpush1.msra.mxu0 0.0
        %7233 = vmatprep.subr.mxu0 0.0
        %7234 = vmatpush1.msra.mxu0 0.0
        %7235 = vmatprep.subr.mxu0 0.0
        %7236 = vmatpush1.msra.mxu0 0.0
        %7237 = vmatprep.subr.mxu0 0.0
        %7238 = vmatpush1.msra.mxu0 0.0
        %7239 = vmatprep.subr.mxu0 0.0
        %7240 = vmatpush1.msra.mxu0 0.0
        %7241 = vmatprep.subr.mxu0 0.0
        %7242 = vmatpush1.msra.mxu0 0.0
        %7243 = vmatprep.subr.mxu0 0.0
        %7244 = vmatpush1.msra.mxu0 0.0
        %7245 = vmatprep.subr.mxu0 0.0
        %7246 = vmatpush1.msra.mxu0 0.0
        %7247 = vmatprep.subr.mxu0 0.0
        %7248 = vmatpush1.msra.mxu0 0.0
        %7249 = vmatprep.subr.mxu0 0.0
        %7250 = vmatpush1.msra.mxu0 0.0
        %7251 = vmatprep.subr.mxu0 0.0
        %7252 = vmatpush1.msra.mxu0 0.0
        %7253 = vmatprep.subr.mxu0 0.0
        %7254 = vmatpush1.msra.mxu0 0.0
        %7255 = vmatprep.subr.mxu0 0.0
        %7256 = vmatpush1.msra.mxu0 0.0
        %7257 = vmatprep.subr.mxu0 0.0
        %7258 = vmatpush1.msra.mxu0 0.0
        %7259 = vmatprep.subr.mxu0 0.0
        %7260 = vmatpush1.msra.mxu0 0.0
        %7261 = vmatprep.subr.mxu0 0.0
        %7262 = vmatpush1.msra.mxu0 0.0
        %7263 = vmatprep.subr.mxu0 0.0
        %7264 = vmatpush1.msra.mxu0 0.0
        %7265 = vmatprep.subr.mxu0 0.0
        %7266 = vmatpush1.msra.mxu0 0.0
        %7267 = vmatprep.subr.mxu0 0.0
        %7268 = vmatpush1.msra.mxu0 0.0
        %7269 = vmatprep.subr.mxu0 0.0
        %7270 = vmatpush1.msra.mxu0 0.0
        %7271 = vmatprep.subr.mxu0 0.0
        %7272 = vmatpush1.msra.mxu0 0.0
        %7273 = vmatprep.subr.mxu0 0.0
        %7274 = vmatpush1.msra.mxu0 0.0
        %7275 = vmatprep.subr.mxu0 0.0
        %7276 = vmatpush1.msra.mxu0 0.0
        %7277 = vmatprep.subr.mxu0 0.0
        %7278 = vmatpush1.msra.mxu0 0.0
        %7279 = vmatprep.subr.mxu0 0.0
        %7280 = vmatpush1.msra.mxu0 0.0
        %7281 = vmatprep.subr.mxu0 0.0
        %7282 = vmatpush1.msra.mxu0 0.0
        %7283 = vmatprep.mubr.f32.mxu0 0.0
        %7284 = vmatmul.mubr.f32.gmra.mrb[0].mxu0 %v7217
        %v7285 = vpop.f32.mrb[0].mxu0
        %v7286 = vadd.f32 0.0, %v7285
        %v7287 = vpop.f32.mrb[0].mxu0
        %7288 = vdwg.mxu0
        %v7290 = vsel %vm7215, %v7286, 0
        %7292 = vmatprep.subr.mxu0 0.0
        %7293 = vmatpush1.msra.mxu0 %v7214
        %7294 = vmatprep.subr.mxu0 0.0
        %7295 = vmatpush1.msra.mxu0 0.0
        %7296 = vmatprep.subr.mxu0 0.0
        %7297 = vmatpush1.msra.mxu0 0.0
        %7298 = vmatprep.subr.mxu0 0.0
        %7299 = vmatpush1.msra.mxu0 0.0
        %7300 = vmatprep.subr.mxu0 0.0
        %7301 = vmatpush1.msra.mxu0 0.0
        %7302 = vmatprep.subr.mxu0 0.0
        %7303 = vmatpush1.msra.mxu0 0.0
        %7304 = vmatprep.subr.mxu0 0.0
        %7305 = vmatpush1.msra.mxu0 0.0
        %7306 = vmatprep.subr.mxu0 0.0
        %7307 = vmatpush1.msra.mxu0 0.0
        %7308 = vmatprep.subr.mxu0 0.0
        %7309 = vmatpush1.msra.mxu0 0.0
        %7310 = vmatprep.subr.mxu0 0.0
        %7311 = vmatpush1.msra.mxu0 0.0
        %7312 = vmatprep.subr.mxu0 0.0
        %7313 = vmatpush1.msra.mxu0 0.0
        %7314 = vmatprep.subr.mxu0 0.0
        %7315 = vmatpush1.msra.mxu0 0.0
        %7316 = vmatprep.subr.mxu0 0.0
        %7317 = vmatpush1.msra.mxu0 0.0
        %7318 = vmatprep.subr.mxu0 0.0
        %7319 = vmatpush1.msra.mxu0 0.0
        %7320 = vmatprep.subr.mxu0 0.0
        %7321 = vmatpush1.msra.mxu0 0.0
        %7322 = vmatprep.subr.mxu0 0.0
        %7323 = vmatpush1.msra.mxu0 0.0
        %7324 = vmatprep.subr.mxu0 0.0
        %7325 = vmatpush1.msra.mxu0 0.0
        %7326 = vmatprep.subr.mxu0 0.0
        %7327 = vmatpush1.msra.mxu0 0.0
        %7328 = vmatprep.subr.mxu0 0.0
        %7329 = vmatpush1.msra.mxu0 0.0
        %7330 = vmatprep.subr.mxu0 0.0
        %7331 = vmatpush1.msra.mxu0 0.0
        %7332 = vmatprep.subr.mxu0 0.0
        %7333 = vmatpush1.msra.mxu0 0.0
        %7334 = vmatprep.subr.mxu0 0.0
        %7335 = vmatpush1.msra.mxu0 0.0
        %7336 = vmatprep.subr.mxu0 0.0
        %7337 = vmatpush1.msra.mxu0 0.0
        %7338 = vmatprep.subr.mxu0 0.0
        %7339 = vmatpush1.msra.mxu0 0.0
        %7340 = vmatprep.subr.mxu0 0.0
        %7341 = vmatpush1.msra.mxu0 0.0
        %7342 = vmatprep.subr.mxu0 0.0
        %7343 = vmatpush1.msra.mxu0 0.0
        %7344 = vmatprep.subr.mxu0 0.0
        %7345 = vmatpush1.msra.mxu0 0.0
        %7346 = vmatprep.subr.mxu0 0.0
        %7347 = vmatpush1.msra.mxu0 0.0
        %7348 = vmatprep.subr.mxu0 0.0
        %7349 = vmatpush1.msra.mxu0 0.0
        %7350 = vmatprep.subr.mxu0 0.0
        %7351 = vmatpush1.msra.mxu0 0.0
        %7352 = vmatprep.subr.mxu0 0.0
        %7353 = vmatpush1.msra.mxu0 0.0
        %7354 = vmatprep.subr.mxu0 0.0
        %7355 = vmatpush1.msra.mxu0 0.0
        %7356 = vmatprep.mubr.f32.mxu0 0.0
        %7357 = vmatmul.mubr.f32.gmra.mrb[0].mxu0 %v7290
        %v7358 = vpop.f32.mrb[0].mxu0
        %v7359 = vadd.f32 0.0, %v7358
        %v7360 = vpop.f32.mrb[0].mxu0
        %7361 = vdwg.mxu0
        %7362 = vmatprep.subr.mxu0 0.0
        %7363 = vmatpush1.msra.mxu0 %v7210
        %7364 = vmatprep.subr.mxu0 0.0
        %7365 = vmatpush1.msra.mxu0 0.0
        %7366 = vmatprep.subr.mxu0 0.0
        %7367 = vmatpush1.msra.mxu0 0.0
        %7368 = vmatprep.subr.mxu0 0.0
        %7369 = vmatpush1.msra.mxu0 0.0
        %7370 = vmatprep.subr.mxu0 0.0
        %7371 = vmatpush1.msra.mxu0 0.0
        %7372 = vmatprep.subr.mxu0 0.0
        %7373 = vmatpush1.msra.mxu0 0.0
        %7374 = vmatprep.subr.mxu0 0.0
        %7375 = vmatpush1.msra.mxu0 0.0
        %7376 = vmatprep.subr.mxu0 0.0
        %7377 = vmatpush1.msra.mxu0 0.0
        %7378 = vmatprep.subr.mxu0 0.0
        %7379 = vmatpush1.msra.mxu0 0.0
        %7380 = vmatprep.subr.mxu0 0.0
        %7381 = vmatpush1.msra.mxu0 0.0
        %7382 = vmatprep.subr.mxu0 0.0
        %7383 = vmatpush1.msra.mxu0 0.0
        %7384 = vmatprep.subr.mxu0 0.0
        %7385 = vmatpush1.msra.mxu0 0.0
        %7386 = vmatprep.subr.mxu0 0.0
        %7387 = vmatpush1.msra.mxu0 0.0
        %7388 = vmatprep.subr.mxu0 0.0
        %7389 = vmatpush1.msra.mxu0 0.0
        %7390 = vmatprep.subr.mxu0 0.0
        %7391 = vmatpush1.msra.mxu0 0.0
        %7392 = vmatprep.subr.mxu0 0.0
        %7393 = vmatpush1.msra.mxu0 0.0
        %7394 = vmatprep.subr.mxu0 0.0
        %7395 = vmatpush1.msra.mxu0 0.0
        %7396 = vmatprep.subr.mxu0 0.0
        %7397 = vmatpush1.msra.mxu0 0.0
        %7398 = vmatprep.subr.mxu0 0.0
        %7399 = vmatpush1.msra.mxu0 0.0
        %7400 = vmatprep.subr.mxu0 0.0
        %7401 = vmatpush1.msra.mxu0 0.0
        %7402 = vmatprep.subr.mxu0 0.0
        %7403 = vmatpush1.msra.mxu0 0.0
        %7404 = vmatprep.subr.mxu0 0.0
        %7405 = vmatpush1.msra.mxu0 0.0
        %7406 = vmatprep.subr.mxu0 0.0
        %7407 = vmatpush1.msra.mxu0 0.0
        %7408 = vmatprep.subr.mxu0 0.0
        %7409 = vmatpush1.msra.mxu0 0.0
        %7410 = vmatprep.subr.mxu0 0.0
        %7411 = vmatpush1.msra.mxu0 0.0
        %7412 = vmatprep.subr.mxu0 0.0
        %7413 = vmatpush1.msra.mxu0 0.0
        %7414 = vmatprep.subr.mxu0 0.0
        %7415 = vmatpush1.msra.mxu0 0.0
        %7416 = vmatprep.subr.mxu0 0.0
        %7417 = vmatpush1.msra.mxu0 0.0
        %7418 = vmatprep.subr.mxu0 0.0
        %7419 = vmatpush1.msra.mxu0 0.0
        %7420 = vmatprep.subr.mxu0 0.0
        %7421 = vmatpush1.msra.mxu0 0.0
        %7422 = vmatprep.subr.mxu0 0.0
        %7423 = vmatpush1.msra.mxu0 0.0
        %7424 = vmatprep.subr.mxu0 0.0
        %7425 = vmatpush1.msra.mxu0 0.0
        %7426 = vmatprep.mubr.f32.mxu0 0.0
        %7427 = vmatmul.mubr.f32.gmra.mrb[0].mxu0 %v7217
        %v7428 = vpop.f32.mrb[0].mxu0
        %v7429 = vadd.f32 0.0, %v7428
        %v7430 = vpop.f32.mrb[0].mxu0
        %7431 = vdwg.mxu0
        %v7433 = vsel %vm7215, %v7429, 0
        %7435 = vmatprep.subr.mxu0 0.0
        %7436 = vmatpush1.msra.mxu0 %v7214
        %7437 = vmatprep.subr.mxu0 0.0
        %7438 = vmatpush1.msra.mxu0 0.0
        %7439 = vmatprep.subr.mxu0 0.0
        %7440 = vmatpush1.msra.mxu0 0.0
        %7441 = vmatprep.subr.mxu0 0.0
        %7442 = vmatpush1.msra.mxu0 0.0
        %7443 = vmatprep.subr.mxu0 0.0
        %7444 = vmatpush1.msra.mxu0 0.0
        %7445 = vmatprep.subr.mxu0 0.0
        %7446 = vmatpush1.msra.mxu0 0.0
        %7447 = vmatprep.subr.mxu0 0.0
        %7448 = vmatpush1.msra.mxu0 0.0
        %7449 = vmatprep.subr.mxu0 0.0
        %7450 = vmatpush1.msra.mxu0 0.0
        %7451 = vmatprep.subr.mxu0 0.0
        %7452 = vmatpush1.msra.mxu0 0.0
        %7453 = vmatprep.subr.mxu0 0.0
        %7454 = vmatpush1.msra.mxu0 0.0
        %7455 = vmatprep.subr.mxu0 0.0
        %7456 = vmatpush1.msra.mxu0 0.0
        %7457 = vmatprep.subr.mxu0 0.0
        %7458 = vmatpush1.msra.mxu0 0.0
        %7459 = vmatprep.subr.mxu0 0.0
        %7460 = vmatpush1.msra.mxu0 0.0
        %7461 = vmatprep.subr.mxu0 0.0
        %7462 = vmatpush1.msra.mxu0 0.0
        %7463 = vmatprep.subr.mxu0 0.0
        %7464 = vmatpush1.msra.mxu0 0.0
        %7465 = vmatprep.subr.mxu0 0.0
        %7466 = vmatpush1.msra.mxu0 0.0
        %7467 = vmatprep.subr.mxu0 0.0
        %7468 = vmatpush1.msra.mxu0 0.0
        %7469 = vmatprep.subr.mxu0 0.0
        %7470 = vmatpush1.msra.mxu0 0.0
        %7471 = vmatprep.subr.mxu0 0.0
        %7472 = vmatpush1.msra.mxu0 0.0
        %7473 = vmatprep.subr.mxu0 0.0
        %7474 = vmatpush1.msra.mxu0 0.0
        %7475 = vmatprep.subr.mxu0 0.0
        %7476 = vmatpush1.msra.mxu0 0.0
        %7477 = vmatprep.subr.mxu0 0.0
        %7478 = vmatpush1.msra.mxu0 0.0
        %7479 = vmatprep.subr.mxu0 0.0
        %7480 = vmatpush1.msra.mxu0 0.0
        %7481 = vmatprep.subr.mxu0 0.0
        %7482 = vmatpush1.msra.mxu0 0.0
        %7483 = vmatprep.subr.mxu0 0.0
        %7484 = vmatpush1.msra.mxu0 0.0
        %7485 = vmatprep.subr.mxu0 0.0
        %7486 = vmatpush1.msra.mxu0 0.0
        %7487 = vmatprep.subr.mxu0 0.0
        %7488 = vmatpush1.msra.mxu0 0.0
        %7489 = vmatprep.subr.mxu0 0.0
        %7490 = vmatpush1.msra.mxu0 0.0
        %7491 = vmatprep.subr.mxu0 0.0
        %7492 = vmatpush1.msra.mxu0 0.0
        %7493 = vmatprep.subr.mxu0 0.0
        %7494 = vmatpush1.msra.mxu0 0.0
        %7495 = vmatprep.subr.mxu0 0.0
        %7496 = vmatpush1.msra.mxu0 0.0
        %7497 = vmatprep.subr.mxu0 0.0
        %7498 = vmatpush1.msra.mxu0 0.0
        %7499 = vmatprep.mubr.f32.mxu0 0.0
        %7500 = vmatmul.mubr.f32.gmra.mrb[0].mxu0 %v7433
        %v7501 = vpop.f32.mrb[0].mxu0
        %v7502 = vadd.f32 0.0, %v7501
        %v7503 = vpop.f32.mrb[0].mxu0
        %7504 = vdwg.mxu0
        %v7505 = vmul.f32 %v7067, %v7067
        %7506 = vmatprep.subr.mxu0 0.0
        %7507 = vmatpush1.msra.mxu0 %v7505
        %7508 = vmatprep.subr.mxu0 0.0
        %7509 = vmatpush1.msra.mxu0 0.0
        %7510 = vmatprep.subr.mxu0 0.0
        %7511 = vmatpush1.msra.mxu0 0.0
        %7512 = vmatprep.subr.mxu0 0.0
        %7513 = vmatpush1.msra.mxu0 0.0
        %7514 = vmatprep.subr.mxu0 0.0
        %7515 = vmatpush1.msra.mxu0 0.0
        %7516 = vmatprep.subr.mxu0 0.0
        %7517 = vmatpush1.msra.mxu0 0.0
        %7518 = vmatprep.subr.mxu0 0.0
        %7519 = vmatpush1.msra.mxu0 0.0
        %7520 = vmatprep.subr.mxu0 0.0
        %7521 = vmatpush1.msra.mxu0 0.0
        %7522 = vmatprep.subr.mxu0 0.0
        %7523 = vmatpush1.msra.mxu0 0.0
        %7524 = vmatprep.subr.mxu0 0.0
        %7525 = vmatpush1.msra.mxu0 0.0
        %7526 = vmatprep.subr.mxu0 0.0
        %7527 = vmatpush1.msra.mxu0 0.0
        %7528 = vmatprep.subr.mxu0 0.0
        %7529 = vmatpush1.msra.mxu0 0.0
        %7530 = vmatprep.subr.mxu0 0.0
        %7531 = vmatpush1.msra.mxu0 0.0
        %7532 = vmatprep.subr.mxu0 0.0
        %7533 = vmatpush1.msra.mxu0 0.0
        %7534 = vmatprep.subr.mxu0 0.0
        %7535 = vmatpush1.msra.mxu0 0.0
        %7536 = vmatprep.subr.mxu0 0.0
        %7537 = vmatpush1.msra.mxu0 0.0
        %7538 = vmatprep.subr.mxu0 0.0
        %7539 = vmatpush1.msra.mxu0 0.0
        %7540 = vmatprep.subr.mxu0 0.0
        %7541 = vmatpush1.msra.mxu0 0.0
        %7542 = vmatprep.subr.mxu0 0.0
        %7543 = vmatpush1.msra.mxu0 0.0
        %7544 = vmatprep.subr.mxu0 0.0
        %7545 = vmatpush1.msra.mxu0 0.0
        %7546 = vmatprep.subr.mxu0 0.0
        %7547 = vmatpush1.msra.mxu0 0.0
        %7548 = vmatprep.subr.mxu0 0.0
        %7549 = vmatpush1.msra.mxu0 0.0
        %7550 = vmatprep.subr.mxu0 0.0
        %7551 = vmatpush1.msra.mxu0 0.0
        %7552 = vmatprep.subr.mxu0 0.0
        %7553 = vmatpush1.msra.mxu0 0.0
        %7554 = vmatprep.subr.mxu0 0.0
        %7555 = vmatpush1.msra.mxu0 0.0
        %7556 = vmatprep.subr.mxu0 0.0
        %7557 = vmatpush1.msra.mxu0 0.0
        %7558 = vmatprep.subr.mxu0 0.0
        %7559 = vmatpush1.msra.mxu0 0.0
        %7560 = vmatprep.subr.mxu0 0.0
        %7561 = vmatpush1.msra.mxu0 0.0
        %7562 = vmatprep.subr.mxu0 0.0
        %7563 = vmatpush1.msra.mxu0 0.0
        %7564 = vmatprep.subr.mxu0 0.0
        %7565 = vmatpush1.msra.mxu0 0.0
        %7566 = vmatprep.subr.mxu0 0.0
        %7567 = vmatpush1.msra.mxu0 0.0
        %7568 = vmatprep.subr.mxu0 0.0
        %7569 = vmatpush1.msra.mxu0 0.0
        %7570 = vmatprep.mubr.f32.mxu0 0.0
        %7571 = vmatmul.mubr.f32.gmra.mrb[0].mxu0 %v7217
        %v7572 = vpop.f32.mrb[0].mxu0
        %v7573 = vadd.f32 0.0, %v7572
        %v7574 = vpop.f32.mrb[0].mxu0
        %7575 = vdwg.mxu0
        %v7577 = vsel %vm7215, %v7573, 0
        %7579 = vmatprep.subr.mxu0 0.0
        %7580 = vmatpush1.msra.mxu0 %v7214
        %7581 = vmatprep.subr.mxu0 0.0
        %7582 = vmatpush1.msra.mxu0 0.0
        %7583 = vmatprep.subr.mxu0 0.0
        %7584 = vmatpush1.msra.mxu0 0.0
        %7585 = vmatprep.subr.mxu0 0.0
        %7586 = vmatpush1.msra.mxu0 0.0
        %7587 = vmatprep.subr.mxu0 0.0
        %7588 = vmatpush1.msra.mxu0 0.0
        %7589 = vmatprep.subr.mxu0 0.0
        %7590 = vmatpush1.msra.mxu0 0.0
        %7591 = vmatprep.subr.mxu0 0.0
        %7592 = vmatpush1.msra.mxu0 0.0
        %7593 = vmatprep.subr.mxu0 0.0
        %7594 = vmatpush1.msra.mxu0 0.0
        %7595 = vmatprep.subr.mxu0 0.0
        %7596 = vmatpush1.msra.mxu0 0.0
        %7597 = vmatprep.subr.mxu0 0.0
        %7598 = vmatpush1.msra.mxu0 0.0
        %7599 = vmatprep.subr.mxu0 0.0
        %7600 = vmatpush1.msra.mxu0 0.0
        %7601 = vmatprep.subr.mxu0 0.0
        %7602 = vmatpush1.msra.mxu0 0.0
        %7603 = vmatprep.subr.mxu0 0.0
        %7604 = vmatpush1.msra.mxu0 0.0
        %7605 = vmatprep.subr.mxu0 0.0
        %7606 = vmatpush1.msra.mxu0 0.0
        %7607 = vmatprep.subr.mxu0 0.0
        %7608 = vmatpush1.msra.mxu0 0.0
        %7609 = vmatprep.subr.mxu0 0.0
        %7610 = vmatpush1.msra.mxu0 0.0
        %7611 = vmatprep.subr.mxu0 0.0
        %7612 = vmatpush1.msra.mxu0 0.0
        %7613 = vmatprep.subr.mxu0 0.0
        %7614 = vmatpush1.msra.mxu0 0.0
        %7615 = vmatprep.subr.mxu0 0.0
        %7616 = vmatpush1.msra.mxu0 0.0
        %7617 = vmatprep.subr.mxu0 0.0
        %7618 = vmatpush1.msra.mxu0 0.0
        %7619 = vmatprep.subr.mxu0 0.0
        %7620 = vmatpush1.msra.mxu0 0.0
        %7621 = vmatprep.subr.mxu0 0.0
        %7622 = vmatpush1.msra.mxu0 0.0
        %7623 = vmatprep.subr.mxu0 0.0
        %7624 = vmatpush1.msra.mxu0 0.0
        %7625 = vmatprep.subr.mxu0 0.0
        %7626 = vmatpush1.msra.mxu0 0.0
        %7627 = vmatprep.subr.mxu0 0.0
        %7628 = vmatpush1.msra.mxu0 0.0
        %7629 = vmatprep.subr.mxu0 0.0
        %7630 = vmatpush1.msra.mxu0 0.0
        %7631 = vmatprep.subr.mxu0 0.0
        %7632 = vmatpush1.msra.mxu0 0.0
        %7633 = vmatprep.subr.mxu0 0.0
        %7634 = vmatpush1.msra.mxu0 0.0
        %7635 = vmatprep.subr.mxu0 0.0
        %7636 = vmatpush1.msra.mxu0 0.0
        %7637 = vmatprep.subr.mxu0 0.0
        %7638 = vmatpush1.msra.mxu0 0.0
        %7639 = vmatprep.subr.mxu0 0.0
        %7640 = vmatpush1.msra.mxu0 0.0
        %7641 = vmatprep.subr.mxu0 0.0
        %7642 = vmatpush1.msra.mxu0 0.0
        %7643 = vmatprep.mubr.f32.mxu0 0.0
        %7644 = vmatmul.mubr.f32.gmra.mrb[0].mxu0 %v7577
        %v7645 = vpop.f32.mrb[0].mxu0
        %v7646 = vadd.f32 0.0, %v7645
        %v7647 = vpop.f32.mrb[0].mxu0
        %7648 = vdwg.mxu0
        %v7649 = vmul.f32 %v7210, %v7210
        %7650 = vmatprep.subr.mxu0 0.0
        %7651 = vmatpush1.msra.mxu0 %v7649
        %7652 = vmatprep.subr.mxu0 0.0
        %7653 = vmatpush1.msra.mxu0 0.0
        %7654 = vmatprep.subr.mxu0 0.0
        %7655 = vmatpush1.msra.mxu0 0.0
        %7656 = vmatprep.subr.mxu0 0.0
        %7657 = vmatpush1.msra.mxu0 0.0
        %7658 = vmatprep.subr.mxu0 0.0
        %7659 = vmatpush1.msra.mxu0 0.0
        %7660 = vmatprep.subr.mxu0 0.0
        %7661 = vmatpush1.msra.mxu0 0.0
        %7662 = vmatprep.subr.mxu0 0.0
        %7663 = vmatpush1.msra.mxu0 0.0
        %7664 = vmatprep.subr.mxu0 0.0
        %7665 = vmatpush1.msra.mxu0 0.0
        %7666 = vmatprep.subr.mxu0 0.0
        %7667 = vmatpush1.msra.mxu0 0.0
        %7668 = vmatprep.subr.mxu0 0.0
        %7669 = vmatpush1.msra.mxu0 0.0
        %7670 = vmatprep.subr.mxu0 0.0
        %7671 = vmatpush1.msra.mxu0 0.0
        %7672 = vmatprep.subr.mxu0 0.0
        %7673 = vmatpush1.msra.mxu0 0.0
        %7674 = vmatprep.subr.mxu0 0.0
        %7675 = vmatpush1.msra.mxu0 0.0
        %7676 = vmatprep.subr.mxu0 0.0
        %7677 = vmatpush1.msra.mxu0 0.0
        %7678 = vmatprep.subr.mxu0 0.0
        %7679 = vmatpush1.msra.mxu0 0.0
        %7680 = vmatprep.subr.mxu0 0.0
        %7681 = vmatpush1.msra.mxu0 0.0
        %7682 = vmatprep.subr.mxu0 0.0
        %7683 = vmatpush1.msra.mxu0 0.0
        %7684 = vmatprep.subr.mxu0 0.0
        %7685 = vmatpush1.msra.mxu0 0.0
        %7686 = vmatprep.subr.mxu0 0.0
        %7687 = vmatpush1.msra.mxu0 0.0
        %7688 = vmatprep.subr.mxu0 0.0
        %7689 = vmatpush1.msra.mxu0 0.0
        %7690 = vmatprep.subr.mxu0 0.0
        %7691 = vmatpush1.msra.mxu0 0.0
        %7692 = vmatprep.subr.mxu0 0.0
        %7693 = vmatpush1.msra.mxu0 0.0
        %7694 = vmatprep.subr.mxu0 0.0
        %7695 = vmatpush1.msra.mxu0 0.0
        %7696 = vmatprep.subr.mxu0 0.0
        %7697 = vmatpush1.msra.mxu0 0.0
        %7698 = vmatprep.subr.mxu0 0.0
        %7699 = vmatpush1.msra.mxu0 0.0
        %7700 = vmatprep.subr.mxu0 0.0
        %7701 = vmatpush1.msra.mxu0 0.0
        %7702 = vmatprep.subr.mxu0 0.0
        %7703 = vmatpush1.msra.mxu0 0.0
        %7704 = vmatprep.subr.mxu0 0.0
        %7705 = vmatpush1.msra.mxu0 0.0
        %7706 = vmatprep.subr.mxu0 0.0
        %7707 = vmatpush1.msra.mxu0 0.0
        %7708 = vmatprep.subr.mxu0 0.0
        %7709 = vmatpush1.msra.mxu0 0.0
        %7710 = vmatprep.subr.mxu0 0.0
        %7711 = vmatpush1.msra.mxu0 0.0
        %7712 = vmatprep.subr.mxu0 0.0
        %7713 = vmatpush1.msra.mxu0 0.0
        %7714 = vmatprep.mubr.f32.mxu0 0.0
        %7715 = vmatmul.mubr.f32.gmra.mrb[0].mxu0 %v7217
        %v7716 = vpop.f32.mrb[0].mxu0
        %v7717 = vadd.f32 0.0, %v7716
        %v7718 = vpop.f32.mrb[0].mxu0
        %7719 = vdwg.mxu0
        %v7721 = vsel %vm7215, %v7717, 0
        %7723 = vmatprep.subr.mxu0 0.0
        %7724 = vmatpush1.msra.mxu0 %v7214
        %7725 = vmatprep.subr.mxu0 0.0
        %7726 = vmatpush1.msra.mxu0 0.0
        %7727 = vmatprep.subr.mxu0 0.0
        %7728 = vmatpush1.msra.mxu0 0.0
        %7729 = vmatprep.subr.mxu0 0.0
        %7730 = vmatpush1.msra.mxu0 0.0
        %7731 = vmatprep.subr.mxu0 0.0
        %7732 = vmatpush1.msra.mxu0 0.0
        %7733 = vmatprep.subr.mxu0 0.0
        %7734 = vmatpush1.msra.mxu0 0.0
        %7735 = vmatprep.subr.mxu0 0.0
        %7736 = vmatpush1.msra.mxu0 0.0
        %7737 = vmatprep.subr.mxu0 0.0
        %7738 = vmatpush1.msra.mxu0 0.0
        %7739 = vmatprep.subr.mxu0 0.0
        %7740 = vmatpush1.msra.mxu0 0.0
        %7741 = vmatprep.subr.mxu0 0.0
        %7742 = vmatpush1.msra.mxu0 0.0
        %7743 = vmatprep.subr.mxu0 0.0
        %7744 = vmatpush1.msra.mxu0 0.0
        %7745 = vmatprep.subr.mxu0 0.0
        %7746 = vmatpush1.msra.mxu0 0.0
        %7747 = vmatprep.subr.mxu0 0.0
        %7748 = vmatpush1.msra.mxu0 0.0
        %7749 = vmatprep.subr.mxu0 0.0
        %7750 = vmatpush1.msra.mxu0 0.0
        %7751 = vmatprep.subr.mxu0 0.0
        %7752 = vmatpush1.msra.mxu0 0.0
        %7753 = vmatprep.subr.mxu0 0.0
        %7754 = vmatpush1.msra.mxu0 0.0
        %7755 = vmatprep.subr.mxu0 0.0
        %7756 = vmatpush1.msra.mxu0 0.0
        %7757 = vmatprep.subr.mxu0 0.0
        %7758 = vmatpush1.msra.mxu0 0.0
        %7759 = vmatprep.subr.mxu0 0.0
        %7760 = vmatpush1.msra.mxu0 0.0
        %7761 = vmatprep.subr.mxu0 0.0
        %7762 = vmatpush1.msra.mxu0 0.0
        %7763 = vmatprep.subr.mxu0 0.0
        %7764 = vmatpush1.msra.mxu0 0.0
        %7765 = vmatprep.subr.mxu0 0.0
        %7766 = vmatpush1.msra.mxu0 0.0
        %7767 = vmatprep.subr.mxu0 0.0
        %7768 = vmatpush1.msra.mxu0 0.0
        %7769 = vmatprep.subr.mxu0 0.0
        %7770 = vmatpush1.msra.mxu0 0.0
        %7771 = vmatprep.subr.mxu0 0.0
        %7772 = vmatpush1.msra.mxu0 0.0
        %7773 = vmatprep.subr.mxu0 0.0
        %7774 = vmatpush1.msra.mxu0 0.0
        %7775 = vmatprep.subr.mxu0 0.0
        %7776 = vmatpush1.msra.mxu0 0.0
        %7777 = vmatprep.subr.mxu0 0.0
        %7778 = vmatpush1.msra.mxu0 0.0
        %7779 = vmatprep.subr.mxu0 0.0
        %7780 = vmatpush1.msra.mxu0 0.0
        %7781 = vmatprep.subr.mxu0 0.0
        %7782 = vmatpush1.msra.mxu0 0.0
        %7783 = vmatprep.subr.mxu0 0.0
        %7784 = vmatpush1.msra.mxu0 0.0
        %7785 = vmatprep.subr.mxu0 0.0
        %7786 = vmatpush1.msra.mxu0 0.0
        %7787 = vmatprep.mubr.f32.mxu0 0.0
        %7788 = vmatmul.mubr.f32.gmra.mrb[0].mxu0 %v7721
        %v7789 = vpop.f32.mrb[0].mxu0
        %v7790 = vadd.f32 0.0, %v7789
        %v7791 = vpop.f32.mrb[0].mxu0
        %7792 = vdwg.mxu0
        %v7793 = vmul.f32 %v7067, %v7210
        %7794 = vmatprep.subr.mxu0 0.0
        %7795 = vmatpush1.msra.mxu0 %v7793
        %7796 = vmatprep.subr.mxu0 0.0
        %7797 = vmatpush1.msra.mxu0 0.0
        %7798 = vmatprep.subr.mxu0 0.0
        %7799 = vmatpush1.msra.mxu0 0.0
        %7800 = vmatprep.subr.mxu0 0.0
        %7801 = vmatpush1.msra.mxu0 0.0
        %7802 = vmatprep.subr.mxu0 0.0
        %7803 = vmatpush1.msra.mxu0 0.0
        %7804 = vmatprep.subr.mxu0 0.0
        %7805 = vmatpush1.msra.mxu0 0.0
        %7806 = vmatprep.subr.mxu0 0.0
        %7807 = vmatpush1.msra.mxu0 0.0
        %7808 = vmatprep.subr.mxu0 0.0
        %7809 = vmatpush1.msra.mxu0 0.0
        %7810 = vmatprep.subr.mxu0 0.0
        %7811 = vmatpush1.msra.mxu0 0.0
        %7812 = vmatprep.subr.mxu0 0.0
        %7813 = vmatpush1.msra.mxu0 0.0
        %7814 = vmatprep.subr.mxu0 0.0
        %7815 = vmatpush1.msra.mxu0 0.0
        %7816 = vmatprep.subr.mxu0 0.0
        %7817 = vmatpush1.msra.mxu0 0.0
        %7818 = vmatprep.subr.mxu0 0.0
        %7819 = vmatpush1.msra.mxu0 0.0
        %7820 = vmatprep.subr.mxu0 0.0
        %7821 = vmatpush1.msra.mxu0 0.0
        %7822 = vmatprep.subr.mxu0 0.0
        %7823 = vmatpush1.msra.mxu0 0.0
        %7824 = vmatprep.subr.mxu0 0.0
        %7825 = vmatpush1.msra.mxu0 0.0
        %7826 = vmatprep.subr.mxu0 0.0
        %7827 = vmatpush1.msra.mxu0 0.0
        %7828 = vmatprep.subr.mxu0 0.0
        %7829 = vmatpush1.msra.mxu0 0.0
        %7830 = vmatprep.subr.mxu0 0.0
        %7831 = vmatpush1.msra.mxu0 0.0
        %7832 = vmatprep.subr.mxu0 0.0
        %7833 = vmatpush1.msra.mxu0 0.0
        %7834 = vmatprep.subr.mxu0 0.0
        %7835 = vmatpush1.msra.mxu0 0.0
        %7836 = vmatprep.subr.mxu0 0.0
        %7837 = vmatpush1.msra.mxu0 0.0
        %7838 = vmatprep.subr.mxu0 0.0
        %7839 = vmatpush1.msra.mxu0 0.0
        %7840 = vmatprep.subr.mxu0 0.0
        %7841 = vmatpush1.msra.mxu0 0.0
        %7842 = vmatprep.subr.mxu0 0.0
        %7843 = vmatpush1.msra.mxu0 0.0
        %7844 = vmatprep.subr.mxu0 0.0
        %7845 = vmatpush1.msra.mxu0 0.0
        %7846 = vmatprep.subr.mxu0 0.0
        %7847 = vmatpush1.msra.mxu0 0.0
        %7848 = vmatprep.subr.mxu0 0.0
        %7849 = vmatpush1.msra.mxu0 0.0
        %7850 = vmatprep.subr.mxu0 0.0
        %7851 = vmatpush1.msra.mxu0 0.0
        %7852 = vmatprep.subr.mxu0 0.0
        %7853 = vmatpush1.msra.mxu0 0.0
        %7854 = vmatprep.subr.mxu0 0.0
        %7855 = vmatpush1.msra.mxu0 0.0
        %7856 = vmatprep.subr.mxu0 0.0
        %7857 = vmatpush1.msra.mxu0 0.0
        %7858 = vmatprep.mubr.f32.mxu0 0.0
        %7859 = vmatmul.mubr.f32.gmra.mrb[0].mxu0 %v7217
        %v7860 = vpop.f32.mrb[0].mxu0
        %v7861 = vadd.f32 0.0, %v7860
        %v7862 = vpop.f32.mrb[0].mxu0
        %7863 = vdwg.mxu0
        %v7865 = vsel %vm7215, %v7861, 0
        %7867 = vmatprep.subr.mxu0 0.0
        %7868 = vmatpush1.msra.mxu0 %v7214
        %7869 = vmatprep.subr.mxu0 0.0
        %7870 = vmatpush1.msra.mxu0 0.0
        %7871 = vmatprep.subr.mxu0 0.0
        %7872 = vmatpush1.msra.mxu0 0.0
        %7873 = vmatprep.subr.mxu0 0.0
        %7874 = vmatpush1.msra.mxu0 0.0
        %7875 = vmatprep.subr.mxu0 0.0
        %7876 = vmatpush1.msra.mxu0 0.0
        %7877 = vmatprep.subr.mxu0 0.0
        %7878 = vmatpush1.msra.mxu0 0.0
        %7879 = vmatprep.subr.mxu0 0.0
        %7880 = vmatpush1.msra.mxu0 0.0
        %7881 = vmatprep.subr.mxu0 0.0
        %7882 = vmatpush1.msra.mxu0 0.0
        %7883 = vmatprep.subr.mxu0 0.0
        %7884 = vmatpush1.msra.mxu0 0.0
        %7885 = vmatprep.subr.mxu0 0.0
        %7886 = vmatpush1.msra.mxu0 0.0
        %7887 = vmatprep.subr.mxu0 0.0
        %7888 = vmatpush1.msra.mxu0 0.0
        %7889 = vmatprep.subr.mxu0 0.0
        %7890 = vmatpush1.msra.mxu0 0.0
        %7891 = vmatprep.subr.mxu0 0.0
        %7892 = vmatpush1.msra.mxu0 0.0
        %7893 = vmatprep.subr.mxu0 0.0
        %7894 = vmatpush1.msra.mxu0 0.0
        %7895 = vmatprep.subr.mxu0 0.0
        %7896 = vmatpush1.msra.mxu0 0.0
        %7897 = vmatprep.subr.mxu0 0.0
        %7898 = vmatpush1.msra.mxu0 0.0
        %7899 = vmatprep.subr.mxu0 0.0
        %7900 = vmatpush1.msra.mxu0 0.0
        %7901 = vmatprep.subr.mxu0 0.0
        %7902 = vmatpush1.msra.mxu0 0.0
        %7903 = vmatprep.subr.mxu0 0.0
        %7904 = vmatpush1.msra.mxu0 0.0
        %7905 = vmatprep.subr.mxu0 0.0
        %7906 = vmatpush1.msra.mxu0 0.0
        %7907 = vmatprep.subr.mxu0 0.0
        %7908 = vmatpush1.msra.mxu0 0.0
        %7909 = vmatprep.subr.mxu0 0.0
        %7910 = vmatpush1.msra.mxu0 0.0
        %7911 = vmatprep.subr.mxu0 0.0
        %7912 = vmatpush1.msra.mxu0 0.0
        %7913 = vmatprep.subr.mxu0 0.0
        %7914 = vmatpush1.msra.mxu0 0.0
        %7915 = vmatprep.subr.mxu0 0.0
        %7916 = vmatpush1.msra.mxu0 0.0
        %7917 = vmatprep.subr.mxu0 0.0
        %7918 = vmatpush1.msra.mxu0 0.0
        %7919 = vmatprep.subr.mxu0 0.0
        %7920 = vmatpush1.msra.mxu0 0.0
        %7921 = vmatprep.subr.mxu0 0.0
        %7922 = vmatpush1.msra.mxu0 0.0
        %7923 = vmatprep.subr.mxu0 0.0
        %7924 = vmatpush1.msra.mxu0 0.0
        %7925 = vmatprep.subr.mxu0 0.0
        %7926 = vmatpush1.msra.mxu0 0.0
        %7927 = vmatprep.subr.mxu0 0.0
        %7928 = vmatpush1.msra.mxu0 0.0
        %7929 = vmatprep.subr.mxu0 0.0
        %7930 = vmatpush1.msra.mxu0 0.0
        %7931 = vmatprep.mubr.f32.mxu0 0.0
        %7932 = vmatmul.mubr.f32.gmra.mrb[0].mxu0 %v7865
        %v7933 = vpop.f32.mrb[0].mxu0
        %v7934 = vadd.f32 0.0, %v7933
        %v7935 = vpop.f32.mrb[0].mxu0
        %7936 = vdwg.mxu0
        %v7937 = vmul.f32 %v7359, %v7359
        %v7938 = vmul.f32 %v7502, %v7502
        %v7939 = vmul.f32 %v7359, %v7502
        %v7940 = vsub.f32 %v7646, %v7937
        %v7941 = vsub.f32 %v7790, %v7938
        %v7942 = vsub.f32 %v7934, %v7939
        %v7943 = vmul.f32 %v7942, 2.0
        %v7944 = vadd.f32 %v7943, 0.0009
        %v7945 = vadd.f32 %v7940, %v7941
        %v7946 = vadd.f32 %v7945, 0.0009
        %v7947 = vrcp.pop %v7946
        %v7948 = vmul.f32 %v7944, %v7947
        %v7949 = vsel %vm7215, %v7948, 0.0
        %7950 = vadd.xlane.f32.xlu0 %v7949
        %v7951 = vpop.xlane.xlu0 %7950
        %v7952 = vrot.slane %v7951, 4
        %v7953 = vadd.f32 %v7951, %v7952
        %v7954 = vrot.slane %v7953, 2
        %v7955 = vadd.f32 %v7953, %v7954
        %v7956 = vrot.slane %v7955, 1
        %v7957 = vadd.f32 %v7955, %v7956
        %v7958 = vmul.f32 %v7957, 0.015625
        %v7959 = vadd.f32 %v7958, 1.0
        %v7960 = vmul.f32 %v7959, 0.5
        %v7961 = vmax.f32 %v7960, 1e-12
        %v7962 = vlog2.pop %v7961
        %v7963 = vmul.f32 %v7962, 0.6931472
        %v7964 = vmul.f32 %v7963, 0.2363
        %v7965 = vmul.f32 %v7964, 1.442695
        %v7966 = vpow.pop %v7965
        %v7967 = vmul.f32 %v6920, %v7966
        %v7968 = vld [vmem:[#allocation19] sm:$0xf]
        %v7969 = vld [vmem:[%s19] sm:$0xff]
        %v7971 = vsel %vm7215, %v7968, 0
        %7973 = vmatprep.subr.mxu0 0.0
        %7974 = vmatpush1.msra.mxu0 %v7067
        %7975 = vmatprep.subr.mxu0 0.0
        %7976 = vmatpush1.msra.mxu0 0.0
        %7977 = vmatprep.subr.mxu0 0.0
        %7978 = vmatpush1.msra.mxu0 0.0
        %7979 = vmatprep.subr.mxu0 0.0
        %7980 = vmatpush1.msra.mxu0 0.0
        %7981 = vmatprep.subr.mxu0 0.0
        %7982 = vmatpush1.msra.mxu0 0.0
        %7983 = vmatprep.subr.mxu0 0.0
        %7984 = vmatpush1.msra.mxu0 0.0
        %7985 = vmatprep.subr.mxu0 0.0
        %7986 = vmatpush1.msra.mxu0 0.0
        %7987 = vmatprep.subr.mxu0 0.0
        %7988 = vmatpush1.msra.mxu0 0.0
        %7989 = vmatprep.subr.mxu0 0.0
        %7990 = vmatpush1.msra.mxu0 0.0
        %7991 = vmatprep.subr.mxu0 0.0
        %7992 = vmatpush1.msra.mxu0 0.0
        %7993 = vmatprep.subr.mxu0 0.0
        %7994 = vmatpush1.msra.mxu0 0.0
        %7995 = vmatprep.subr.mxu0 0.0
        %7996 = vmatpush1.msra.mxu0 0.0
        %7997 = vmatprep.subr.mxu0 0.0
        %7998 = vmatpush1.msra.mxu0 0.0
        %7999 = vmatprep.subr.mxu0 0.0
        %8000 = vmatpush1.msra.mxu0 0.0
        %8001 = vmatprep.subr.mxu0 0.0
        %8002 = vmatpush1.msra.mxu0 0.0
        %8003 = vmatprep.subr.mxu0 0.0
        %8004 = vmatpush1.msra.mxu0 0.0
        %8005 = vmatprep.subr.mxu0 0.0
        %8006 = vmatpush1.msra.mxu0 0.0
        %8007 = vmatprep.subr.mxu0 0.0
        %8008 = vmatpush1.msra.mxu0 0.0
        %8009 = vmatprep.subr.mxu0 0.0
        %8010 = vmatpush1.msra.mxu0 0.0
        %8011 = vmatprep.subr.mxu0 0.0
        %8012 = vmatpush1.msra.mxu0 0.0
        %8013 = vmatprep.subr.mxu0 0.0
        %8014 = vmatpush1.msra.mxu0 0.0
        %8015 = vmatprep.subr.mxu0 0.0
        %8016 = vmatpush1.msra.mxu0 0.0
        %8017 = vmatprep.subr.mxu0 0.0
        %8018 = vmatpush1.msra.mxu0 0.0
        %8019 = vmatprep.subr.mxu0 0.0
        %8020 = vmatpush1.msra.mxu0 0.0
        %8021 = vmatprep.subr.mxu0 0.0
        %8022 = vmatpush1.msra.mxu0 0.0
        %8023 = vmatprep.subr.mxu0 0.0
        %8024 = vmatpush1.msra.mxu0 0.0
        %8025 = vmatprep.subr.mxu0 0.0
        %8026 = vmatpush1.msra.mxu0 0.0
        %8027 = vmatprep.subr.mxu0 0.0
        %8028 = vmatpush1.msra.mxu0 0.0
        %8029 = vmatprep.subr.mxu0 0.0
        %8030 = vmatpush1.msra.mxu0 0.0
        %8031 = vmatprep.subr.mxu0 0.0
        %8032 = vmatpush1.msra.mxu0 0.0
        %8033 = vmatprep.subr.mxu0 0.0
        %8034 = vmatpush1.msra.mxu0 0.0
        %8035 = vmatprep.subr.mxu0 0.0
        %8036 = vmatpush1.msra.mxu0 0.0
        %8037 = vmatprep.mubr.f32.mxu0 0.0
        %8038 = vmatmul.mubr.f32.gmra.mrb[0].mxu0 %v7971
        %v8039 = vpop.f32.mrb[0].mxu0
        %v8040 = vadd.f32 0.0, %v8039
        %v8041 = vpop.f32.mrb[0].mxu0
        %8042 = vdwg.mxu0
        %v8044 = vsel %vm7215, %v8040, 0
        %8046 = vmatprep.subr.mxu0 0.0
        %8047 = vmatpush1.msra.mxu0 %v7969
        %8048 = vmatprep.subr.mxu0 0.0
        %8049 = vmatpush1.msra.mxu0 0.0
        %8050 = vmatprep.subr.mxu0 0.0
        %8051 = vmatpush1.msra.mxu0 0.0
        %8052 = vmatprep.subr.mxu0 0.0
        %8053 = vmatpush1.msra.mxu0 0.0
        %8054 = vmatprep.subr.mxu0 0.0
        %8055 = vmatpush1.msra.mxu0 0.0
        %8056 = vmatprep.subr.mxu0 0.0
        %8057 = vmatpush1.msra.mxu0 0.0
        %8058 = vmatprep.subr.mxu0 0.0
        %8059 = vmatpush1.msra.mxu0 0.0
        %8060 = vmatprep.subr.mxu0 0.0
        %8061 = vmatpush1.msra.mxu0 0.0
        %8062 = vmatprep.subr.mxu0 0.0
        %8063 = vmatpush1.msra.mxu0 0.0
        %8064 = vmatprep.subr.mxu0 0.0
        %8065 = vmatpush1.msra.mxu0 0.0
        %8066 = vmatprep.subr.mxu0 0.0
        %8067 = vmatpush1.msra.mxu0 0.0
        %8068 = vmatprep.subr.mxu0 0.0
        %8069 = vmatpush1.msra.mxu0 0.0
        %8070 = vmatprep.subr.mxu0 0.0
        %8071 = vmatpush1.msra.mxu0 0.0
        %8072 = vmatprep.subr.mxu0 0.0
        %8073 = vmatpush1.msra.mxu0 0.0
        %8074 = vmatprep.subr.mxu0 0.0
        %8075 = vmatpush1.msra.mxu0 0.0
        %8076 = vmatprep.subr.mxu0 0.0
        %8077 = vmatpush1.msra.mxu0 0.0
        %8078 = vmatprep.subr.mxu0 0.0
        %8079 = vmatpush1.msra.mxu0 0.0
        %8080 = vmatprep.subr.mxu0 0.0
        %8081 = vmatpush1.msra.mxu0 0.0
        %8082 = vmatprep.subr.mxu0 0.0
        %8083 = vmatpush1.msra.mxu0 0.0
        %8084 = vmatprep.subr.mxu0 0.0
        %8085 = vmatpush1.msra.mxu0 0.0
        %8086 = vmatprep.subr.mxu0 0.0
        %8087 = vmatpush1.msra.mxu0 0.0
        %8088 = vmatprep.subr.mxu0 0.0
        %8089 = vmatpush1.msra.mxu0 0.0
        %8090 = vmatprep.subr.mxu0 0.0
        %8091 = vmatpush1.msra.mxu0 0.0
        %8092 = vmatprep.subr.mxu0 0.0
        %8093 = vmatpush1.msra.mxu0 0.0
        %8094 = vmatprep.subr.mxu0 0.0
        %8095 = vmatpush1.msra.mxu0 0.0
        %8096 = vmatprep.subr.mxu0 0.0
        %8097 = vmatpush1.msra.mxu0 0.0
        %8098 = vmatprep.subr.mxu0 0.0
        %8099 = vmatpush1.msra.mxu0 0.0
        %8100 = vmatprep.subr.mxu0 0.0
        %8101 = vmatpush1.msra.mxu0 0.0
        %8102 = vmatprep.subr.mxu0 0.0
        %8103 = vmatpush1.msra.mxu0 0.0
        %8104 = vmatprep.subr.mxu0 0.0
        %8105 = vmatpush1.msra.mxu0 0.0
        %8106 = vmatprep.subr.mxu0 0.0
        %8107 = vmatpush1.msra.mxu0 0.0
        %8108 = vmatprep.subr.mxu0 0.0
        %8109 = vmatpush1.msra.mxu0 0.0
        %8110 = vmatprep.mubr.f32.mxu0 0.0
        %8111 = vmatmul.mubr.f32.gmra.mrb[0].mxu0 %v8044
        %v8112 = vpop.f32.mrb[0].mxu0
        %v8113 = vadd.f32 0.0, %v8112
        %v8114 = vpop.f32.mrb[0].mxu0
        %8115 = vdwg.mxu0
        %8116 = vmatprep.subr.mxu0 0.0
        %8117 = vmatpush1.msra.mxu0 %v7210
        %8118 = vmatprep.subr.mxu0 0.0
        %8119 = vmatpush1.msra.mxu0 0.0
        %8120 = vmatprep.subr.mxu0 0.0
        %8121 = vmatpush1.msra.mxu0 0.0
        %8122 = vmatprep.subr.mxu0 0.0
        %8123 = vmatpush1.msra.mxu0 0.0
        %8124 = vmatprep.subr.mxu0 0.0
        %8125 = vmatpush1.msra.mxu0 0.0
        %8126 = vmatprep.subr.mxu0 0.0
        %8127 = vmatpush1.msra.mxu0 0.0
        %8128 = vmatprep.subr.mxu0 0.0
        %8129 = vmatpush1.msra.mxu0 0.0
        %8130 = vmatprep.subr.mxu0 0.0
        %8131 = vmatpush1.msra.mxu0 0.0
        %8132 = vmatprep.subr.mxu0 0.0
        %8133 = vmatpush1.msra.mxu0 0.0
        %8134 = vmatprep.subr.mxu0 0.0
        %8135 = vmatpush1.msra.mxu0 0.0
        %8136 = vmatprep.subr.mxu0 0.0
        %8137 = vmatpush1.msra.mxu0 0.0
        %8138 = vmatprep.subr.mxu0 0.0
        %8139 = vmatpush1.msra.mxu0 0.0
        %8140 = vmatprep.subr.mxu0 0.0
        %8141 = vmatpush1.msra.mxu0 0.0
        %8142 = vmatprep.subr.mxu0 0.0
        %8143 = vmatpush1.msra.mxu0 0.0
        %8144 = vmatprep.subr.mxu0 0.0
        %8145 = vmatpush1.msra.mxu0 0.0
        %8146 = vmatprep.subr.mxu0 0.0
        %8147 = vmatpush1.msra.mxu0 0.0
        %8148 = vmatprep.subr.mxu0 0.0
        %8149 = vmatpush1.msra.mxu0 0.0
        %8150 = vmatprep.subr.mxu0 0.0
        %8151 = vmatpush1.msra.mxu0 0.0
        %8152 = vmatprep.subr.mxu0 0.0
        %8153 = vmatpush1.msra.mxu0 0.0
        %8154 = vmatprep.subr.mxu0 0.0
        %8155 = vmatpush1.msra.mxu0 0.0
        %8156 = vmatprep.subr.mxu0 0.0
        %8157 = vmatpush1.msra.mxu0 0.0
        %8158 = vmatprep.subr.mxu0 0.0
        %8159 = vmatpush1.msra.mxu0 0.0
        %8160 = vmatprep.subr.mxu0 0.0
        %8161 = vmatpush1.msra.mxu0 0.0
        %8162 = vmatprep.subr.mxu0 0.0
        %8163 = vmatpush1.msra.mxu0 0.0
        %8164 = vmatprep.subr.mxu0 0.0
        %8165 = vmatpush1.msra.mxu0 0.0
        %8166 = vmatprep.subr.mxu0 0.0
        %8167 = vmatpush1.msra.mxu0 0.0
        %8168 = vmatprep.subr.mxu0 0.0
        %8169 = vmatpush1.msra.mxu0 0.0
        %8170 = vmatprep.subr.mxu0 0.0
        %8171 = vmatpush1.msra.mxu0 0.0
        %8172 = vmatprep.subr.mxu0 0.0
        %8173 = vmatpush1.msra.mxu0 0.0
        %8174 = vmatprep.subr.mxu0 0.0
        %8175 = vmatpush1.msra.mxu0 0.0
        %8176 = vmatprep.subr.mxu0 0.0
        %8177 = vmatpush1.msra.mxu0 0.0
        %8178 = vmatprep.subr.mxu0 0.0
        %8179 = vmatpush1.msra.mxu0 0.0
        %8180 = vmatprep.mubr.f32.mxu0 0.0
        %8181 = vmatmul.mubr.f32.gmra.mrb[0].mxu0 %v7971
        %v8182 = vpop.f32.mrb[0].mxu0
        %v8183 = vadd.f32 0.0, %v8182
        %v8184 = vpop.f32.mrb[0].mxu0
        %8185 = vdwg.mxu0
        %v8187 = vsel %vm7215, %v8183, 0
        %8189 = vmatprep.subr.mxu0 0.0
        %8190 = vmatpush1.msra.mxu0 %v7969
        %8191 = vmatprep.subr.mxu0 0.0
        %8192 = vmatpush1.msra.mxu0 0.0
        %8193 = vmatprep.subr.mxu0 0.0
        %8194 = vmatpush1.msra.mxu0 0.0
        %8195 = vmatprep.subr.mxu0 0.0
        %8196 = vmatpush1.msra.mxu0 0.0
        %8197 = vmatprep.subr.mxu0 0.0
        %8198 = vmatpush1.msra.mxu0 0.0
        %8199 = vmatprep.subr.mxu0 0.0
        %8200 = vmatpush1.msra.mxu0 0.0
        %8201 = vmatprep.subr.mxu0 0.0
        %8202 = vmatpush1.msra.mxu0 0.0
        %8203 = vmatprep.subr.mxu0 0.0
        %8204 = vmatpush1.msra.mxu0 0.0
        %8205 = vmatprep.subr.mxu0 0.0
        %8206 = vmatpush1.msra.mxu0 0.0
        %8207 = vmatprep.subr.mxu0 0.0
        %8208 = vmatpush1.msra.mxu0 0.0
        %8209 = vmatprep.subr.mxu0 0.0
        %8210 = vmatpush1.msra.mxu0 0.0
        %8211 = vmatprep.subr.mxu0 0.0
        %8212 = vmatpush1.msra.mxu0 0.0
        %8213 = vmatprep.subr.mxu0 0.0
        %8214 = vmatpush1.msra.mxu0 0.0
        %8215 = vmatprep.subr.mxu0 0.0
        %8216 = vmatpush1.msra.mxu0 0.0
        %8217 = vmatprep.subr.mxu0 0.0
        %8218 = vmatpush1.msra.mxu0 0.0
        %8219 = vmatprep.subr.mxu0 0.0
        %8220 = vmatpush1.msra.mxu0 0.0
        %8221 = vmatprep.subr.mxu0 0.0
        %8222 = vmatpush1.msra.mxu0 0.0
        %8223 = vmatprep.subr.mxu0 0.0
        %8224 = vmatpush1.msra.mxu0 0.0
        %8225 = vmatprep.subr.mxu0 0.0
        %8226 = vmatpush1.msra.mxu0 0.0
        %8227 = vmatprep.subr.mxu0 0.0
        %8228 = vmatpush1.msra.mxu0 0.0
        %8229 = vmatprep.subr.mxu0 0.0
        %8230 = vmatpush1.msra.mxu0 0.0
        %8231 = vmatprep.subr.mxu0 0.0
        %8232 = vmatpush1.msra.mxu0 0.0
        %8233 = vmatprep.subr.mxu0 0.0
        %8234 = vmatpush1.msra.mxu0 0.0
        %8235 = vmatprep.subr.mxu0 0.0
        %8236 = vmatpush1.msra.mxu0 0.0
        %8237 = vmatprep.subr.mxu0 0.0
        %8238 = vmatpush1.msra.mxu0 0.0
        %8239 = vmatprep.subr.mxu0 0.0
        %8240 = vmatpush1.msra.mxu0 0.0
        %8241 = vmatprep.subr.mxu0 0.0
        %8242 = vmatpush1.msra.mxu0 0.0
        %8243 = vmatprep.subr.mxu0 0.0
        %8244 = vmatpush1.msra.mxu0 0.0
        %8245 = vmatprep.subr.mxu0 0.0
        %8246 = vmatpush1.msra.mxu0 0.0
        %8247 = vmatprep.subr.mxu0 0.0
        %8248 = vmatpush1.msra.mxu0 0.0
        %8249 = vmatprep.subr.mxu0 0.0
        %8250 = vmatpush1.msra.mxu0 0.0
        %8251 = vmatprep.subr.mxu0 0.0
        %8252 = vmatpush1.msra.mxu0 0.0
        %8253 = vmatprep.mubr.f32.mxu0 0.0
        %8254 = vmatmul.mubr.f32.gmra.mrb[0].mxu0 %v8187
        %v8255 = vpop.f32.mrb[0].mxu0
        %v8256 = vadd.f32 0.0, %v8255
        %v8257 = vpop.f32.mrb[0].mxu0
        %8258 = vdwg.mxu0
        %v8259 = vld [vmem:[#allocation9] sm:$0xf]
        %v8260 = vld [vmem:[#allocation13] sm:$0xf]
        %vm8261 = vcmask 31744
        %v8263 = vsel %vm8261, %v8259, 0
        %vm8265 = vcmask 1043456
        %v8267 = vsel %vm8265, %v8113, 0
        %8269 = vmatprep.subr.mxu0 0.0
        %8270 = vmatpush1.msra.mxu0 %v8267
        %8271 = vmatprep.subr.mxu0 0.0
        %8272 = vmatpush1.msra.mxu0 0.0
        %8273 = vmatprep.subr.mxu0 0.0
        %8274 = vmatpush1.msra.mxu0 0.0
        %8275 = vmatprep.subr.mxu0 0.0
        %8276 = vmatpush1.msra.mxu0 0.0
        %8277 = vmatprep.subr.mxu0 0.0
        %8278 = vmatpush1.msra.mxu0 0.0
        %8279 = vmatprep.subr.mxu0 0.0
        %8280 = vmatpush1.msra.mxu0 0.0
        %8281 = vmatprep.subr.mxu0 0.0
        %8282 = vmatpush1.msra.mxu0 0.0
        %8283 = vmatprep.subr.mxu0 0.0
        %8284 = vmatpush1.msra.mxu0 0.0
        %8285 = vmatprep.subr.mxu0 0.0
        %8286 = vmatpush1.msra.mxu0 0.0
        %8287 = vmatprep.subr.mxu0 0.0
        %8288 = vmatpush1.msra.mxu0 0.0
        %8289 = vmatprep.subr.mxu0 0.0
        %8290 = vmatpush1.msra.mxu0 0.0
        %8291 = vmatprep.subr.mxu0 0.0
        %8292 = vmatpush1.msra.mxu0 0.0
        %8293 = vmatprep.subr.mxu0 0.0
        %8294 = vmatpush1.msra.mxu0 0.0
        %8295 = vmatprep.subr.mxu0 0.0
        %8296 = vmatpush1.msra.mxu0 0.0
        %8297 = vmatprep.subr.mxu0 0.0
        %8298 = vmatpush1.msra.mxu0 0.0
        %8299 = vmatprep.subr.mxu0 0.0
        %8300 = vmatpush1.msra.mxu0 0.0
        %8301 = vmatprep.subr.mxu0 0.0
        %8302 = vmatpush1.msra.mxu0 0.0
        %8303 = vmatprep.subr.mxu0 0.0
        %8304 = vmatpush1.msra.mxu0 0.0
        %8305 = vmatprep.subr.mxu0 0.0
        %8306 = vmatpush1.msra.mxu0 0.0
        %8307 = vmatprep.subr.mxu0 0.0
        %8308 = vmatpush1.msra.mxu0 0.0
        %8309 = vmatprep.subr.mxu0 0.0
        %8310 = vmatpush1.msra.mxu0 0.0
        %8311 = vmatprep.subr.mxu0 0.0
        %8312 = vmatpush1.msra.mxu0 0.0
        %8313 = vmatprep.subr.mxu0 0.0
        %8314 = vmatpush1.msra.mxu0 0.0
        %8315 = vmatprep.subr.mxu0 0.0
        %8316 = vmatpush1.msra.mxu0 0.0
        %8317 = vmatprep.subr.mxu0 0.0
        %8318 = vmatpush1.msra.mxu0 0.0
        %8319 = vmatprep.subr.mxu0 0.0
        %8320 = vmatpush1.msra.mxu0 0.0
        %8321 = vmatprep.subr.mxu0 0.0
        %8322 = vmatpush1.msra.mxu0 0.0
        %8323 = vmatprep.subr.mxu0 0.0
        %8324 = vmatpush1.msra.mxu0 0.0
        %8325 = vmatprep.subr.mxu0 0.0
        %8326 = vmatpush1.msra.mxu0 0.0
        %8327 = vmatprep.subr.mxu0 0.0
        %8328 = vmatpush1.msra.mxu0 0.0
        %8329 = vmatprep.subr.mxu0 0.0
        %8330 = vmatpush1.msra.mxu0 0.0
        %8331 = vmatprep.subr.mxu0 0.0
        %8332 = vmatpush1.msra.mxu0 0.0
        %8333 = vmatprep.mubr.f32.mxu0 0.0
        %8334 = vmatmul.mubr.f32.gmra.mrb[0].mxu0 %v8263
        %v8335 = vpop.f32.mrb[0].mxu0
        %v8336 = vadd.f32 0.0, %v8335
        %v8337 = vpop.f32.mrb[0].mxu0
        %8338 = vdwg.mxu0
        %v8340 = vsel %vm8261, %v8336, 0
        %v8343 = vsel %vm8265, %v8260, 0
        %8345 = vmatprep.subr.mxu0 0.0
        %8346 = vmatpush1.msra.mxu0 %v8343
        %8347 = vmatprep.subr.mxu0 0.0
        %8348 = vmatpush1.msra.mxu0 0.0
        %8349 = vmatprep.subr.mxu0 0.0
        %8350 = vmatpush1.msra.mxu0 0.0
        %8351 = vmatprep.subr.mxu0 0.0
        %8352 = vmatpush1.msra.mxu0 0.0
        %8353 = vmatprep.subr.mxu0 0.0
        %8354 = vmatpush1.msra.mxu0 0.0
        %8355 = vmatprep.subr.mxu0 0.0
        %8356 = vmatpush1.msra.mxu0 0.0
        %8357 = vmatprep.subr.mxu0 0.0
        %8358 = vmatpush1.msra.mxu0 0.0
        %8359 = vmatprep.subr.mxu0 0.0
        %8360 = vmatpush1.msra.mxu0 0.0
        %8361 = vmatprep.subr.mxu0 0.0
        %8362 = vmatpush1.msra.mxu0 0.0
        %8363 = vmatprep.subr.mxu0 0.0
        %8364 = vmatpush1.msra.mxu0 0.0
        %8365 = vmatprep.subr.mxu0 0.0
        %8366 = vmatpush1.msra.mxu0 0.0
        %8367 = vmatprep.subr.mxu0 0.0
        %8368 = vmatpush1.msra.mxu0 0.0
        %8369 = vmatprep.subr.mxu0 0.0
        %8370 = vmatpush1.msra.mxu0 0.0
        %8371 = vmatprep.subr.mxu0 0.0
        %8372 = vmatpush1.msra.mxu0 0.0
        %8373 = vmatprep.subr.mxu0 0.0
        %8374 = vmatpush1.msra.mxu0 0.0
        %8375 = vmatprep.subr.mxu0 0.0
        %8376 = vmatpush1.msra.mxu0 0.0
        %8377 = vmatprep.subr.mxu0 0.0
        %8378 = vmatpush1.msra.mxu0 0.0
        %8379 = vmatprep.subr.mxu0 0.0
        %8380 = vmatpush1.msra.mxu0 0.0
        %8381 = vmatprep.subr.mxu0 0.0
        %8382 = vmatpush1.msra.mxu0 0.0
        %8383 = vmatprep.subr.mxu0 0.0
        %8384 = vmatpush1.msra.mxu0 0.0
        %8385 = vmatprep.subr.mxu0 0.0
        %8386 = vmatpush1.msra.mxu0 0.0
        %8387 = vmatprep.subr.mxu0 0.0
        %8388 = vmatpush1.msra.mxu0 0.0
        %8389 = vmatprep.subr.mxu0 0.0
        %8390 = vmatpush1.msra.mxu0 0.0
        %8391 = vmatprep.subr.mxu0 0.0
        %8392 = vmatpush1.msra.mxu0 0.0
        %8393 = vmatprep.subr.mxu0 0.0
        %8394 = vmatpush1.msra.mxu0 0.0
        %8395 = vmatprep.subr.mxu0 0.0
        %8396 = vmatpush1.msra.mxu0 0.0
        %8397 = vmatprep.subr.mxu0 0.0
        %8398 = vmatpush1.msra.mxu0 0.0
        %8399 = vmatprep.subr.mxu0 0.0
        %8400 = vmatpush1.msra.mxu0 0.0
        %8401 = vmatprep.subr.mxu0 0.0
        %8402 = vmatpush1.msra.mxu0 0.0
        %8403 = vmatprep.subr.mxu0 0.0
        %8404 = vmatpush1.msra.mxu0 0.0
        %8405 = vmatprep.subr.mxu0 0.0
        %8406 = vmatpush1.msra.mxu0 0.0
        %8407 = vmatprep.subr.mxu0 0.0
        %8408 = vmatpush1.msra.mxu0 0.0
        %8409 = vmatprep.mubr.f32.mxu0 0.0
        %8410 = vmatmul.mubr.f32.gmra.mrb[0].mxu0 %v8340
        %v8411 = vpop.f32.mrb[0].mxu0
        %v8412 = vadd.f32 0.0, %v8411
        %v8413 = vpop.f32.mrb[0].mxu0
        %8414 = vdwg.mxu0
        %v8416 = vsel %vm8265, %v8256, 0
        %8418 = vmatprep.subr.mxu0 0.0
        %8419 = vmatpush1.msra.mxu0 %v8416
        %8420 = vmatprep.subr.mxu0 0.0
        %8421 = vmatpush1.msra.mxu0 0.0
        %8422 = vmatprep.subr.mxu0 0.0
        %8423 = vmatpush1.msra.mxu0 0.0
        %8424 = vmatprep.subr.mxu0 0.0
        %8425 = vmatpush1.msra.mxu0 0.0
        %8426 = vmatprep.subr.mxu0 0.0
        %8427 = vmatpush1.msra.mxu0 0.0
        %8428 = vmatprep.subr.mxu0 0.0
        %8429 = vmatpush1.msra.mxu0 0.0
        %8430 = vmatprep.subr.mxu0 0.0
        %8431 = vmatpush1.msra.mxu0 0.0
        %8432 = vmatprep.subr.mxu0 0.0
        %8433 = vmatpush1.msra.mxu0 0.0
        %8434 = vmatprep.subr.mxu0 0.0
        %8435 = vmatpush1.msra.mxu0 0.0
        %8436 = vmatprep.subr.mxu0 0.0
        %8437 = vmatpush1.msra.mxu0 0.0
        %8438 = vmatprep.subr.mxu0 0.0
        %8439 = vmatpush1.msra.mxu0 0.0
        %8440 = vmatprep.subr.mxu0 0.0
        %8441 = vmatpush1.msra.mxu0 0.0
        %8442 = vmatprep.subr.mxu0 0.0
        %8443 = vmatpush1.msra.mxu0 0.0
        %8444 = vmatprep.subr.mxu0 0.0
        %8445 = vmatpush1.msra.mxu0 0.0
        %8446 = vmatprep.subr.mxu0 0.0
        %8447 = vmatpush1.msra.mxu0 0.0
        %8448 = vmatprep.subr.mxu0 0.0
        %8449 = vmatpush1.msra.mxu0 0.0
        %8450 = vmatprep.subr.mxu0 0.0
        %8451 = vmatpush1.msra.mxu0 0.0
        %8452 = vmatprep.subr.mxu0 0.0
        %8453 = vmatpush1.msra.mxu0 0.0
        %8454 = vmatprep.subr.mxu0 0.0
        %8455 = vmatpush1.msra.mxu0 0.0
        %8456 = vmatprep.subr.mxu0 0.0
        %8457 = vmatpush1.msra.mxu0 0.0
        %8458 = vmatprep.subr.mxu0 0.0
        %8459 = vmatpush1.msra.mxu0 0.0
        %8460 = vmatprep.subr.mxu0 0.0
        %8461 = vmatpush1.msra.mxu0 0.0
        %8462 = vmatprep.subr.mxu0 0.0
        %8463 = vmatpush1.msra.mxu0 0.0
        %8464 = vmatprep.subr.mxu0 0.0
        %8465 = vmatpush1.msra.mxu0 0.0
        %8466 = vmatprep.subr.mxu0 0.0
        %8467 = vmatpush1.msra.mxu0 0.0
        %8468 = vmatprep.subr.mxu0 0.0
        %8469 = vmatpush1.msra.mxu0 0.0
        %8470 = vmatprep.subr.mxu0 0.0
        %8471 = vmatpush1.msra.mxu0 0.0
        %8472 = vmatprep.subr.mxu0 0.0
        %8473 = vmatpush1.msra.mxu0 0.0
        %8474 = vmatprep.subr.mxu0 0.0
        %8475 = vmatpush1.msra.mxu0 0.0
        %8476 = vmatprep.subr.mxu0 0.0
        %8477 = vmatpush1.msra.mxu0 0.0
        %8478 = vmatprep.subr.mxu0 0.0
        %8479 = vmatpush1.msra.mxu0 0.0
        %8480 = vmatprep.subr.mxu0 0.0
        %8481 = vmatpush1.msra.mxu0 0.0
        %8482 = vmatprep.mubr.f32.mxu0 0.0
        %8483 = vmatmul.mubr.f32.gmra.mrb[0].mxu0 %v8263
        %v8484 = vpop.f32.mrb[0].mxu0
        %v8485 = vadd.f32 0.0, %v8484
        %v8486 = vpop.f32.mrb[0].mxu0
        %8487 = vdwg.mxu0
        %v8489 = vsel %vm8261, %v8485, 0
        %8491 = vmatprep.subr.mxu0 0.0
        %8492 = vmatpush1.msra.mxu0 %v8343
        %8493 = vmatprep.subr.mxu0 0.0
        %8494 = vmatpush1.msra.mxu0 0.0
        %8495 = vmatprep.subr.mxu0 0.0
        %8496 = vmatpush1.msra.mxu0 0.0
        %8497 = vmatprep.subr.mxu0 0.0
        %8498 = vmatpush1.msra.mxu0 0.0
        %8499 = vmatprep.subr.mxu0 0.0
        %8500 = vmatpush1.msra.mxu0 0.0
        %8501 = vmatprep.subr.mxu0 0.0
        %8502 = vmatpush1.msra.mxu0 0.0
        %8503 = vmatprep.subr.mxu0 0.0
        %8504 = vmatpush1.msra.mxu0 0.0
        %8505 = vmatprep.subr.mxu0 0.0
        %8506 = vmatpush1.msra.mxu0 0.0
        %8507 = vmatprep.subr.mxu0 0.0
        %8508 = vmatpush1.msra.mxu0 0.0
        %8509 = vmatprep.subr.mxu0 0.0
        %8510 = vmatpush1.msra.mxu0 0.0
        %8511 = vmatprep.subr.mxu0 0.0
        %8512 = vmatpush1.msra.mxu0 0.0
        %8513 = vmatprep.subr.mxu0 0.0
        %8514 = vmatpush1.msra.mxu0 0.0
        %8515 = vmatprep.subr.mxu0 0.0
        %8516 = vmatpush1.msra.mxu0 0.0
        %8517 = vmatprep.subr.mxu0 0.0
        %8518 = vmatpush1.msra.mxu0 0.0
        %8519 = vmatprep.subr.mxu0 0.0
        %8520 = vmatpush1.msra.mxu0 0.0
        %8521 = vmatprep.subr.mxu0 0.0
        %8522 = vmatpush1.msra.mxu0 0.0
        %8523 = vmatprep.subr.mxu0 0.0
        %8524 = vmatpush1.msra.mxu0 0.0
        %8525 = vmatprep.subr.mxu0 0.0
        %8526 = vmatpush1.msra.mxu0 0.0
        %8527 = vmatprep.subr.mxu0 0.0
        %8528 = vmatpush1.msra.mxu0 0.0
        %8529 = vmatprep.subr.mxu0 0.0
        %8530 = vmatpush1.msra.mxu0 0.0
        %8531 = vmatprep.subr.mxu0 0.0
        %8532 = vmatpush1.msra.mxu0 0.0
        %8533 = vmatprep.subr.mxu0 0.0
        %8534 = vmatpush1.msra.mxu0 0.0
        %8535 = vmatprep.subr.mxu0 0.0
        %8536 = vmatpush1.msra.mxu0 0.0
        %8537 = vmatprep.subr.mxu0 0.0
        %8538 = vmatpush1.msra.mxu0 0.0
        %8539 = vmatprep.subr.mxu0 0.0
        %8540 = vmatpush1.msra.mxu0 0.0
        %8541 = vmatprep.subr.mxu0 0.0
        %8542 = vmatpush1.msra.mxu0 0.0
        %8543 = vmatprep.subr.mxu0 0.0
        %8544 = vmatpush1.msra.mxu0 0.0
        %8545 = vmatprep.subr.mxu0 0.0
        %8546 = vmatpush1.msra.mxu0 0.0
        %8547 = vmatprep.subr.mxu0 0.0
        %8548 = vmatpush1.msra.mxu0 0.0
        %8549 = vmatprep.subr.mxu0 0.0
        %8550 = vmatpush1.msra.mxu0 0.0
        %8551 = vmatprep.subr.mxu0 0.0
        %8552 = vmatpush1.msra.mxu0 0.0
        %8553 = vmatprep.subr.mxu0 0.0
        %8554 = vmatpush1.msra.mxu0 0.0
        %8555 = vmatprep.mubr.f32.mxu0 0.0
        %8556 = vmatmul.mubr.f32.gmra.mrb[0].mxu0 %v8489
        %v8557 = vpop.f32.mrb[0].mxu0
        %v8558 = vadd.f32 0.0, %v8557
        %v8559 = vpop.f32.mrb[0].mxu0
        %8560 = vdwg.mxu0
        %v8561 = vmul.f32 %v8113, %v8113
        %v8563 = vsel %vm8265, %v8561, 0
        %8565 = vmatprep.subr.mxu0 0.0
        %8566 = vmatpush1.msra.mxu0 %v8563
        %8567 = vmatprep.subr.mxu0 0.0
        %8568 = vmatpush1.msra.mxu0 0.0
        %8569 = vmatprep.subr.mxu0 0.0
        %8570 = vmatpush1.msra.mxu0 0.0
        %8571 = vmatprep.subr.mxu0 0.0
        %8572 = vmatpush1.msra.mxu0 0.0
        %8573 = vmatprep.subr.mxu0 0.0
        %8574 = vmatpush1.msra.mxu0 0.0
        %8575 = vmatprep.subr.mxu0 0.0
        %8576 = vmatpush1.msra.mxu0 0.0
        %8577 = vmatprep.subr.mxu0 0.0
        %8578 = vmatpush1.msra.mxu0 0.0
        %8579 = vmatprep.subr.mxu0 0.0
        %8580 = vmatpush1.msra.mxu0 0.0
        %8581 = vmatprep.subr.mxu0 0.0
        %8582 = vmatpush1.msra.mxu0 0.0
        %8583 = vmatprep.subr.mxu0 0.0
        %8584 = vmatpush1.msra.mxu0 0.0
        %8585 = vmatprep.subr.mxu0 0.0
        %8586 = vmatpush1.msra.mxu0 0.0
        %8587 = vmatprep.subr.mxu0 0.0
        %8588 = vmatpush1.msra.mxu0 0.0
        %8589 = vmatprep.subr.mxu0 0.0
        %8590 = vmatpush1.msra.mxu0 0.0
        %8591 = vmatprep.subr.mxu0 0.0
        %8592 = vmatpush1.msra.mxu0 0.0
        %8593 = vmatprep.subr.mxu0 0.0
        %8594 = vmatpush1.msra.mxu0 0.0
        %8595 = vmatprep.subr.mxu0 0.0
        %8596 = vmatpush1.msra.mxu0 0.0
        %8597 = vmatprep.subr.mxu0 0.0
        %8598 = vmatpush1.msra.mxu0 0.0
        %8599 = vmatprep.subr.mxu0 0.0
        %8600 = vmatpush1.msra.mxu0 0.0
        %8601 = vmatprep.subr.mxu0 0.0
        %8602 = vmatpush1.msra.mxu0 0.0
        %8603 = vmatprep.subr.mxu0 0.0
        %8604 = vmatpush1.msra.mxu0 0.0
        %8605 = vmatprep.subr.mxu0 0.0
        %8606 = vmatpush1.msra.mxu0 0.0
        %8607 = vmatprep.subr.mxu0 0.0
        %8608 = vmatpush1.msra.mxu0 0.0
        %8609 = vmatprep.subr.mxu0 0.0
        %8610 = vmatpush1.msra.mxu0 0.0
        %8611 = vmatprep.subr.mxu0 0.0
        %8612 = vmatpush1.msra.mxu0 0.0
        %8613 = vmatprep.subr.mxu0 0.0
        %8614 = vmatpush1.msra.mxu0 0.0
        %8615 = vmatprep.subr.mxu0 0.0
        %8616 = vmatpush1.msra.mxu0 0.0
        %8617 = vmatprep.subr.mxu0 0.0
        %8618 = vmatpush1.msra.mxu0 0.0
        %8619 = vmatprep.subr.mxu0 0.0
        %8620 = vmatpush1.msra.mxu0 0.0
        %8621 = vmatprep.subr.mxu0 0.0
        %8622 = vmatpush1.msra.mxu0 0.0
        %8623 = vmatprep.subr.mxu0 0.0
        %8624 = vmatpush1.msra.mxu0 0.0
        %8625 = vmatprep.subr.mxu0 0.0
        %8626 = vmatpush1.msra.mxu0 0.0
        %8627 = vmatprep.subr.mxu0 0.0
        %8628 = vmatpush1.msra.mxu0 0.0
        %8629 = vmatprep.mubr.f32.mxu0 0.0
        %8630 = vmatmul.mubr.f32.gmra.mrb[0].mxu0 %v8263
        %v8631 = vpop.f32.mrb[0].mxu0
        %v8632 = vadd.f32 0.0, %v8631
        %v8633 = vpop.f32.mrb[0].mxu0
        %8634 = vdwg.mxu0
        %v8636 = vsel %vm8261, %v8632, 0
        %8638 = vmatprep.subr.mxu0 0.0
        %8639 = vmatpush1.msra.mxu0 %v8343
        %8640 = vmatprep.subr.mxu0 0.0
        %8641 = vmatpush1.msra.mxu0 0.0
        %8642 = vmatprep.subr.mxu0 0.0
        %8643 = vmatpush1.msra.mxu0 0.0
        %8644 = vmatprep.subr.mxu0 0.0
        %8645 = vmatpush1.msra.mxu0 0.0
        %8646 = vmatprep.subr.mxu0 0.0
        %8647 = vmatpush1.msra.mxu0 0.0
        %8648 = vmatprep.subr.mxu0 0.0
        %8649 = vmatpush1.msra.mxu0 0.0
        %8650 = vmatprep.subr.mxu0 0.0
        %8651 = vmatpush1.msra.mxu0 0.0
        %8652 = vmatprep.subr.mxu0 0.0
        %8653 = vmatpush1.msra.mxu0 0.0
        %8654 = vmatprep.subr.mxu0 0.0
        %8655 = vmatpush1.msra.mxu0 0.0
        %8656 = vmatprep.subr.mxu0 0.0
        %8657 = vmatpush1.msra.mxu0 0.0
        %8658 = vmatprep.subr.mxu0 0.0
        %8659 = vmatpush1.msra.mxu0 0.0
        %8660 = vmatprep.subr.mxu0 0.0
        %8661 = vmatpush1.msra.mxu0 0.0
        %8662 = vmatprep.subr.mxu0 0.0
        %8663 = vmatpush1.msra.mxu0 0.0
        %8664 = vmatprep.subr.mxu0 0.0
        %8665 = vmatpush1.msra.mxu0 0.0
        %8666 = vmatprep.subr.mxu0 0.0
        %8667 = vmatpush1.msra.mxu0 0.0
        %8668 = vmatprep.subr.mxu0 0.0
        %8669 = vmatpush1.msra.mxu0 0.0
        %8670 = vmatprep.subr.mxu0 0.0
        %8671 = vmatpush1.msra.mxu0 0.0
        %8672 = vmatprep.subr.mxu0 0.0
        %8673 = vmatpush1.msra.mxu0 0.0
        %8674 = vmatprep.subr.mxu0 0.0
        %8675 = vmatpush1.msra.mxu0 0.0
        %8676 = vmatprep.subr.mxu0 0.0
        %8677 = vmatpush1.msra.mxu0 0.0
        %8678 = vmatprep.subr.mxu0 0.0
        %8679 = vmatpush1.msra.mxu0 0.0
        %8680 = vmatprep.subr.mxu0 0.0
        %8681 = vmatpush1.msra.mxu0 0.0
        %8682 = vmatprep.subr.mxu0 0.0
        %8683 = vmatpush1.msra.mxu0 0.0
        %8684 = vmatprep.subr.mxu0 0.0
        %8685 = vmatpush1.msra.mxu0 0.0
        %8686 = vmatprep.subr.mxu0 0.0
        %8687 = vmatpush1.msra.mxu0 0.0
        %8688 = vmatprep.subr.mxu0 0.0
        %8689 = vmatpush1.msra.mxu0 0.0
        %8690 = vmatprep.subr.mxu0 0.0
        %8691 = vmatpush1.msra.mxu0 0.0
        %8692 = vmatprep.subr.mxu0 0.0
        %8693 = vmatpush1.msra.mxu0 0.0
        %8694 = vmatprep.subr.mxu0 0.0
        %8695 = vmatpush1.msra.mxu0 0.0
        %8696 = vmatprep.subr.mxu0 0.0
        %8697 = vmatpush1.msra.mxu0 0.0
        %8698 = vmatprep.subr.mxu0 0.0
        %8699 = vmatpush1.msra.mxu0 0.0
        %8700 = vmatprep.subr.mxu0 0.0
        %8701 = vmatpush1.msra.mxu0 0.0
        %8702 = vmatprep.mubr.f32.mxu0 0.0
        %8703 = vmatmul.mubr.f32.gmra.mrb[0].mxu0 %v8636
        %v8704 = vpop.f32.mrb[0].mxu0
        %v8705 = vadd.f32 0.0, %v8704
        %v8706 = vpop.f32.mrb[0].mxu0
        %8707 = vdwg.mxu0
        %v8708 = vmul.f32 %v8256, %v8256
        %v8710 = vsel %vm8265, %v8708, 0
        %8712 = vmatprep.subr.mxu0 0.0
        %8713 = vmatpush1.msra.mxu0 %v8710
        %8714 = vmatprep.subr.mxu0 0.0
        %8715 = vmatpush1.msra.mxu0 0.0
        %8716 = vmatprep.subr.mxu0 0.0
        %8717 = vmatpush1.msra.mxu0 0.0
        %8718 = vmatprep.subr.mxu0 0.0
        %8719 = vmatpush1.msra.mxu0 0.0
        %8720 = vmatprep.subr.mxu0 0.0
        %8721 = vmatpush1.msra.mxu0 0.0
        %8722 = vmatprep.subr.mxu0 0.0
        %8723 = vmatpush1.msra.mxu0 0.0
        %8724 = vmatprep.subr.mxu0 0.0
        %8725 = vmatpush1.msra.mxu0 0.0
        %8726 = vmatprep.subr.mxu0 0.0
        %8727 = vmatpush1.msra.mxu0 0.0
        %8728 = vmatprep.subr.mxu0 0.0
        %8729 = vmatpush1.msra.mxu0 0.0
        %8730 = vmatprep.subr.mxu0 0.0
        %8731 = vmatpush1.msra.mxu0 0.0
        %8732 = vmatprep.subr.mxu0 0.0
        %8733 = vmatpush1.msra.mxu0 0.0
        %8734 = vmatprep.subr.mxu0 0.0
        %8735 = vmatpush1.msra.mxu0 0.0
        %8736 = vmatprep.subr.mxu0 0.0
        %8737 = vmatpush1.msra.mxu0 0.0
        %8738 = vmatprep.subr.mxu0 0.0
        %8739 = vmatpush1.msra.mxu0 0.0
        %8740 = vmatprep.subr.mxu0 0.0
        %8741 = vmatpush1.msra.mxu0 0.0
        %8742 = vmatprep.subr.mxu0 0.0
        %8743 = vmatpush1.msra.mxu0 0.0
        %8744 = vmatprep.subr.mxu0 0.0
        %8745 = vmatpush1.msra.mxu0 0.0
        %8746 = vmatprep.subr.mxu0 0.0
        %8747 = vmatpush1.msra.mxu0 0.0
        %8748 = vmatprep.subr.mxu0 0.0
        %8749 = vmatpush1.msra.mxu0 0.0
        %8750 = vmatprep.subr.mxu0 0.0
        %8751 = vmatpush1.msra.mxu0 0.0
        %8752 = vmatprep.subr.mxu0 0.0
        %8753 = vmatpush1.msra.mxu0 0.0
        %8754 = vmatprep.subr.mxu0 0.0
        %8755 = vmatpush1.msra.mxu0 0.0
        %8756 = vmatprep.subr.mxu0 0.0
        %8757 = vmatpush1.msra.mxu0 0.0
        %8758 = vmatprep.subr.mxu0 0.0
        %8759 = vmatpush1.msra.mxu0 0.0
        %8760 = vmatprep.subr.mxu0 0.0
        %8761 = vmatpush1.msra.mxu0 0.0
        %8762 = vmatprep.subr.mxu0 0.0
        %8763 = vmatpush1.msra.mxu0 0.0
        %8764 = vmatprep.subr.mxu0 0.0
        %8765 = vmatpush1.msra.mxu0 0.0
        %8766 = vmatprep.subr.mxu0 0.0
        %8767 = vmatpush1.msra.mxu0 0.0
        %8768 = vmatprep.subr.mxu0 0.0
        %8769 = vmatpush1.msra.mxu0 0.0
        %8770 = vmatprep.subr.mxu0 0.0
        %8771 = vmatpush1.msra.mxu0 0.0
        %8772 = vmatprep.subr.mxu0 0.0
        %8773 = vmatpush1.msra.mxu0 0.0
        %8774 = vmatprep.subr.mxu0 0.0
        %8775 = vmatpush1.msra.mxu0 0.0
        %8776 = vmatprep.mubr.f32.mxu0 0.0
        %8777 = vmatmul.mubr.f32.gmra.mrb[0].mxu0 %v8263
        %v8778 = vpop.f32.mrb[0].mxu0
        %v8779 = vadd.f32 0.0, %v8778
        %v8780 = vpop.f32.mrb[0].mxu0
        %8781 = vdwg.mxu0
        %v8783 = vsel %vm8261, %v8779, 0
        %8785 = vmatprep.subr.mxu0 0.0
        %8786 = vmatpush1.msra.mxu0 %v8343
        %8787 = vmatprep.subr.mxu0 0.0
        %8788 = vmatpush1.msra.mxu0 0.0
        %8789 = vmatprep.subr.mxu0 0.0
        %8790 = vmatpush1.msra.mxu0 0.0
        %8791 = vmatprep.subr.mxu0 0.0
        %8792 = vmatpush1.msra.mxu0 0.0
        %8793 = vmatprep.subr.mxu0 0.0
        %8794 = vmatpush1.msra.mxu0 0.0
        %8795 = vmatprep.subr.mxu0 0.0
        %8796 = vmatpush1.msra.mxu0 0.0
        %8797 = vmatprep.subr.mxu0 0.0
        %8798 = vmatpush1.msra.mxu0 0.0
        %8799 = vmatprep.subr.mxu0 0.0
        %8800 = vmatpush1.msra.mxu0 0.0
        %8801 = vmatprep.subr.mxu0 0.0
        %8802 = vmatpush1.msra.mxu0 0.0
        %8803 = vmatprep.subr.mxu0 0.0
        %8804 = vmatpush1.msra.mxu0 0.0
        %8805 = vmatprep.subr.mxu0 0.0
        %8806 = vmatpush1.msra.mxu0 0.0
        %8807 = vmatprep.subr.mxu0 0.0
        %8808 = vmatpush1.msra.mxu0 0.0
        %8809 = vmatprep.subr.mxu0 0.0
        %8810 = vmatpush1.msra.mxu0 0.0
        %8811 = vmatprep.subr.mxu0 0.0
        %8812 = vmatpush1.msra.mxu0 0.0
        %8813 = vmatprep.subr.mxu0 0.0
        %8814 = vmatpush1.msra.mxu0 0.0
        %8815 = vmatprep.subr.mxu0 0.0
        %8816 = vmatpush1.msra.mxu0 0.0
        %8817 = vmatprep.subr.mxu0 0.0
        %8818 = vmatpush1.msra.mxu0 0.0
        %8819 = vmatprep.subr.mxu0 0.0
        %8820 = vmatpush1.msra.mxu0 0.0
        %8821 = vmatprep.subr.mxu0 0.0
        %8822 = vmatpush1.msra.mxu0 0.0
        %8823 = vmatprep.subr.mxu0 0.0
        %8824 = vmatpush1.msra.mxu0 0.0
        %8825 = vmatprep.subr.mxu0 0.0
        %8826 = vmatpush1.msra.mxu0 0.0
        %8827 = vmatprep.subr.mxu0 0.0
        %8828 = vmatpush1.msra.mxu0 0.0
        %8829 = vmatprep.subr.mxu0 0.0
        %8830 = vmatpush1.msra.mxu0 0.0
        %8831 = vmatprep.subr.mxu0 0.0
        %8832 = vmatpush1.msra.mxu0 0.0
        %8833 = vmatprep.subr.mxu0 0.0
        %8834 = vmatpush1.msra.mxu0 0.0
        %8835 = vmatprep.subr.mxu0 0.0
        %8836 = vmatpush1.msra.mxu0 0.0
        %8837 = vmatprep.subr.mxu0 0.0
        %8838 = vmatpush1.msra.mxu0 0.0
        %8839 = vmatprep.subr.mxu0 0.0
        %8840 = vmatpush1.msra.mxu0 0.0
        %8841 = vmatprep.subr.mxu0 0.0
        %8842 = vmatpush1.msra.mxu0 0.0
        %8843 = vmatprep.subr.mxu0 0.0
        %8844 = vmatpush1.msra.mxu0 0.0
        %8845 = vmatprep.subr.mxu0 0.0
        %8846 = vmatpush1.msra.mxu0 0.0
        %8847 = vmatprep.subr.mxu0 0.0
        %8848 = vmatpush1.msra.mxu0 0.0
        %8849 = vmatprep.mubr.f32.mxu0 0.0
        %8850 = vmatmul.mubr.f32.gmra.mrb[0].mxu0 %v8783
        %v8851 = vpop.f32.mrb[0].mxu0
        %v8852 = vadd.f32 0.0, %v8851
        %v8853 = vpop.f32.mrb[0].mxu0
        %8854 = vdwg.mxu0
        %v8855 = vmul.f32 %v8113, %v8256
        %v8857 = vsel %vm8265, %v8855, 0
        %8859 = vmatprep.subr.mxu0 0.0
        %8860 = vmatpush1.msra.mxu0 %v8857
        %8861 = vmatprep.subr.mxu0 0.0
        %8862 = vmatpush1.msra.mxu0 0.0
        %8863 = vmatprep.subr.mxu0 0.0
        %8864 = vmatpush1.msra.mxu0 0.0
        %8865 = vmatprep.subr.mxu0 0.0
        %8866 = vmatpush1.msra.mxu0 0.0
        %8867 = vmatprep.subr.mxu0 0.0
        %8868 = vmatpush1.msra.mxu0 0.0
        %8869 = vmatprep.subr.mxu0 0.0
        %8870 = vmatpush1.msra.mxu0 0.0
        %8871 = vmatprep.subr.mxu0 0.0
        %8872 = vmatpush1.msra.mxu0 0.0
        %8873 = vmatprep.subr.mxu0 0.0
        %8874 = vmatpush1.msra.mxu0 0.0
        %8875 = vmatprep.subr.mxu0 0.0
        %8876 = vmatpush1.msra.mxu0 0.0
        %8877 = vmatprep.subr.mxu0 0.0
        %8878 = vmatpush1.msra.mxu0 0.0
        %8879 = vmatprep.subr.mxu0 0.0
        %8880 = vmatpush1.msra.mxu0 0.0
        %8881 = vmatprep.subr.mxu0 0.0
        %8882 = vmatpush1.msra.mxu0 0.0
        %8883 = vmatprep.subr.mxu0 0.0
        %8884 = vmatpush1.msra.mxu0 0.0
        %8885 = vmatprep.subr.mxu0 0.0
        %8886 = vmatpush1.msra.mxu0 0.0
        %8887 = vmatprep.subr.mxu0 0.0
        %8888 = vmatpush1.msra.mxu0 0.0
        %8889 = vmatprep.subr.mxu0 0.0
        %8890 = vmatpush1.msra.mxu0 0.0
        %8891 = vmatprep.subr.mxu0 0.0
        %8892 = vmatpush1.msra.mxu0 0.0
        %8893 = vmatprep.subr.mxu0 0.0
        %8894 = vmatpush1.msra.mxu0 0.0
        %8895 = vmatprep.subr.mxu0 0.0
        %8896 = vmatpush1.msra.mxu0 0.0
        %8897 = vmatprep.subr.mxu0 0.0
        %8898 = vmatpush1.msra.mxu0 0.0
        %8899 = vmatprep.subr.mxu0 0.0
        %8900 = vmatpush1.msra.mxu0 0.0
        %8901 = vmatprep.subr.mxu0 0.0
        %8902 = vmatpush1.msra.mxu0 0.0
        %8903 = vmatprep.subr.mxu0 0.0
        %8904 = vmatpush1.msra.mxu0 0.0
        %8905 = vmatprep.subr.mxu0 0.0
        %8906 = vmatpush1.msra.mxu0 0.0
        %8907 = vmatprep.subr.mxu0 0.0
        %8908 = vmatpush1.msra.mxu0 0.0
        %8909 = vmatprep.subr.mxu0 0.0
        %8910 = vmatpush1.msra.mxu0 0.0
        %8911 = vmatprep.subr.mxu0 0.0
        %8912 = vmatpush1.msra.mxu0 0.0
        %8913 = vmatprep.subr.mxu0 0.0
        %8914 = vmatpush1.msra.mxu0 0.0
        %8915 = vmatprep.subr.mxu0 0.0
        %8916 = vmatpush1.msra.mxu0 0.0
        %8917 = vmatprep.subr.mxu0 0.0
        %8918 = vmatpush1.msra.mxu0 0.0
        %8919 = vmatprep.subr.mxu0 0.0
        %8920 = vmatpush1.msra.mxu0 0.0
        %8921 = vmatprep.subr.mxu0 0.0
        %8922 = vmatpush1.msra.mxu0 0.0
        %8923 = vmatprep.mubr.f32.mxu0 0.0
        %8924 = vmatmul.mubr.f32.gmra.mrb[0].mxu0 %v8263
        %v8925 = vpop.f32.mrb[0].mxu0
        %v8926 = vadd.f32 0.0, %v8925
        %v8927 = vpop.f32.mrb[0].mxu0
        %8928 = vdwg.mxu0
        %v8930 = vsel %vm8261, %v8926, 0
        %8932 = vmatprep.subr.mxu0 0.0
        %8933 = vmatpush1.msra.mxu0 %v8343
        %8934 = vmatprep.subr.mxu0 0.0
        %8935 = vmatpush1.msra.mxu0 0.0
        %8936 = vmatprep.subr.mxu0 0.0
        %8937 = vmatpush1.msra.mxu0 0.0
        %8938 = vmatprep.subr.mxu0 0.0
        %8939 = vmatpush1.msra.mxu0 0.0
        %8940 = vmatprep.subr.mxu0 0.0
        %8941 = vmatpush1.msra.mxu0 0.0
        %8942 = vmatprep.subr.mxu0 0.0
        %8943 = vmatpush1.msra.mxu0 0.0
        %8944 = vmatprep.subr.mxu0 0.0
        %8945 = vmatpush1.msra.mxu0 0.0
        %8946 = vmatprep.subr.mxu0 0.0
        %8947 = vmatpush1.msra.mxu0 0.0
        %8948 = vmatprep.subr.mxu0 0.0
        %8949 = vmatpush1.msra.mxu0 0.0
        %8950 = vmatprep.subr.mxu0 0.0
        %8951 = vmatpush1.msra.mxu0 0.0
        %8952 = vmatprep.subr.mxu0 0.0
        %8953 = vmatpush1.msra.mxu0 0.0
        %8954 = vmatprep.subr.mxu0 0.0
        %8955 = vmatpush1.msra.mxu0 0.0
        %8956 = vmatprep.subr.mxu0 0.0
        %8957 = vmatpush1.msra.mxu0 0.0
        %8958 = vmatprep.subr.mxu0 0.0
        %8959 = vmatpush1.msra.mxu0 0.0
        %8960 = vmatprep.subr.mxu0 0.0
        %8961 = vmatpush1.msra.mxu0 0.0
        %8962 = vmatprep.subr.mxu0 0.0
        %8963 = vmatpush1.msra.mxu0 0.0
        %8964 = vmatprep.subr.mxu0 0.0
        %8965 = vmatpush1.msra.mxu0 0.0
        %8966 = vmatprep.subr.mxu0 0.0
        %8967 = vmatpush1.msra.mxu0 0.0
        %8968 = vmatprep.subr.mxu0 0.0
        %8969 = vmatpush1.msra.mxu0 0.0
        %8970 = vmatprep.subr.mxu0 0.0
        %8971 = vmatpush1.msra.mxu0 0.0
        %8972 = vmatprep.subr.mxu0 0.0
        %8973 = vmatpush1.msra.mxu0 0.0
        %8974 = vmatprep.subr.mxu0 0.0
        %8975 = vmatpush1.msra.mxu0 0.0
        %8976 = vmatprep.subr.mxu0 0.0
        %8977 = vmatpush1.msra.mxu0 0.0
        %8978 = vmatprep.subr.mxu0 0.0
        %8979 = vmatpush1.msra.mxu0 0.0
        %8980 = vmatprep.subr.mxu0 0.0
        %8981 = vmatpush1.msra.mxu0 0.0
        %8982 = vmatprep.subr.mxu0 0.0
        %8983 = vmatpush1.msra.mxu0 0.0
        %8984 = vmatprep.subr.mxu0 0.0
        %8985 = vmatpush1.msra.mxu0 0.0
        %8986 = vmatprep.subr.mxu0 0.0
        %8987 = vmatpush1.msra.mxu0 0.0
        %8988 = vmatprep.subr.mxu0 0.0
        %8989 = vmatpush1.msra.mxu0 0.0
        %8990 = vmatprep.subr.mxu0 0.0
        %8991 = vmatpush1.msra.mxu0 0.0
        %8992 = vmatprep.subr.mxu0 0.0
        %8993 = vmatpush1.msra.mxu0 0.0
        %8994 = vmatprep.subr.mxu0 0.0
        %8995 = vmatpush1.msra.mxu0 0.0
        %8996 = vmatprep.mubr.f32.mxu0 0.0
        %8997 = vmatmul.mubr.f32.gmra.mrb[0].mxu0 %v8930
        %v8998 = vpop.f32.mrb[0].mxu0
        %v8999 = vadd.f32 0.0, %v8998
        %v9000 = vpop.f32.mrb[0].mxu0
        %9001 = vdwg.mxu0
        %v9002 = vmul.f32 %v8412, %v8412
        %v9003 = vmul.f32 %v8558, %v8558
        %v9004 = vmul.f32 %v8412, %v8558
        %v9005 = vsub.f32 %v8705, %v9002
        %v9006 = vsub.f32 %v8852, %v9003
        %v9007 = vsub.f32 %v8999, %v9004
        %v9008 = vmul.f32 %v9007, 2.0
        %v9009 = vadd.f32 %v9008, 0.0009
        %v9010 = vadd.f32 %v9005, %v9006
        %v9011 = vadd.f32 %v9010, 0.0009
        %v9012 = vmul.f32 %v9004, 2.0
        %v9013 = vadd.f32 %v9012, 0.0001
        %v9014 = vmul.f32 %v9013, %v9009
        %v9015 = vadd.f32 %v9002, %v9003
        %v9016 = vadd.f32 %v9015, 0.0001
        %v9017 = vmul.f32 %v9016, %v9011
        %v9018 = vrcp.pop %v9017
        %v9019 = vmul.f32 %v9014, %v9018
        %vm9020 = vcmask 27648
        %v9021 = vsel %vm9020, %v9019, 0.0
        %9022 = vadd.xlane.f32.xlu0 %v9021
        %v9023 = vpop.xlane.xlu0 %9022
        %v9024 = vsel %vm8265, %v9023, 0.0
        %v9025 = vrot.slane %v9024, 4
        %v9026 = vadd.f32 %v9024, %v9025
        %v9027 = vrot.slane %v9026, 2
        %v9028 = vadd.f32 %v9026, %v9027
        %v9029 = vrot.slane %v9028, 1
        %v9030 = vadd.f32 %v9028, %v9029
        %v9031 = vmul.f32 %v9030, 0.0625
        %v9032 = vadd.f32 %v9031, 1.0
        %v9033 = vmul.f32 %v9032, 0.5
        %v9034 = vmax.f32 %v9033, 1e-12
        %v9035 = vlog2.pop %v9034
        %v9036 = vmul.f32 %v9035, 0.6931472
        %v9037 = vmul.f32 %v9036, 0.1333
        %v9038 = vmul.f32 %v9037, 1.442695
        %v9039 = vpow.pop %v9038
        %v9040 = vmul.f32 %v7967, %v9039
        %v9041 = vlaneseq
        %v9042 = vand.u32 %v9041, 127
        %vm9043 = vcmp.eq.s32.totalorder %v9042, 0
        %v9044 = vsel %vm9043, %v2656, 0.0
        %vm9045 = vcmp.eq.s32.totalorder %v9042, 1
        %v9046 = vsel %vm9045, %v2966, 0.0
        %v9047 = vadd.f32 %v9044, %v9046
        %vm9048 = vcmp.eq.s32.totalorder %v9042, 2
        %v9049 = vsel %vm9048, %v9040, 0.0
        %v9050 = vadd.f32 %v9047, %v9049
        %9051 = vst [vmem:[%s851] sm:$0x1] %v9050
        %p9052 = scmp.lt.s32.totalorder %s43, 1
        %s9053 = scalar_select %p9052, %s43, 1
        %s9054 = scalar_lea.vmem %s20, %s9053
        // Predicated region
        $region157: #{_lambda_.1} parent=99 // pred_check
          %p9055 = pneg %p491
        $region158: #{_lambda_.1} parent=99 // pred_check_branch
          %9057 = sbr.rel (%p9055) target = $region160
        $region159: #{_lambda_.1} parent=99 // pred_region
          _
        $region160: #{_lambda_.1} parent=99 // pred_fallthru
          _
      $region100: #{_lambda_.1} parent=5 // pred_fallthru
        _
      %p9058 = scmp.le.s32.totalorder 2, %s38
      // Predicated region
      $region161: #{_lambda_.1} parent=5 // pred_check
        %p9059 = pneg %p9058
      $region162: #{_lambda_.1} parent=5 // pred_check_branch
        %9061 = sbr.rel (%p9059) target = $region164
      $region163: #{_lambda_.1} parent=5 // pred_region
        %s9062 = ssub.s32 %s38, 2
        // Predicated region
        $region165: #{_lambda_.1} parent=163 // pred_check
          %p9063 = pneg %p497
        $region166: #{_lambda_.1} parent=163 // pred_check_branch
          %9065 = sbr.rel (%p9063) target = $region168
        $region167: #{_lambda_.1} parent=163 // pred_region
          %p9066 = scmp.lt.s32.totalorder %s44, 1
          %s9067 = scalar_select %p9066, %s44, 1
          %s9068 = scalar_lea.vmem %s20, %s9067
        $region168: #{_lambda_.1} parent=163 // pred_fallthru
          _
      $region164: #{_lambda_.1} parent=5 // pred_fallthru
        _
    $region6: #{_lambda_.1} parent=1 // loop_footer
      %s42 = sadd.s32 1, %s38
    $region7: #{_lambda_.1} parent=1 // loop_footer_branch
      %37 = sbr.rel target = $region3
    $region8: #{_lambda_.1} parent=1 // loop_exit
      _
    %9069 = vsyncpa [#allocation3], 1
    %s9070 = scalar_lea.sflag [#allocation3], 1
    %9071 = vsyncpa %s9070, 1
    %9072 = vsyncpa [#allocation5], 1
    %s9073 = scalar_lea.sflag [#allocation5], 1
    %9074 = vsyncpa %s9073, 1
    %9075 = vsyncpa [#allocation8], 1
    %9076 = vsyncpa [#allocation11], 1
    %9077 = vsyncpa [#allocation14], 1
    %9078 = vsyncpa [#allocation17], 1
    %9079 = vsyncpa [#allocation20], 1
    %9080 = vsyncpa [#allocation23], 1

</llo_original>
